<compile_context>
chip_gen: v5e
topology: v5e:2x2
jax: 0.10.0
libtpu: 0.0.40
codegen_flags: <defaults>
</compile_context>

<pallas_src>
import jax
import jax.numpy as jnp
import numpy as np
from jax.experimental import pallas as pl
from jax.experimental.pallas import tpu as pltpu

K = 7              # conv kernel size
PAD = K // 2       # padding = 3
ROWS_TARGET = 128  # target LHS rows per MXU weight push


def _round_up(x, m):
    return (x + m - 1) // m * m


def _fused_kernel(x1_ref, x2_ref, x3_ref,
                  t1_ref, t2_ref, t3_ref,
                  b1_ref, b2_ref, b3_ref,
                  out_ref,
                  pbuf, acc, v3buf):
    """Fused conv1/conv2/conv3 + elementwise epilogues for one batch of B images.

    x*_ref : (B, H, W*C)     lane-dense activations, f32
    t*_ref : (K, W*C, W*C)   block-Toeplitz weights, bf16 (kw taps + W padding folded in)
    b*_ref : (1, W*C)        bias tiled over W, f32
    out_ref: (B, H, W*C)     f32
    pbuf   : (B*S + 8, W*C)  f32 scratch with per-image H halos (S = H+2*PAD rounded to 8)
    acc    : (B*S, W*C)      f32 conv accumulator (VMEM so big row counts never spill)
    v3buf  : (B, H, W*C)     f32 scratch keeping v3 alive across the conv2 stage
    """
    B, H, WC = x1_ref.shape
    ROWS = acc.shape[0]
    S = ROWS // B

    # Zero once per grid step: halo rows are never overwritten afterwards, so
    # all three conv stages reuse the same padded buffer.
    pbuf[...] = jnp.zeros(pbuf.shape, jnp.float32)

    def fill_interior(b, val):
        pbuf[b * S + PAD: b * S + PAD + H, :] = val

    def conv(t_ref, b_ref):
        # K sublane-shifted (B*S, WC) x (WC, WC) bf16 matmuls, f32 accumulation
        # in VMEM.  All B images share each 256-wide weight push; rows landing
        # in inter-image halo positions are garbage and simply never read.
        acc[...] = jnp.dot(pbuf[0:ROWS, :].astype(jnp.bfloat16), t_ref[0],
                           preferred_element_type=jnp.float32) + b_ref[...]
        for kh in range(1, K):
            acc[...] += jnp.dot(pbuf[kh:kh + ROWS, :].astype(jnp.bfloat16),
                                t_ref[kh],
                                preferred_element_type=jnp.float32)

    # ---- stage 1: v1 = conv1(x1); v3 = relu(x2 + v1); v5 = relu(v1 * x3)
    for b in range(B):
        fill_interior(b, x1_ref[b])
    conv(t1_ref, b1_ref)
    for b in range(B):
        v1 = acc[b * S: b * S + H, :]
        v3buf[b] = jnp.maximum(x2_ref[b] + v1, 0.0)
        fill_interior(b, jnp.maximum(v1 * x3_ref[b], 0.0))       # v5

    # ---- stage 2: v6 = conv2(v5); v8 = relu(v3 + v6)
    conv(t2_ref, b2_ref)
    for b in range(B):
        v6 = acc[b * S: b * S + H, :]
        fill_interior(b, jnp.maximum(v3buf[b] + v6, 0.0))         # v8

    # ---- stage 3: v9 = conv3(v8); out = relu(1 + v9)
    conv(t3_ref, b3_ref)
    for b in range(B):
        out_ref[b] = jnp.maximum(1.0 + acc[b * S: b * S + H, :], 0.0)


def _toeplitz_weight(w, out_w):
    """HWIO weights (K, K, Cin, Cout) -> banded block-Toeplitz (K, W*Cin, W*Cout), bf16.

    t[kh, u*Cin + c, q*Cout + o] = w[kh, u - q + PAD, c, o] if the kw index is in
    range, else 0.  The band truncation at the matrix edges realizes the
    W-direction zero padding of the convolution.
    """
    k, _, cin, cout = w.shape
    pad = (k - 1) // 2
    u = jnp.arange(out_w)[:, None]        # input column index
    q = jnp.arange(out_w)[None, :]        # output column index
    kw = u - q + pad
    valid = (kw >= 0) & (kw < k)
    kw_c = jnp.where(valid, kw, 0)
    blocks = w[:, kw_c, :, :]                                   # (K, W, W, Cin, Cout)
    blocks = jnp.where(valid[None, :, :, None, None], blocks, 0.0)
    t = jnp.transpose(blocks, (0, 1, 3, 2, 4)).reshape(k, out_w * cin, out_w * cout)
    return t.astype(jnp.bfloat16)


def prepare_params(params, W, C):
    """One-time preprocessing (hoisted out of the per-call forward path)."""
    (w1, b1), (w2, b2), (w3, b3) = params

    def bias_row(b):
        return jnp.tile(b.reshape(1, C), (1, W)).astype(jnp.float32)

    return (_toeplitz_weight(w1, W), _toeplitz_weight(w2, W), _toeplitz_weight(w3, W),
            bias_row(b1), bias_row(b2), bias_row(b3))


@jax.jit
def model_forward(x1, x2, x3, prep):
    """x1, x2, x3: (N, H, W, C) float32 NHWC.  prep = prepare_params(params, W, C)."""
    t1, t2, t3, bt1, bt2, bt3 = prep
    N, H, W, C = x1.shape
    WC = W * C

    # --- static tiling decisions -------------------------------------------
    S = _round_up(H + 2 * PAD, 8)                  # per-image padded height
    B = max(1, min(N, ROWS_TARGET // max(H, 1)))   # images per grid step
    if N >= 2:
        B = min(B, max(1, N // 2))                 # keep grid >= 2 for v7x's 2 TCs
    while N % B:                                   # avoid a ragged trailing block
        B -= 1
    G = N // B
    ROWS = B * S

    # Free contiguous reshape to the lane-dense (last dim = W*C) layout.
    x1f = x1.reshape(N, H, WC)
    x2f = x2.reshape(N, H, WC)
    x3f = x3.reshape(N, H, WC)

    act_spec = pl.BlockSpec((B, H, WC), lambda g: (g, 0, 0))
    t_spec = pl.BlockSpec((K, WC, WC), lambda g: (0, 0, 0))
    b_spec = pl.BlockSpec((1, WC), lambda g: (0, 0))

    # --- VMEM budget derived from actual buffer sizes -----------------------
    act_bytes = B * H * WC * 4
    w_bytes = K * WC * WC * 2                      # bf16 Toeplitz weights
    scratch_bytes = (ROWS + 8) * WC * 4 + ROWS * WC * 4 + B * H * WC * 4
    need = (4 * 2 * act_bytes                      # x1,x2,x3,out double-buffered
            + 3 * 2 * w_bytes                      # weights (conservatively x2)
            + 3 * 2 * WC * 4                       # biases
            + scratch_bytes)
    vmem_limit = int(min(64 * 1024 * 1024, max(16 * 1024 * 1024, 2 * need)))

    out = pl.pallas_call(
        _fused_kernel,
        out_shape=jax.ShapeDtypeStruct((N, H, WC), jnp.float32),
        grid=(G,),
        in_specs=[act_spec, act_spec, act_spec,
                  t_spec, t_spec, t_spec,
                  b_spec, b_spec, b_spec],
        out_specs=act_spec,
        scratch_shapes=[pltpu.VMEM((ROWS + 8, WC), jnp.float32),   # padded conv input
                        pltpu.VMEM((ROWS, WC), jnp.float32),       # conv accumulator
                        pltpu.VMEM((B, H, WC), jnp.float32)],      # v3 carry
        compiler_params=pltpu.CompilerParams(
            dimension_semantics=("parallel",),
            vmem_limit_bytes=vmem_limit),
    )(x1f, x2f, x3f, t1, t2, t3, bt1, bt2, bt3)
    return out.reshape(N, H, W, C)


def _ref_forward(x1, x2, x3, params, conv_dtype=jnp.float32):
    """Pure-JAX reference mirroring the PyTorch forward.

    conv_dtype=bfloat16 reproduces the kernel's conv-input/weight quantization
    (with f32 accumulation) for a tight comparison; float32 gives the exact
    module semantics.
    """
    def q(v):
        return v.astype(conv_dtype).astype(jnp.float32)

    def conv(x, w, b):
        y = jax.lax.conv_general_dilated(
            q(x), q(w), window_strides=(1, 1),
            padding=((PAD, PAD), (PAD, PAD)),
            dimension_numbers=("NHWC", "HWIO", "NHWC"),
            precision=jax.lax.Precision.HIGHEST)
        return y + b.reshape(1, 1, 1, -1)

    (w1, b1), (w2, b2), (w3, b3) = params
    v1 = conv(x1, w1, b1)
    v3 = jax.nn.relu(x2 + v1)
    v5 = jax.nn.relu(v1 * x3)
    v6 = conv(v5, w2, b2)
    v8 = jax.nn.relu(v3 + v6)
    v9 = conv(v8, w3, b3)
    return jax.nn.relu(1.0 + v9)


if __name__ == "__main__":
    # Small shapes consistent with the module (the convs require C=16).
    N, H, W, C = 4, 32, 16, 16

    key = jax.random.PRNGKey(0)
    ks = jax.random.split(key, 9)

    x1 = jax.random.normal(ks[0], (N, H, W, C), jnp.float32)
    x2 = jax.random.normal(ks[1], (N, H, W, C), jnp.float32)
    x3 = jax.random.normal(ks[2], (N, H, W, C), jnp.float32)

    def make_conv_params(kw, kb):
        # Deterministic synthetic init (shapes match nn.Conv2d(16, 16, 7)).
        w = jax.random.normal(kw, (K, K, C, C), jnp.float32) * 0.05
        b = jax.random.normal(kb, (1, C), jnp.float32) * 0.05
        return w, b

    params = (make_conv_params(ks[3], ks[4]),
              make_conv_params(ks[5], ks[6]),
              make_conv_params(ks[7], ks[8]))

    prep = prepare_params(params, W, C)     # one-time, hoisted out of forward

    out = jax.block_until_ready(model_forward(x1, x2, x3, prep))

    # Tight check vs. a reference with the same bf16 conv-input/weight quantization.
    ref_bf16 = jax.block_until_ready(
        _ref_forward(x1, x2, x3, params, conv_dtype=jnp.bfloat16))
    np.testing.assert_allclose(np.asarray(out), np.asarray(ref_bf16),
                               rtol=1e-2, atol=1e-2)

    # Loose sanity check vs. the exact f32 module semantics (bf16 MXU inputs).
    ref_f32 = jax.block_until_ready(_ref_forward(x1, x2, x3, params))
    np.testing.assert_allclose(np.asarray(out), np.asarray(ref_f32),
                               rtol=1e-1, atol=2e-1)

    print("KERNEL_OK")
</pallas_src>

<mosaic_0001>
module attributes {stable_mosaic.version = 11 : i64} {
  func.func @_fused_kernel(%arg0: i32, %arg1: memref<2x32x256xf32, #tpu.memory_space<vmem>>, %arg2: memref<2x32x256xf32, #tpu.memory_space<vmem>>, %arg3: memref<2x32x256xf32, #tpu.memory_space<vmem>>, %arg4: memref<7x256x256xbf16, #tpu.memory_space<vmem>>, %arg5: memref<7x256x256xbf16, #tpu.memory_space<vmem>>, %arg6: memref<7x256x256xbf16, #tpu.memory_space<vmem>>, %arg7: memref<1x256xf32, #tpu.memory_space<vmem>>, %arg8: memref<1x256xf32, #tpu.memory_space<vmem>>, %arg9: memref<1x256xf32, #tpu.memory_space<vmem>>, %arg10: memref<2x32x256xf32, #tpu.memory_space<vmem>>, %arg11: memref<88x256xf32, #tpu.memory_space<vmem>>, %arg12: memref<80x256xf32, #tpu.memory_space<vmem>>, %arg13: memref<2x32x256xf32, #tpu.memory_space<vmem>>) attributes {dimension_semantics = [#tpu.dimension_semantics<parallel>], iteration_bounds = array<i64: 2>, scalar_prefetch = 0 : i64, scratch_operands = 3 : i64, tpu.core_type = #tpu.core_type<tc>, window_params = [{transform_indices = @transform_0, window_bounds = array<i64: 2, 32, 256>}, {transform_indices = @transform_1, window_bounds = array<i64: 2, 32, 256>}, {transform_indices = @transform_2, window_bounds = array<i64: 2, 32, 256>}, {pipeline_mode = #tpu.pipeline_mode<synchronous>, transform_indices = @transform_3, window_bounds = array<i64: 7, 256, 256>}, {pipeline_mode = #tpu.pipeline_mode<synchronous>, transform_indices = @transform_4, window_bounds = array<i64: 7, 256, 256>}, {pipeline_mode = #tpu.pipeline_mode<synchronous>, transform_indices = @transform_5, window_bounds = array<i64: 7, 256, 256>}, {pipeline_mode = #tpu.pipeline_mode<synchronous>, transform_indices = @transform_6, window_bounds = array<i64: 1, 256>}, {pipeline_mode = #tpu.pipeline_mode<synchronous>, transform_indices = @transform_7, window_bounds = array<i64: 1, 256>}, {pipeline_mode = #tpu.pipeline_mode<synchronous>, transform_indices = @transform_8, window_bounds = array<i64: 1, 256>}, {transform_indices = @transform_9, window_bounds = array<i64: 2, 32, 256>}]} {
    %cst = arith.constant 0.000000e+00 : f32
    %0 = vector.broadcast %cst : f32 to vector<88x256xf32>
    %c0 = arith.constant 0 : index
    %c0_0 = arith.constant 0 : index
    %1 = vector.load %arg11[%c0, %c0_0] : memref<88x256xf32, #tpu.memory_space<vmem>>, vector<88x256xf32>
    tpu.vector_store %arg11[%c0, %c0_0], %0 {strides = array<i32>} : memref<88x256xf32, #tpu.memory_space<vmem>>, vector<88x256xf32>,
    %c0_1 = arith.constant 0 : index
    %c0_2 = arith.constant 0 : index
    %c0_3 = arith.constant 0 : index
    %2 = vector.load %arg1[%c0_1, %c0_2, %c0_3] : memref<2x32x256xf32, #tpu.memory_space<vmem>>, vector<1x32x256xf32>
    %3 = vector.shape_cast %2 : vector<1x32x256xf32> to vector<32x256xf32>
    %c3 = arith.constant 3 : index
    %c0_4 = arith.constant 0 : index
    %4 = vector.load %arg11[%c3, %c0_4] : memref<88x256xf32, #tpu.memory_space<vmem>>, vector<32x256xf32>
    tpu.vector_store %arg11[%c3, %c0_4], %3 {strides = array<i32>} : memref<88x256xf32, #tpu.memory_space<vmem>>, vector<32x256xf32>,
    %c1 = arith.constant 1 : index
    %c0_5 = arith.constant 0 : index
    %c0_6 = arith.constant 0 : index
    %5 = vector.load %arg1[%c1, %c0_5, %c0_6] : memref<2x32x256xf32, #tpu.memory_space<vmem>>, vector<1x32x256xf32>
    %6 = vector.shape_cast %5 : vector<1x32x256xf32> to vector<32x256xf32>
    %c43 = arith.constant 43 : index
    %c0_7 = arith.constant 0 : index
    %7 = vector.load %arg11[%c43, %c0_7] : memref<88x256xf32, #tpu.memory_space<vmem>>, vector<32x256xf32>
    tpu.vector_store %arg11[%c43, %c0_7], %6 {strides = array<i32>} : memref<88x256xf32, #tpu.memory_space<vmem>>, vector<32x256xf32>,
    %c0_8 = arith.constant 0 : index
    %c0_9 = arith.constant 0 : index
    %8 = vector.load %arg11[%c0_8, %c0_9] : memref<88x256xf32, #tpu.memory_space<vmem>>, vector<80x256xf32>
    %9 = arith.truncf %8 : vector<80x256xf32> to vector<80x256xbf16>
    %c0_10 = arith.constant 0 : index
    %c0_11 = arith.constant 0 : index
    %c0_12 = arith.constant 0 : index
    %10 = vector.load %arg4[%c0_10, %c0_11, %c0_12] : memref<7x256x256xbf16, #tpu.memory_space<vmem>>, vector<1x256x256xbf16>
    %11 = vector.shape_cast %10 : vector<1x256x256xbf16> to vector<256x256xbf16>
    %cst_13 = arith.constant dense<0.000000e+00> : vector<80x256xf32>
    %12 = tpu.matmul %9, %11, %cst_13 {dimension_numbers = #tpu.dot_dimension_numbers<[1], [0], [0], [1], [0, 0, 1, 1], [], []>} : vector<80x256xbf16>, vector<256x256xbf16>, vector<80x256xf32> -> vector<80x256xf32>
    %c0_14 = arith.constant 0 : index
    %c0_15 = arith.constant 0 : index
    %13 = vector.load %arg7[%c0_14, %c0_15] : memref<1x256xf32, #tpu.memory_space<vmem>>, vector<1x256xf32>
    %14 = vector.broadcast %13 : vector<1x256xf32> to vector<80x256xf32>
    %15 = arith.addf %12, %14 : vector<80x256xf32>
    %c0_16 = arith.constant 0 : index
    %c0_17 = arith.constant 0 : index
    %16 = vector.load %arg12[%c0_16, %c0_17] : memref<80x256xf32, #tpu.memory_space<vmem>>, vector<80x256xf32>
    tpu.vector_store %arg12[%c0_16, %c0_17], %15 {strides = array<i32>} : memref<80x256xf32, #tpu.memory_space<vmem>>, vector<80x256xf32>,
    %c0_18 = arith.constant 0 : index
    %c0_19 = arith.constant 0 : index
    %17 = vector.load %arg12[%c0_18, %c0_19] : memref<80x256xf32, #tpu.memory_space<vmem>>, vector<80x256xf32>
    %c1_20 = arith.constant 1 : index
    %c0_21 = arith.constant 0 : index
    %18 = vector.load %arg11[%c1_20, %c0_21] : memref<88x256xf32, #tpu.memory_space<vmem>>, vector<80x256xf32>
    %19 = arith.truncf %18 : vector<80x256xf32> to vector<80x256xbf16>
    %c1_22 = arith.constant 1 : index
    %c0_23 = arith.constant 0 : index
    %c0_24 = arith.constant 0 : index
    %20 = vector.load %arg4[%c1_22, %c0_23, %c0_24] : memref<7x256x256xbf16, #tpu.memory_space<vmem>>, vector<1x256x256xbf16>
    %21 = vector.shape_cast %20 : vector<1x256x256xbf16> to vector<256x256xbf16>
    %cst_25 = arith.constant dense<0.000000e+00> : vector<80x256xf32>
    %22 = tpu.matmul %19, %21, %cst_25 {dimension_numbers = #tpu.dot_dimension_numbers<[1], [0], [0], [1], [0, 0, 1, 1], [], []>} : vector<80x256xbf16>, vector<256x256xbf16>, vector<80x256xf32> -> vector<80x256xf32>
    %23 = arith.addf %17, %22 : vector<80x256xf32>
    %c0_26 = arith.constant 0 : index
    %c0_27 = arith.constant 0 : index
    %24 = vector.load %arg12[%c0_26, %c0_27] : memref<80x256xf32, #tpu.memory_space<vmem>>, vector<80x256xf32>
    tpu.vector_store %arg12[%c0_26, %c0_27], %23 {strides = array<i32>} : memref<80x256xf32, #tpu.memory_space<vmem>>, vector<80x256xf32>,
    %c0_28 = arith.constant 0 : index
    %c0_29 = arith.constant 0 : index
    %25 = vector.load %arg12[%c0_28, %c0_29] : memref<80x256xf32, #tpu.memory_space<vmem>>, vector<80x256xf32>
    %c2 = arith.constant 2 : index
    %c0_30 = arith.constant 0 : index
    %26 = vector.load %arg11[%c2, %c0_30] : memref<88x256xf32, #tpu.memory_space<vmem>>, vector<80x256xf32>
    %27 = arith.truncf %26 : vector<80x256xf32> to vector<80x256xbf16>
    %c2_31 = arith.constant 2 : index
    %c0_32 = arith.constant 0 : index
    %c0_33 = arith.constant 0 : index
    %28 = vector.load %arg4[%c2_31, %c0_32, %c0_33] : memref<7x256x256xbf16, #tpu.memory_space<vmem>>, vector<1x256x256xbf16>
    %29 = vector.shape_cast %28 : vector<1x256x256xbf16> to vector<256x256xbf16>
    %cst_34 = arith.constant dense<0.000000e+00> : vector<80x256xf32>
    %30 = tpu.matmul %27, %29, %cst_34 {dimension_numbers = #tpu.dot_dimension_numbers<[1], [0], [0], [1], [0, 0, 1, 1], [], []>} : vector<80x256xbf16>, vector<256x256xbf16>, vector<80x256xf32> -> vector<80x256xf32>
    %31 = arith.addf %25, %30 : vector<80x256xf32>
    %c0_35 = arith.constant 0 : index
    %c0_36 = arith.constant 0 : index
    %32 = vector.load %arg12[%c0_35, %c0_36] : memref<80x256xf32, #tpu.memory_space<vmem>>, vector<80x256xf32>
    tpu.vector_store %arg12[%c0_35, %c0_36], %31 {strides = array<i32>} : memref<80x256xf32, #tpu.memory_space<vmem>>, vector<80x256xf32>,
    %c0_37 = arith.constant 0 : index
    %c0_38 = arith.constant 0 : index
    %33 = vector.load %arg12[%c0_37, %c0_38] : memref<80x256xf32, #tpu.memory_space<vmem>>, vector<80x256xf32>
    %c3_39 = arith.constant 3 : index
    %c0_40 = arith.constant 0 : index
    %34 = vector.load %arg11[%c3_39, %c0_40] : memref<88x256xf32, #tpu.memory_space<vmem>>, vector<80x256xf32>
    %35 = arith.truncf %34 : vector<80x256xf32> to vector<80x256xbf16>
    %c3_41 = arith.constant 3 : index
    %c0_42 = arith.constant 0 : index
    %c0_43 = arith.constant 0 : index
    %36 = vector.load %arg4[%c3_41, %c0_42, %c0_43] : memref<7x256x256xbf16, #tpu.memory_space<vmem>>, vector<1x256x256xbf16>
    %37 = vector.shape_cast %36 : vector<1x256x256xbf16> to vector<256x256xbf16>
    %cst_44 = arith.constant dense<0.000000e+00> : vector<80x256xf32>
    %38 = tpu.matmul %35, %37, %cst_44 {dimension_numbers = #tpu.dot_dimension_numbers<[1], [0], [0], [1], [0, 0, 1, 1], [], []>} : vector<80x256xbf16>, vector<256x256xbf16>, vector<80x256xf32> -> vector<80x256xf32>
    %39 = arith.addf %33, %38 : vector<80x256xf32>
    %c0_45 = arith.constant 0 : index
    %c0_46 = arith.constant 0 : index
    %40 = vector.load %arg12[%c0_45, %c0_46] : memref<80x256xf32, #tpu.memory_space<vmem>>, vector<80x256xf32>
    tpu.vector_store %arg12[%c0_45, %c0_46], %39 {strides = array<i32>} : memref<80x256xf32, #tpu.memory_space<vmem>>, vector<80x256xf32>,
    %c0_47 = arith.constant 0 : index
    %c0_48 = arith.constant 0 : index
    %41 = vector.load %arg12[%c0_47, %c0_48] : memref<80x256xf32, #tpu.memory_space<vmem>>, vector<80x256xf32>
    %c4 = arith.constant 4 : index
    %c0_49 = arith.constant 0 : index
    %42 = vector.load %arg11[%c4, %c0_49] : memref<88x256xf32, #tpu.memory_space<vmem>>, vector<80x256xf32>
    %43 = arith.truncf %42 : vector<80x256xf32> to vector<80x256xbf16>
    %c4_50 = arith.constant 4 : index
    %c0_51 = arith.constant 0 : index
    %c0_52 = arith.constant 0 : index
    %44 = vector.load %arg4[%c4_50, %c0_51, %c0_52] : memref<7x256x256xbf16, #tpu.memory_space<vmem>>, vector<1x256x256xbf16>
    %45 = vector.shape_cast %44 : vector<1x256x256xbf16> to vector<256x256xbf16>
    %cst_53 = arith.constant dense<0.000000e+00> : vector<80x256xf32>
    %46 = tpu.matmul %43, %45, %cst_53 {dimension_numbers = #tpu.dot_dimension_numbers<[1], [0], [0], [1], [0, 0, 1, 1], [], []>} : vector<80x256xbf16>, vector<256x256xbf16>, vector<80x256xf32> -> vector<80x256xf32>
    %47 = arith.addf %41, %46 : vector<80x256xf32>
    %c0_54 = arith.constant 0 : index
    %c0_55 = arith.constant 0 : index
    %48 = vector.load %arg12[%c0_54, %c0_55] : memref<80x256xf32, #tpu.memory_space<vmem>>, vector<80x256xf32>
    tpu.vector_store %arg12[%c0_54, %c0_55], %47 {strides = array<i32>} : memref<80x256xf32, #tpu.memory_space<vmem>>, vector<80x256xf32>,
    %c0_56 = arith.constant 0 : index
    %c0_57 = arith.constant 0 : index
    %49 = vector.load %arg12[%c0_56, %c0_57] : memref<80x256xf32, #tpu.memory_space<vmem>>, vector<80x256xf32>
    %c5 = arith.constant 5 : index
    %c0_58 = arith.constant 0 : index
    %50 = vector.load %arg11[%c5, %c0_58] : memref<88x256xf32, #tpu.memory_space<vmem>>, vector<80x256xf32>
    %51 = arith.truncf %50 : vector<80x256xf32> to vector<80x256xbf16>
    %c5_59 = arith.constant 5 : index
    %c0_60 = arith.constant 0 : index
    %c0_61 = arith.constant 0 : index
    %52 = vector.load %arg4[%c5_59, %c0_60, %c0_61] : memref<7x256x256xbf16, #tpu.memory_space<vmem>>, vector<1x256x256xbf16>
    %53 = vector.shape_cast %52 : vector<1x256x256xbf16> to vector<256x256xbf16>
    %cst_62 = arith.constant dense<0.000000e+00> : vector<80x256xf32>
    %54 = tpu.matmul %51, %53, %cst_62 {dimension_numbers = #tpu.dot_dimension_numbers<[1], [0], [0], [1], [0, 0, 1, 1], [], []>} : vector<80x256xbf16>, vector<256x256xbf16>, vector<80x256xf32> -> vector<80x256xf32>
    %55 = arith.addf %49, %54 : vector<80x256xf32>
    %c0_63 = arith.constant 0 : index
    %c0_64 = arith.constant 0 : index
    %56 = vector.load %arg12[%c0_63, %c0_64] : memref<80x256xf32, #tpu.memory_space<vmem>>, vector<80x256xf32>
    tpu.vector_store %arg12[%c0_63, %c0_64], %55 {strides = array<i32>} : memref<80x256xf32, #tpu.memory_space<vmem>>, vector<80x256xf32>,
    %c0_65 = arith.constant 0 : index
    %c0_66 = arith.constant 0 : index
    %57 = vector.load %arg12[%c0_65, %c0_66] : memref<80x256xf32, #tpu.memory_space<vmem>>, vector<80x256xf32>
    %c6 = arith.constant 6 : index
    %c0_67 = arith.constant 0 : index
    %58 = vector.load %arg11[%c6, %c0_67] : memref<88x256xf32, #tpu.memory_space<vmem>>, vector<80x256xf32>
    %59 = arith.truncf %58 : vector<80x256xf32> to vector<80x256xbf16>
    %c6_68 = arith.constant 6 : index
    %c0_69 = arith.constant 0 : index
    %c0_70 = arith.constant 0 : index
    %60 = vector.load %arg4[%c6_68, %c0_69, %c0_70] : memref<7x256x256xbf16, #tpu.memory_space<vmem>>, vector<1x256x256xbf16>
    %61 = vector.shape_cast %60 : vector<1x256x256xbf16> to vector<256x256xbf16>
    %cst_71 = arith.constant dense<0.000000e+00> : vector<80x256xf32>
    %62 = tpu.matmul %59, %61, %cst_71 {dimension_numbers = #tpu.dot_dimension_numbers<[1], [0], [0], [1], [0, 0, 1, 1], [], []>} : vector<80x256xbf16>, vector<256x256xbf16>, vector<80x256xf32> -> vector<80x256xf32>
    %63 = arith.addf %57, %62 : vector<80x256xf32>
    %c0_72 = arith.constant 0 : index
    %c0_73 = arith.constant 0 : index
    %64 = vector.load %arg12[%c0_72, %c0_73] : memref<80x256xf32, #tpu.memory_space<vmem>>, vector<80x256xf32>
    tpu.vector_store %arg12[%c0_72, %c0_73], %63 {strides = array<i32>} : memref<80x256xf32, #tpu.memory_space<vmem>>, vector<80x256xf32>,
    %c0_74 = arith.constant 0 : index
    %c0_75 = arith.constant 0 : index
    %65 = vector.load %arg12[%c0_74, %c0_75] : memref<80x256xf32, #tpu.memory_space<vmem>>, vector<32x256xf32>
    %c0_76 = arith.constant 0 : index
    %c0_77 = arith.constant 0 : index
    %c0_78 = arith.constant 0 : index
    %66 = vector.load %arg2[%c0_76, %c0_77, %c0_78] : memref<2x32x256xf32, #tpu.memory_space<vmem>>, vector<1x32x256xf32>
    %67 = vector.shape_cast %66 : vector<1x32x256xf32> to vector<32x256xf32>
    %68 = arith.addf %67, %65 : vector<32x256xf32>
    %cst_79 = arith.constant 0.000000e+00 : f32
    %69 = vector.broadcast %cst_79 : f32 to vector<32x256xf32>
    %70 = arith.maximumf %68, %69 : vector<32x256xf32>
    %c0_80 = arith.constant 0 : index
    %c0_81 = arith.constant 0 : index
    %c0_82 = arith.constant 0 : index
    %71 = vector.load %arg13[%c0_80, %c0_81, %c0_82] : memref<2x32x256xf32, #tpu.memory_space<vmem>>, vector<1x32x256xf32>
    %72 = vector.shape_cast %71 : vector<1x32x256xf32> to vector<32x256xf32>
    %73 = vector.shape_cast %70 : vector<32x256xf32> to vector<1x32x256xf32>
    tpu.vector_store %arg13[%c0_80, %c0_81, %c0_82], %73 {strides = array<i32>} : memref<2x32x256xf32, #tpu.memory_space<vmem>>, vector<1x32x256xf32>,
    %c0_83 = arith.constant 0 : index
    %c0_84 = arith.constant 0 : index
    %c0_85 = arith.constant 0 : index
    %74 = vector.load %arg3[%c0_83, %c0_84, %c0_85] : memref<2x32x256xf32, #tpu.memory_space<vmem>>, vector<1x32x256xf32>
    %75 = vector.shape_cast %74 : vector<1x32x256xf32> to vector<32x256xf32>
    %76 = arith.mulf %65, %75 : vector<32x256xf32>
    %cst_86 = arith.constant 0.000000e+00 : f32
    %77 = vector.broadcast %cst_86 : f32 to vector<32x256xf32>
    %78 = arith.maximumf %76, %77 : vector<32x256xf32>
    %c3_87 = arith.constant 3 : index
    %c0_88 = arith.constant 0 : index
    %79 = vector.load %arg11[%c3_87, %c0_88] : memref<88x256xf32, #tpu.memory_space<vmem>>, vector<32x256xf32>
    tpu.vector_store %arg11[%c3_87, %c0_88], %78 {strides = array<i32>} : memref<88x256xf32, #tpu.memory_space<vmem>>, vector<32x256xf32>,
    %c40 = arith.constant 40 : index
    %c0_89 = arith.constant 0 : index
    %80 = vector.load %arg12[%c40, %c0_89] : memref<80x256xf32, #tpu.memory_space<vmem>>, vector<32x256xf32>
    %c1_90 = arith.constant 1 : index
    %c0_91 = arith.constant 0 : index
    %c0_92 = arith.constant 0 : index
    %81 = vector.load %arg2[%c1_90, %c0_91, %c0_92] : memref<2x32x256xf32, #tpu.memory_space<vmem>>, vector<1x32x256xf32>
    %82 = vector.shape_cast %81 : vector<1x32x256xf32> to vector<32x256xf32>
    %83 = arith.addf %82, %80 : vector<32x256xf32>
    %cst_93 = arith.constant 0.000000e+00 : f32
    %84 = vector.broadcast %cst_93 : f32 to vector<32x256xf32>
    %85 = arith.maximumf %83, %84 : vector<32x256xf32>
    %c1_94 = arith.constant 1 : index
    %c0_95 = arith.constant 0 : index
    %c0_96 = arith.constant 0 : index
    %86 = vector.load %arg13[%c1_94, %c0_95, %c0_96] : memref<2x32x256xf32, #tpu.memory_space<vmem>>, vector<1x32x256xf32>
    %87 = vector.shape_cast %86 : vector<1x32x256xf32> to vector<32x256xf32>
    %88 = vector.shape_cast %85 : vector<32x256xf32> to vector<1x32x256xf32>
    tpu.vector_store %arg13[%c1_94, %c0_95, %c0_96], %88 {strides = array<i32>} : memref<2x32x256xf32, #tpu.memory_space<vmem>>, vector<1x32x256xf32>,
    %c1_97 = arith.constant 1 : index
    %c0_98 = arith.constant 0 : index
    %c0_99 = arith.constant 0 : index
    %89 = vector.load %arg3[%c1_97, %c0_98, %c0_99] : memref<2x32x256xf32, #tpu.memory_space<vmem>>, vector<1x32x256xf32>
    %90 = vector.shape_cast %89 : vector<1x32x256xf32> to vector<32x256xf32>
    %91 = arith.mulf %80, %90 : vector<32x256xf32>
    %cst_100 = arith.constant 0.000000e+00 : f32
    %92 = vector.broadcast %cst_100 : f32 to vector<32x256xf32>
    %93 = arith.maximumf %91, %92 : vector<32x256xf32>
    %c43_101 = arith.constant 43 : index
    %c0_102 = arith.constant 0 : index
    %94 = vector.load %arg11[%c43_101, %c0_102] : memref<88x256xf32, #tpu.memory_space<vmem>>, vector<32x256xf32>
    tpu.vector_store %arg11[%c43_101, %c0_102], %93 {strides = array<i32>} : memref<88x256xf32, #tpu.memory_space<vmem>>, vector<32x256xf32>,
    %c0_103 = arith.constant 0 : index
    %c0_104 = arith.constant 0 : index
    %95 = vector.load %arg11[%c0_103, %c0_104] : memref<88x256xf32, #tpu.memory_space<vmem>>, vector<80x256xf32>
    %96 = arith.truncf %95 : vector<80x256xf32> to vector<80x256xbf16>
    %c0_105 = arith.constant 0 : index
    %c0_106 = arith.constant 0 : index
    %c0_107 = arith.constant 0 : index
    %97 = vector.load %arg5[%c0_105, %c0_106, %c0_107] : memref<7x256x256xbf16, #tpu.memory_space<vmem>>, vector<1x256x256xbf16>
    %98 = vector.shape_cast %97 : vector<1x256x256xbf16> to vector<256x256xbf16>
    %cst_108 = arith.constant dense<0.000000e+00> : vector<80x256xf32>
    %99 = tpu.matmul %96, %98, %cst_108 {dimension_numbers = #tpu.dot_dimension_numbers<[1], [0], [0], [1], [0, 0, 1, 1], [], []>} : vector<80x256xbf16>, vector<256x256xbf16>, vector<80x256xf32> -> vector<80x256xf32>
    %c0_109 = arith.constant 0 : index
    %c0_110 = arith.constant 0 : index
    %100 = vector.load %arg8[%c0_109, %c0_110] : memref<1x256xf32, #tpu.memory_space<vmem>>, vector<1x256xf32>
    %101 = vector.broadcast %100 : vector<1x256xf32> to vector<80x256xf32>
    %102 = arith.addf %99, %101 : vector<80x256xf32>
    %c0_111 = arith.constant 0 : index
    %c0_112 = arith.constant 0 : index
    %103 = vector.load %arg12[%c0_111, %c0_112] : memref<80x256xf32, #tpu.memory_space<vmem>>, vector<80x256xf32>
    tpu.vector_store %arg12[%c0_111, %c0_112], %102 {strides = array<i32>} : memref<80x256xf32, #tpu.memory_space<vmem>>, vector<80x256xf32>,
    %c0_113 = arith.constant 0 : index
    %c0_114 = arith.constant 0 : index
    %104 = vector.load %arg12[%c0_113, %c0_114] : memref<80x256xf32, #tpu.memory_space<vmem>>, vector<80x256xf32>
    %c1_115 = arith.constant 1 : index
    %c0_116 = arith.constant 0 : index
    %105 = vector.load %arg11[%c1_115, %c0_116] : memref<88x256xf32, #tpu.memory_space<vmem>>, vector<80x256xf32>
    %106 = arith.truncf %105 : vector<80x256xf32> to vector<80x256xbf16>
    %c1_117 = arith.constant 1 : index
    %c0_118 = arith.constant 0 : index
    %c0_119 = arith.constant 0 : index
    %107 = vector.load %arg5[%c1_117, %c0_118, %c0_119] : memref<7x256x256xbf16, #tpu.memory_space<vmem>>, vector<1x256x256xbf16>
    %108 = vector.shape_cast %107 : vector<1x256x256xbf16> to vector<256x256xbf16>
    %cst_120 = arith.constant dense<0.000000e+00> : vector<80x256xf32>
    %109 = tpu.matmul %106, %108, %cst_120 {dimension_numbers = #tpu.dot_dimension_numbers<[1], [0], [0], [1], [0, 0, 1, 1], [], []>} : vector<80x256xbf16>, vector<256x256xbf16>, vector<80x256xf32> -> vector<80x256xf32>
    %110 = arith.addf %104, %109 : vector<80x256xf32>
    %c0_121 = arith.constant 0 : index
    %c0_122 = arith.constant 0 : index
    %111 = vector.load %arg12[%c0_121, %c0_122] : memref<80x256xf32, #tpu.memory_space<vmem>>, vector<80x256xf32>
    tpu.vector_store %arg12[%c0_121, %c0_122], %110 {strides = array<i32>} : memref<80x256xf32, #tpu.memory_space<vmem>>, vector<80x256xf32>,
    %c0_123 = arith.constant 0 : index
    %c0_124 = arith.constant 0 : index
    %112 = vector.load %arg12[%c0_123, %c0_124] : memref<80x256xf32, #tpu.memory_space<vmem>>, vector<80x256xf32>
    %c2_125 = arith.constant 2 : index
    %c0_126 = arith.constant 0 : index
    %113 = vector.load %arg11[%c2_125, %c0_126] : memref<88x256xf32, #tpu.memory_space<vmem>>, vector<80x256xf32>
    %114 = arith.truncf %113 : vector<80x256xf32> to vector<80x256xbf16>
    %c2_127 = arith.constant 2 : index
    %c0_128 = arith.constant 0 : index
    %c0_129 = arith.constant 0 : index
    %115 = vector.load %arg5[%c2_127, %c0_128, %c0_129] : memref<7x256x256xbf16, #tpu.memory_space<vmem>>, vector<1x256x256xbf16>
    %116 = vector.shape_cast %115 : vector<1x256x256xbf16> to vector<256x256xbf16>
    %cst_130 = arith.constant dense<0.000000e+00> : vector<80x256xf32>
    %117 = tpu.matmul %114, %116, %cst_130 {dimension_numbers = #tpu.dot_dimension_numbers<[1], [0], [0], [1], [0, 0, 1, 1], [], []>} : vector<80x256xbf16>, vector<256x256xbf16>, vector<80x256xf32> -> vector<80x256xf32>
    %118 = arith.addf %112, %117 : vector<80x256xf32>
    %c0_131 = arith.constant 0 : index
    %c0_132 = arith.constant 0 : index
    %119 = vector.load %arg12[%c0_131, %c0_132] : memref<80x256xf32, #tpu.memory_space<vmem>>, vector<80x256xf32>
    tpu.vector_store %arg12[%c0_131, %c0_132], %118 {strides = array<i32>} : memref<80x256xf32, #tpu.memory_space<vmem>>, vector<80x256xf32>,
    %c0_133 = arith.constant 0 : index
    %c0_134 = arith.constant 0 : index
    %120 = vector.load %arg12[%c0_133, %c0_134] : memref<80x256xf32, #tpu.memory_space<vmem>>, vector<80x256xf32>
    %c3_135 = arith.constant 3 : index
    %c0_136 = arith.constant 0 : index
    %121 = vector.load %arg11[%c3_135, %c0_136] : memref<88x256xf32, #tpu.memory_space<vmem>>, vector<80x256xf32>
    %122 = arith.truncf %121 : vector<80x256xf32> to vector<80x256xbf16>
    %c3_137 = arith.constant 3 : index
    %c0_138 = arith.constant 0 : index
    %c0_139 = arith.constant 0 : index
    %123 = vector.load %arg5[%c3_137, %c0_138, %c0_139] : memref<7x256x256xbf16, #tpu.memory_space<vmem>>, vector<1x256x256xbf16>
    %124 = vector.shape_cast %123 : vector<1x256x256xbf16> to vector<256x256xbf16>
    %cst_140 = arith.constant dense<0.000000e+00> : vector<80x256xf32>
    %125 = tpu.matmul %122, %124, %cst_140 {dimension_numbers = #tpu.dot_dimension_numbers<[1], [0], [0], [1], [0, 0, 1, 1], [], []>} : vector<80x256xbf16>, vector<256x256xbf16>, vector<80x256xf32> -> vector<80x256xf32>
    %126 = arith.addf %120, %125 : vector<80x256xf32>
    %c0_141 = arith.constant 0 : index
    %c0_142 = arith.constant 0 : index
    %127 = vector.load %arg12[%c0_141, %c0_142] : memref<80x256xf32, #tpu.memory_space<vmem>>, vector<80x256xf32>
    tpu.vector_store %arg12[%c0_141, %c0_142], %126 {strides = array<i32>} : memref<80x256xf32, #tpu.memory_space<vmem>>, vector<80x256xf32>,
    %c0_143 = arith.constant 0 : index
    %c0_144 = arith.constant 0 : index
    %128 = vector.load %arg12[%c0_143, %c0_144] : memref<80x256xf32, #tpu.memory_space<vmem>>, vector<80x256xf32>
    %c4_145 = arith.constant 4 : index
    %c0_146 = arith.constant 0 : index
    %129 = vector.load %arg11[%c4_145, %c0_146] : memref<88x256xf32, #tpu.memory_space<vmem>>, vector<80x256xf32>
    %130 = arith.truncf %129 : vector<80x256xf32> to vector<80x256xbf16>
    %c4_147 = arith.constant 4 : index
    %c0_148 = arith.constant 0 : index
    %c0_149 = arith.constant 0 : index
    %131 = vector.load %arg5[%c4_147, %c0_148, %c0_149] : memref<7x256x256xbf16, #tpu.memory_space<vmem>>, vector<1x256x256xbf16>
    %132 = vector.shape_cast %131 : vector<1x256x256xbf16> to vector<256x256xbf16>
    %cst_150 = arith.constant dense<0.000000e+00> : vector<80x256xf32>
    %133 = tpu.matmul %130, %132, %cst_150 {dimension_numbers = #tpu.dot_dimension_numbers<[1], [0], [0], [1], [0, 0, 1, 1], [], []>} : vector<80x256xbf16>, vector<256x256xbf16>, vector<80x256xf32> -> vector<80x256xf32>
    %134 = arith.addf %128, %133 : vector<80x256xf32>
    %c0_151 = arith.constant 0 : index
    %c0_152 = arith.constant 0 : index
    %135 = vector.load %arg12[%c0_151, %c0_152] : memref<80x256xf32, #tpu.memory_space<vmem>>, vector<80x256xf32>
    tpu.vector_store %arg12[%c0_151, %c0_152], %134 {strides = array<i32>} : memref<80x256xf32, #tpu.memory_space<vmem>>, vector<80x256xf32>,
    %c0_153 = arith.constant 0 : index
    %c0_154 = arith.constant 0 : index
    %136 = vector.load %arg12[%c0_153, %c0_154] : memref<80x256xf32, #tpu.memory_space<vmem>>, vector<80x256xf32>
    %c5_155 = arith.constant 5 : index
    %c0_156 = arith.constant 0 : index
    %137 = vector.load %arg11[%c5_155, %c0_156] : memref<88x256xf32, #tpu.memory_space<vmem>>, vector<80x256xf32>
    %138 = arith.truncf %137 : vector<80x256xf32> to vector<80x256xbf16>
    %c5_157 = arith.constant 5 : index
    %c0_158 = arith.constant 0 : index
    %c0_159 = arith.constant 0 : index
    %139 = vector.load %arg5[%c5_157, %c0_158, %c0_159] : memref<7x256x256xbf16, #tpu.memory_space<vmem>>, vector<1x256x256xbf16>
    %140 = vector.shape_cast %139 : vector<1x256x256xbf16> to vector<256x256xbf16>
    %cst_160 = arith.constant dense<0.000000e+00> : vector<80x256xf32>
    %141 = tpu.matmul %138, %140, %cst_160 {dimension_numbers = #tpu.dot_dimension_numbers<[1], [0], [0], [1], [0, 0, 1, 1], [], []>} : vector<80x256xbf16>, vector<256x256xbf16>, vector<80x256xf32> -> vector<80x256xf32>
    %142 = arith.addf %136, %141 : vector<80x256xf32>
    %c0_161 = arith.constant 0 : index
    %c0_162 = arith.constant 0 : index
    %143 = vector.load %arg12[%c0_161, %c0_162] : memref<80x256xf32, #tpu.memory_space<vmem>>, vector<80x256xf32>
    tpu.vector_store %arg12[%c0_161, %c0_162], %142 {strides = array<i32>} : memref<80x256xf32, #tpu.memory_space<vmem>>, vector<80x256xf32>,
    %c0_163 = arith.constant 0 : index
    %c0_164 = arith.constant 0 : index
    %144 = vector.load %arg12[%c0_163, %c0_164] : memref<80x256xf32, #tpu.memory_space<vmem>>, vector<80x256xf32>
    %c6_165 = arith.constant 6 : index
    %c0_166 = arith.constant 0 : index
    %145 = vector.load %arg11[%c6_165, %c0_166] : memref<88x256xf32, #tpu.memory_space<vmem>>, vector<80x256xf32>
    %146 = arith.truncf %145 : vector<80x256xf32> to vector<80x256xbf16>
    %c6_167 = arith.constant 6 : index
    %c0_168 = arith.constant 0 : index
    %c0_169 = arith.constant 0 : index
    %147 = vector.load %arg5[%c6_167, %c0_168, %c0_169] : memref<7x256x256xbf16, #tpu.memory_space<vmem>>, vector<1x256x256xbf16>
    %148 = vector.shape_cast %147 : vector<1x256x256xbf16> to vector<256x256xbf16>
    %cst_170 = arith.constant dense<0.000000e+00> : vector<80x256xf32>
    %149 = tpu.matmul %146, %148, %cst_170 {dimension_numbers = #tpu.dot_dimension_numbers<[1], [0], [0], [1], [0, 0, 1, 1], [], []>} : vector<80x256xbf16>, vector<256x256xbf16>, vector<80x256xf32> -> vector<80x256xf32>
    %150 = arith.addf %144, %149 : vector<80x256xf32>
    %c0_171 = arith.constant 0 : index
    %c0_172 = arith.constant 0 : index
    %151 = vector.load %arg12[%c0_171, %c0_172] : memref<80x256xf32, #tpu.memory_space<vmem>>, vector<80x256xf32>
    tpu.vector_store %arg12[%c0_171, %c0_172], %150 {strides = array<i32>} : memref<80x256xf32, #tpu.memory_space<vmem>>, vector<80x256xf32>,
    %c0_173 = arith.constant 0 : index
    %c0_174 = arith.constant 0 : index
    %152 = vector.load %arg12[%c0_173, %c0_174] : memref<80x256xf32, #tpu.memory_space<vmem>>, vector<32x256xf32>
    %c0_175 = arith.constant 0 : index
    %c0_176 = arith.constant 0 : index
    %c0_177 = arith.constant 0 : index
    %153 = vector.load %arg13[%c0_175, %c0_176, %c0_177] : memref<2x32x256xf32, #tpu.memory_space<vmem>>, vector<1x32x256xf32>
    %154 = vector.shape_cast %153 : vector<1x32x256xf32> to vector<32x256xf32>
    %155 = arith.addf %154, %152 : vector<32x256xf32>
    %cst_178 = arith.constant 0.000000e+00 : f32
    %156 = vector.broadcast %cst_178 : f32 to vector<32x256xf32>
    %157 = arith.maximumf %155, %156 : vector<32x256xf32>
    %c3_179 = arith.constant 3 : index
    %c0_180 = arith.constant 0 : index
    %158 = vector.load %arg11[%c3_179, %c0_180] : memref<88x256xf32, #tpu.memory_space<vmem>>, vector<32x256xf32>
    tpu.vector_store %arg11[%c3_179, %c0_180], %157 {strides = array<i32>} : memref<88x256xf32, #tpu.memory_space<vmem>>, vector<32x256xf32>,
    %c40_181 = arith.constant 40 : index
    %c0_182 = arith.constant 0 : index
    %159 = vector.load %arg12[%c40_181, %c0_182] : memref<80x256xf32, #tpu.memory_space<vmem>>, vector<32x256xf32>
    %c1_183 = arith.constant 1 : index
    %c0_184 = arith.constant 0 : index
    %c0_185 = arith.constant 0 : index
    %160 = vector.load %arg13[%c1_183, %c0_184, %c0_185] : memref<2x32x256xf32, #tpu.memory_space<vmem>>, vector<1x32x256xf32>
    %161 = vector.shape_cast %160 : vector<1x32x256xf32> to vector<32x256xf32>
    %162 = arith.addf %161, %159 : vector<32x256xf32>
    %cst_186 = arith.constant 0.000000e+00 : f32
    %163 = vector.broadcast %cst_186 : f32 to vector<32x256xf32>
    %164 = arith.maximumf %162, %163 : vector<32x256xf32>
    %c43_187 = arith.constant 43 : index
    %c0_188 = arith.constant 0 : index
    %165 = vector.load %arg11[%c43_187, %c0_188] : memref<88x256xf32, #tpu.memory_space<vmem>>, vector<32x256xf32>
    tpu.vector_store %arg11[%c43_187, %c0_188], %164 {strides = array<i32>} : memref<88x256xf32, #tpu.memory_space<vmem>>, vector<32x256xf32>,
    %c0_189 = arith.constant 0 : index
    %c0_190 = arith.constant 0 : index
    %166 = vector.load %arg11[%c0_189, %c0_190] : memref<88x256xf32, #tpu.memory_space<vmem>>, vector<80x256xf32>
    %167 = arith.truncf %166 : vector<80x256xf32> to vector<80x256xbf16>
    %c0_191 = arith.constant 0 : index
    %c0_192 = arith.constant 0 : index
    %c0_193 = arith.constant 0 : index
    %168 = vector.load %arg6[%c0_191, %c0_192, %c0_193] : memref<7x256x256xbf16, #tpu.memory_space<vmem>>, vector<1x256x256xbf16>
    %169 = vector.shape_cast %168 : vector<1x256x256xbf16> to vector<256x256xbf16>
    %cst_194 = arith.constant dense<0.000000e+00> : vector<80x256xf32>
    %170 = tpu.matmul %167, %169, %cst_194 {dimension_numbers = #tpu.dot_dimension_numbers<[1], [0], [0], [1], [0, 0, 1, 1], [], []>} : vector<80x256xbf16>, vector<256x256xbf16>, vector<80x256xf32> -> vector<80x256xf32>
    %c0_195 = arith.constant 0 : index
    %c0_196 = arith.constant 0 : index
    %171 = vector.load %arg9[%c0_195, %c0_196] : memref<1x256xf32, #tpu.memory_space<vmem>>, vector<1x256xf32>
    %172 = vector.broadcast %171 : vector<1x256xf32> to vector<80x256xf32>
    %173 = arith.addf %170, %172 : vector<80x256xf32>
    %c0_197 = arith.constant 0 : index
    %c0_198 = arith.constant 0 : index
    %174 = vector.load %arg12[%c0_197, %c0_198] : memref<80x256xf32, #tpu.memory_space<vmem>>, vector<80x256xf32>
    tpu.vector_store %arg12[%c0_197, %c0_198], %173 {strides = array<i32>} : memref<80x256xf32, #tpu.memory_space<vmem>>, vector<80x256xf32>,
    %c0_199 = arith.constant 0 : index
    %c0_200 = arith.constant 0 : index
    %175 = vector.load %arg12[%c0_199, %c0_200] : memref<80x256xf32, #tpu.memory_space<vmem>>, vector<80x256xf32>
    %c1_201 = arith.constant 1 : index
    %c0_202 = arith.constant 0 : index
    %176 = vector.load %arg11[%c1_201, %c0_202] : memref<88x256xf32, #tpu.memory_space<vmem>>, vector<80x256xf32>
    %177 = arith.truncf %176 : vector<80x256xf32> to vector<80x256xbf16>
    %c1_203 = arith.constant 1 : index
    %c0_204 = arith.constant 0 : index
    %c0_205 = arith.constant 0 : index
    %178 = vector.load %arg6[%c1_203, %c0_204, %c0_205] : memref<7x256x256xbf16, #tpu.memory_space<vmem>>, vector<1x256x256xbf16>
    %179 = vector.shape_cast %178 : vector<1x256x256xbf16> to vector<256x256xbf16>
    %cst_206 = arith.constant dense<0.000000e+00> : vector<80x256xf32>
    %180 = tpu.matmul %177, %179, %cst_206 {dimension_numbers = #tpu.dot_dimension_numbers<[1], [0], [0], [1], [0, 0, 1, 1], [], []>} : vector<80x256xbf16>, vector<256x256xbf16>, vector<80x256xf32> -> vector<80x256xf32>
    %181 = arith.addf %175, %180 : vector<80x256xf32>
    %c0_207 = arith.constant 0 : index
    %c0_208 = arith.constant 0 : index
    %182 = vector.load %arg12[%c0_207, %c0_208] : memref<80x256xf32, #tpu.memory_space<vmem>>, vector<80x256xf32>
    tpu.vector_store %arg12[%c0_207, %c0_208], %181 {strides = array<i32>} : memref<80x256xf32, #tpu.memory_space<vmem>>, vector<80x256xf32>,
    %c0_209 = arith.constant 0 : index
    %c0_210 = arith.constant 0 : index
    %183 = vector.load %arg12[%c0_209, %c0_210] : memref<80x256xf32, #tpu.memory_space<vmem>>, vector<80x256xf32>
    %c2_211 = arith.constant 2 : index
    %c0_212 = arith.constant 0 : index
    %184 = vector.load %arg11[%c2_211, %c0_212] : memref<88x256xf32, #tpu.memory_space<vmem>>, vector<80x256xf32>
    %185 = arith.truncf %184 : vector<80x256xf32> to vector<80x256xbf16>
    %c2_213 = arith.constant 2 : index
    %c0_214 = arith.constant 0 : index
    %c0_215 = arith.constant 0 : index
    %186 = vector.load %arg6[%c2_213, %c0_214, %c0_215] : memref<7x256x256xbf16, #tpu.memory_space<vmem>>, vector<1x256x256xbf16>
    %187 = vector.shape_cast %186 : vector<1x256x256xbf16> to vector<256x256xbf16>
    %cst_216 = arith.constant dense<0.000000e+00> : vector<80x256xf32>
    %188 = tpu.matmul %185, %187, %cst_216 {dimension_numbers = #tpu.dot_dimension_numbers<[1], [0], [0], [1], [0, 0, 1, 1], [], []>} : vector<80x256xbf16>, vector<256x256xbf16>, vector<80x256xf32> -> vector<80x256xf32>
    %189 = arith.addf %183, %188 : vector<80x256xf32>
    %c0_217 = arith.constant 0 : index
    %c0_218 = arith.constant 0 : index
    %190 = vector.load %arg12[%c0_217, %c0_218] : memref<80x256xf32, #tpu.memory_space<vmem>>, vector<80x256xf32>
    tpu.vector_store %arg12[%c0_217, %c0_218], %189 {strides = array<i32>} : memref<80x256xf32, #tpu.memory_space<vmem>>, vector<80x256xf32>,
    %c0_219 = arith.constant 0 : index
    %c0_220 = arith.constant 0 : index
    %191 = vector.load %arg12[%c0_219, %c0_220] : memref<80x256xf32, #tpu.memory_space<vmem>>, vector<80x256xf32>
    %c3_221 = arith.constant 3 : index
    %c0_222 = arith.constant 0 : index
    %192 = vector.load %arg11[%c3_221, %c0_222] : memref<88x256xf32, #tpu.memory_space<vmem>>, vector<80x256xf32>
    %193 = arith.truncf %192 : vector<80x256xf32> to vector<80x256xbf16>
    %c3_223 = arith.constant 3 : index
    %c0_224 = arith.constant 0 : index
    %c0_225 = arith.constant 0 : index
    %194 = vector.load %arg6[%c3_223, %c0_224, %c0_225] : memref<7x256x256xbf16, #tpu.memory_space<vmem>>, vector<1x256x256xbf16>
    %195 = vector.shape_cast %194 : vector<1x256x256xbf16> to vector<256x256xbf16>
    %cst_226 = arith.constant dense<0.000000e+00> : vector<80x256xf32>
    %196 = tpu.matmul %193, %195, %cst_226 {dimension_numbers = #tpu.dot_dimension_numbers<[1], [0], [0], [1], [0, 0, 1, 1], [], []>} : vector<80x256xbf16>, vector<256x256xbf16>, vector<80x256xf32> -> vector<80x256xf32>
    %197 = arith.addf %191, %196 : vector<80x256xf32>
    %c0_227 = arith.constant 0 : index
    %c0_228 = arith.constant 0 : index
    %198 = vector.load %arg12[%c0_227, %c0_228] : memref<80x256xf32, #tpu.memory_space<vmem>>, vector<80x256xf32>
    tpu.vector_store %arg12[%c0_227, %c0_228], %197 {strides = array<i32>} : memref<80x256xf32, #tpu.memory_space<vmem>>, vector<80x256xf32>,
    %c0_229 = arith.constant 0 : index
    %c0_230 = arith.constant 0 : index
    %199 = vector.load %arg12[%c0_229, %c0_230] : memref<80x256xf32, #tpu.memory_space<vmem>>, vector<80x256xf32>
    %c4_231 = arith.constant 4 : index
    %c0_232 = arith.constant 0 : index
    %200 = vector.load %arg11[%c4_231, %c0_232] : memref<88x256xf32, #tpu.memory_space<vmem>>, vector<80x256xf32>
    %201 = arith.truncf %200 : vector<80x256xf32> to vector<80x256xbf16>
    %c4_233 = arith.constant 4 : index
    %c0_234 = arith.constant 0 : index
    %c0_235 = arith.constant 0 : index
    %202 = vector.load %arg6[%c4_233, %c0_234, %c0_235] : memref<7x256x256xbf16, #tpu.memory_space<vmem>>, vector<1x256x256xbf16>
    %203 = vector.shape_cast %202 : vector<1x256x256xbf16> to vector<256x256xbf16>
    %cst_236 = arith.constant dense<0.000000e+00> : vector<80x256xf32>
    %204 = tpu.matmul %201, %203, %cst_236 {dimension_numbers = #tpu.dot_dimension_numbers<[1], [0], [0], [1], [0, 0, 1, 1], [], []>} : vector<80x256xbf16>, vector<256x256xbf16>, vector<80x256xf32> -> vector<80x256xf32>
    %205 = arith.addf %199, %204 : vector<80x256xf32>
    %c0_237 = arith.constant 0 : index
    %c0_238 = arith.constant 0 : index
    %206 = vector.load %arg12[%c0_237, %c0_238] : memref<80x256xf32, #tpu.memory_space<vmem>>, vector<80x256xf32>
    tpu.vector_store %arg12[%c0_237, %c0_238], %205 {strides = array<i32>} : memref<80x256xf32, #tpu.memory_space<vmem>>, vector<80x256xf32>,
    %c0_239 = arith.constant 0 : index
    %c0_240 = arith.constant 0 : index
    %207 = vector.load %arg12[%c0_239, %c0_240] : memref<80x256xf32, #tpu.memory_space<vmem>>, vector<80x256xf32>
    %c5_241 = arith.constant 5 : index
    %c0_242 = arith.constant 0 : index
    %208 = vector.load %arg11[%c5_241, %c0_242] : memref<88x256xf32, #tpu.memory_space<vmem>>, vector<80x256xf32>
    %209 = arith.truncf %208 : vector<80x256xf32> to vector<80x256xbf16>
    %c5_243 = arith.constant 5 : index
    %c0_244 = arith.constant 0 : index
    %c0_245 = arith.constant 0 : index
    %210 = vector.load %arg6[%c5_243, %c0_244, %c0_245] : memref<7x256x256xbf16, #tpu.memory_space<vmem>>, vector<1x256x256xbf16>
    %211 = vector.shape_cast %210 : vector<1x256x256xbf16> to vector<256x256xbf16>
    %cst_246 = arith.constant dense<0.000000e+00> : vector<80x256xf32>
    %212 = tpu.matmul %209, %211, %cst_246 {dimension_numbers = #tpu.dot_dimension_numbers<[1], [0], [0], [1], [0, 0, 1, 1], [], []>} : vector<80x256xbf16>, vector<256x256xbf16>, vector<80x256xf32> -> vector<80x256xf32>
    %213 = arith.addf %207, %212 : vector<80x256xf32>
    %c0_247 = arith.constant 0 : index
    %c0_248 = arith.constant 0 : index
    %214 = vector.load %arg12[%c0_247, %c0_248] : memref<80x256xf32, #tpu.memory_space<vmem>>, vector<80x256xf32>
    tpu.vector_store %arg12[%c0_247, %c0_248], %213 {strides = array<i32>} : memref<80x256xf32, #tpu.memory_space<vmem>>, vector<80x256xf32>,
    %c0_249 = arith.constant 0 : index
    %c0_250 = arith.constant 0 : index
    %215 = vector.load %arg12[%c0_249, %c0_250] : memref<80x256xf32, #tpu.memory_space<vmem>>, vector<80x256xf32>
    %c6_251 = arith.constant 6 : index
    %c0_252 = arith.constant 0 : index
    %216 = vector.load %arg11[%c6_251, %c0_252] : memref<88x256xf32, #tpu.memory_space<vmem>>, vector<80x256xf32>
    %217 = arith.truncf %216 : vector<80x256xf32> to vector<80x256xbf16>
    %c6_253 = arith.constant 6 : index
    %c0_254 = arith.constant 0 : index
    %c0_255 = arith.constant 0 : index
    %218 = vector.load %arg6[%c6_253, %c0_254, %c0_255] : memref<7x256x256xbf16, #tpu.memory_space<vmem>>, vector<1x256x256xbf16>
    %219 = vector.shape_cast %218 : vector<1x256x256xbf16> to vector<256x256xbf16>
    %cst_256 = arith.constant dense<0.000000e+00> : vector<80x256xf32>
    %220 = tpu.matmul %217, %219, %cst_256 {dimension_numbers = #tpu.dot_dimension_numbers<[1], [0], [0], [1], [0, 0, 1, 1], [], []>} : vector<80x256xbf16>, vector<256x256xbf16>, vector<80x256xf32> -> vector<80x256xf32>
    %221 = arith.addf %215, %220 : vector<80x256xf32>
    %c0_257 = arith.constant 0 : index
    %c0_258 = arith.constant 0 : index
    %222 = vector.load %arg12[%c0_257, %c0_258] : memref<80x256xf32, #tpu.memory_space<vmem>>, vector<80x256xf32>
    tpu.vector_store %arg12[%c0_257, %c0_258], %221 {strides = array<i32>} : memref<80x256xf32, #tpu.memory_space<vmem>>, vector<80x256xf32>,
    %c0_259 = arith.constant 0 : index
    %c0_260 = arith.constant 0 : index
    %223 = vector.load %arg12[%c0_259, %c0_260] : memref<80x256xf32, #tpu.memory_space<vmem>>, vector<32x256xf32>
    %cst_261 = arith.constant 1.000000e+00 : f32
    %224 = vector.broadcast %cst_261 : f32 to vector<32x256xf32>
    %225 = arith.addf %224, %223 : vector<32x256xf32>
    %cst_262 = arith.constant 0.000000e+00 : f32
    %226 = vector.broadcast %cst_262 : f32 to vector<32x256xf32>
    %227 = arith.maximumf %225, %226 : vector<32x256xf32>
    %c0_263 = arith.constant 0 : index
    %c0_264 = arith.constant 0 : index
    %c0_265 = arith.constant 0 : index
    %228 = vector.load %arg10[%c0_263, %c0_264, %c0_265] : memref<2x32x256xf32, #tpu.memory_space<vmem>>, vector<1x32x256xf32>
    %229 = vector.shape_cast %228 : vector<1x32x256xf32> to vector<32x256xf32>
    %230 = vector.shape_cast %227 : vector<32x256xf32> to vector<1x32x256xf32>
    tpu.vector_store %arg10[%c0_263, %c0_264, %c0_265], %230 {strides = array<i32>} : memref<2x32x256xf32, #tpu.memory_space<vmem>>, vector<1x32x256xf32>,
    %c40_266 = arith.constant 40 : index
    %c0_267 = arith.constant 0 : index
    %231 = vector.load %arg12[%c40_266, %c0_267] : memref<80x256xf32, #tpu.memory_space<vmem>>, vector<32x256xf32>
    %cst_268 = arith.constant 1.000000e+00 : f32
    %232 = vector.broadcast %cst_268 : f32 to vector<32x256xf32>
    %233 = arith.addf %232, %231 : vector<32x256xf32>
    %cst_269 = arith.constant 0.000000e+00 : f32
    %234 = vector.broadcast %cst_269 : f32 to vector<32x256xf32>
    %235 = arith.maximumf %233, %234 : vector<32x256xf32>
    %c1_270 = arith.constant 1 : index
    %c0_271 = arith.constant 0 : index
    %c0_272 = arith.constant 0 : index
    %236 = vector.load %arg10[%c1_270, %c0_271, %c0_272] : memref<2x32x256xf32, #tpu.memory_space<vmem>>, vector<1x32x256xf32>
    %237 = vector.shape_cast %236 : vector<1x32x256xf32> to vector<32x256xf32>
    %238 = vector.shape_cast %235 : vector<32x256xf32> to vector<1x32x256xf32>
    tpu.vector_store %arg10[%c1_270, %c0_271, %c0_272], %238 {strides = array<i32>} : memref<2x32x256xf32, #tpu.memory_space<vmem>>, vector<1x32x256xf32>,
    return
  }
  func.func @transform_0(%arg0: i32) -> (i32, i32, i32) {
    %c0_i32 = arith.constant 0 : i32
    %c0_i32_0 = arith.constant 0 : i32
    %c0_i32_1 = arith.constant 0 : i32
    return %arg0, %c0_i32, %c0_i32_0 : i32, i32, i32
  }
  func.func @transform_1(%arg0: i32) -> (i32, i32, i32) {
    %c0_i32 = arith.constant 0 : i32
    %c0_i32_0 = arith.constant 0 : i32
    %c0_i32_1 = arith.constant 0 : i32
    return %arg0, %c0_i32, %c0_i32_0 : i32, i32, i32
  }
  func.func @transform_2(%arg0: i32) -> (i32, i32, i32) {
    %c0_i32 = arith.constant 0 : i32
    %c0_i32_0 = arith.constant 0 : i32
    %c0_i32_1 = arith.constant 0 : i32
    return %arg0, %c0_i32, %c0_i32_0 : i32, i32, i32
  }
  func.func @transform_3(%arg0: i32) -> (i32, i32, i32) {
    %c0_i32 = arith.constant 0 : i32
    %c0_i32_0 = arith.constant 0 : i32
    %c0_i32_1 = arith.constant 0 : i32
    %c0_i32_2 = arith.constant 0 : i32
    return %c0_i32, %c0_i32_0, %c0_i32_1 : i32, i32, i32
  }
  func.func @transform_4(%arg0: i32) -> (i32, i32, i32) {
    %c0_i32 = arith.constant 0 : i32
    %c0_i32_0 = arith.constant 0 : i32
    %c0_i32_1 = arith.constant 0 : i32
    %c0_i32_2 = arith.constant 0 : i32
    return %c0_i32, %c0_i32_0, %c0_i32_1 : i32, i32, i32
  }
  func.func @transform_5(%arg0: i32) -> (i32, i32, i32) {
    %c0_i32 = arith.constant 0 : i32
    %c0_i32_0 = arith.constant 0 : i32
    %c0_i32_1 = arith.constant 0 : i32
    %c0_i32_2 = arith.constant 0 : i32
    return %c0_i32, %c0_i32_0, %c0_i32_1 : i32, i32, i32
  }
  func.func @transform_6(%arg0: i32) -> (i32, i32) {
    %c0_i32 = arith.constant 0 : i32
    %c0_i32_0 = arith.constant 0 : i32
    %c0_i32_1 = arith.constant 0 : i32
    return %c0_i32, %c0_i32_0 : i32, i32
  }
  func.func @transform_7(%arg0: i32) -> (i32, i32) {
    %c0_i32 = arith.constant 0 : i32
    %c0_i32_0 = arith.constant 0 : i32
    %c0_i32_1 = arith.constant 0 : i32
    return %c0_i32, %c0_i32_0 : i32, i32
  }
  func.func @transform_8(%arg0: i32) -> (i32, i32) {
    %c0_i32 = arith.constant 0 : i32
    %c0_i32_0 = arith.constant 0 : i32
    %c0_i32_1 = arith.constant 0 : i32
    return %c0_i32, %c0_i32_0 : i32, i32
  }
  func.func @transform_9(%arg0: i32) -> (i32, i32, i32) {
    %c0_i32 = arith.constant 0 : i32
    %c0_i32_0 = arith.constant 0 : i32
    %c0_i32_1 = arith.constant 0 : i32
    return %arg0, %c0_i32, %c0_i32_0 : i32, i32, i32
  }
}

</mosaic_0001>

<llo_original>
// kernel: model_forward.1
$region0: #{model_forward.1}
  #allocation0 [shape = 'u32[]', space=smem, size = 0x4, offset = 0x4, fixed_abs, tag = 'smem constant byte address 0x4 - core index']
  #allocation1 [shape = 'u32[72,128]{1,0:T(1,128)}', space=vmem, size = 0x9000, scoped, tag = 'internal scratch']
  #allocation2 [shape = 'f32[88,256]{1,0:T(8,128)}', space=vmem, size = 0x16000, scoped, tag = 'scratch operand']
  #allocation3 [shape = 'f32[80,256]{1,0:T(8,128)}', space=vmem, size = 0x14000, scoped, tag = 'scratch operand']
  #allocation4 [shape = 'f32[2,32,256]{2,1,0:T(8,128)}', space=vmem, size = 0x10000, scoped, tag = 'scratch operand']
  %s0 = inlined_call_operand.vmem [shape: f32[4,32,256], index: 0, kind: input, shape index: {}]
  %s1 = inlined_call_operand.vmem [shape: f32[4,32,256], index: 1, kind: input, shape index: {}]
  %s2 = inlined_call_operand.vmem [shape: f32[4,32,256], index: 2, kind: input, shape index: {}]
  %s3 = inlined_call_operand.vmem [shape: bf16[7,256,256], index: 3, kind: input, shape index: {}]
  %s4 = inlined_call_operand.hbm [shape: bf16[7,256,256], index: 4, kind: input, shape index: {}]
  %s5 = inlined_call_operand.hbm [shape: bf16[7,256,256], index: 5, kind: input, shape index: {}]
  %s6 = inlined_call_operand.vmem [shape: f32[1,256], index: 6, kind: input, shape index: {}]
  %s7 = inlined_call_operand.hbm [shape: f32[1,256], index: 7, kind: input, shape index: {}]
  %s8 = inlined_call_operand.hbm [shape: f32[1,256], index: 8, kind: input, shape index: {}]
  %s9 = inlined_call_operand.vmem [shape: f32[4,32,256], index: 9, kind: output, shape index: {}]
  %s10 = sld [smem:[#allocation0]]
  $region85: #{model_forward.1} parent=0
    _
  %s12 = ssub.s32 1, %s10
  %s13 = scalar_select 0, %s12, %s10
  $region1: #{model_forward.1} parent=0
    #allocation5 [shape = 'u8[917504]{0}', space=vmem, size = 0xe0000, scoped, tag = 'input window, operand 4, single buffered']
    #allocation6 [shape = 's32[2]{0}', space=sflag, size = 0x8, scoped, tag = 'scoped memory for model_forward.1']
    #allocation7 [shape = 'u8[917504]{0}', space=vmem, size = 0xe0000, scoped, tag = 'input window, operand 5, single buffered']
    #allocation8 [shape = 's32[1]{0}', space=sflag, size = 0x4, scoped, tag = 'scoped memory for model_forward.1']
    #allocation9 [shape = 'u8[1024]{0}', space=vmem, size = 0x400, scoped, tag = 'input window, operand 7, single buffered']
    #allocation10 [shape = 'u8[1024]{0}', space=vmem, size = 0x400, scoped, tag = 'input window, operand 8, single buffered']
    #allocation11 [shape = 's32[1]{0}', space=sflag, size = 0x4, scoped, tag = 'scoped memory for model_forward.1']
    %14 = vsyncpa [#allocation6], 0
    %15 = vsyncpa [#allocation8], 0
    %16 = vsyncpa [#allocation11], 0
    loop: start=0, step=1, limit=4
    $region2: #{model_forward.1} parent=1 // loop_pre_header
      _
    $region3: #{model_forward.1} parent=1 // loop_header
      %s18 = sphi 0, %s22
      %p19 = scmp.ge.s32.totalorder %s18, 4
      %s28 = sphi 0, %s30
      %s31 = sphi 0, %s28
      %s32 = sphi 0, %s31
      %s48 = sphi 0, %s32
      %s54 = sphi 0, %s56
      %s57 = sphi 0, %s54
      %s58 = sphi 0, %s57
      %s74 = sphi 0, %s58
      %s80 = sphi 0, %s82
      %s83 = sphi 0, %s80
      %s84 = sphi 0, %s83
      %s100 = sphi 0, %s84
      %s104 = sphi 0, %s104
      %s106 = sphi 0, %s104
      %s107 = sphi 0, %s106
      %s121 = sphi 0, %s107
      %s125 = sphi 0, %s125
      %s127 = sphi 0, %s125
      %s128 = sphi 0, %s127
      %s142 = sphi 0, %s128
      %s146 = sphi 0, %s146
      %s148 = sphi 0, %s146
      %s149 = sphi 0, %s148
      %s163 = sphi 0, %s149
      %s167 = sphi 0, %s167
      %s169 = sphi 0, %s167
      %s170 = sphi 0, %s169
      %s184 = sphi 0, %s170
      %s188 = sphi 0, %s188
      %s190 = sphi 0, %s188
      %s191 = sphi 0, %s190
      %s205 = sphi 0, %s191
      %s209 = sphi 0, %s209
      %s211 = sphi 0, %s209
      %s212 = sphi 0, %s211
      %s226 = sphi 0, %s212
      %s232 = sphi 0, %s234
      %s235 = sphi 0, %s232
      %s236 = sphi 0, %s235
      %s252 = sphi 0, %s236
    $region4: #{model_forward.1} parent=1 // loop_header_branch
      %21 = sbr.rel (%p19) target = $region8
    $region5: #{model_forward.1} parent=1 // loop_body
      %s23 = ssub.s32 %s18, 1
      %s24 = ssub.s32 %s18, 2
      %s25 = sadd.s32 %s18, 1
      %s26 = ssub.s32 %s18, %s25
      %p27 = scmp.eq.s32.totalorder %s26, 0
      %s29 = sadd.s32 %s28, 1
      %s30 = scalar_select %p27, %s28, %s29
      %p33 = pneg %p27
      %p34 = scmp.eq.s32.totalorder %s18, 1
      %p35 = por %p33, %p34
      %p36 = scmp.ne.s32.totalorder %s28, %s31
      %p37 = scmp.eq.s32.totalorder %s18, 0
      %p38 = por %p36, %p37
      %p39 = scmp.ne.s32.totalorder %s28, %s31
      %p40 = scmp.eq.s32.totalorder %s23, 1
      %p41 = por %p39, %p40
      %p42 = scmp.ne.s32.totalorder %s31, %s32
      %p43 = scmp.eq.s32.totalorder %s23, 0
      %p44 = por %p42, %p43
      %p45 = scmp.ne.s32.totalorder %s31, %s32
      %p46 = scmp.eq.s32.totalorder %s24, 1
      %p47 = por %p45, %p46
      %p49 = scmp.ne.s32.totalorder %s32, %s48
      %p50 = scmp.eq.s32.totalorder %s24, 0
      %p51 = por %p49, %p50
      %s52 = ssub.s32 %s18, %s25
      %p53 = scmp.eq.s32.totalorder %s52, 0
      %s55 = sadd.s32 %s54, 1
      %s56 = scalar_select %p53, %s54, %s55
      %p59 = pneg %p53
      %p60 = scmp.eq.s32.totalorder %s18, 1
      %p61 = por %p59, %p60
      %p62 = scmp.ne.s32.totalorder %s54, %s57
      %p63 = scmp.eq.s32.totalorder %s18, 0
      %p64 = por %p62, %p63
      %p65 = scmp.ne.s32.totalorder %s54, %s57
      %p66 = scmp.eq.s32.totalorder %s23, 1
      %p67 = por %p65, %p66
      %p68 = scmp.ne.s32.totalorder %s57, %s58
      %p69 = scmp.eq.s32.totalorder %s23, 0
      %p70 = por %p68, %p69
      %p71 = scmp.ne.s32.totalorder %s57, %s58
      %p72 = scmp.eq.s32.totalorder %s24, 1
      %p73 = por %p71, %p72
      %p75 = scmp.ne.s32.totalorder %s58, %s74
      %p76 = scmp.eq.s32.totalorder %s24, 0
      %p77 = por %p75, %p76
      %s78 = ssub.s32 %s18, %s25
      %p79 = scmp.eq.s32.totalorder %s78, 0
      %s81 = sadd.s32 %s80, 1
      %s82 = scalar_select %p79, %s80, %s81
      %p85 = pneg %p79
      %p86 = scmp.eq.s32.totalorder %s18, 1
      %p87 = por %p85, %p86
      %p88 = scmp.ne.s32.totalorder %s80, %s83
      %p89 = scmp.eq.s32.totalorder %s18, 0
      %p90 = por %p88, %p89
      %p91 = scmp.ne.s32.totalorder %s80, %s83
      %p92 = scmp.eq.s32.totalorder %s23, 1
      %p93 = por %p91, %p92
      %p94 = scmp.ne.s32.totalorder %s83, %s84
      %p95 = scmp.eq.s32.totalorder %s23, 0
      %p96 = por %p94, %p95
      %p97 = scmp.ne.s32.totalorder %s83, %s84
      %p98 = scmp.eq.s32.totalorder %s24, 1
      %p99 = por %p97, %p98
      %p101 = scmp.ne.s32.totalorder %s84, %s100
      %p102 = scmp.eq.s32.totalorder %s24, 0
      %p103 = por %p101, %p102
      %s105 = sadd.s32 %s104, 1
      %p108 = scmp.eq.s32.totalorder %s18, 1
      %p109 = scmp.ne.s32.totalorder %s104, %s106
      %p110 = scmp.eq.s32.totalorder %s18, 0
      %p111 = por %p109, %p110
      %p112 = scmp.ne.s32.totalorder %s104, %s106
      %p113 = scmp.eq.s32.totalorder %s23, 1
      %p114 = por %p112, %p113
      %p115 = scmp.ne.s32.totalorder %s106, %s107
      %p116 = scmp.eq.s32.totalorder %s23, 0
      %p117 = por %p115, %p116
      %p118 = scmp.ne.s32.totalorder %s106, %s107
      %p119 = scmp.eq.s32.totalorder %s24, 1
      %p120 = por %p118, %p119
      %p122 = scmp.ne.s32.totalorder %s107, %s121
      %p123 = scmp.eq.s32.totalorder %s24, 0
      %p124 = por %p122, %p123
      %s126 = sadd.s32 %s125, 1
      %p129 = scmp.eq.s32.totalorder %s18, 1
      %p130 = scmp.ne.s32.totalorder %s125, %s127
      %p131 = scmp.eq.s32.totalorder %s18, 0
      %p132 = por %p130, %p131
      %p133 = scmp.ne.s32.totalorder %s125, %s127
      %p134 = scmp.eq.s32.totalorder %s23, 1
      %p135 = por %p133, %p134
      %p136 = scmp.ne.s32.totalorder %s127, %s128
      %p137 = scmp.eq.s32.totalorder %s23, 0
      %p138 = por %p136, %p137
      %p139 = scmp.ne.s32.totalorder %s127, %s128
      %p140 = scmp.eq.s32.totalorder %s24, 1
      %p141 = por %p139, %p140
      %p143 = scmp.ne.s32.totalorder %s128, %s142
      %p144 = scmp.eq.s32.totalorder %s24, 0
      %p145 = por %p143, %p144
      %s147 = sadd.s32 %s146, 1
      %p150 = scmp.eq.s32.totalorder %s18, 1
      %p151 = scmp.ne.s32.totalorder %s146, %s148
      %p152 = scmp.eq.s32.totalorder %s18, 0
      %p153 = por %p151, %p152
      %p154 = scmp.ne.s32.totalorder %s146, %s148
      %p155 = scmp.eq.s32.totalorder %s23, 1
      %p156 = por %p154, %p155
      %p157 = scmp.ne.s32.totalorder %s148, %s149
      %p158 = scmp.eq.s32.totalorder %s23, 0
      %p159 = por %p157, %p158
      %p160 = scmp.ne.s32.totalorder %s148, %s149
      %p161 = scmp.eq.s32.totalorder %s24, 1
      %p162 = por %p160, %p161
      %p164 = scmp.ne.s32.totalorder %s149, %s163
      %p165 = scmp.eq.s32.totalorder %s24, 0
      %p166 = por %p164, %p165
      %s168 = sadd.s32 %s167, 1
      %p171 = scmp.eq.s32.totalorder %s18, 1
      %p172 = scmp.ne.s32.totalorder %s167, %s169
      %p173 = scmp.eq.s32.totalorder %s18, 0
      %p174 = por %p172, %p173
      %p175 = scmp.ne.s32.totalorder %s167, %s169
      %p176 = scmp.eq.s32.totalorder %s23, 1
      %p177 = por %p175, %p176
      %p178 = scmp.ne.s32.totalorder %s169, %s170
      %p179 = scmp.eq.s32.totalorder %s23, 0
      %p180 = por %p178, %p179
      %p181 = scmp.ne.s32.totalorder %s169, %s170
      %p182 = scmp.eq.s32.totalorder %s24, 1
      %p183 = por %p181, %p182
      %p185 = scmp.ne.s32.totalorder %s170, %s184
      %p186 = scmp.eq.s32.totalorder %s24, 0
      %p187 = por %p185, %p186
      %s189 = sadd.s32 %s188, 1
      %p192 = scmp.eq.s32.totalorder %s18, 1
      %p193 = scmp.ne.s32.totalorder %s188, %s190
      %p194 = scmp.eq.s32.totalorder %s18, 0
      %p195 = por %p193, %p194
      %p196 = scmp.ne.s32.totalorder %s188, %s190
      %p197 = scmp.eq.s32.totalorder %s23, 1
      %p198 = por %p196, %p197
      %p199 = scmp.ne.s32.totalorder %s190, %s191
      %p200 = scmp.eq.s32.totalorder %s23, 0
      %p201 = por %p199, %p200
      %p202 = scmp.ne.s32.totalorder %s190, %s191
      %p203 = scmp.eq.s32.totalorder %s24, 1
      %p204 = por %p202, %p203
      %p206 = scmp.ne.s32.totalorder %s191, %s205
      %p207 = scmp.eq.s32.totalorder %s24, 0
      %p208 = por %p206, %p207
      %s210 = sadd.s32 %s209, 1
      %p213 = scmp.eq.s32.totalorder %s18, 1
      %p214 = scmp.ne.s32.totalorder %s209, %s211
      %p215 = scmp.eq.s32.totalorder %s18, 0
      %p216 = por %p214, %p215
      %p217 = scmp.ne.s32.totalorder %s209, %s211
      %p218 = scmp.eq.s32.totalorder %s23, 1
      %p219 = por %p217, %p218
      %p220 = scmp.ne.s32.totalorder %s211, %s212
      %p221 = scmp.eq.s32.totalorder %s23, 0
      %p222 = por %p220, %p221
      %p223 = scmp.ne.s32.totalorder %s211, %s212
      %p224 = scmp.eq.s32.totalorder %s24, 1
      %p225 = por %p223, %p224
      %p227 = scmp.ne.s32.totalorder %s212, %s226
      %p228 = scmp.eq.s32.totalorder %s24, 0
      %p229 = por %p227, %p228
      %s230 = ssub.s32 %s18, %s25
      %p231 = scmp.eq.s32.totalorder %s230, 0
      %s233 = sadd.s32 %s232, 1
      %s234 = scalar_select %p231, %s232, %s233
      %p237 = pneg %p231
      %p238 = scmp.eq.s32.totalorder %s18, 1
      %p239 = por %p237, %p238
      %p240 = scmp.ne.s32.totalorder %s232, %s235
      %p241 = scmp.eq.s32.totalorder %s18, 0
      %p242 = por %p240, %p241
      %p243 = scmp.ne.s32.totalorder %s232, %s235
      %p244 = scmp.eq.s32.totalorder %s23, 1
      %p245 = por %p243, %p244
      %p246 = scmp.ne.s32.totalorder %s235, %s236
      %p247 = scmp.eq.s32.totalorder %s23, 0
      %p248 = por %p246, %p247
      %p249 = scmp.ne.s32.totalorder %s235, %s236
      %p250 = scmp.eq.s32.totalorder %s24, 1
      %p251 = por %p249, %p250
      %p253 = scmp.ne.s32.totalorder %s236, %s252
      %p254 = scmp.eq.s32.totalorder %s24, 0
      %p255 = por %p253, %p254
      %p256 = scmp.le.s32.totalorder 1, %s18
      %p257 = scmp.lt.s32.totalorder %s18, 3
      %p258 = pnand %p256, %p257
      %p259 = pneg %p258
      // Predicated region
      $region9: #{model_forward.1} parent=5 // pred_check
        _
      $region10: #{model_forward.1} parent=5 // pred_check_branch
        %261 = sbr.rel (%p258) target = $region12
      $region11: #{model_forward.1} parent=5 // pred_region
        %s262 = ssub.s32 %s18, 1
        // Predicated region
        $region13: #{model_forward.1} parent=11 // pred_check
          %p263 = pneg %p117
        $region14: #{model_forward.1} parent=11 // pred_check_branch
          %265 = sbr.rel (%p263) target = $region16
        $region15: #{model_forward.1} parent=11 // pred_region
          _
        $region16: #{model_forward.1} parent=11 // pred_fallthru
          _
        // Predicated region
        $region17: #{model_forward.1} parent=11 // pred_check
          %p266 = pneg %p138
        $region18: #{model_forward.1} parent=11 // pred_check_branch
          %268 = sbr.rel (%p266) target = $region20
        $region19: #{model_forward.1} parent=11 // pred_region
          %270 = vsyncadd [#allocation6], 0
          %s271 = sshll.u32 %s4, 4
          %s272 = int_to_ptr.hbm [resolvable:$true] %s271
          %s273 = sshll.u32 [#allocation5], 4
          %s274 = int_to_ptr.vmem [resolvable:$true] %s273
          %279 = dma.hbm_to_vmem [thread:$0]  %s272, 28672, %s274, [#allocation6], 128, 128, 8
        $region20: #{model_forward.1} parent=11 // pred_fallthru
          _
        // Predicated region
        $region21: #{model_forward.1} parent=11 // pred_check
          %p280 = pneg %p159
        $region22: #{model_forward.1} parent=11 // pred_check_branch
          %282 = sbr.rel (%p280) target = $region24
        $region23: #{model_forward.1} parent=11 // pred_region
          %284 = vsyncadd [#allocation8], 0
          %s285 = sshll.u32 %s5, 4
          %s286 = int_to_ptr.hbm [resolvable:$true] %s285
          %s287 = sshll.u32 [#allocation7], 4
          %s288 = int_to_ptr.vmem [resolvable:$true] %s287
          %293 = dma.hbm_to_vmem [thread:$0]  %s286, 28672, %s288, [#allocation8], 128, 128, 8
        $region24: #{model_forward.1} parent=11 // pred_fallthru
          _
        // Predicated region
        $region25: #{model_forward.1} parent=11 // pred_check
          %p294 = pneg %p180
        $region26: #{model_forward.1} parent=11 // pred_check_branch
          %296 = sbr.rel (%p294) target = $region28
        $region27: #{model_forward.1} parent=11 // pred_region
          _
        $region28: #{model_forward.1} parent=11 // pred_fallthru
          _
        // Predicated region
        $region29: #{model_forward.1} parent=11 // pred_check
          %p297 = pneg %p201
        $region30: #{model_forward.1} parent=11 // pred_check_branch
          %299 = sbr.rel (%p297) target = $region32
        $region31: #{model_forward.1} parent=11 // pred_region
          %301 = vsyncadd [#allocation8], 0
          %s303 = sshll.u32 %s7, 4
          %s304 = int_to_ptr.hbm [resolvable:$true] %s303
          %s305 = sshll.u32 [#allocation9], 4
          %s306 = int_to_ptr.vmem [resolvable:$true] %s305
          %308 = dma.hbm_to_vmem [thread:$0]  %s304, 32, %s306, [#allocation8]
        $region32: #{model_forward.1} parent=11 // pred_fallthru
          _
        // Predicated region
        $region33: #{model_forward.1} parent=11 // pred_check
          %p309 = pneg %p222
        $region34: #{model_forward.1} parent=11 // pred_check_branch
          %311 = sbr.rel (%p309) target = $region36
        $region35: #{model_forward.1} parent=11 // pred_region
          %313 = vsyncadd [#allocation11], 0
          %s315 = sshll.u32 %s8, 4
          %s316 = int_to_ptr.hbm [resolvable:$true] %s315
          %s317 = sshll.u32 [#allocation10], 4
          %s318 = int_to_ptr.vmem [resolvable:$true] %s317
          %320 = dma.hbm_to_vmem [thread:$0]  %s316, 32, %s318, [#allocation11]
        $region36: #{model_forward.1} parent=11 // pred_fallthru
          _
      $region12: #{model_forward.1} parent=5 // pred_fallthru
        _
      %p321 = scmp.lt.s32.totalorder %s18, 2
      // Predicated region
      $region37: #{model_forward.1} parent=5 // pred_check
        %p322 = pneg %p321
      $region38: #{model_forward.1} parent=5 // pred_check_branch
        %324 = sbr.rel (%p322) target = $region40
      $region39: #{model_forward.1} parent=5 // pred_region
        // Predicated region
        $region41: #{model_forward.1} parent=39 // pred_check
          %p325 = pneg %p38
        $region42: #{model_forward.1} parent=39 // pred_check_branch
          %327 = sbr.rel (%p325) target = $region44
        $region43: #{model_forward.1} parent=39 // pred_region
          %s328 = smul.u32 2, %s18
          %p329 = scmp.lt.s32.totalorder %s328, 3
          %s330 = scalar_select %p329, %s328, 3
          %s331 = smul.addr %s330, 8
          %s332 = smul.addr %s331, 8
          %s333 = scalar_lea.vmem %s0, %s332
          %s334 = smul.u32 2, %s18
        $region44: #{model_forward.1} parent=39 // pred_fallthru
          _
        // Predicated region
        $region45: #{model_forward.1} parent=39 // pred_check
          %p335 = pneg %p64
        $region46: #{model_forward.1} parent=39 // pred_check_branch
          %337 = sbr.rel (%p335) target = $region48
        $region47: #{model_forward.1} parent=39 // pred_region
          %s338 = smul.u32 2, %s18
          %p339 = scmp.lt.s32.totalorder %s338, 3
          %s340 = scalar_select %p339, %s338, 3
          %s341 = smul.addr %s340, 8
          %s342 = smul.addr %s341, 8
          %s343 = scalar_lea.vmem %s1, %s342
          %s344 = smul.u32 2, %s18
        $region48: #{model_forward.1} parent=39 // pred_fallthru
          _
        // Predicated region
        $region49: #{model_forward.1} parent=39 // pred_check
          %p345 = pneg %p90
        $region50: #{model_forward.1} parent=39 // pred_check_branch
          %347 = sbr.rel (%p345) target = $region52
        $region51: #{model_forward.1} parent=39 // pred_region
          %s348 = smul.u32 2, %s18
          %p349 = scmp.lt.s32.totalorder %s348, 3
          %s350 = scalar_select %p349, %s348, 3
          %s351 = smul.addr %s350, 8
          %s352 = smul.addr %s351, 8
          %s353 = scalar_lea.vmem %s2, %s352
          %s354 = smul.u32 2, %s18
        $region52: #{model_forward.1} parent=39 // pred_fallthru
          _
      $region40: #{model_forward.1} parent=5 // pred_fallthru
        _
      %p355 = scmp.le.s32.totalorder 1, %s18
      %p356 = scmp.lt.s32.totalorder %s18, 3
      %p357 = pnand %p355, %p356
      %p358 = pneg %p357
      // Predicated region
      $region53: #{model_forward.1} parent=5 // pred_check
        _
      $region54: #{model_forward.1} parent=5 // pred_check_branch
        %360 = sbr.rel (%p357) target = $region56
      $region55: #{model_forward.1} parent=5 // pred_region
        %s361 = ssub.s32 %s18, 1
        // Predicated region
        $region57: #{model_forward.1} parent=55 // pred_check
          %p362 = pneg %p138
        $region58: #{model_forward.1} parent=55 // pred_check_branch
          %364 = sbr.rel (%p362) target = $region60
        $region59: #{model_forward.1} parent=55 // pred_region
          %366 = dma.done [#allocation6], 28672
        $region60: #{model_forward.1} parent=55 // pred_fallthru
          _
        // Predicated region
        $region61: #{model_forward.1} parent=55 // pred_check
          %p367 = pneg %p159
        $region62: #{model_forward.1} parent=55 // pred_check_branch
          %369 = sbr.rel (%p367) target = $region64
        $region63: #{model_forward.1} parent=55 // pred_region
          %371 = dma.done [#allocation8], 28672
        $region64: #{model_forward.1} parent=55 // pred_fallthru
          _
        // Predicated region
        $region65: #{model_forward.1} parent=55 // pred_check
          %p372 = pneg %p201
        $region66: #{model_forward.1} parent=55 // pred_check_branch
          %374 = sbr.rel (%p372) target = $region68
        $region67: #{model_forward.1} parent=55 // pred_region
          %376 = dma.done [#allocation8], 32
        $region68: #{model_forward.1} parent=55 // pred_fallthru
          _
        // Predicated region
        $region69: #{model_forward.1} parent=55 // pred_check
          %p377 = pneg %p222
        $region70: #{model_forward.1} parent=55 // pred_check_branch
          %379 = sbr.rel (%p377) target = $region72
        $region71: #{model_forward.1} parent=55 // pred_region
          %381 = dma.done [#allocation11], 32
        $region72: #{model_forward.1} parent=55 // pred_fallthru
          _
        %s382 = smul.u32 2, %s23
        %p383 = scmp.lt.s32.totalorder %s382, 3
        %s384 = scalar_select %p383, %s382, 3
        %s385 = smul.addr %s384, 8
        %s386 = smul.addr %s385, 8
        %s387 = scalar_lea.vmem %s0, %s386
        %p388 = pneg %p44
        %p389 = pneg %p41
        %s390 = smul.u32 2, %s23
        %p391 = scmp.lt.s32.totalorder %s390, 3
        %s392 = scalar_select %p391, %s390, 3
        %s393 = smul.addr %s392, 8
        %s394 = smul.addr %s393, 8
        %s395 = scalar_lea.vmem %s1, %s394
        %p396 = pneg %p70
        %p397 = pneg %p67
        %s398 = smul.u32 2, %s23
        %p399 = scmp.lt.s32.totalorder %s398, 3
        %s400 = scalar_select %p399, %s398, 3
        %s401 = smul.addr %s400, 8
        %s402 = smul.addr %s401, 8
        %s403 = scalar_lea.vmem %s2, %s402
        %p404 = pneg %p96
        %p405 = pneg %p93
        %p406 = pneg %p117
        %p407 = pneg %p114
        %p408 = pneg %p138
        %p409 = pneg %p135
        %p410 = pneg %p159
        %p411 = pneg %p156
        %p412 = pneg %p180
        %p413 = pneg %p177
        %p414 = pneg %p201
        %p415 = pneg %p198
        %p416 = pneg %p222
        %p417 = pneg %p219
        %p418 = pneg %p248
        %p419 = pneg %p245
        %s420 = smul.u32 2, %s23
        %p421 = scmp.lt.s32.totalorder %s420, 3
        %s422 = scalar_select %p421, %s420, 3
        %s423 = smul.addr %s422, 8
        %s424 = smul.addr %s423, 8
        %s425 = scalar_lea.vmem %s9, %s424
        %s426 = smul.u32 2, %s23
        %p427 = scmp.lt.s32.totalorder %s426, 3
        %s428 = scalar_select %p427, %s426, 3
        %s429 = smul.addr %s428, 8
        %s430 = smul.addr %s429, 8
        %s431 = scalar_lea.vmem %s0, %s430
        %s432 = smul.u32 2, %s23
        %s433 = smul.u32 2, %s23
        %p434 = scmp.lt.s32.totalorder %s433, 3
        %s435 = scalar_select %p434, %s433, 3
        %s436 = smul.addr %s435, 8
        %s437 = smul.addr %s436, 8
        %s438 = scalar_lea.vmem %s1, %s437
        %s439 = smul.u32 2, %s23
        %s440 = smul.u32 2, %s23
        %p441 = scmp.lt.s32.totalorder %s440, 3
        %s442 = scalar_select %p441, %s440, 3
        %s443 = smul.addr %s442, 8
        %s444 = smul.addr %s443, 8
        %s445 = scalar_lea.vmem %s2, %s444
        %s446 = smul.u32 2, %s23
        %s447 = smul.u32 2, %s23
        %p448 = scmp.lt.s32.totalorder %s447, 3
        %s449 = scalar_select %p448, %s447, 3
        %s450 = smul.addr %s449, 8
        %s451 = smul.addr %s450, 8
        %s452 = scalar_lea.vmem %s9, %s451
        %s453 = smul.u32 2, %s23
        %454 = vst [vmem:[#allocation2] sm:$0xff] 0.0
        %455 = vst [vmem:[#allocation2 + $0x8] sm:$0xff] 0.0
        %456 = vst [vmem:[#allocation2 + $0x10] sm:$0xff] 0.0
        %457 = vst [vmem:[#allocation2 + $0x18] sm:$0xff] 0.0
        %458 = vst [vmem:[#allocation2 + $0x20] sm:$0xff] 0.0
        %459 = vst [vmem:[#allocation2 + $0x28] sm:$0xff] 0.0
        %460 = vst [vmem:[#allocation2 + $0x30] sm:$0xff] 0.0
        %461 = vst [vmem:[#allocation2 + $0x38] sm:$0xff] 0.0
        %462 = vst [vmem:[#allocation2 + $0x40] sm:$0xff] 0.0
        %463 = vst [vmem:[#allocation2 + $0x48] sm:$0xff] 0.0
        %464 = vst [vmem:[#allocation2 + $0x50] sm:$0xff] 0.0
        %465 = vst [vmem:[#allocation2 + $0x58] sm:$0xff] 0.0
        %466 = vst [vmem:[#allocation2 + $0x60] sm:$0xff] 0.0
        %467 = vst [vmem:[#allocation2 + $0x68] sm:$0xff] 0.0
        %468 = vst [vmem:[#allocation2 + $0x70] sm:$0xff] 0.0
        %469 = vst [vmem:[#allocation2 + $0x78] sm:$0xff] 0.0
        %470 = vst [vmem:[#allocation2 + $0x80] sm:$0xff] 0.0
        %471 = vst [vmem:[#allocation2 + $0x88] sm:$0xff] 0.0
        %472 = vst [vmem:[#allocation2 + $0x90] sm:$0xff] 0.0
        %473 = vst [vmem:[#allocation2 + $0x98] sm:$0xff] 0.0
        %474 = vst [vmem:[#allocation2 + $0xa0] sm:$0xff] 0.0
        %475 = vst [vmem:[#allocation2 + $0xa8] sm:$0xff] 0.0
        %v476 = vld [vmem:[%s431] sm:$0xff]
        %v477 = vld [vmem:[%s431 + $0x8] sm:$0xff]
        %v478 = vld [vmem:[%s431 + $0x10] sm:$0xff]
        %v479 = vld [vmem:[%s431 + $0x18] sm:$0xff]
        %v480 = vld [vmem:[%s431 + $0x20] sm:$0xff]
        %v481 = vld [vmem:[%s431 + $0x28] sm:$0xff]
        %v482 = vld [vmem:[%s431 + $0x30] sm:$0xff]
        %v483 = vld [vmem:[%s431 + $0x38] sm:$0xff]
        %vm492 = vcmask 1042432
        %v493 = vrot.slane %v476, 5
        %v494 = vrot.slane %v477, 5
        %v495 = vrot.slane %v478, 5
        %v496 = vsel %vm492, %v493, %v495
        %v497 = vrot.slane %v479, 5
        %v498 = vsel %vm492, %v494, %v497
        %v499 = vrot.slane %v480, 5
        %v500 = vsel %vm492, %v495, %v499
        %v501 = vrot.slane %v481, 5
        %v502 = vsel %vm492, %v497, %v501
        %v503 = vrot.slane %v482, 5
        %v504 = vsel %vm492, %v499, %v503
        %v505 = vrot.slane %v483, 5
        %v506 = vsel %vm492, %v501, %v505
        %517 = vst [vmem:[#allocation2] sm:$0xf8] %v493
        %518 = vst [vmem:[#allocation2 + $0x8] sm:$0xf8] %v494
        %519 = vst [vmem:[#allocation2 + $0x10] sm:$0xff] %v496
        %520 = vst [vmem:[#allocation2 + $0x18] sm:$0xff] %v498
        %521 = vst [vmem:[#allocation2 + $0x20] sm:$0xff] %v500
        %522 = vst [vmem:[#allocation2 + $0x28] sm:$0xff] %v502
        %523 = vst [vmem:[#allocation2 + $0x30] sm:$0xff] %v504
        %524 = vst [vmem:[#allocation2 + $0x38] sm:$0xff] %v506
        %525 = vst [vmem:[#allocation2 + $0x40] sm:$0x7] %v503
        %526 = vst [vmem:[#allocation2 + $0x48] sm:$0x7] %v505
        %s527 = scalar_lea.vmem %s431, 64
        %v528 = vld [vmem:[%s527] sm:$0xff]
        %v529 = vld [vmem:[%s527 + $0x8] sm:$0xff]
        %v530 = vld [vmem:[%s527 + $0x10] sm:$0xff]
        %v531 = vld [vmem:[%s527 + $0x18] sm:$0xff]
        %v532 = vld [vmem:[%s527 + $0x20] sm:$0xff]
        %v533 = vld [vmem:[%s527 + $0x28] sm:$0xff]
        %v534 = vld [vmem:[%s527 + $0x30] sm:$0xff]
        %v535 = vld [vmem:[%s527 + $0x38] sm:$0xff]
        %v544 = vrot.slane %v528, 5
        %v545 = vrot.slane %v529, 5
        %v546 = vrot.slane %v530, 5
        %v547 = vsel %vm492, %v544, %v546
        %v548 = vrot.slane %v531, 5
        %v549 = vsel %vm492, %v545, %v548
        %v550 = vrot.slane %v532, 5
        %v551 = vsel %vm492, %v546, %v550
        %v552 = vrot.slane %v533, 5
        %v553 = vsel %vm492, %v548, %v552
        %v554 = vrot.slane %v534, 5
        %v555 = vsel %vm492, %v550, %v554
        %v556 = vrot.slane %v535, 5
        %v557 = vsel %vm492, %v552, %v556
        %568 = vst [vmem:[#allocation2 + $0x50] sm:$0xf8] %v544
        %569 = vst [vmem:[#allocation2 + $0x58] sm:$0xf8] %v545
        %570 = vst [vmem:[#allocation2 + $0x60] sm:$0xff] %v547
        %571 = vst [vmem:[#allocation2 + $0x68] sm:$0xff] %v549
        %572 = vst [vmem:[#allocation2 + $0x70] sm:$0xff] %v551
        %573 = vst [vmem:[#allocation2 + $0x78] sm:$0xff] %v553
        %574 = vst [vmem:[#allocation2 + $0x80] sm:$0xff] %v555
        %575 = vst [vmem:[#allocation2 + $0x88] sm:$0xff] %v557
        %576 = vst [vmem:[#allocation2 + $0x90] sm:$0x7] %v554
        %577 = vst [vmem:[#allocation2 + $0x98] sm:$0x7] %v556
        %v578 = vld [vmem:[#allocation2] sm:$0xff]
        %v579 = vld [vmem:[#allocation2 + $0x8] sm:$0xff]
        %v580 = vld [vmem:[#allocation2 + $0x10] sm:$0xff]
        %v581 = vld [vmem:[#allocation2 + $0x18] sm:$0xff]
        %v582 = vld [vmem:[#allocation2 + $0x20] sm:$0xff]
        %v583 = vld [vmem:[#allocation2 + $0x28] sm:$0xff]
        %v584 = vld [vmem:[#allocation2 + $0x30] sm:$0xff]
        %v585 = vld [vmem:[#allocation2 + $0x38] sm:$0xff]
        %v586 = vld [vmem:[#allocation2 + $0x40] sm:$0xff]
        %v587 = vld [vmem:[#allocation2 + $0x48] sm:$0xff]
        %v588 = vld [vmem:[#allocation2 + $0x50] sm:$0xff]
        %v589 = vld [vmem:[#allocation2 + $0x58] sm:$0xff]
        %v590 = vld [vmem:[#allocation2 + $0x60] sm:$0xff]
        %v591 = vld [vmem:[#allocation2 + $0x68] sm:$0xff]
        %v592 = vld [vmem:[#allocation2 + $0x70] sm:$0xff]
        %v593 = vld [vmem:[#allocation2 + $0x78] sm:$0xff]
        %v594 = vld [vmem:[#allocation2 + $0x80] sm:$0xff]
        %v595 = vld [vmem:[#allocation2 + $0x88] sm:$0xff]
        %v596 = vld [vmem:[#allocation2 + $0x90] sm:$0xff]
        %v597 = vld [vmem:[#allocation2 + $0x98] sm:$0xff]
        %v598 = vpack.c.bf16 %v580, %v578
        %v599 = vpack.c.bf16 %v581, %v579
        %v600 = vpack.c.bf16 %v584, %v582
        %v601 = vpack.c.bf16 %v585, %v583
        %v602 = vpack.c.bf16 %v588, %v586
        %v603 = vpack.c.bf16 %v589, %v587
        %v604 = vpack.c.bf16 %v592, %v590
        %v605 = vpack.c.bf16 %v593, %v591
        %v606 = vpack.c.bf16 %v596, %v594
        %v607 = vpack.c.bf16 %v597, %v595
        %v608 = vld [vmem:[%s3] sm:$0xff]
        %v609 = vld [vmem:[%s3 + $0x8] sm:$0xff]
        %v610 = vld [vmem:[%s3 + $0x10] sm:$0xff]
        %v611 = vld [vmem:[%s3 + $0x18] sm:$0xff]
        %v612 = vld [vmem:[%s3 + $0x20] sm:$0xff]
        %v613 = vld [vmem:[%s3 + $0x28] sm:$0xff]
        %v614 = vld [vmem:[%s3 + $0x30] sm:$0xff]
        %v615 = vld [vmem:[%s3 + $0x38] sm:$0xff]
        %v616 = vld [vmem:[%s3 + $0x40] sm:$0xff]
        %v617 = vld [vmem:[%s3 + $0x48] sm:$0xff]
        %v618 = vld [vmem:[%s3 + $0x50] sm:$0xff]
        %v619 = vld [vmem:[%s3 + $0x58] sm:$0xff]
        %v620 = vld [vmem:[%s3 + $0x60] sm:$0xff]
        %v621 = vld [vmem:[%s3 + $0x68] sm:$0xff]
        %v622 = vld [vmem:[%s3 + $0x70] sm:$0xff]
        %v623 = vld [vmem:[%s3 + $0x78] sm:$0xff]
        %v624 = vld [vmem:[%s3 + $0x80] sm:$0xff]
        %v625 = vld [vmem:[%s3 + $0x88] sm:$0xff]
        %v626 = vld [vmem:[%s3 + $0x90] sm:$0xff]
        %v627 = vld [vmem:[%s3 + $0x98] sm:$0xff]
        %v628 = vld [vmem:[%s3 + $0xa0] sm:$0xff]
        %v629 = vld [vmem:[%s3 + $0xa8] sm:$0xff]
        %v630 = vld [vmem:[%s3 + $0xb0] sm:$0xff]
        %v631 = vld [vmem:[%s3 + $0xb8] sm:$0xff]
        %v632 = vld [vmem:[%s3 + $0xc0] sm:$0xff]
        %v633 = vld [vmem:[%s3 + $0xc8] sm:$0xff]
        %v634 = vld [vmem:[%s3 + $0xd0] sm:$0xff]
        %v635 = vld [vmem:[%s3 + $0xd8] sm:$0xff]
        %v636 = vld [vmem:[%s3 + $0xe0] sm:$0xff]
        %v637 = vld [vmem:[%s3 + $0xe8] sm:$0xff]
        %v638 = vld [vmem:[%s3 + $0xf0] sm:$0xff]
        %v639 = vld [vmem:[%s3 + $0xf8] sm:$0xff]
        %v640 = vld [vmem:[%s6] sm:$0x3]
        %v642 = vperm.slane %v640, 0
        %v643 = vperm.slane %v640, 1
        %v678 = vunpack.c.l.b16 %v608
        %v679 = vunpack.c.h.b16 %v608
        %v680 = vunpack.c.l.b16 %v609
        %v681 = vunpack.c.h.b16 %v609
        %v682 = vunpack.c.l.b16 %v610
        %v683 = vunpack.c.h.b16 %v610
        %v684 = vunpack.c.l.b16 %v611
        %v685 = vunpack.c.h.b16 %v611
        %v686 = vunpack.c.l.b16 %v612
        %v687 = vunpack.c.h.b16 %v612
        %v688 = vunpack.c.l.b16 %v613
        %v689 = vunpack.c.h.b16 %v613
        %v690 = vunpack.c.l.b16 %v614
        %v691 = vunpack.c.h.b16 %v614
        %v692 = vunpack.c.l.b16 %v615
        %v693 = vunpack.c.h.b16 %v615
        %v694 = vunpack.c.l.b16 %v616
        %v695 = vunpack.c.h.b16 %v616
        %v696 = vunpack.c.l.b16 %v617
        %v697 = vunpack.c.h.b16 %v617
        %v698 = vunpack.c.l.b16 %v618
        %v699 = vunpack.c.h.b16 %v618
        %v700 = vunpack.c.l.b16 %v619
        %v701 = vunpack.c.h.b16 %v619
        %v702 = vunpack.c.l.b16 %v620
        %v703 = vunpack.c.h.b16 %v620
        %v704 = vunpack.c.l.b16 %v621
        %v705 = vunpack.c.h.b16 %v621
        %v706 = vunpack.c.l.b16 %v622
        %v707 = vunpack.c.h.b16 %v622
        %v708 = vunpack.c.l.b16 %v623
        %v709 = vunpack.c.h.b16 %v623
        %v710 = vunpack.c.l.b16 %v624
        %v711 = vunpack.c.h.b16 %v624
        %v712 = vunpack.c.l.b16 %v625
        %v713 = vunpack.c.h.b16 %v625
        %v714 = vunpack.c.l.b16 %v626
        %v715 = vunpack.c.h.b16 %v626
        %v716 = vunpack.c.l.b16 %v627
        %v717 = vunpack.c.h.b16 %v627
        %v718 = vunpack.c.l.b16 %v628
        %v719 = vunpack.c.h.b16 %v628
        %v720 = vunpack.c.l.b16 %v629
        %v721 = vunpack.c.h.b16 %v629
        %v722 = vunpack.c.l.b16 %v630
        %v723 = vunpack.c.h.b16 %v630
        %v724 = vunpack.c.l.b16 %v631
        %v725 = vunpack.c.h.b16 %v631
        %v726 = vunpack.c.l.b16 %v632
        %v727 = vunpack.c.h.b16 %v632
        %v728 = vunpack.c.l.b16 %v633
        %v729 = vunpack.c.h.b16 %v633
        %v730 = vunpack.c.l.b16 %v634
        %v731 = vunpack.c.h.b16 %v634
        %v732 = vunpack.c.l.b16 %v635
        %v733 = vunpack.c.h.b16 %v635
        %v734 = vunpack.c.l.b16 %v636
        %v735 = vunpack.c.h.b16 %v636
        %v736 = vunpack.c.l.b16 %v637
        %v737 = vunpack.c.h.b16 %v637
        %v738 = vunpack.c.l.b16 %v638
        %v739 = vunpack.c.h.b16 %v638
        %v740 = vunpack.c.l.b16 %v639
        %v741 = vunpack.c.h.b16 %v639
        %v742 = vpack.c.b16 %v680, %v678
        %v743 = vpack.c.b16 %v681, %v679
        %v744 = vpack.c.b16 %v684, %v682
        %v745 = vpack.c.b16 %v685, %v683
        %v746 = vpack.c.b16 %v688, %v686
        %v747 = vpack.c.b16 %v689, %v687
        %v748 = vpack.c.b16 %v692, %v690
        %v749 = vpack.c.b16 %v693, %v691
        %v750 = vpack.c.b16 %v696, %v694
        %v751 = vpack.c.b16 %v697, %v695
        %v752 = vpack.c.b16 %v700, %v698
        %v753 = vpack.c.b16 %v701, %v699
        %v754 = vpack.c.b16 %v704, %v702
        %v755 = vpack.c.b16 %v705, %v703
        %v756 = vpack.c.b16 %v708, %v706
        %v757 = vpack.c.b16 %v709, %v707
        %v758 = vpack.c.b16 %v712, %v710
        %v759 = vpack.c.b16 %v713, %v711
        %v760 = vpack.c.b16 %v716, %v714
        %v761 = vpack.c.b16 %v717, %v715
        %v762 = vpack.c.b16 %v720, %v718
        %v763 = vpack.c.b16 %v721, %v719
        %v764 = vpack.c.b16 %v724, %v722
        %v765 = vpack.c.b16 %v725, %v723
        %v766 = vpack.c.b16 %v728, %v726
        %v767 = vpack.c.b16 %v729, %v727
        %v768 = vpack.c.b16 %v732, %v730
        %v769 = vpack.c.b16 %v733, %v731
        %v770 = vpack.c.b16 %v736, %v734
        %v771 = vpack.c.b16 %v737, %v735
        %v772 = vpack.c.b16 %v740, %v738
        %v773 = vpack.c.b16 %v741, %v739
        %806 = vmatpush.bf16.msra.mxu0 %v756
        %807 = vmatpush.bf16.msra.mxu0 %v754
        %808 = vmatpush.bf16.msra.mxu0 %v752
        %809 = vmatpush.bf16.msra.mxu0 %v750
        %810 = vmatpush.bf16.msra.mxu0 %v748
        %811 = vmatpush.bf16.msra.mxu0 %v746
        %812 = vmatpush.bf16.msra.mxu0 %v744
        %813 = vmatpush.bf16.msra.mxu0 %v742
        %814 = vmatmul.bf16.gmra.mxu0 %v598
        %v815 = vpop.f32.mrf.mxu0
        %v816 = vadd.f32 %v642, %v815
        %v817 = vpop.f32.mrf.mxu0
        %v818 = vadd.f32 %v642, %v817
        %819 = vmatmul.bf16.gmra.mxu0 %v600
        %v820 = vpop.f32.mrf.mxu0
        %v821 = vadd.f32 %v642, %v820
        %v822 = vpop.f32.mrf.mxu0
        %v823 = vadd.f32 %v642, %v822
        %824 = vmatmul.bf16.gmra.mxu0 %v602
        %v825 = vpop.f32.mrf.mxu0
        %v826 = vadd.f32 %v642, %v825
        %v827 = vpop.f32.mrf.mxu0
        %v828 = vadd.f32 %v642, %v827
        %829 = vmatmul.bf16.gmra.mxu0 %v604
        %v830 = vpop.f32.mrf.mxu0
        %v831 = vadd.f32 %v642, %v830
        %v832 = vpop.f32.mrf.mxu0
        %v833 = vadd.f32 %v642, %v832
        %834 = vmatmul.bf16.gmra.mxu0 %v606
        %v835 = vpop.f32.mrf.mxu0
        %v836 = vadd.f32 %v642, %v835
        %v837 = vpop.f32.mrf.mxu0
        %v838 = vadd.f32 %v642, %v837
        %839 = vdwg.mxu0
        %840 = vmatpush.bf16.msra.mxu0 %v772
        %841 = vmatpush.bf16.msra.mxu0 %v770
        %842 = vmatpush.bf16.msra.mxu0 %v768
        %843 = vmatpush.bf16.msra.mxu0 %v766
        %844 = vmatpush.bf16.msra.mxu0 %v764
        %845 = vmatpush.bf16.msra.mxu0 %v762
        %846 = vmatpush.bf16.msra.mxu0 %v760
        %847 = vmatpush.bf16.msra.mxu0 %v758
        %848 = vmatmul.bf16.gmra.mxu0 %v599
        %v849 = vpop.f32.mrf.mxu0
        %v850 = vadd.f32 %v816, %v849
        %v851 = vpop.f32.mrf.mxu0
        %v852 = vadd.f32 %v818, %v851
        %853 = vmatmul.bf16.gmra.mxu0 %v601
        %v854 = vpop.f32.mrf.mxu0
        %v855 = vadd.f32 %v821, %v854
        %v856 = vpop.f32.mrf.mxu0
        %v857 = vadd.f32 %v823, %v856
        %858 = vmatmul.bf16.gmra.mxu0 %v603
        %v859 = vpop.f32.mrf.mxu0
        %v860 = vadd.f32 %v826, %v859
        %v861 = vpop.f32.mrf.mxu0
        %v862 = vadd.f32 %v828, %v861
        %863 = vmatmul.bf16.gmra.mxu0 %v605
        %v864 = vpop.f32.mrf.mxu0
        %v865 = vadd.f32 %v831, %v864
        %v866 = vpop.f32.mrf.mxu0
        %v867 = vadd.f32 %v833, %v866
        %868 = vmatmul.bf16.gmra.mxu0 %v607
        %v869 = vpop.f32.mrf.mxu0
        %v870 = vadd.f32 %v836, %v869
        %v871 = vpop.f32.mrf.mxu0
        %v872 = vadd.f32 %v838, %v871
        %873 = vdwg.mxu0
        %874 = vmatpush.bf16.msra.mxu0 %v757
        %875 = vmatpush.bf16.msra.mxu0 %v755
        %876 = vmatpush.bf16.msra.mxu0 %v753
        %877 = vmatpush.bf16.msra.mxu0 %v751
        %878 = vmatpush.bf16.msra.mxu0 %v749
        %879 = vmatpush.bf16.msra.mxu0 %v747
        %880 = vmatpush.bf16.msra.mxu0 %v745
        %881 = vmatpush.bf16.msra.mxu0 %v743
        %882 = vmatmul.bf16.gmra.mxu0 %v598
        %v883 = vpop.f32.mrf.mxu0
        %v884 = vadd.f32 %v643, %v883
        %v885 = vpop.f32.mrf.mxu0
        %v886 = vadd.f32 %v643, %v885
        %887 = vmatmul.bf16.gmra.mxu0 %v600
        %v888 = vpop.f32.mrf.mxu0
        %v889 = vadd.f32 %v643, %v888
        %v890 = vpop.f32.mrf.mxu0
        %v891 = vadd.f32 %v643, %v890
        %892 = vmatmul.bf16.gmra.mxu0 %v602
        %v893 = vpop.f32.mrf.mxu0
        %v894 = vadd.f32 %v643, %v893
        %v895 = vpop.f32.mrf.mxu0
        %v896 = vadd.f32 %v643, %v895
        %897 = vmatmul.bf16.gmra.mxu0 %v604
        %v898 = vpop.f32.mrf.mxu0
        %v899 = vadd.f32 %v643, %v898
        %v900 = vpop.f32.mrf.mxu0
        %v901 = vadd.f32 %v643, %v900
        %902 = vmatmul.bf16.gmra.mxu0 %v606
        %v903 = vpop.f32.mrf.mxu0
        %v904 = vadd.f32 %v643, %v903
        %v905 = vpop.f32.mrf.mxu0
        %v906 = vadd.f32 %v643, %v905
        %907 = vdwg.mxu0
        %908 = vmatpush.bf16.msra.mxu0 %v773
        %909 = vmatpush.bf16.msra.mxu0 %v771
        %910 = vmatpush.bf16.msra.mxu0 %v769
        %911 = vmatpush.bf16.msra.mxu0 %v767
        %912 = vmatpush.bf16.msra.mxu0 %v765
        %913 = vmatpush.bf16.msra.mxu0 %v763
        %914 = vmatpush.bf16.msra.mxu0 %v761
        %915 = vmatpush.bf16.msra.mxu0 %v759
        %916 = vmatmul.bf16.gmra.mxu0 %v599
        %v917 = vpop.f32.mrf.mxu0
        %v918 = vadd.f32 %v884, %v917
        %v919 = vpop.f32.mrf.mxu0
        %v920 = vadd.f32 %v886, %v919
        %921 = vmatmul.bf16.gmra.mxu0 %v601
        %v922 = vpop.f32.mrf.mxu0
        %v923 = vadd.f32 %v889, %v922
        %v924 = vpop.f32.mrf.mxu0
        %v925 = vadd.f32 %v891, %v924
        %926 = vmatmul.bf16.gmra.mxu0 %v603
        %v927 = vpop.f32.mrf.mxu0
        %v928 = vadd.f32 %v894, %v927
        %v929 = vpop.f32.mrf.mxu0
        %v930 = vadd.f32 %v896, %v929
        %931 = vmatmul.bf16.gmra.mxu0 %v605
        %v932 = vpop.f32.mrf.mxu0
        %v933 = vadd.f32 %v899, %v932
        %v934 = vpop.f32.mrf.mxu0
        %v935 = vadd.f32 %v901, %v934
        %936 = vmatmul.bf16.gmra.mxu0 %v607
        %v937 = vpop.f32.mrf.mxu0
        %v938 = vadd.f32 %v904, %v937
        %v939 = vpop.f32.mrf.mxu0
        %v940 = vadd.f32 %v906, %v939
        %941 = vdwg.mxu0
        %942 = vst [vmem:[#allocation3] sm:$0xff] %v850
        %943 = vst [vmem:[#allocation3 + $0x8] sm:$0xff] %v918
        %944 = vst [vmem:[#allocation3 + $0x10] sm:$0xff] %v852
        %945 = vst [vmem:[#allocation3 + $0x18] sm:$0xff] %v920
        %946 = vst [vmem:[#allocation3 + $0x20] sm:$0xff] %v855
        %947 = vst [vmem:[#allocation3 + $0x28] sm:$0xff] %v923
        %948 = vst [vmem:[#allocation3 + $0x30] sm:$0xff] %v857
        %949 = vst [vmem:[#allocation3 + $0x38] sm:$0xff] %v925
        %950 = vst [vmem:[#allocation3 + $0x40] sm:$0xff] %v860
        %951 = vst [vmem:[#allocation3 + $0x48] sm:$0xff] %v928
        %952 = vst [vmem:[#allocation3 + $0x50] sm:$0xff] %v862
        %953 = vst [vmem:[#allocation3 + $0x58] sm:$0xff] %v930
        %954 = vst [vmem:[#allocation3 + $0x60] sm:$0xff] %v865
        %955 = vst [vmem:[#allocation3 + $0x68] sm:$0xff] %v933
        %956 = vst [vmem:[#allocation3 + $0x70] sm:$0xff] %v867
        %957 = vst [vmem:[#allocation3 + $0x78] sm:$0xff] %v935
        %958 = vst [vmem:[#allocation3 + $0x80] sm:$0xff] %v870
        %959 = vst [vmem:[#allocation3 + $0x88] sm:$0xff] %v938
        %960 = vst [vmem:[#allocation3 + $0x90] sm:$0xff] %v872
        %961 = vst [vmem:[#allocation3 + $0x98] sm:$0xff] %v940
        %v962 = vld [vmem:[#allocation3] sm:$0xff]
        %v963 = vld [vmem:[#allocation3 + $0x8] sm:$0xff]
        %v964 = vld [vmem:[#allocation3 + $0x10] sm:$0xff]
        %v965 = vld [vmem:[#allocation3 + $0x18] sm:$0xff]
        %v966 = vld [vmem:[#allocation3 + $0x20] sm:$0xff]
        %v967 = vld [vmem:[#allocation3 + $0x28] sm:$0xff]
        %v968 = vld [vmem:[#allocation3 + $0x30] sm:$0xff]
        %v969 = vld [vmem:[#allocation3 + $0x38] sm:$0xff]
        %v970 = vld [vmem:[#allocation3 + $0x40] sm:$0xff]
        %v971 = vld [vmem:[#allocation3 + $0x48] sm:$0xff]
        %v972 = vld [vmem:[#allocation3 + $0x50] sm:$0xff]
        %v973 = vld [vmem:[#allocation3 + $0x58] sm:$0xff]
        %v974 = vld [vmem:[#allocation3 + $0x60] sm:$0xff]
        %v975 = vld [vmem:[#allocation3 + $0x68] sm:$0xff]
        %v976 = vld [vmem:[#allocation3 + $0x70] sm:$0xff]
        %v977 = vld [vmem:[#allocation3 + $0x78] sm:$0xff]
        %v978 = vld [vmem:[#allocation3 + $0x80] sm:$0xff]
        %v979 = vld [vmem:[#allocation3 + $0x88] sm:$0xff]
        %v980 = vld [vmem:[#allocation3 + $0x90] sm:$0xff]
        %v981 = vld [vmem:[#allocation3 + $0x98] sm:$0xff]
        %v982 = vld [vmem:[#allocation2] sm:$0xfe]
        %v983 = vld [vmem:[#allocation2 + $0x8] sm:$0xfe]
        %v984 = vld [vmem:[#allocation2 + $0x10] sm:$0xff]
        %v985 = vld [vmem:[#allocation2 + $0x18] sm:$0xff]
        %v986 = vld [vmem:[#allocation2 + $0x20] sm:$0xff]
        %v987 = vld [vmem:[#allocation2 + $0x28] sm:$0xff]
        %v988 = vld [vmem:[#allocation2 + $0x30] sm:$0xff]
        %v989 = vld [vmem:[#allocation2 + $0x38] sm:$0xff]
        %v990 = vld [vmem:[#allocation2 + $0x40] sm:$0xff]
        %v991 = vld [vmem:[#allocation2 + $0x48] sm:$0xff]
        %v992 = vld [vmem:[#allocation2 + $0x50] sm:$0xff]
        %v993 = vld [vmem:[#allocation2 + $0x58] sm:$0xff]
        %v994 = vld [vmem:[#allocation2 + $0x60] sm:$0xff]
        %v995 = vld [vmem:[#allocation2 + $0x68] sm:$0xff]
        %v996 = vld [vmem:[#allocation2 + $0x70] sm:$0xff]
        %v997 = vld [vmem:[#allocation2 + $0x78] sm:$0xff]
        %v998 = vld [vmem:[#allocation2 + $0x80] sm:$0xff]
        %v999 = vld [vmem:[#allocation2 + $0x88] sm:$0xff]
        %v1000 = vld [vmem:[#allocation2 + $0x90] sm:$0xff]
        %v1001 = vld [vmem:[#allocation2 + $0x98] sm:$0xff]
        %v1002 = vld [vmem:[#allocation2 + $0xa0] sm:$0x1]
        %v1003 = vld [vmem:[#allocation2 + $0xa8] sm:$0x1]
        %v1004 = vpack.c.bf16 %v984, %v982
        %v1005 = vpack.c.bf16 %v985, %v983
        %v1006 = vpack.c.bf16 %v988, %v986
        %v1007 = vpack.c.bf16 %v989, %v987
        %v1008 = vpack.c.bf16 %v992, %v990
        %v1009 = vpack.c.bf16 %v993, %v991
        %v1010 = vpack.c.bf16 %v996, %v994
        %v1011 = vpack.c.bf16 %v997, %v995
        %v1012 = vpack.c.bf16 %v1000, %v998
        %v1013 = vpack.c.bf16 %v1001, %v999
        %v1014 = vpack.c.bf16 %v1002, %v1002
        %v1015 = vpack.c.bf16 %v1003, %v1003
        %s1016 = scalar_lea.vmem %s3, 256
        %v1017 = vld [vmem:[%s1016] sm:$0xff]
        %v1018 = vld [vmem:[%s1016 + $0x8] sm:$0xff]
        %v1019 = vld [vmem:[%s1016 + $0x10] sm:$0xff]
        %v1020 = vld [vmem:[%s1016 + $0x18] sm:$0xff]
        %v1021 = vld [vmem:[%s1016 + $0x20] sm:$0xff]
        %v1022 = vld [vmem:[%s1016 + $0x28] sm:$0xff]
        %v1023 = vld [vmem:[%s1016 + $0x30] sm:$0xff]
        %v1024 = vld [vmem:[%s1016 + $0x38] sm:$0xff]
        %v1025 = vld [vmem:[%s1016 + $0x40] sm:$0xff]
        %v1026 = vld [vmem:[%s1016 + $0x48] sm:$0xff]
        %v1027 = vld [vmem:[%s1016 + $0x50] sm:$0xff]
        %v1028 = vld [vmem:[%s1016 + $0x58] sm:$0xff]
        %v1029 = vld [vmem:[%s1016 + $0x60] sm:$0xff]
        %v1030 = vld [vmem:[%s1016 + $0x68] sm:$0xff]
        %v1031 = vld [vmem:[%s1016 + $0x70] sm:$0xff]
        %v1032 = vld [vmem:[%s1016 + $0x78] sm:$0xff]
        %v1033 = vld [vmem:[%s1016 + $0x80] sm:$0xff]
        %v1034 = vld [vmem:[%s1016 + $0x88] sm:$0xff]
        %v1035 = vld [vmem:[%s1016 + $0x90] sm:$0xff]
        %v1036 = vld [vmem:[%s1016 + $0x98] sm:$0xff]
        %v1037 = vld [vmem:[%s1016 + $0xa0] sm:$0xff]
        %v1038 = vld [vmem:[%s1016 + $0xa8] sm:$0xff]
        %v1039 = vld [vmem:[%s1016 + $0xb0] sm:$0xff]
        %v1040 = vld [vmem:[%s1016 + $0xb8] sm:$0xff]
        %v1041 = vld [vmem:[%s1016 + $0xc0] sm:$0xff]
        %v1042 = vld [vmem:[%s1016 + $0xc8] sm:$0xff]
        %v1043 = vld [vmem:[%s1016 + $0xd0] sm:$0xff]
        %v1044 = vld [vmem:[%s1016 + $0xd8] sm:$0xff]
        %v1045 = vld [vmem:[%s1016 + $0xe0] sm:$0xff]
        %v1046 = vld [vmem:[%s1016 + $0xe8] sm:$0xff]
        %v1047 = vld [vmem:[%s1016 + $0xf0] sm:$0xff]
        %v1048 = vld [vmem:[%s1016 + $0xf8] sm:$0xff]
        %vm1049 = vsmask.f32 7424
        %v1051 = vshrl.u32 %v1004, 16
        %v1053 = vshll.u32 %v1004, 16
        %v1055 = vrot.slane %v1053, 1
        %v1056 = vor.u32 %v1051, %v1055
        %v1058 = vshll.u32 %v1006, 16
        %v1060 = vrot.slane %v1058, 1
        %v1061 = vsel %vm1049, %v1056, %v1060
        %v1063 = vshrl.u32 %v1005, 16
        %v1065 = vshll.u32 %v1005, 16
        %v1067 = vrot.slane %v1065, 1
        %v1068 = vor.u32 %v1063, %v1067
        %v1070 = vshll.u32 %v1007, 16
        %v1072 = vrot.slane %v1070, 1
        %v1073 = vsel %vm1049, %v1068, %v1072
        %v1074 = vshrl.u32 %v1006, 16
        %v1076 = vor.u32 %v1074, %v1060
        %v1078 = vshll.u32 %v1008, 16
        %v1080 = vrot.slane %v1078, 1
        %v1081 = vsel %vm1049, %v1076, %v1080
        %v1082 = vshrl.u32 %v1007, 16
        %v1084 = vor.u32 %v1082, %v1072
        %v1086 = vshll.u32 %v1009, 16
        %v1088 = vrot.slane %v1086, 1
        %v1089 = vsel %vm1049, %v1084, %v1088
        %v1090 = vshrl.u32 %v1008, 16
        %v1092 = vor.u32 %v1090, %v1080
        %v1094 = vshll.u32 %v1010, 16
        %v1096 = vrot.slane %v1094, 1
        %v1097 = vsel %vm1049, %v1092, %v1096
        %v1098 = vshrl.u32 %v1009, 16
        %v1100 = vor.u32 %v1098, %v1088
        %v1102 = vshll.u32 %v1011, 16
        %v1104 = vrot.slane %v1102, 1
        %v1105 = vsel %vm1049, %v1100, %v1104
        %v1106 = vshrl.u32 %v1010, 16
        %v1108 = vor.u32 %v1106, %v1096
        %v1110 = vshll.u32 %v1012, 16
        %v1112 = vrot.slane %v1110, 1
        %v1113 = vsel %vm1049, %v1108, %v1112
        %v1114 = vshrl.u32 %v1011, 16
        %v1116 = vor.u32 %v1114, %v1104
        %v1118 = vshll.u32 %v1013, 16
        %v1120 = vrot.slane %v1118, 1
        %v1121 = vsel %vm1049, %v1116, %v1120
        %v1122 = vshrl.u32 %v1012, 16
        %v1124 = vor.u32 %v1122, %v1112
        %v1126 = vshll.u32 %v1014, 16
        %v1128 = vrot.slane %v1126, 1
        %v1129 = vsel %vm1049, %v1124, %v1128
        %v1130 = vshrl.u32 %v1013, 16
        %v1132 = vor.u32 %v1130, %v1120
        %v1134 = vshll.u32 %v1015, 16
        %v1136 = vrot.slane %v1134, 1
        %v1137 = vsel %vm1049, %v1132, %v1136
        %v1180 = vunpack.c.l.b16 %v1017
        %v1181 = vunpack.c.h.b16 %v1017
        %v1182 = vunpack.c.l.b16 %v1018
        %v1183 = vunpack.c.h.b16 %v1018
        %v1184 = vunpack.c.l.b16 %v1019
        %v1185 = vunpack.c.h.b16 %v1019
        %v1186 = vunpack.c.l.b16 %v1020
        %v1187 = vunpack.c.h.b16 %v1020
        %v1188 = vunpack.c.l.b16 %v1021
        %v1189 = vunpack.c.h.b16 %v1021
        %v1190 = vunpack.c.l.b16 %v1022
        %v1191 = vunpack.c.h.b16 %v1022
        %v1192 = vunpack.c.l.b16 %v1023
        %v1193 = vunpack.c.h.b16 %v1023
        %v1194 = vunpack.c.l.b16 %v1024
        %v1195 = vunpack.c.h.b16 %v1024
        %v1196 = vunpack.c.l.b16 %v1025
        %v1197 = vunpack.c.h.b16 %v1025
        %v1198 = vunpack.c.l.b16 %v1026
        %v1199 = vunpack.c.h.b16 %v1026
        %v1200 = vunpack.c.l.b16 %v1027
        %v1201 = vunpack.c.h.b16 %v1027
        %v1202 = vunpack.c.l.b16 %v1028
        %v1203 = vunpack.c.h.b16 %v1028
        %v1204 = vunpack.c.l.b16 %v1029
        %v1205 = vunpack.c.h.b16 %v1029
        %v1206 = vunpack.c.l.b16 %v1030
        %v1207 = vunpack.c.h.b16 %v1030
        %v1208 = vunpack.c.l.b16 %v1031
        %v1209 = vunpack.c.h.b16 %v1031
        %v1210 = vunpack.c.l.b16 %v1032
        %v1211 = vunpack.c.h.b16 %v1032
        %v1212 = vunpack.c.l.b16 %v1033
        %v1213 = vunpack.c.h.b16 %v1033
        %v1214 = vunpack.c.l.b16 %v1034
        %v1215 = vunpack.c.h.b16 %v1034
        %v1216 = vunpack.c.l.b16 %v1035
        %v1217 = vunpack.c.h.b16 %v1035
        %v1218 = vunpack.c.l.b16 %v1036
        %v1219 = vunpack.c.h.b16 %v1036
        %v1220 = vunpack.c.l.b16 %v1037
        %v1221 = vunpack.c.h.b16 %v1037
        %v1222 = vunpack.c.l.b16 %v1038
        %v1223 = vunpack.c.h.b16 %v1038
        %v1224 = vunpack.c.l.b16 %v1039
        %v1225 = vunpack.c.h.b16 %v1039
        %v1226 = vunpack.c.l.b16 %v1040
        %v1227 = vunpack.c.h.b16 %v1040
        %v1228 = vunpack.c.l.b16 %v1041
        %v1229 = vunpack.c.h.b16 %v1041
        %v1230 = vunpack.c.l.b16 %v1042
        %v1231 = vunpack.c.h.b16 %v1042
        %v1232 = vunpack.c.l.b16 %v1043
        %v1233 = vunpack.c.h.b16 %v1043
        %v1234 = vunpack.c.l.b16 %v1044
        %v1235 = vunpack.c.h.b16 %v1044
        %v1236 = vunpack.c.l.b16 %v1045
        %v1237 = vunpack.c.h.b16 %v1045
        %v1238 = vunpack.c.l.b16 %v1046
        %v1239 = vunpack.c.h.b16 %v1046
        %v1240 = vunpack.c.l.b16 %v1047
        %v1241 = vunpack.c.h.b16 %v1047
        %v1242 = vunpack.c.l.b16 %v1048
        %v1243 = vunpack.c.h.b16 %v1048
        %v1244 = vpack.c.b16 %v1182, %v1180
        %v1245 = vpack.c.b16 %v1183, %v1181
        %v1246 = vpack.c.b16 %v1186, %v1184
        %v1247 = vpack.c.b16 %v1187, %v1185
        %v1248 = vpack.c.b16 %v1190, %v1188
        %v1249 = vpack.c.b16 %v1191, %v1189
        %v1250 = vpack.c.b16 %v1194, %v1192
        %v1251 = vpack.c.b16 %v1195, %v1193
        %v1252 = vpack.c.b16 %v1198, %v1196
        %v1253 = vpack.c.b16 %v1199, %v1197
        %v1254 = vpack.c.b16 %v1202, %v1200
        %v1255 = vpack.c.b16 %v1203, %v1201
        %v1256 = vpack.c.b16 %v1206, %v1204
        %v1257 = vpack.c.b16 %v1207, %v1205
        %v1258 = vpack.c.b16 %v1210, %v1208
        %v1259 = vpack.c.b16 %v1211, %v1209
        %v1260 = vpack.c.b16 %v1214, %v1212
        %v1261 = vpack.c.b16 %v1215, %v1213
        %v1262 = vpack.c.b16 %v1218, %v1216
        %v1263 = vpack.c.b16 %v1219, %v1217
        %v1264 = vpack.c.b16 %v1222, %v1220
        %v1265 = vpack.c.b16 %v1223, %v1221
        %v1266 = vpack.c.b16 %v1226, %v1224
        %v1267 = vpack.c.b16 %v1227, %v1225
        %v1268 = vpack.c.b16 %v1230, %v1228
        %v1269 = vpack.c.b16 %v1231, %v1229
        %v1270 = vpack.c.b16 %v1234, %v1232
        %v1271 = vpack.c.b16 %v1235, %v1233
        %v1272 = vpack.c.b16 %v1238, %v1236
        %v1273 = vpack.c.b16 %v1239, %v1237
        %v1274 = vpack.c.b16 %v1242, %v1240
        %v1275 = vpack.c.b16 %v1243, %v1241
        %1308 = vmatpush.bf16.msra.mxu0 %v1258
        %1309 = vmatpush.bf16.msra.mxu0 %v1256
        %1310 = vmatpush.bf16.msra.mxu0 %v1254
        %1311 = vmatpush.bf16.msra.mxu0 %v1252
        %1312 = vmatpush.bf16.msra.mxu0 %v1250
        %1313 = vmatpush.bf16.msra.mxu0 %v1248
        %1314 = vmatpush.bf16.msra.mxu0 %v1246
        %1315 = vmatpush.bf16.msra.mxu0 %v1244
        %1316 = vmatmul.bf16.gmra.mxu0 %v1061
        %v1317 = vpop.f32.mrf.mxu0
        %v1318 = vadd.f32 0.0, %v1317
        %v1319 = vpop.f32.mrf.mxu0
        %v1320 = vadd.f32 0.0, %v1319
        %1321 = vmatmul.bf16.gmra.mxu0 %v1081
        %v1322 = vpop.f32.mrf.mxu0
        %v1323 = vadd.f32 0.0, %v1322
        %v1324 = vpop.f32.mrf.mxu0
        %v1325 = vadd.f32 0.0, %v1324
        %1326 = vmatmul.bf16.gmra.mxu0 %v1097
        %v1327 = vpop.f32.mrf.mxu0
        %v1328 = vadd.f32 0.0, %v1327
        %v1329 = vpop.f32.mrf.mxu0
        %v1330 = vadd.f32 0.0, %v1329
        %1331 = vmatmul.bf16.gmra.mxu0 %v1113
        %v1332 = vpop.f32.mrf.mxu0
        %v1333 = vadd.f32 0.0, %v1332
        %v1334 = vpop.f32.mrf.mxu0
        %v1335 = vadd.f32 0.0, %v1334
        %1336 = vmatmul.bf16.gmra.mxu0 %v1129
        %v1337 = vpop.f32.mrf.mxu0
        %v1338 = vadd.f32 0.0, %v1337
        %v1339 = vpop.f32.mrf.mxu0
        %v1340 = vadd.f32 0.0, %v1339
        %1341 = vdwg.mxu0
        %1342 = vmatpush.bf16.msra.mxu0 %v1274
        %1343 = vmatpush.bf16.msra.mxu0 %v1272
        %1344 = vmatpush.bf16.msra.mxu0 %v1270
        %1345 = vmatpush.bf16.msra.mxu0 %v1268
        %1346 = vmatpush.bf16.msra.mxu0 %v1266
        %1347 = vmatpush.bf16.msra.mxu0 %v1264
        %1348 = vmatpush.bf16.msra.mxu0 %v1262
        %1349 = vmatpush.bf16.msra.mxu0 %v1260
        %1350 = vmatmul.bf16.gmra.mxu0 %v1073
        %v1351 = vpop.f32.mrf.mxu0
        %v1352 = vadd.f32 %v1318, %v1351
        %v1353 = vpop.f32.mrf.mxu0
        %v1354 = vadd.f32 %v1320, %v1353
        %1355 = vmatmul.bf16.gmra.mxu0 %v1089
        %v1356 = vpop.f32.mrf.mxu0
        %v1357 = vadd.f32 %v1323, %v1356
        %v1358 = vpop.f32.mrf.mxu0
        %v1359 = vadd.f32 %v1325, %v1358
        %1360 = vmatmul.bf16.gmra.mxu0 %v1105
        %v1361 = vpop.f32.mrf.mxu0
        %v1362 = vadd.f32 %v1328, %v1361
        %v1363 = vpop.f32.mrf.mxu0
        %v1364 = vadd.f32 %v1330, %v1363
        %1365 = vmatmul.bf16.gmra.mxu0 %v1121
        %v1366 = vpop.f32.mrf.mxu0
        %v1367 = vadd.f32 %v1333, %v1366
        %v1368 = vpop.f32.mrf.mxu0
        %v1369 = vadd.f32 %v1335, %v1368
        %1370 = vmatmul.bf16.gmra.mxu0 %v1137
        %v1371 = vpop.f32.mrf.mxu0
        %v1372 = vadd.f32 %v1338, %v1371
        %v1373 = vpop.f32.mrf.mxu0
        %v1374 = vadd.f32 %v1340, %v1373
        %1375 = vdwg.mxu0
        %1376 = vmatpush.bf16.msra.mxu0 %v1259
        %1377 = vmatpush.bf16.msra.mxu0 %v1257
        %1378 = vmatpush.bf16.msra.mxu0 %v1255
        %1379 = vmatpush.bf16.msra.mxu0 %v1253
        %1380 = vmatpush.bf16.msra.mxu0 %v1251
        %1381 = vmatpush.bf16.msra.mxu0 %v1249
        %1382 = vmatpush.bf16.msra.mxu0 %v1247
        %1383 = vmatpush.bf16.msra.mxu0 %v1245
        %1384 = vmatmul.bf16.gmra.mxu0 %v1061
        %v1385 = vpop.f32.mrf.mxu0
        %v1386 = vadd.f32 0.0, %v1385
        %v1387 = vpop.f32.mrf.mxu0
        %v1388 = vadd.f32 0.0, %v1387
        %1389 = vmatmul.bf16.gmra.mxu0 %v1081
        %v1390 = vpop.f32.mrf.mxu0
        %v1391 = vadd.f32 0.0, %v1390
        %v1392 = vpop.f32.mrf.mxu0
        %v1393 = vadd.f32 0.0, %v1392
        %1394 = vmatmul.bf16.gmra.mxu0 %v1097
        %v1395 = vpop.f32.mrf.mxu0
        %v1396 = vadd.f32 0.0, %v1395
        %v1397 = vpop.f32.mrf.mxu0
        %v1398 = vadd.f32 0.0, %v1397
        %1399 = vmatmul.bf16.gmra.mxu0 %v1113
        %v1400 = vpop.f32.mrf.mxu0
        %v1401 = vadd.f32 0.0, %v1400
        %v1402 = vpop.f32.mrf.mxu0
        %v1403 = vadd.f32 0.0, %v1402
        %1404 = vmatmul.bf16.gmra.mxu0 %v1129
        %v1405 = vpop.f32.mrf.mxu0
        %v1406 = vadd.f32 0.0, %v1405
        %v1407 = vpop.f32.mrf.mxu0
        %v1408 = vadd.f32 0.0, %v1407
        %1409 = vdwg.mxu0
        %1410 = vmatpush.bf16.msra.mxu0 %v1275
        %1411 = vmatpush.bf16.msra.mxu0 %v1273
        %1412 = vmatpush.bf16.msra.mxu0 %v1271
        %1413 = vmatpush.bf16.msra.mxu0 %v1269
        %1414 = vmatpush.bf16.msra.mxu0 %v1267
        %1415 = vmatpush.bf16.msra.mxu0 %v1265
        %1416 = vmatpush.bf16.msra.mxu0 %v1263
        %1417 = vmatpush.bf16.msra.mxu0 %v1261
        %1418 = vmatmul.bf16.gmra.mxu0 %v1073
        %v1419 = vpop.f32.mrf.mxu0
        %v1420 = vadd.f32 %v1386, %v1419
        %v1421 = vpop.f32.mrf.mxu0
        %v1422 = vadd.f32 %v1388, %v1421
        %1423 = vmatmul.bf16.gmra.mxu0 %v1089
        %v1424 = vpop.f32.mrf.mxu0
        %v1425 = vadd.f32 %v1391, %v1424
        %v1426 = vpop.f32.mrf.mxu0
        %v1427 = vadd.f32 %v1393, %v1426
        %1428 = vmatmul.bf16.gmra.mxu0 %v1105
        %v1429 = vpop.f32.mrf.mxu0
        %v1430 = vadd.f32 %v1396, %v1429
        %v1431 = vpop.f32.mrf.mxu0
        %v1432 = vadd.f32 %v1398, %v1431
        %1433 = vmatmul.bf16.gmra.mxu0 %v1121
        %v1434 = vpop.f32.mrf.mxu0
        %v1435 = vadd.f32 %v1401, %v1434
        %v1436 = vpop.f32.mrf.mxu0
        %v1437 = vadd.f32 %v1403, %v1436
        %1438 = vmatmul.bf16.gmra.mxu0 %v1137
        %v1439 = vpop.f32.mrf.mxu0
        %v1440 = vadd.f32 %v1406, %v1439
        %v1441 = vpop.f32.mrf.mxu0
        %v1442 = vadd.f32 %v1408, %v1441
        %1443 = vdwg.mxu0
        %v1444 = vadd.f32 %v962, %v1352
        %v1445 = vadd.f32 %v963, %v1420
        %v1446 = vadd.f32 %v964, %v1354
        %v1447 = vadd.f32 %v965, %v1422
        %v1448 = vadd.f32 %v966, %v1357
        %v1449 = vadd.f32 %v967, %v1425
        %v1450 = vadd.f32 %v968, %v1359
        %v1451 = vadd.f32 %v969, %v1427
        %v1452 = vadd.f32 %v970, %v1362
        %v1453 = vadd.f32 %v971, %v1430
        %v1454 = vadd.f32 %v972, %v1364
        %v1455 = vadd.f32 %v973, %v1432
        %v1456 = vadd.f32 %v974, %v1367
        %v1457 = vadd.f32 %v975, %v1435
        %v1458 = vadd.f32 %v976, %v1369
        %v1459 = vadd.f32 %v977, %v1437
        %v1460 = vadd.f32 %v978, %v1372
        %v1461 = vadd.f32 %v979, %v1440
        %v1462 = vadd.f32 %v980, %v1374
        %v1463 = vadd.f32 %v981, %v1442
        %1464 = vst [vmem:[#allocation3] sm:$0xff] %v1444
        %1465 = vst [vmem:[#allocation3 + $0x8] sm:$0xff] %v1445
        %1466 = vst [vmem:[#allocation3 + $0x10] sm:$0xff] %v1446
        %1467 = vst [vmem:[#allocation3 + $0x18] sm:$0xff] %v1447
        %1468 = vst [vmem:[#allocation3 + $0x20] sm:$0xff] %v1448
        %1469 = vst [vmem:[#allocation3 + $0x28] sm:$0xff] %v1449
        %1470 = vst [vmem:[#allocation3 + $0x30] sm:$0xff] %v1450
        %1471 = vst [vmem:[#allocation3 + $0x38] sm:$0xff] %v1451
        %1472 = vst [vmem:[#allocation3 + $0x40] sm:$0xff] %v1452
        %1473 = vst [vmem:[#allocation3 + $0x48] sm:$0xff] %v1453
        %1474 = vst [vmem:[#allocation3 + $0x50] sm:$0xff] %v1454
        %1475 = vst [vmem:[#allocation3 + $0x58] sm:$0xff] %v1455
        %1476 = vst [vmem:[#allocation3 + $0x60] sm:$0xff] %v1456
        %1477 = vst [vmem:[#allocation3 + $0x68] sm:$0xff] %v1457
        %1478 = vst [vmem:[#allocation3 + $0x70] sm:$0xff] %v1458
        %1479 = vst [vmem:[#allocation3 + $0x78] sm:$0xff] %v1459
        %1480 = vst [vmem:[#allocation3 + $0x80] sm:$0xff] %v1460
        %1481 = vst [vmem:[#allocation3 + $0x88] sm:$0xff] %v1461
        %1482 = vst [vmem:[#allocation3 + $0x90] sm:$0xff] %v1462
        %1483 = vst [vmem:[#allocation3 + $0x98] sm:$0xff] %v1463
        %v1484 = vld [vmem:[#allocation3] sm:$0xff]
        %v1485 = vld [vmem:[#allocation3 + $0x8] sm:$0xff]
        %v1486 = vld [vmem:[#allocation3 + $0x10] sm:$0xff]
        %v1487 = vld [vmem:[#allocation3 + $0x18] sm:$0xff]
        %v1488 = vld [vmem:[#allocation3 + $0x20] sm:$0xff]
        %v1489 = vld [vmem:[#allocation3 + $0x28] sm:$0xff]
        %v1490 = vld [vmem:[#allocation3 + $0x30] sm:$0xff]
        %v1491 = vld [vmem:[#allocation3 + $0x38] sm:$0xff]
        %v1492 = vld [vmem:[#allocation3 + $0x40] sm:$0xff]
        %v1493 = vld [vmem:[#allocation3 + $0x48] sm:$0xff]
        %v1494 = vld [vmem:[#allocation3 + $0x50] sm:$0xff]
        %v1495 = vld [vmem:[#allocation3 + $0x58] sm:$0xff]
        %v1496 = vld [vmem:[#allocation3 + $0x60] sm:$0xff]
        %v1497 = vld [vmem:[#allocation3 + $0x68] sm:$0xff]
        %v1498 = vld [vmem:[#allocation3 + $0x70] sm:$0xff]
        %v1499 = vld [vmem:[#allocation3 + $0x78] sm:$0xff]
        %v1500 = vld [vmem:[#allocation3 + $0x80] sm:$0xff]
        %v1501 = vld [vmem:[#allocation3 + $0x88] sm:$0xff]
        %v1502 = vld [vmem:[#allocation3 + $0x90] sm:$0xff]
        %v1503 = vld [vmem:[#allocation3 + $0x98] sm:$0xff]
        %v1504 = vld [vmem:[#allocation2] sm:$0xfc]
        %v1505 = vld [vmem:[#allocation2 + $0x8] sm:$0xfc]
        %v1506 = vld [vmem:[#allocation2 + $0x10] sm:$0xff]
        %v1507 = vld [vmem:[#allocation2 + $0x18] sm:$0xff]
        %v1508 = vld [vmem:[#allocation2 + $0x20] sm:$0xff]
        %v1509 = vld [vmem:[#allocation2 + $0x28] sm:$0xff]
        %v1510 = vld [vmem:[#allocation2 + $0x30] sm:$0xff]
        %v1511 = vld [vmem:[#allocation2 + $0x38] sm:$0xff]
        %v1512 = vld [vmem:[#allocation2 + $0x40] sm:$0xff]
        %v1513 = vld [vmem:[#allocation2 + $0x48] sm:$0xff]
        %v1514 = vld [vmem:[#allocation2 + $0x50] sm:$0xff]
        %v1515 = vld [vmem:[#allocation2 + $0x58] sm:$0xff]
        %v1516 = vld [vmem:[#allocation2 + $0x60] sm:$0xff]
        %v1517 = vld [vmem:[#allocation2 + $0x68] sm:$0xff]
        %v1518 = vld [vmem:[#allocation2 + $0x70] sm:$0xff]
        %v1519 = vld [vmem:[#allocation2 + $0x78] sm:$0xff]
        %v1520 = vld [vmem:[#allocation2 + $0x80] sm:$0xff]
        %v1521 = vld [vmem:[#allocation2 + $0x88] sm:$0xff]
        %v1522 = vld [vmem:[#allocation2 + $0x90] sm:$0xff]
        %v1523 = vld [vmem:[#allocation2 + $0x98] sm:$0xff]
        %v1524 = vld [vmem:[#allocation2 + $0xa0] sm:$0x3]
        %v1525 = vld [vmem:[#allocation2 + $0xa8] sm:$0x3]
        %v1526 = vpack.c.bf16 %v1506, %v1504
        %v1527 = vpack.c.bf16 %v1507, %v1505
        %v1528 = vpack.c.bf16 %v1510, %v1508
        %v1529 = vpack.c.bf16 %v1511, %v1509
        %v1530 = vpack.c.bf16 %v1514, %v1512
        %v1531 = vpack.c.bf16 %v1515, %v1513
        %v1532 = vpack.c.bf16 %v1518, %v1516
        %v1533 = vpack.c.bf16 %v1519, %v1517
        %v1534 = vpack.c.bf16 %v1522, %v1520
        %v1535 = vpack.c.bf16 %v1523, %v1521
        %v1536 = vpack.c.bf16 %v1524, %v1524
        %v1537 = vpack.c.bf16 %v1525, %v1525
        %s1538 = scalar_lea.vmem %s3, 512
        %v1539 = vld [vmem:[%s1538] sm:$0xff]
        %v1540 = vld [vmem:[%s1538 + $0x8] sm:$0xff]
        %v1541 = vld [vmem:[%s1538 + $0x10] sm:$0xff]
        %v1542 = vld [vmem:[%s1538 + $0x18] sm:$0xff]
        %v1543 = vld [vmem:[%s1538 + $0x20] sm:$0xff]
        %v1544 = vld [vmem:[%s1538 + $0x28] sm:$0xff]
        %v1545 = vld [vmem:[%s1538 + $0x30] sm:$0xff]
        %v1546 = vld [vmem:[%s1538 + $0x38] sm:$0xff]
        %v1547 = vld [vmem:[%s1538 + $0x40] sm:$0xff]
        %v1548 = vld [vmem:[%s1538 + $0x48] sm:$0xff]
        %v1549 = vld [vmem:[%s1538 + $0x50] sm:$0xff]
        %v1550 = vld [vmem:[%s1538 + $0x58] sm:$0xff]
        %v1551 = vld [vmem:[%s1538 + $0x60] sm:$0xff]
        %v1552 = vld [vmem:[%s1538 + $0x68] sm:$0xff]
        %v1553 = vld [vmem:[%s1538 + $0x70] sm:$0xff]
        %v1554 = vld [vmem:[%s1538 + $0x78] sm:$0xff]
        %v1555 = vld [vmem:[%s1538 + $0x80] sm:$0xff]
        %v1556 = vld [vmem:[%s1538 + $0x88] sm:$0xff]
        %v1557 = vld [vmem:[%s1538 + $0x90] sm:$0xff]
        %v1558 = vld [vmem:[%s1538 + $0x98] sm:$0xff]
        %v1559 = vld [vmem:[%s1538 + $0xa0] sm:$0xff]
        %v1560 = vld [vmem:[%s1538 + $0xa8] sm:$0xff]
        %v1561 = vld [vmem:[%s1538 + $0xb0] sm:$0xff]
        %v1562 = vld [vmem:[%s1538 + $0xb8] sm:$0xff]
        %v1563 = vld [vmem:[%s1538 + $0xc0] sm:$0xff]
        %v1564 = vld [vmem:[%s1538 + $0xc8] sm:$0xff]
        %v1565 = vld [vmem:[%s1538 + $0xd0] sm:$0xff]
        %v1566 = vld [vmem:[%s1538 + $0xd8] sm:$0xff]
        %v1567 = vld [vmem:[%s1538 + $0xe0] sm:$0xff]
        %v1568 = vld [vmem:[%s1538 + $0xe8] sm:$0xff]
        %v1569 = vld [vmem:[%s1538 + $0xf0] sm:$0xff]
        %v1570 = vld [vmem:[%s1538 + $0xf8] sm:$0xff]
        %vm1583 = vcmask 1046528
        %v1584 = vrot.slane %v1526, 1
        %v1585 = vrot.slane %v1528, 1
        %v1586 = vsel %vm1583, %v1584, %v1585
        %v1587 = vrot.slane %v1527, 1
        %v1588 = vrot.slane %v1529, 1
        %v1589 = vsel %vm1583, %v1587, %v1588
        %v1590 = vrot.slane %v1530, 1
        %v1591 = vsel %vm1583, %v1585, %v1590
        %v1592 = vrot.slane %v1531, 1
        %v1593 = vsel %vm1583, %v1588, %v1592
        %v1594 = vrot.slane %v1532, 1
        %v1595 = vsel %vm1583, %v1590, %v1594
        %v1596 = vrot.slane %v1533, 1
        %v1597 = vsel %vm1583, %v1592, %v1596
        %v1598 = vrot.slane %v1534, 1
        %v1599 = vsel %vm1583, %v1594, %v1598
        %v1600 = vrot.slane %v1535, 1
        %v1601 = vsel %vm1583, %v1596, %v1600
        %v1602 = vrot.slane %v1536, 1
        %v1603 = vsel %vm1583, %v1598, %v1602
        %v1604 = vrot.slane %v1537, 1
        %v1605 = vsel %vm1583, %v1600, %v1604
        %v1648 = vunpack.c.l.b16 %v1539
        %v1649 = vunpack.c.h.b16 %v1539
        %v1650 = vunpack.c.l.b16 %v1540
        %v1651 = vunpack.c.h.b16 %v1540
        %v1652 = vunpack.c.l.b16 %v1541
        %v1653 = vunpack.c.h.b16 %v1541
        %v1654 = vunpack.c.l.b16 %v1542
        %v1655 = vunpack.c.h.b16 %v1542
        %v1656 = vunpack.c.l.b16 %v1543
        %v1657 = vunpack.c.h.b16 %v1543
        %v1658 = vunpack.c.l.b16 %v1544
        %v1659 = vunpack.c.h.b16 %v1544
        %v1660 = vunpack.c.l.b16 %v1545
        %v1661 = vunpack.c.h.b16 %v1545
        %v1662 = vunpack.c.l.b16 %v1546
        %v1663 = vunpack.c.h.b16 %v1546
        %v1664 = vunpack.c.l.b16 %v1547
        %v1665 = vunpack.c.h.b16 %v1547
        %v1666 = vunpack.c.l.b16 %v1548
        %v1667 = vunpack.c.h.b16 %v1548
        %v1668 = vunpack.c.l.b16 %v1549
        %v1669 = vunpack.c.h.b16 %v1549
        %v1670 = vunpack.c.l.b16 %v1550
        %v1671 = vunpack.c.h.b16 %v1550
        %v1672 = vunpack.c.l.b16 %v1551
        %v1673 = vunpack.c.h.b16 %v1551
        %v1674 = vunpack.c.l.b16 %v1552
        %v1675 = vunpack.c.h.b16 %v1552
        %v1676 = vunpack.c.l.b16 %v1553
        %v1677 = vunpack.c.h.b16 %v1553
        %v1678 = vunpack.c.l.b16 %v1554
        %v1679 = vunpack.c.h.b16 %v1554
        %v1680 = vunpack.c.l.b16 %v1555
        %v1681 = vunpack.c.h.b16 %v1555
        %v1682 = vunpack.c.l.b16 %v1556
        %v1683 = vunpack.c.h.b16 %v1556
        %v1684 = vunpack.c.l.b16 %v1557
        %v1685 = vunpack.c.h.b16 %v1557
        %v1686 = vunpack.c.l.b16 %v1558
        %v1687 = vunpack.c.h.b16 %v1558
        %v1688 = vunpack.c.l.b16 %v1559
        %v1689 = vunpack.c.h.b16 %v1559
        %v1690 = vunpack.c.l.b16 %v1560
        %v1691 = vunpack.c.h.b16 %v1560
        %v1692 = vunpack.c.l.b16 %v1561
        %v1693 = vunpack.c.h.b16 %v1561
        %v1694 = vunpack.c.l.b16 %v1562
        %v1695 = vunpack.c.h.b16 %v1562
        %v1696 = vunpack.c.l.b16 %v1563
        %v1697 = vunpack.c.h.b16 %v1563
        %v1698 = vunpack.c.l.b16 %v1564
        %v1699 = vunpack.c.h.b16 %v1564
        %v1700 = vunpack.c.l.b16 %v1565
        %v1701 = vunpack.c.h.b16 %v1565
        %v1702 = vunpack.c.l.b16 %v1566
        %v1703 = vunpack.c.h.b16 %v1566
        %v1704 = vunpack.c.l.b16 %v1567
        %v1705 = vunpack.c.h.b16 %v1567
        %v1706 = vunpack.c.l.b16 %v1568
        %v1707 = vunpack.c.h.b16 %v1568
        %v1708 = vunpack.c.l.b16 %v1569
        %v1709 = vunpack.c.h.b16 %v1569
        %v1710 = vunpack.c.l.b16 %v1570
        %v1711 = vunpack.c.h.b16 %v1570
        %v1712 = vpack.c.b16 %v1650, %v1648
        %v1713 = vpack.c.b16 %v1651, %v1649
        %v1714 = vpack.c.b16 %v1654, %v1652
        %v1715 = vpack.c.b16 %v1655, %v1653
        %v1716 = vpack.c.b16 %v1658, %v1656
        %v1717 = vpack.c.b16 %v1659, %v1657
        %v1718 = vpack.c.b16 %v1662, %v1660
        %v1719 = vpack.c.b16 %v1663, %v1661
        %v1720 = vpack.c.b16 %v1666, %v1664
        %v1721 = vpack.c.b16 %v1667, %v1665
        %v1722 = vpack.c.b16 %v1670, %v1668
        %v1723 = vpack.c.b16 %v1671, %v1669
        %v1724 = vpack.c.b16 %v1674, %v1672
        %v1725 = vpack.c.b16 %v1675, %v1673
        %v1726 = vpack.c.b16 %v1678, %v1676
        %v1727 = vpack.c.b16 %v1679, %v1677
        %v1728 = vpack.c.b16 %v1682, %v1680
        %v1729 = vpack.c.b16 %v1683, %v1681
        %v1730 = vpack.c.b16 %v1686, %v1684
        %v1731 = vpack.c.b16 %v1687, %v1685
        %v1732 = vpack.c.b16 %v1690, %v1688
        %v1733 = vpack.c.b16 %v1691, %v1689
        %v1734 = vpack.c.b16 %v1694, %v1692
        %v1735 = vpack.c.b16 %v1695, %v1693
        %v1736 = vpack.c.b16 %v1698, %v1696
        %v1737 = vpack.c.b16 %v1699, %v1697
        %v1738 = vpack.c.b16 %v1702, %v1700
        %v1739 = vpack.c.b16 %v1703, %v1701
        %v1740 = vpack.c.b16 %v1706, %v1704
        %v1741 = vpack.c.b16 %v1707, %v1705
        %v1742 = vpack.c.b16 %v1710, %v1708
        %v1743 = vpack.c.b16 %v1711, %v1709
        %1776 = vmatpush.bf16.msra.mxu0 %v1726
        %1777 = vmatpush.bf16.msra.mxu0 %v1724
        %1778 = vmatpush.bf16.msra.mxu0 %v1722
        %1779 = vmatpush.bf16.msra.mxu0 %v1720
        %1780 = vmatpush.bf16.msra.mxu0 %v1718
        %1781 = vmatpush.bf16.msra.mxu0 %v1716
        %1782 = vmatpush.bf16.msra.mxu0 %v1714
        %1783 = vmatpush.bf16.msra.mxu0 %v1712
        %1784 = vmatmul.bf16.gmra.mxu0 %v1586
        %v1785 = vpop.f32.mrf.mxu0
        %v1786 = vadd.f32 0.0, %v1785
        %v1787 = vpop.f32.mrf.mxu0
        %v1788 = vadd.f32 0.0, %v1787
        %1789 = vmatmul.bf16.gmra.mxu0 %v1591
        %v1790 = vpop.f32.mrf.mxu0
        %v1791 = vadd.f32 0.0, %v1790
        %v1792 = vpop.f32.mrf.mxu0
        %v1793 = vadd.f32 0.0, %v1792
        %1794 = vmatmul.bf16.gmra.mxu0 %v1595
        %v1795 = vpop.f32.mrf.mxu0
        %v1796 = vadd.f32 0.0, %v1795
        %v1797 = vpop.f32.mrf.mxu0
        %v1798 = vadd.f32 0.0, %v1797
        %1799 = vmatmul.bf16.gmra.mxu0 %v1599
        %v1800 = vpop.f32.mrf.mxu0
        %v1801 = vadd.f32 0.0, %v1800
        %v1802 = vpop.f32.mrf.mxu0
        %v1803 = vadd.f32 0.0, %v1802
        %1804 = vmatmul.bf16.gmra.mxu0 %v1603
        %v1805 = vpop.f32.mrf.mxu0
        %v1806 = vadd.f32 0.0, %v1805
        %v1807 = vpop.f32.mrf.mxu0
        %v1808 = vadd.f32 0.0, %v1807
        %1809 = vdwg.mxu0
        %1810 = vmatpush.bf16.msra.mxu0 %v1742
        %1811 = vmatpush.bf16.msra.mxu0 %v1740
        %1812 = vmatpush.bf16.msra.mxu0 %v1738
        %1813 = vmatpush.bf16.msra.mxu0 %v1736
        %1814 = vmatpush.bf16.msra.mxu0 %v1734
        %1815 = vmatpush.bf16.msra.mxu0 %v1732
        %1816 = vmatpush.bf16.msra.mxu0 %v1730
        %1817 = vmatpush.bf16.msra.mxu0 %v1728
        %1818 = vmatmul.bf16.gmra.mxu0 %v1589
        %v1819 = vpop.f32.mrf.mxu0
        %v1820 = vadd.f32 %v1786, %v1819
        %v1821 = vpop.f32.mrf.mxu0
        %v1822 = vadd.f32 %v1788, %v1821
        %1823 = vmatmul.bf16.gmra.mxu0 %v1593
        %v1824 = vpop.f32.mrf.mxu0
        %v1825 = vadd.f32 %v1791, %v1824
        %v1826 = vpop.f32.mrf.mxu0
        %v1827 = vadd.f32 %v1793, %v1826
        %1828 = vmatmul.bf16.gmra.mxu0 %v1597
        %v1829 = vpop.f32.mrf.mxu0
        %v1830 = vadd.f32 %v1796, %v1829
        %v1831 = vpop.f32.mrf.mxu0
        %v1832 = vadd.f32 %v1798, %v1831
        %1833 = vmatmul.bf16.gmra.mxu0 %v1601
        %v1834 = vpop.f32.mrf.mxu0
        %v1835 = vadd.f32 %v1801, %v1834
        %v1836 = vpop.f32.mrf.mxu0
        %v1837 = vadd.f32 %v1803, %v1836
        %1838 = vmatmul.bf16.gmra.mxu0 %v1605
        %v1839 = vpop.f32.mrf.mxu0
        %v1840 = vadd.f32 %v1806, %v1839
        %v1841 = vpop.f32.mrf.mxu0
        %v1842 = vadd.f32 %v1808, %v1841
        %1843 = vdwg.mxu0
        %1844 = vmatpush.bf16.msra.mxu0 %v1727
        %1845 = vmatpush.bf16.msra.mxu0 %v1725
        %1846 = vmatpush.bf16.msra.mxu0 %v1723
        %1847 = vmatpush.bf16.msra.mxu0 %v1721
        %1848 = vmatpush.bf16.msra.mxu0 %v1719
        %1849 = vmatpush.bf16.msra.mxu0 %v1717
        %1850 = vmatpush.bf16.msra.mxu0 %v1715
        %1851 = vmatpush.bf16.msra.mxu0 %v1713
        %1852 = vmatmul.bf16.gmra.mxu0 %v1586
        %v1853 = vpop.f32.mrf.mxu0
        %v1854 = vadd.f32 0.0, %v1853
        %v1855 = vpop.f32.mrf.mxu0
        %v1856 = vadd.f32 0.0, %v1855
        %1857 = vmatmul.bf16.gmra.mxu0 %v1591
        %v1858 = vpop.f32.mrf.mxu0
        %v1859 = vadd.f32 0.0, %v1858
        %v1860 = vpop.f32.mrf.mxu0
        %v1861 = vadd.f32 0.0, %v1860
        %1862 = vmatmul.bf16.gmra.mxu0 %v1595
        %v1863 = vpop.f32.mrf.mxu0
        %v1864 = vadd.f32 0.0, %v1863
        %v1865 = vpop.f32.mrf.mxu0
        %v1866 = vadd.f32 0.0, %v1865
        %1867 = vmatmul.bf16.gmra.mxu0 %v1599
        %v1868 = vpop.f32.mrf.mxu0
        %v1869 = vadd.f32 0.0, %v1868
        %v1870 = vpop.f32.mrf.mxu0
        %v1871 = vadd.f32 0.0, %v1870
        %1872 = vmatmul.bf16.gmra.mxu0 %v1603
        %v1873 = vpop.f32.mrf.mxu0
        %v1874 = vadd.f32 0.0, %v1873
        %v1875 = vpop.f32.mrf.mxu0
        %v1876 = vadd.f32 0.0, %v1875
        %1877 = vdwg.mxu0
        %1878 = vmatpush.bf16.msra.mxu0 %v1743
        %1879 = vmatpush.bf16.msra.mxu0 %v1741
        %1880 = vmatpush.bf16.msra.mxu0 %v1739
        %1881 = vmatpush.bf16.msra.mxu0 %v1737
        %1882 = vmatpush.bf16.msra.mxu0 %v1735
        %1883 = vmatpush.bf16.msra.mxu0 %v1733
        %1884 = vmatpush.bf16.msra.mxu0 %v1731
        %1885 = vmatpush.bf16.msra.mxu0 %v1729
        %1886 = vmatmul.bf16.gmra.mxu0 %v1589
        %v1887 = vpop.f32.mrf.mxu0
        %v1888 = vadd.f32 %v1854, %v1887
        %v1889 = vpop.f32.mrf.mxu0
        %v1890 = vadd.f32 %v1856, %v1889
        %1891 = vmatmul.bf16.gmra.mxu0 %v1593
        %v1892 = vpop.f32.mrf.mxu0
        %v1893 = vadd.f32 %v1859, %v1892
        %v1894 = vpop.f32.mrf.mxu0
        %v1895 = vadd.f32 %v1861, %v1894
        %1896 = vmatmul.bf16.gmra.mxu0 %v1597
        %v1897 = vpop.f32.mrf.mxu0
        %v1898 = vadd.f32 %v1864, %v1897
        %v1899 = vpop.f32.mrf.mxu0
        %v1900 = vadd.f32 %v1866, %v1899
        %1901 = vmatmul.bf16.gmra.mxu0 %v1601
        %v1902 = vpop.f32.mrf.mxu0
        %v1903 = vadd.f32 %v1869, %v1902
        %v1904 = vpop.f32.mrf.mxu0
        %v1905 = vadd.f32 %v1871, %v1904
        %1906 = vmatmul.bf16.gmra.mxu0 %v1605
        %v1907 = vpop.f32.mrf.mxu0
        %v1908 = vadd.f32 %v1874, %v1907
        %v1909 = vpop.f32.mrf.mxu0
        %v1910 = vadd.f32 %v1876, %v1909
        %1911 = vdwg.mxu0
        %v1912 = vadd.f32 %v1484, %v1820
        %v1913 = vadd.f32 %v1485, %v1888
        %v1914 = vadd.f32 %v1486, %v1822
        %v1915 = vadd.f32 %v1487, %v1890
        %v1916 = vadd.f32 %v1488, %v1825
        %v1917 = vadd.f32 %v1489, %v1893
        %v1918 = vadd.f32 %v1490, %v1827
        %v1919 = vadd.f32 %v1491, %v1895
        %v1920 = vadd.f32 %v1492, %v1830
        %v1921 = vadd.f32 %v1493, %v1898
        %v1922 = vadd.f32 %v1494, %v1832
        %v1923 = vadd.f32 %v1495, %v1900
        %v1924 = vadd.f32 %v1496, %v1835
        %v1925 = vadd.f32 %v1497, %v1903
        %v1926 = vadd.f32 %v1498, %v1837
        %v1927 = vadd.f32 %v1499, %v1905
        %v1928 = vadd.f32 %v1500, %v1840
        %v1929 = vadd.f32 %v1501, %v1908
        %v1930 = vadd.f32 %v1502, %v1842
        %v1931 = vadd.f32 %v1503, %v1910
        %1932 = vst [vmem:[#allocation3] sm:$0xff] %v1912
        %1933 = vst [vmem:[#allocation3 + $0x8] sm:$0xff] %v1913
        %1934 = vst [vmem:[#allocation3 + $0x10] sm:$0xff] %v1914
        %1935 = vst [vmem:[#allocation3 + $0x18] sm:$0xff] %v1915
        %1936 = vst [vmem:[#allocation3 + $0x20] sm:$0xff] %v1916
        %1937 = vst [vmem:[#allocation3 + $0x28] sm:$0xff] %v1917
        %1938 = vst [vmem:[#allocation3 + $0x30] sm:$0xff] %v1918
        %1939 = vst [vmem:[#allocation3 + $0x38] sm:$0xff] %v1919
        %1940 = vst [vmem:[#allocation3 + $0x40] sm:$0xff] %v1920
        %1941 = vst [vmem:[#allocation3 + $0x48] sm:$0xff] %v1921
        %1942 = vst [vmem:[#allocation3 + $0x50] sm:$0xff] %v1922
        %1943 = vst [vmem:[#allocation3 + $0x58] sm:$0xff] %v1923
        %1944 = vst [vmem:[#allocation3 + $0x60] sm:$0xff] %v1924
        %1945 = vst [vmem:[#allocation3 + $0x68] sm:$0xff] %v1925
        %1946 = vst [vmem:[#allocation3 + $0x70] sm:$0xff] %v1926
        %1947 = vst [vmem:[#allocation3 + $0x78] sm:$0xff] %v1927
        %1948 = vst [vmem:[#allocation3 + $0x80] sm:$0xff] %v1928
        %1949 = vst [vmem:[#allocation3 + $0x88] sm:$0xff] %v1929
        %1950 = vst [vmem:[#allocation3 + $0x90] sm:$0xff] %v1930
        %1951 = vst [vmem:[#allocation3 + $0x98] sm:$0xff] %v1931
        %v1952 = vld [vmem:[#allocation3] sm:$0xff]
        %v1953 = vld [vmem:[#allocation3 + $0x8] sm:$0xff]
        %v1954 = vld [vmem:[#allocation3 + $0x10] sm:$0xff]
        %v1955 = vld [vmem:[#allocation3 + $0x18] sm:$0xff]
        %v1956 = vld [vmem:[#allocation3 + $0x20] sm:$0xff]
        %v1957 = vld [vmem:[#allocation3 + $0x28] sm:$0xff]
        %v1958 = vld [vmem:[#allocation3 + $0x30] sm:$0xff]
        %v1959 = vld [vmem:[#allocation3 + $0x38] sm:$0xff]
        %v1960 = vld [vmem:[#allocation3 + $0x40] sm:$0xff]
        %v1961 = vld [vmem:[#allocation3 + $0x48] sm:$0xff]
        %v1962 = vld [vmem:[#allocation3 + $0x50] sm:$0xff]
        %v1963 = vld [vmem:[#allocation3 + $0x58] sm:$0xff]
        %v1964 = vld [vmem:[#allocation3 + $0x60] sm:$0xff]
        %v1965 = vld [vmem:[#allocation3 + $0x68] sm:$0xff]
        %v1966 = vld [vmem:[#allocation3 + $0x70] sm:$0xff]
        %v1967 = vld [vmem:[#allocation3 + $0x78] sm:$0xff]
        %v1968 = vld [vmem:[#allocation3 + $0x80] sm:$0xff]
        %v1969 = vld [vmem:[#allocation3 + $0x88] sm:$0xff]
        %v1970 = vld [vmem:[#allocation3 + $0x90] sm:$0xff]
        %v1971 = vld [vmem:[#allocation3 + $0x98] sm:$0xff]
        %v1972 = vld [vmem:[#allocation2] sm:$0xf8]
        %v1973 = vld [vmem:[#allocation2 + $0x8] sm:$0xf8]
        %v1974 = vld [vmem:[#allocation2 + $0x10] sm:$0xff]
        %v1975 = vld [vmem:[#allocation2 + $0x18] sm:$0xff]
        %v1976 = vld [vmem:[#allocation2 + $0x20] sm:$0xff]
        %v1977 = vld [vmem:[#allocation2 + $0x28] sm:$0xff]
        %v1978 = vld [vmem:[#allocation2 + $0x30] sm:$0xff]
        %v1979 = vld [vmem:[#allocation2 + $0x38] sm:$0xff]
        %v1980 = vld [vmem:[#allocation2 + $0x40] sm:$0xff]
        %v1981 = vld [vmem:[#allocation2 + $0x48] sm:$0xff]
        %v1982 = vld [vmem:[#allocation2 + $0x50] sm:$0xff]
        %v1983 = vld [vmem:[#allocation2 + $0x58] sm:$0xff]
        %v1984 = vld [vmem:[#allocation2 + $0x60] sm:$0xff]
        %v1985 = vld [vmem:[#allocation2 + $0x68] sm:$0xff]
        %v1986 = vld [vmem:[#allocation2 + $0x70] sm:$0xff]
        %v1987 = vld [vmem:[#allocation2 + $0x78] sm:$0xff]
        %v1988 = vld [vmem:[#allocation2 + $0x80] sm:$0xff]
        %v1989 = vld [vmem:[#allocation2 + $0x88] sm:$0xff]
        %v1990 = vld [vmem:[#allocation2 + $0x90] sm:$0xff]
        %v1991 = vld [vmem:[#allocation2 + $0x98] sm:$0xff]
        %v1992 = vld [vmem:[#allocation2 + $0xa0] sm:$0x7]
        %v1993 = vld [vmem:[#allocation2 + $0xa8] sm:$0x7]
        %v1994 = vpack.c.bf16 %v1974, %v1972
        %v1995 = vpack.c.bf16 %v1975, %v1973
        %v1996 = vpack.c.bf16 %v1978, %v1976
        %v1997 = vpack.c.bf16 %v1979, %v1977
        %v1998 = vpack.c.bf16 %v1982, %v1980
        %v1999 = vpack.c.bf16 %v1983, %v1981
        %v2000 = vpack.c.bf16 %v1986, %v1984
        %v2001 = vpack.c.bf16 %v1987, %v1985
        %v2002 = vpack.c.bf16 %v1990, %v1988
        %v2003 = vpack.c.bf16 %v1991, %v1989
        %v2004 = vpack.c.bf16 %v1992, %v1992
        %v2005 = vpack.c.bf16 %v1993, %v1993
        %s2006 = scalar_lea.vmem %s3, 768
        %v2007 = vld [vmem:[%s2006] sm:$0xff]
        %v2008 = vld [vmem:[%s2006 + $0x8] sm:$0xff]
        %v2009 = vld [vmem:[%s2006 + $0x10] sm:$0xff]
        %v2010 = vld [vmem:[%s2006 + $0x18] sm:$0xff]
        %v2011 = vld [vmem:[%s2006 + $0x20] sm:$0xff]
        %v2012 = vld [vmem:[%s2006 + $0x28] sm:$0xff]
        %v2013 = vld [vmem:[%s2006 + $0x30] sm:$0xff]
        %v2014 = vld [vmem:[%s2006 + $0x38] sm:$0xff]
        %v2015 = vld [vmem:[%s2006 + $0x40] sm:$0xff]
        %v2016 = vld [vmem:[%s2006 + $0x48] sm:$0xff]
        %v2017 = vld [vmem:[%s2006 + $0x50] sm:$0xff]
        %v2018 = vld [vmem:[%s2006 + $0x58] sm:$0xff]
        %v2019 = vld [vmem:[%s2006 + $0x60] sm:$0xff]
        %v2020 = vld [vmem:[%s2006 + $0x68] sm:$0xff]
        %v2021 = vld [vmem:[%s2006 + $0x70] sm:$0xff]
        %v2022 = vld [vmem:[%s2006 + $0x78] sm:$0xff]
        %v2023 = vld [vmem:[%s2006 + $0x80] sm:$0xff]
        %v2024 = vld [vmem:[%s2006 + $0x88] sm:$0xff]
        %v2025 = vld [vmem:[%s2006 + $0x90] sm:$0xff]
        %v2026 = vld [vmem:[%s2006 + $0x98] sm:$0xff]
        %v2027 = vld [vmem:[%s2006 + $0xa0] sm:$0xff]
        %v2028 = vld [vmem:[%s2006 + $0xa8] sm:$0xff]
        %v2029 = vld [vmem:[%s2006 + $0xb0] sm:$0xff]
        %v2030 = vld [vmem:[%s2006 + $0xb8] sm:$0xff]
        %v2031 = vld [vmem:[%s2006 + $0xc0] sm:$0xff]
        %v2032 = vld [vmem:[%s2006 + $0xc8] sm:$0xff]
        %v2033 = vld [vmem:[%s2006 + $0xd0] sm:$0xff]
        %v2034 = vld [vmem:[%s2006 + $0xd8] sm:$0xff]
        %v2035 = vld [vmem:[%s2006 + $0xe0] sm:$0xff]
        %v2036 = vld [vmem:[%s2006 + $0xe8] sm:$0xff]
        %v2037 = vld [vmem:[%s2006 + $0xf0] sm:$0xff]
        %v2038 = vld [vmem:[%s2006 + $0xf8] sm:$0xff]
        %vm2039 = vsmask.f32 6400
        %v2041 = vshrl.u32 %v1994, 16
        %v2043 = vrot.slane %v2041, 1
        %v2044 = vshll.u32 %v1994, 16
        %v2046 = vrot.slane %v2044, 2
        %v2047 = vor.u32 %v2043, %v2046
        %v2049 = vshrl.u32 %v1996, 16
        %v2051 = vrot.slane %v2049, 1
        %v2052 = vshll.u32 %v1996, 16
        %v2054 = vrot.slane %v2052, 2
        %v2055 = vor.u32 %v2051, %v2054
        %v2056 = vsel %vm2039, %v2047, %v2055
        %v2058 = vshrl.u32 %v1995, 16
        %v2060 = vrot.slane %v2058, 1
        %v2061 = vshll.u32 %v1995, 16
        %v2063 = vrot.slane %v2061, 2
        %v2064 = vor.u32 %v2060, %v2063
        %v2066 = vshrl.u32 %v1997, 16
        %v2068 = vrot.slane %v2066, 1
        %v2069 = vshll.u32 %v1997, 16
        %v2071 = vrot.slane %v2069, 2
        %v2072 = vor.u32 %v2068, %v2071
        %v2073 = vsel %vm2039, %v2064, %v2072
        %v2075 = vshrl.u32 %v1998, 16
        %v2077 = vrot.slane %v2075, 1
        %v2078 = vshll.u32 %v1998, 16
        %v2080 = vrot.slane %v2078, 2
        %v2081 = vor.u32 %v2077, %v2080
        %v2082 = vsel %vm2039, %v2055, %v2081
        %v2084 = vshrl.u32 %v1999, 16
        %v2086 = vrot.slane %v2084, 1
        %v2087 = vshll.u32 %v1999, 16
        %v2089 = vrot.slane %v2087, 2
        %v2090 = vor.u32 %v2086, %v2089
        %v2091 = vsel %vm2039, %v2072, %v2090
        %v2093 = vshrl.u32 %v2000, 16
        %v2095 = vrot.slane %v2093, 1
        %v2096 = vshll.u32 %v2000, 16
        %v2098 = vrot.slane %v2096, 2
        %v2099 = vor.u32 %v2095, %v2098
        %v2100 = vsel %vm2039, %v2081, %v2099
        %v2102 = vshrl.u32 %v2001, 16
        %v2104 = vrot.slane %v2102, 1
        %v2105 = vshll.u32 %v2001, 16
        %v2107 = vrot.slane %v2105, 2
        %v2108 = vor.u32 %v2104, %v2107
        %v2109 = vsel %vm2039, %v2090, %v2108
        %v2111 = vshrl.u32 %v2002, 16
        %v2113 = vrot.slane %v2111, 1
        %v2114 = vshll.u32 %v2002, 16
        %v2116 = vrot.slane %v2114, 2
        %v2117 = vor.u32 %v2113, %v2116
        %v2118 = vsel %vm2039, %v2099, %v2117
        %v2120 = vshrl.u32 %v2003, 16
        %v2122 = vrot.slane %v2120, 1
        %v2123 = vshll.u32 %v2003, 16
        %v2125 = vrot.slane %v2123, 2
        %v2126 = vor.u32 %v2122, %v2125
        %v2127 = vsel %vm2039, %v2108, %v2126
        %v2129 = vshrl.u32 %v2004, 16
        %v2131 = vrot.slane %v2129, 1
        %v2132 = vshll.u32 %v2004, 16
        %v2134 = vrot.slane %v2132, 2
        %v2135 = vor.u32 %v2131, %v2134
        %v2136 = vsel %vm2039, %v2117, %v2135
        %v2138 = vshrl.u32 %v2005, 16
        %v2140 = vrot.slane %v2138, 1
        %v2141 = vshll.u32 %v2005, 16
        %v2143 = vrot.slane %v2141, 2
        %v2144 = vor.u32 %v2140, %v2143
        %v2145 = vsel %vm2039, %v2126, %v2144
        %v2188 = vunpack.c.l.b16 %v2007
        %v2189 = vunpack.c.h.b16 %v2007
        %v2190 = vunpack.c.l.b16 %v2008
        %v2191 = vunpack.c.h.b16 %v2008
        %v2192 = vunpack.c.l.b16 %v2009
        %v2193 = vunpack.c.h.b16 %v2009
        %v2194 = vunpack.c.l.b16 %v2010
        %v2195 = vunpack.c.h.b16 %v2010
        %v2196 = vunpack.c.l.b16 %v2011
        %v2197 = vunpack.c.h.b16 %v2011
        %v2198 = vunpack.c.l.b16 %v2012
        %v2199 = vunpack.c.h.b16 %v2012
        %v2200 = vunpack.c.l.b16 %v2013
        %v2201 = vunpack.c.h.b16 %v2013
        %v2202 = vunpack.c.l.b16 %v2014
        %v2203 = vunpack.c.h.b16 %v2014
        %v2204 = vunpack.c.l.b16 %v2015
        %v2205 = vunpack.c.h.b16 %v2015
        %v2206 = vunpack.c.l.b16 %v2016
        %v2207 = vunpack.c.h.b16 %v2016
        %v2208 = vunpack.c.l.b16 %v2017
        %v2209 = vunpack.c.h.b16 %v2017
        %v2210 = vunpack.c.l.b16 %v2018
        %v2211 = vunpack.c.h.b16 %v2018
        %v2212 = vunpack.c.l.b16 %v2019
        %v2213 = vunpack.c.h.b16 %v2019
        %v2214 = vunpack.c.l.b16 %v2020
        %v2215 = vunpack.c.h.b16 %v2020
        %v2216 = vunpack.c.l.b16 %v2021
        %v2217 = vunpack.c.h.b16 %v2021
        %v2218 = vunpack.c.l.b16 %v2022
        %v2219 = vunpack.c.h.b16 %v2022
        %v2220 = vunpack.c.l.b16 %v2023
        %v2221 = vunpack.c.h.b16 %v2023
        %v2222 = vunpack.c.l.b16 %v2024
        %v2223 = vunpack.c.h.b16 %v2024
        %v2224 = vunpack.c.l.b16 %v2025
        %v2225 = vunpack.c.h.b16 %v2025
        %v2226 = vunpack.c.l.b16 %v2026
        %v2227 = vunpack.c.h.b16 %v2026
        %v2228 = vunpack.c.l.b16 %v2027
        %v2229 = vunpack.c.h.b16 %v2027
        %v2230 = vunpack.c.l.b16 %v2028
        %v2231 = vunpack.c.h.b16 %v2028
        %v2232 = vunpack.c.l.b16 %v2029
        %v2233 = vunpack.c.h.b16 %v2029
        %v2234 = vunpack.c.l.b16 %v2030
        %v2235 = vunpack.c.h.b16 %v2030
        %v2236 = vunpack.c.l.b16 %v2031
        %v2237 = vunpack.c.h.b16 %v2031
        %v2238 = vunpack.c.l.b16 %v2032
        %v2239 = vunpack.c.h.b16 %v2032
        %v2240 = vunpack.c.l.b16 %v2033
        %v2241 = vunpack.c.h.b16 %v2033
        %v2242 = vunpack.c.l.b16 %v2034
        %v2243 = vunpack.c.h.b16 %v2034
        %v2244 = vunpack.c.l.b16 %v2035
        %v2245 = vunpack.c.h.b16 %v2035
        %v2246 = vunpack.c.l.b16 %v2036
        %v2247 = vunpack.c.h.b16 %v2036
        %v2248 = vunpack.c.l.b16 %v2037
        %v2249 = vunpack.c.h.b16 %v2037
        %v2250 = vunpack.c.l.b16 %v2038
        %v2251 = vunpack.c.h.b16 %v2038
        %v2252 = vpack.c.b16 %v2190, %v2188
        %v2253 = vpack.c.b16 %v2191, %v2189
        %v2254 = vpack.c.b16 %v2194, %v2192
        %v2255 = vpack.c.b16 %v2195, %v2193
        %v2256 = vpack.c.b16 %v2198, %v2196
        %v2257 = vpack.c.b16 %v2199, %v2197
        %v2258 = vpack.c.b16 %v2202, %v2200
        %v2259 = vpack.c.b16 %v2203, %v2201
        %v2260 = vpack.c.b16 %v2206, %v2204
        %v2261 = vpack.c.b16 %v2207, %v2205
        %v2262 = vpack.c.b16 %v2210, %v2208
        %v2263 = vpack.c.b16 %v2211, %v2209
        %v2264 = vpack.c.b16 %v2214, %v2212
        %v2265 = vpack.c.b16 %v2215, %v2213
        %v2266 = vpack.c.b16 %v2218, %v2216
        %v2267 = vpack.c.b16 %v2219, %v2217
        %v2268 = vpack.c.b16 %v2222, %v2220
        %v2269 = vpack.c.b16 %v2223, %v2221
        %v2270 = vpack.c.b16 %v2226, %v2224
        %v2271 = vpack.c.b16 %v2227, %v2225
        %v2272 = vpack.c.b16 %v2230, %v2228
        %v2273 = vpack.c.b16 %v2231, %v2229
        %v2274 = vpack.c.b16 %v2234, %v2232
        %v2275 = vpack.c.b16 %v2235, %v2233
        %v2276 = vpack.c.b16 %v2238, %v2236
        %v2277 = vpack.c.b16 %v2239, %v2237
        %v2278 = vpack.c.b16 %v2242, %v2240
        %v2279 = vpack.c.b16 %v2243, %v2241
        %v2280 = vpack.c.b16 %v2246, %v2244
        %v2281 = vpack.c.b16 %v2247, %v2245
        %v2282 = vpack.c.b16 %v2250, %v2248
        %v2283 = vpack.c.b16 %v2251, %v2249
        %2316 = vmatpush.bf16.msra.mxu0 %v2266
        %2317 = vmatpush.bf16.msra.mxu0 %v2264
        %2318 = vmatpush.bf16.msra.mxu0 %v2262
        %2319 = vmatpush.bf16.msra.mxu0 %v2260
        %2320 = vmatpush.bf16.msra.mxu0 %v2258
        %2321 = vmatpush.bf16.msra.mxu0 %v2256
        %2322 = vmatpush.bf16.msra.mxu0 %v2254
        %2323 = vmatpush.bf16.msra.mxu0 %v2252
        %2324 = vmatmul.bf16.gmra.mxu0 %v2056
        %v2325 = vpop.f32.mrf.mxu0
        %v2326 = vadd.f32 0.0, %v2325
        %v2327 = vpop.f32.mrf.mxu0
        %v2328 = vadd.f32 0.0, %v2327
        %2329 = vmatmul.bf16.gmra.mxu0 %v2082
        %v2330 = vpop.f32.mrf.mxu0
        %v2331 = vadd.f32 0.0, %v2330
        %v2332 = vpop.f32.mrf.mxu0
        %v2333 = vadd.f32 0.0, %v2332
        %2334 = vmatmul.bf16.gmra.mxu0 %v2100
        %v2335 = vpop.f32.mrf.mxu0
        %v2336 = vadd.f32 0.0, %v2335
        %v2337 = vpop.f32.mrf.mxu0
        %v2338 = vadd.f32 0.0, %v2337
        %2339 = vmatmul.bf16.gmra.mxu0 %v2118
        %v2340 = vpop.f32.mrf.mxu0
        %v2341 = vadd.f32 0.0, %v2340
        %v2342 = vpop.f32.mrf.mxu0
        %v2343 = vadd.f32 0.0, %v2342
        %2344 = vmatmul.bf16.gmra.mxu0 %v2136
        %v2345 = vpop.f32.mrf.mxu0
        %v2346 = vadd.f32 0.0, %v2345
        %v2347 = vpop.f32.mrf.mxu0
        %v2348 = vadd.f32 0.0, %v2347
        %2349 = vdwg.mxu0
        %2350 = vmatpush.bf16.msra.mxu0 %v2282
        %2351 = vmatpush.bf16.msra.mxu0 %v2280
        %2352 = vmatpush.bf16.msra.mxu0 %v2278
        %2353 = vmatpush.bf16.msra.mxu0 %v2276
        %2354 = vmatpush.bf16.msra.mxu0 %v2274
        %2355 = vmatpush.bf16.msra.mxu0 %v2272
        %2356 = vmatpush.bf16.msra.mxu0 %v2270
        %2357 = vmatpush.bf16.msra.mxu0 %v2268
        %2358 = vmatmul.bf16.gmra.mxu0 %v2073
        %v2359 = vpop.f32.mrf.mxu0
        %v2360 = vadd.f32 %v2326, %v2359
        %v2361 = vpop.f32.mrf.mxu0
        %v2362 = vadd.f32 %v2328, %v2361
        %2363 = vmatmul.bf16.gmra.mxu0 %v2091
        %v2364 = vpop.f32.mrf.mxu0
        %v2365 = vadd.f32 %v2331, %v2364
        %v2366 = vpop.f32.mrf.mxu0
        %v2367 = vadd.f32 %v2333, %v2366
        %2368 = vmatmul.bf16.gmra.mxu0 %v2109
        %v2369 = vpop.f32.mrf.mxu0
        %v2370 = vadd.f32 %v2336, %v2369
        %v2371 = vpop.f32.mrf.mxu0
        %v2372 = vadd.f32 %v2338, %v2371
        %2373 = vmatmul.bf16.gmra.mxu0 %v2127
        %v2374 = vpop.f32.mrf.mxu0
        %v2375 = vadd.f32 %v2341, %v2374
        %v2376 = vpop.f32.mrf.mxu0
        %v2377 = vadd.f32 %v2343, %v2376
        %2378 = vmatmul.bf16.gmra.mxu0 %v2145
        %v2379 = vpop.f32.mrf.mxu0
        %v2380 = vadd.f32 %v2346, %v2379
        %v2381 = vpop.f32.mrf.mxu0
        %v2382 = vadd.f32 %v2348, %v2381
        %2383 = vdwg.mxu0
        %2384 = vmatpush.bf16.msra.mxu0 %v2267
        %2385 = vmatpush.bf16.msra.mxu0 %v2265
        %2386 = vmatpush.bf16.msra.mxu0 %v2263
        %2387 = vmatpush.bf16.msra.mxu0 %v2261
        %2388 = vmatpush.bf16.msra.mxu0 %v2259
        %2389 = vmatpush.bf16.msra.mxu0 %v2257
        %2390 = vmatpush.bf16.msra.mxu0 %v2255
        %2391 = vmatpush.bf16.msra.mxu0 %v2253
        %2392 = vmatmul.bf16.gmra.mxu0 %v2056
        %v2393 = vpop.f32.mrf.mxu0
        %v2394 = vadd.f32 0.0, %v2393
        %v2395 = vpop.f32.mrf.mxu0
        %v2396 = vadd.f32 0.0, %v2395
        %2397 = vmatmul.bf16.gmra.mxu0 %v2082
        %v2398 = vpop.f32.mrf.mxu0
        %v2399 = vadd.f32 0.0, %v2398
        %v2400 = vpop.f32.mrf.mxu0
        %v2401 = vadd.f32 0.0, %v2400
        %2402 = vmatmul.bf16.gmra.mxu0 %v2100
        %v2403 = vpop.f32.mrf.mxu0
        %v2404 = vadd.f32 0.0, %v2403
        %v2405 = vpop.f32.mrf.mxu0
        %v2406 = vadd.f32 0.0, %v2405
        %2407 = vmatmul.bf16.gmra.mxu0 %v2118
        %v2408 = vpop.f32.mrf.mxu0
        %v2409 = vadd.f32 0.0, %v2408
        %v2410 = vpop.f32.mrf.mxu0
        %v2411 = vadd.f32 0.0, %v2410
        %2412 = vmatmul.bf16.gmra.mxu0 %v2136
        %v2413 = vpop.f32.mrf.mxu0
        %v2414 = vadd.f32 0.0, %v2413
        %v2415 = vpop.f32.mrf.mxu0
        %v2416 = vadd.f32 0.0, %v2415
        %2417 = vdwg.mxu0
        %2418 = vmatpush.bf16.msra.mxu0 %v2283
        %2419 = vmatpush.bf16.msra.mxu0 %v2281
        %2420 = vmatpush.bf16.msra.mxu0 %v2279
        %2421 = vmatpush.bf16.msra.mxu0 %v2277
        %2422 = vmatpush.bf16.msra.mxu0 %v2275
        %2423 = vmatpush.bf16.msra.mxu0 %v2273
        %2424 = vmatpush.bf16.msra.mxu0 %v2271
        %2425 = vmatpush.bf16.msra.mxu0 %v2269
        %2426 = vmatmul.bf16.gmra.mxu0 %v2073
        %v2427 = vpop.f32.mrf.mxu0
        %v2428 = vadd.f32 %v2394, %v2427
        %v2429 = vpop.f32.mrf.mxu0
        %v2430 = vadd.f32 %v2396, %v2429
        %2431 = vmatmul.bf16.gmra.mxu0 %v2091
        %v2432 = vpop.f32.mrf.mxu0
        %v2433 = vadd.f32 %v2399, %v2432
        %v2434 = vpop.f32.mrf.mxu0
        %v2435 = vadd.f32 %v2401, %v2434
        %2436 = vmatmul.bf16.gmra.mxu0 %v2109
        %v2437 = vpop.f32.mrf.mxu0
        %v2438 = vadd.f32 %v2404, %v2437
        %v2439 = vpop.f32.mrf.mxu0
        %v2440 = vadd.f32 %v2406, %v2439
        %2441 = vmatmul.bf16.gmra.mxu0 %v2127
        %v2442 = vpop.f32.mrf.mxu0
        %v2443 = vadd.f32 %v2409, %v2442
        %v2444 = vpop.f32.mrf.mxu0
        %v2445 = vadd.f32 %v2411, %v2444
        %2446 = vmatmul.bf16.gmra.mxu0 %v2145
        %v2447 = vpop.f32.mrf.mxu0
        %v2448 = vadd.f32 %v2414, %v2447
        %v2449 = vpop.f32.mrf.mxu0
        %v2450 = vadd.f32 %v2416, %v2449
        %2451 = vdwg.mxu0
        %v2452 = vadd.f32 %v1952, %v2360
        %v2453 = vadd.f32 %v1953, %v2428
        %v2454 = vadd.f32 %v1954, %v2362
        %v2455 = vadd.f32 %v1955, %v2430
        %v2456 = vadd.f32 %v1956, %v2365
        %v2457 = vadd.f32 %v1957, %v2433
        %v2458 = vadd.f32 %v1958, %v2367
        %v2459 = vadd.f32 %v1959, %v2435
        %v2460 = vadd.f32 %v1960, %v2370
        %v2461 = vadd.f32 %v1961, %v2438
        %v2462 = vadd.f32 %v1962, %v2372
        %v2463 = vadd.f32 %v1963, %v2440
        %v2464 = vadd.f32 %v1964, %v2375
        %v2465 = vadd.f32 %v1965, %v2443
        %v2466 = vadd.f32 %v1966, %v2377
        %v2467 = vadd.f32 %v1967, %v2445
        %v2468 = vadd.f32 %v1968, %v2380
        %v2469 = vadd.f32 %v1969, %v2448
        %v2470 = vadd.f32 %v1970, %v2382
        %v2471 = vadd.f32 %v1971, %v2450
        %2472 = vst [vmem:[#allocation3] sm:$0xff] %v2452
        %2473 = vst [vmem:[#allocation3 + $0x8] sm:$0xff] %v2453
        %2474 = vst [vmem:[#allocation3 + $0x10] sm:$0xff] %v2454
        %2475 = vst [vmem:[#allocation3 + $0x18] sm:$0xff] %v2455
        %2476 = vst [vmem:[#allocation3 + $0x20] sm:$0xff] %v2456
        %2477 = vst [vmem:[#allocation3 + $0x28] sm:$0xff] %v2457
        %2478 = vst [vmem:[#allocation3 + $0x30] sm:$0xff] %v2458
        %2479 = vst [vmem:[#allocation3 + $0x38] sm:$0xff] %v2459
        %2480 = vst [vmem:[#allocation3 + $0x40] sm:$0xff] %v2460
        %2481 = vst [vmem:[#allocation3 + $0x48] sm:$0xff] %v2461
        %2482 = vst [vmem:[#allocation3 + $0x50] sm:$0xff] %v2462
        %2483 = vst [vmem:[#allocation3 + $0x58] sm:$0xff] %v2463
        %2484 = vst [vmem:[#allocation3 + $0x60] sm:$0xff] %v2464
        %2485 = vst [vmem:[#allocation3 + $0x68] sm:$0xff] %v2465
        %2486 = vst [vmem:[#allocation3 + $0x70] sm:$0xff] %v2466
        %2487 = vst [vmem:[#allocation3 + $0x78] sm:$0xff] %v2467
        %2488 = vst [vmem:[#allocation3 + $0x80] sm:$0xff] %v2468
        %2489 = vst [vmem:[#allocation3 + $0x88] sm:$0xff] %v2469
        %2490 = vst [vmem:[#allocation3 + $0x90] sm:$0xff] %v2470
        %2491 = vst [vmem:[#allocation3 + $0x98] sm:$0xff] %v2471
        %v2492 = vld [vmem:[#allocation3] sm:$0xff]
        %v2493 = vld [vmem:[#allocation3 + $0x8] sm:$0xff]
        %v2494 = vld [vmem:[#allocation3 + $0x10] sm:$0xff]
        %v2495 = vld [vmem:[#allocation3 + $0x18] sm:$0xff]
        %v2496 = vld [vmem:[#allocation3 + $0x20] sm:$0xff]
        %v2497 = vld [vmem:[#allocation3 + $0x28] sm:$0xff]
        %v2498 = vld [vmem:[#allocation3 + $0x30] sm:$0xff]
        %v2499 = vld [vmem:[#allocation3 + $0x38] sm:$0xff]
        %v2500 = vld [vmem:[#allocation3 + $0x40] sm:$0xff]
        %v2501 = vld [vmem:[#allocation3 + $0x48] sm:$0xff]
        %v2502 = vld [vmem:[#allocation3 + $0x50] sm:$0xff]
        %v2503 = vld [vmem:[#allocation3 + $0x58] sm:$0xff]
        %v2504 = vld [vmem:[#allocation3 + $0x60] sm:$0xff]
        %v2505 = vld [vmem:[#allocation3 + $0x68] sm:$0xff]
        %v2506 = vld [vmem:[#allocation3 + $0x70] sm:$0xff]
        %v2507 = vld [vmem:[#allocation3 + $0x78] sm:$0xff]
        %v2508 = vld [vmem:[#allocation3 + $0x80] sm:$0xff]
        %v2509 = vld [vmem:[#allocation3 + $0x88] sm:$0xff]
        %v2510 = vld [vmem:[#allocation3 + $0x90] sm:$0xff]
        %v2511 = vld [vmem:[#allocation3 + $0x98] sm:$0xff]
        %v2512 = vld [vmem:[#allocation2] sm:$0xf0]
        %v2513 = vld [vmem:[#allocation2 + $0x8] sm:$0xf0]
        %v2514 = vld [vmem:[#allocation2 + $0x10] sm:$0xff]
        %v2515 = vld [vmem:[#allocation2 + $0x18] sm:$0xff]
        %v2516 = vld [vmem:[#allocation2 + $0x20] sm:$0xff]
        %v2517 = vld [vmem:[#allocation2 + $0x28] sm:$0xff]
        %v2518 = vld [vmem:[#allocation2 + $0x30] sm:$0xff]
        %v2519 = vld [vmem:[#allocation2 + $0x38] sm:$0xff]
        %v2520 = vld [vmem:[#allocation2 + $0x40] sm:$0xff]
        %v2521 = vld [vmem:[#allocation2 + $0x48] sm:$0xff]
        %v2522 = vld [vmem:[#allocation2 + $0x50] sm:$0xff]
        %v2523 = vld [vmem:[#allocation2 + $0x58] sm:$0xff]
        %v2524 = vld [vmem:[#allocation2 + $0x60] sm:$0xff]
        %v2525 = vld [vmem:[#allocation2 + $0x68] sm:$0xff]
        %v2526 = vld [vmem:[#allocation2 + $0x70] sm:$0xff]
        %v2527 = vld [vmem:[#allocation2 + $0x78] sm:$0xff]
        %v2528 = vld [vmem:[#allocation2 + $0x80] sm:$0xff]
        %v2529 = vld [vmem:[#allocation2 + $0x88] sm:$0xff]
        %v2530 = vld [vmem:[#allocation2 + $0x90] sm:$0xff]
        %v2531 = vld [vmem:[#allocation2 + $0x98] sm:$0xff]
        %v2532 = vld [vmem:[#allocation2 + $0xa0] sm:$0xf]
        %v2533 = vld [vmem:[#allocation2 + $0xa8] sm:$0xf]
        %v2534 = vpack.c.bf16 %v2514, %v2512
        %v2535 = vpack.c.bf16 %v2515, %v2513
        %v2536 = vpack.c.bf16 %v2518, %v2516
        %v2537 = vpack.c.bf16 %v2519, %v2517
        %v2538 = vpack.c.bf16 %v2522, %v2520
        %v2539 = vpack.c.bf16 %v2523, %v2521
        %v2540 = vpack.c.bf16 %v2526, %v2524
        %v2541 = vpack.c.bf16 %v2527, %v2525
        %v2542 = vpack.c.bf16 %v2530, %v2528
        %v2543 = vpack.c.bf16 %v2531, %v2529
        %v2544 = vpack.c.bf16 %v2532, %v2532
        %v2545 = vpack.c.bf16 %v2533, %v2533
        %s2546 = scalar_lea.vmem %s3, 1024
        %v2547 = vld [vmem:[%s2546] sm:$0xff]
        %v2548 = vld [vmem:[%s2546 + $0x8] sm:$0xff]
        %v2549 = vld [vmem:[%s2546 + $0x10] sm:$0xff]
        %v2550 = vld [vmem:[%s2546 + $0x18] sm:$0xff]
        %v2551 = vld [vmem:[%s2546 + $0x20] sm:$0xff]
        %v2552 = vld [vmem:[%s2546 + $0x28] sm:$0xff]
        %v2553 = vld [vmem:[%s2546 + $0x30] sm:$0xff]
        %v2554 = vld [vmem:[%s2546 + $0x38] sm:$0xff]
        %v2555 = vld [vmem:[%s2546 + $0x40] sm:$0xff]
        %v2556 = vld [vmem:[%s2546 + $0x48] sm:$0xff]
        %v2557 = vld [vmem:[%s2546 + $0x50] sm:$0xff]
        %v2558 = vld [vmem:[%s2546 + $0x58] sm:$0xff]
        %v2559 = vld [vmem:[%s2546 + $0x60] sm:$0xff]
        %v2560 = vld [vmem:[%s2546 + $0x68] sm:$0xff]
        %v2561 = vld [vmem:[%s2546 + $0x70] sm:$0xff]
        %v2562 = vld [vmem:[%s2546 + $0x78] sm:$0xff]
        %v2563 = vld [vmem:[%s2546 + $0x80] sm:$0xff]
        %v2564 = vld [vmem:[%s2546 + $0x88] sm:$0xff]
        %v2565 = vld [vmem:[%s2546 + $0x90] sm:$0xff]
        %v2566 = vld [vmem:[%s2546 + $0x98] sm:$0xff]
        %v2567 = vld [vmem:[%s2546 + $0xa0] sm:$0xff]
        %v2568 = vld [vmem:[%s2546 + $0xa8] sm:$0xff]
        %v2569 = vld [vmem:[%s2546 + $0xb0] sm:$0xff]
        %v2570 = vld [vmem:[%s2546 + $0xb8] sm:$0xff]
        %v2571 = vld [vmem:[%s2546 + $0xc0] sm:$0xff]
        %v2572 = vld [vmem:[%s2546 + $0xc8] sm:$0xff]
        %v2573 = vld [vmem:[%s2546 + $0xd0] sm:$0xff]
        %v2574 = vld [vmem:[%s2546 + $0xd8] sm:$0xff]
        %v2575 = vld [vmem:[%s2546 + $0xe0] sm:$0xff]
        %v2576 = vld [vmem:[%s2546 + $0xe8] sm:$0xff]
        %v2577 = vld [vmem:[%s2546 + $0xf0] sm:$0xff]
        %v2578 = vld [vmem:[%s2546 + $0xf8] sm:$0xff]
        %vm2591 = vcmask 1045504
        %v2592 = vrot.slane %v2534, 2
        %v2593 = vrot.slane %v2536, 2
        %v2594 = vsel %vm2591, %v2592, %v2593
        %v2595 = vrot.slane %v2535, 2
        %v2596 = vrot.slane %v2537, 2
        %v2597 = vsel %vm2591, %v2595, %v2596
        %v2598 = vrot.slane %v2538, 2
        %v2599 = vsel %vm2591, %v2593, %v2598
        %v2600 = vrot.slane %v2539, 2
        %v2601 = vsel %vm2591, %v2596, %v2600
        %v2602 = vrot.slane %v2540, 2
        %v2603 = vsel %vm2591, %v2598, %v2602
        %v2604 = vrot.slane %v2541, 2
        %v2605 = vsel %vm2591, %v2600, %v2604
        %v2606 = vrot.slane %v2542, 2
        %v2607 = vsel %vm2591, %v2602, %v2606
        %v2608 = vrot.slane %v2543, 2
        %v2609 = vsel %vm2591, %v2604, %v2608
        %v2610 = vrot.slane %v2544, 2
        %v2611 = vsel %vm2591, %v2606, %v2610
        %v2612 = vrot.slane %v2545, 2
        %v2613 = vsel %vm2591, %v2608, %v2612
        %v2656 = vunpack.c.l.b16 %v2547
        %v2657 = vunpack.c.h.b16 %v2547
        %v2658 = vunpack.c.l.b16 %v2548
        %v2659 = vunpack.c.h.b16 %v2548
        %v2660 = vunpack.c.l.b16 %v2549
        %v2661 = vunpack.c.h.b16 %v2549
        %v2662 = vunpack.c.l.b16 %v2550
        %v2663 = vunpack.c.h.b16 %v2550
        %v2664 = vunpack.c.l.b16 %v2551
        %v2665 = vunpack.c.h.b16 %v2551
        %v2666 = vunpack.c.l.b16 %v2552
        %v2667 = vunpack.c.h.b16 %v2552
        %v2668 = vunpack.c.l.b16 %v2553
        %v2669 = vunpack.c.h.b16 %v2553
        %v2670 = vunpack.c.l.b16 %v2554
        %v2671 = vunpack.c.h.b16 %v2554
        %v2672 = vunpack.c.l.b16 %v2555
        %v2673 = vunpack.c.h.b16 %v2555
        %v2674 = vunpack.c.l.b16 %v2556
        %v2675 = vunpack.c.h.b16 %v2556
        %v2676 = vunpack.c.l.b16 %v2557
        %v2677 = vunpack.c.h.b16 %v2557
        %v2678 = vunpack.c.l.b16 %v2558
        %v2679 = vunpack.c.h.b16 %v2558
        %v2680 = vunpack.c.l.b16 %v2559
        %v2681 = vunpack.c.h.b16 %v2559
        %v2682 = vunpack.c.l.b16 %v2560
        %v2683 = vunpack.c.h.b16 %v2560
        %v2684 = vunpack.c.l.b16 %v2561
        %v2685 = vunpack.c.h.b16 %v2561
        %v2686 = vunpack.c.l.b16 %v2562
        %v2687 = vunpack.c.h.b16 %v2562
        %v2688 = vunpack.c.l.b16 %v2563
        %v2689 = vunpack.c.h.b16 %v2563
        %v2690 = vunpack.c.l.b16 %v2564
        %v2691 = vunpack.c.h.b16 %v2564
        %v2692 = vunpack.c.l.b16 %v2565
        %v2693 = vunpack.c.h.b16 %v2565
        %v2694 = vunpack.c.l.b16 %v2566
        %v2695 = vunpack.c.h.b16 %v2566
        %v2696 = vunpack.c.l.b16 %v2567
        %v2697 = vunpack.c.h.b16 %v2567
        %v2698 = vunpack.c.l.b16 %v2568
        %v2699 = vunpack.c.h.b16 %v2568
        %v2700 = vunpack.c.l.b16 %v2569
        %v2701 = vunpack.c.h.b16 %v2569
        %v2702 = vunpack.c.l.b16 %v2570
        %v2703 = vunpack.c.h.b16 %v2570
        %v2704 = vunpack.c.l.b16 %v2571
        %v2705 = vunpack.c.h.b16 %v2571
        %v2706 = vunpack.c.l.b16 %v2572
        %v2707 = vunpack.c.h.b16 %v2572
        %v2708 = vunpack.c.l.b16 %v2573
        %v2709 = vunpack.c.h.b16 %v2573
        %v2710 = vunpack.c.l.b16 %v2574
        %v2711 = vunpack.c.h.b16 %v2574
        %v2712 = vunpack.c.l.b16 %v2575
        %v2713 = vunpack.c.h.b16 %v2575
        %v2714 = vunpack.c.l.b16 %v2576
        %v2715 = vunpack.c.h.b16 %v2576
        %v2716 = vunpack.c.l.b16 %v2577
        %v2717 = vunpack.c.h.b16 %v2577
        %v2718 = vunpack.c.l.b16 %v2578
        %v2719 = vunpack.c.h.b16 %v2578
        %v2720 = vpack.c.b16 %v2658, %v2656
        %v2721 = vpack.c.b16 %v2659, %v2657
        %v2722 = vpack.c.b16 %v2662, %v2660
        %v2723 = vpack.c.b16 %v2663, %v2661
        %v2724 = vpack.c.b16 %v2666, %v2664
        %v2725 = vpack.c.b16 %v2667, %v2665
        %v2726 = vpack.c.b16 %v2670, %v2668
        %v2727 = vpack.c.b16 %v2671, %v2669
        %v2728 = vpack.c.b16 %v2674, %v2672
        %v2729 = vpack.c.b16 %v2675, %v2673
        %v2730 = vpack.c.b16 %v2678, %v2676
        %v2731 = vpack.c.b16 %v2679, %v2677
        %v2732 = vpack.c.b16 %v2682, %v2680
        %v2733 = vpack.c.b16 %v2683, %v2681
        %v2734 = vpack.c.b16 %v2686, %v2684
        %v2735 = vpack.c.b16 %v2687, %v2685
        %v2736 = vpack.c.b16 %v2690, %v2688
        %v2737 = vpack.c.b16 %v2691, %v2689
        %v2738 = vpack.c.b16 %v2694, %v2692
        %v2739 = vpack.c.b16 %v2695, %v2693
        %v2740 = vpack.c.b16 %v2698, %v2696
        %v2741 = vpack.c.b16 %v2699, %v2697
        %v2742 = vpack.c.b16 %v2702, %v2700
        %v2743 = vpack.c.b16 %v2703, %v2701
        %v2744 = vpack.c.b16 %v2706, %v2704
        %v2745 = vpack.c.b16 %v2707, %v2705
        %v2746 = vpack.c.b16 %v2710, %v2708
        %v2747 = vpack.c.b16 %v2711, %v2709
        %v2748 = vpack.c.b16 %v2714, %v2712
        %v2749 = vpack.c.b16 %v2715, %v2713
        %v2750 = vpack.c.b16 %v2718, %v2716
        %v2751 = vpack.c.b16 %v2719, %v2717
        %2784 = vmatpush.bf16.msra.mxu0 %v2734
        %2785 = vmatpush.bf16.msra.mxu0 %v2732
        %2786 = vmatpush.bf16.msra.mxu0 %v2730
        %2787 = vmatpush.bf16.msra.mxu0 %v2728
        %2788 = vmatpush.bf16.msra.mxu0 %v2726
        %2789 = vmatpush.bf16.msra.mxu0 %v2724
        %2790 = vmatpush.bf16.msra.mxu0 %v2722
        %2791 = vmatpush.bf16.msra.mxu0 %v2720
        %2792 = vmatmul.bf16.gmra.mxu0 %v2594
        %v2793 = vpop.f32.mrf.mxu0
        %v2794 = vadd.f32 0.0, %v2793
        %v2795 = vpop.f32.mrf.mxu0
        %v2796 = vadd.f32 0.0, %v2795
        %2797 = vmatmul.bf16.gmra.mxu0 %v2599
        %v2798 = vpop.f32.mrf.mxu0
        %v2799 = vadd.f32 0.0, %v2798
        %v2800 = vpop.f32.mrf.mxu0
        %v2801 = vadd.f32 0.0, %v2800
        %2802 = vmatmul.bf16.gmra.mxu0 %v2603
        %v2803 = vpop.f32.mrf.mxu0
        %v2804 = vadd.f32 0.0, %v2803
        %v2805 = vpop.f32.mrf.mxu0
        %v2806 = vadd.f32 0.0, %v2805
        %2807 = vmatmul.bf16.gmra.mxu0 %v2607
        %v2808 = vpop.f32.mrf.mxu0
        %v2809 = vadd.f32 0.0, %v2808
        %v2810 = vpop.f32.mrf.mxu0
        %v2811 = vadd.f32 0.0, %v2810
        %2812 = vmatmul.bf16.gmra.mxu0 %v2611
        %v2813 = vpop.f32.mrf.mxu0
        %v2814 = vadd.f32 0.0, %v2813
        %v2815 = vpop.f32.mrf.mxu0
        %v2816 = vadd.f32 0.0, %v2815
        %2817 = vdwg.mxu0
        %2818 = vmatpush.bf16.msra.mxu0 %v2750
        %2819 = vmatpush.bf16.msra.mxu0 %v2748
        %2820 = vmatpush.bf16.msra.mxu0 %v2746
        %2821 = vmatpush.bf16.msra.mxu0 %v2744
        %2822 = vmatpush.bf16.msra.mxu0 %v2742
        %2823 = vmatpush.bf16.msra.mxu0 %v2740
        %2824 = vmatpush.bf16.msra.mxu0 %v2738
        %2825 = vmatpush.bf16.msra.mxu0 %v2736
        %2826 = vmatmul.bf16.gmra.mxu0 %v2597
        %v2827 = vpop.f32.mrf.mxu0
        %v2828 = vadd.f32 %v2794, %v2827
        %v2829 = vpop.f32.mrf.mxu0
        %v2830 = vadd.f32 %v2796, %v2829
        %2831 = vmatmul.bf16.gmra.mxu0 %v2601
        %v2832 = vpop.f32.mrf.mxu0
        %v2833 = vadd.f32 %v2799, %v2832
        %v2834 = vpop.f32.mrf.mxu0
        %v2835 = vadd.f32 %v2801, %v2834
        %2836 = vmatmul.bf16.gmra.mxu0 %v2605
        %v2837 = vpop.f32.mrf.mxu0
        %v2838 = vadd.f32 %v2804, %v2837
        %v2839 = vpop.f32.mrf.mxu0
        %v2840 = vadd.f32 %v2806, %v2839
        %2841 = vmatmul.bf16.gmra.mxu0 %v2609
        %v2842 = vpop.f32.mrf.mxu0
        %v2843 = vadd.f32 %v2809, %v2842
        %v2844 = vpop.f32.mrf.mxu0
        %v2845 = vadd.f32 %v2811, %v2844
        %2846 = vmatmul.bf16.gmra.mxu0 %v2613
        %v2847 = vpop.f32.mrf.mxu0
        %v2848 = vadd.f32 %v2814, %v2847
        %v2849 = vpop.f32.mrf.mxu0
        %v2850 = vadd.f32 %v2816, %v2849
        %2851 = vdwg.mxu0
        %2852 = vmatpush.bf16.msra.mxu0 %v2735
        %2853 = vmatpush.bf16.msra.mxu0 %v2733
        %2854 = vmatpush.bf16.msra.mxu0 %v2731
        %2855 = vmatpush.bf16.msra.mxu0 %v2729
        %2856 = vmatpush.bf16.msra.mxu0 %v2727
        %2857 = vmatpush.bf16.msra.mxu0 %v2725
        %2858 = vmatpush.bf16.msra.mxu0 %v2723
        %2859 = vmatpush.bf16.msra.mxu0 %v2721
        %2860 = vmatmul.bf16.gmra.mxu0 %v2594
        %v2861 = vpop.f32.mrf.mxu0
        %v2862 = vadd.f32 0.0, %v2861
        %v2863 = vpop.f32.mrf.mxu0
        %v2864 = vadd.f32 0.0, %v2863
        %2865 = vmatmul.bf16.gmra.mxu0 %v2599
        %v2866 = vpop.f32.mrf.mxu0
        %v2867 = vadd.f32 0.0, %v2866
        %v2868 = vpop.f32.mrf.mxu0
        %v2869 = vadd.f32 0.0, %v2868
        %2870 = vmatmul.bf16.gmra.mxu0 %v2603
        %v2871 = vpop.f32.mrf.mxu0
        %v2872 = vadd.f32 0.0, %v2871
        %v2873 = vpop.f32.mrf.mxu0
        %v2874 = vadd.f32 0.0, %v2873
        %2875 = vmatmul.bf16.gmra.mxu0 %v2607
        %v2876 = vpop.f32.mrf.mxu0
        %v2877 = vadd.f32 0.0, %v2876
        %v2878 = vpop.f32.mrf.mxu0
        %v2879 = vadd.f32 0.0, %v2878
        %2880 = vmatmul.bf16.gmra.mxu0 %v2611
        %v2881 = vpop.f32.mrf.mxu0
        %v2882 = vadd.f32 0.0, %v2881
        %v2883 = vpop.f32.mrf.mxu0
        %v2884 = vadd.f32 0.0, %v2883
        %2885 = vdwg.mxu0
        %2886 = vmatpush.bf16.msra.mxu0 %v2751
        %2887 = vmatpush.bf16.msra.mxu0 %v2749
        %2888 = vmatpush.bf16.msra.mxu0 %v2747
        %2889 = vmatpush.bf16.msra.mxu0 %v2745
        %2890 = vmatpush.bf16.msra.mxu0 %v2743
        %2891 = vmatpush.bf16.msra.mxu0 %v2741
        %2892 = vmatpush.bf16.msra.mxu0 %v2739
        %2893 = vmatpush.bf16.msra.mxu0 %v2737
        %2894 = vmatmul.bf16.gmra.mxu0 %v2597
        %v2895 = vpop.f32.mrf.mxu0
        %v2896 = vadd.f32 %v2862, %v2895
        %v2897 = vpop.f32.mrf.mxu0
        %v2898 = vadd.f32 %v2864, %v2897
        %2899 = vmatmul.bf16.gmra.mxu0 %v2601
        %v2900 = vpop.f32.mrf.mxu0
        %v2901 = vadd.f32 %v2867, %v2900
        %v2902 = vpop.f32.mrf.mxu0
        %v2903 = vadd.f32 %v2869, %v2902
        %2904 = vmatmul.bf16.gmra.mxu0 %v2605
        %v2905 = vpop.f32.mrf.mxu0
        %v2906 = vadd.f32 %v2872, %v2905
        %v2907 = vpop.f32.mrf.mxu0
        %v2908 = vadd.f32 %v2874, %v2907
        %2909 = vmatmul.bf16.gmra.mxu0 %v2609
        %v2910 = vpop.f32.mrf.mxu0
        %v2911 = vadd.f32 %v2877, %v2910
        %v2912 = vpop.f32.mrf.mxu0
        %v2913 = vadd.f32 %v2879, %v2912
        %2914 = vmatmul.bf16.gmra.mxu0 %v2613
        %v2915 = vpop.f32.mrf.mxu0
        %v2916 = vadd.f32 %v2882, %v2915
        %v2917 = vpop.f32.mrf.mxu0
        %v2918 = vadd.f32 %v2884, %v2917
        %2919 = vdwg.mxu0
        %v2920 = vadd.f32 %v2492, %v2828
        %v2921 = vadd.f32 %v2493, %v2896
        %v2922 = vadd.f32 %v2494, %v2830
        %v2923 = vadd.f32 %v2495, %v2898
        %v2924 = vadd.f32 %v2496, %v2833
        %v2925 = vadd.f32 %v2497, %v2901
        %v2926 = vadd.f32 %v2498, %v2835
        %v2927 = vadd.f32 %v2499, %v2903
        %v2928 = vadd.f32 %v2500, %v2838
        %v2929 = vadd.f32 %v2501, %v2906
        %v2930 = vadd.f32 %v2502, %v2840
        %v2931 = vadd.f32 %v2503, %v2908
        %v2932 = vadd.f32 %v2504, %v2843
        %v2933 = vadd.f32 %v2505, %v2911
        %v2934 = vadd.f32 %v2506, %v2845
        %v2935 = vadd.f32 %v2507, %v2913
        %v2936 = vadd.f32 %v2508, %v2848
        %v2937 = vadd.f32 %v2509, %v2916
        %v2938 = vadd.f32 %v2510, %v2850
        %v2939 = vadd.f32 %v2511, %v2918
        %2940 = vst [vmem:[#allocation3] sm:$0xff] %v2920
        %2941 = vst [vmem:[#allocation3 + $0x8] sm:$0xff] %v2921
        %2942 = vst [vmem:[#allocation3 + $0x10] sm:$0xff] %v2922
        %2943 = vst [vmem:[#allocation3 + $0x18] sm:$0xff] %v2923
        %2944 = vst [vmem:[#allocation3 + $0x20] sm:$0xff] %v2924
        %2945 = vst [vmem:[#allocation3 + $0x28] sm:$0xff] %v2925
        %2946 = vst [vmem:[#allocation3 + $0x30] sm:$0xff] %v2926
        %2947 = vst [vmem:[#allocation3 + $0x38] sm:$0xff] %v2927
        %2948 = vst [vmem:[#allocation3 + $0x40] sm:$0xff] %v2928
        %2949 = vst [vmem:[#allocation3 + $0x48] sm:$0xff] %v2929
        %2950 = vst [vmem:[#allocation3 + $0x50] sm:$0xff] %v2930
        %2951 = vst [vmem:[#allocation3 + $0x58] sm:$0xff] %v2931
        %2952 = vst [vmem:[#allocation3 + $0x60] sm:$0xff] %v2932
        %2953 = vst [vmem:[#allocation3 + $0x68] sm:$0xff] %v2933
        %2954 = vst [vmem:[#allocation3 + $0x70] sm:$0xff] %v2934
        %2955 = vst [vmem:[#allocation3 + $0x78] sm:$0xff] %v2935
        %2956 = vst [vmem:[#allocation3 + $0x80] sm:$0xff] %v2936
        %2957 = vst [vmem:[#allocation3 + $0x88] sm:$0xff] %v2937
        %2958 = vst [vmem:[#allocation3 + $0x90] sm:$0xff] %v2938
        %2959 = vst [vmem:[#allocation3 + $0x98] sm:$0xff] %v2939
        %v2960 = vld [vmem:[#allocation3] sm:$0xff]
        %v2961 = vld [vmem:[#allocation3 + $0x8] sm:$0xff]
        %v2962 = vld [vmem:[#allocation3 + $0x10] sm:$0xff]
        %v2963 = vld [vmem:[#allocation3 + $0x18] sm:$0xff]
        %v2964 = vld [vmem:[#allocation3 + $0x20] sm:$0xff]
        %v2965 = vld [vmem:[#allocation3 + $0x28] sm:$0xff]
        %v2966 = vld [vmem:[#allocation3 + $0x30] sm:$0xff]
        %v2967 = vld [vmem:[#allocation3 + $0x38] sm:$0xff]
        %v2968 = vld [vmem:[#allocation3 + $0x40] sm:$0xff]
        %v2969 = vld [vmem:[#allocation3 + $0x48] sm:$0xff]
        %v2970 = vld [vmem:[#allocation3 + $0x50] sm:$0xff]
        %v2971 = vld [vmem:[#allocation3 + $0x58] sm:$0xff]
        %v2972 = vld [vmem:[#allocation3 + $0x60] sm:$0xff]
        %v2973 = vld [vmem:[#allocation3 + $0x68] sm:$0xff]
        %v2974 = vld [vmem:[#allocation3 + $0x70] sm:$0xff]
        %v2975 = vld [vmem:[#allocation3 + $0x78] sm:$0xff]
        %v2976 = vld [vmem:[#allocation3 + $0x80] sm:$0xff]
        %v2977 = vld [vmem:[#allocation3 + $0x88] sm:$0xff]
        %v2978 = vld [vmem:[#allocation3 + $0x90] sm:$0xff]
        %v2979 = vld [vmem:[#allocation3 + $0x98] sm:$0xff]
        %v2980 = vld [vmem:[#allocation2] sm:$0xe0]
        %v2981 = vld [vmem:[#allocation2 + $0x8] sm:$0xe0]
        %v2982 = vld [vmem:[#allocation2 + $0x10] sm:$0xff]
        %v2983 = vld [vmem:[#allocation2 + $0x18] sm:$0xff]
        %v2984 = vld [vmem:[#allocation2 + $0x20] sm:$0xff]
        %v2985 = vld [vmem:[#allocation2 + $0x28] sm:$0xff]
        %v2986 = vld [vmem:[#allocation2 + $0x30] sm:$0xff]
        %v2987 = vld [vmem:[#allocation2 + $0x38] sm:$0xff]
        %v2988 = vld [vmem:[#allocation2 + $0x40] sm:$0xff]
        %v2989 = vld [vmem:[#allocation2 + $0x48] sm:$0xff]
        %v2990 = vld [vmem:[#allocation2 + $0x50] sm:$0xff]
        %v2991 = vld [vmem:[#allocation2 + $0x58] sm:$0xff]
        %v2992 = vld [vmem:[#allocation2 + $0x60] sm:$0xff]
        %v2993 = vld [vmem:[#allocation2 + $0x68] sm:$0xff]
        %v2994 = vld [vmem:[#allocation2 + $0x70] sm:$0xff]
        %v2995 = vld [vmem:[#allocation2 + $0x78] sm:$0xff]
        %v2996 = vld [vmem:[#allocation2 + $0x80] sm:$0xff]
        %v2997 = vld [vmem:[#allocation2 + $0x88] sm:$0xff]
        %v2998 = vld [vmem:[#allocation2 + $0x90] sm:$0xff]
        %v2999 = vld [vmem:[#allocation2 + $0x98] sm:$0xff]
        %v3000 = vld [vmem:[#allocation2 + $0xa0] sm:$0x1f]
        %v3001 = vld [vmem:[#allocation2 + $0xa8] sm:$0x1f]
        %v3002 = vpack.c.bf16 %v2982, %v2980
        %v3003 = vpack.c.bf16 %v2983, %v2981
        %v3004 = vpack.c.bf16 %v2986, %v2984
        %v3005 = vpack.c.bf16 %v2987, %v2985
        %v3006 = vpack.c.bf16 %v2990, %v2988
        %v3007 = vpack.c.bf16 %v2991, %v2989
        %v3008 = vpack.c.bf16 %v2994, %v2992
        %v3009 = vpack.c.bf16 %v2995, %v2993
        %v3010 = vpack.c.bf16 %v2998, %v2996
        %v3011 = vpack.c.bf16 %v2999, %v2997
        %v3012 = vpack.c.bf16 %v3000, %v3000
        %v3013 = vpack.c.bf16 %v3001, %v3001
        %s3014 = scalar_lea.vmem %s3, 1280
        %v3015 = vld [vmem:[%s3014] sm:$0xff]
        %v3016 = vld [vmem:[%s3014 + $0x8] sm:$0xff]
        %v3017 = vld [vmem:[%s3014 + $0x10] sm:$0xff]
        %v3018 = vld [vmem:[%s3014 + $0x18] sm:$0xff]
        %v3019 = vld [vmem:[%s3014 + $0x20] sm:$0xff]
        %v3020 = vld [vmem:[%s3014 + $0x28] sm:$0xff]
        %v3021 = vld [vmem:[%s3014 + $0x30] sm:$0xff]
        %v3022 = vld [vmem:[%s3014 + $0x38] sm:$0xff]
        %v3023 = vld [vmem:[%s3014 + $0x40] sm:$0xff]
        %v3024 = vld [vmem:[%s3014 + $0x48] sm:$0xff]
        %v3025 = vld [vmem:[%s3014 + $0x50] sm:$0xff]
        %v3026 = vld [vmem:[%s3014 + $0x58] sm:$0xff]
        %v3027 = vld [vmem:[%s3014 + $0x60] sm:$0xff]
        %v3028 = vld [vmem:[%s3014 + $0x68] sm:$0xff]
        %v3029 = vld [vmem:[%s3014 + $0x70] sm:$0xff]
        %v3030 = vld [vmem:[%s3014 + $0x78] sm:$0xff]
        %v3031 = vld [vmem:[%s3014 + $0x80] sm:$0xff]
        %v3032 = vld [vmem:[%s3014 + $0x88] sm:$0xff]
        %v3033 = vld [vmem:[%s3014 + $0x90] sm:$0xff]
        %v3034 = vld [vmem:[%s3014 + $0x98] sm:$0xff]
        %v3035 = vld [vmem:[%s3014 + $0xa0] sm:$0xff]
        %v3036 = vld [vmem:[%s3014 + $0xa8] sm:$0xff]
        %v3037 = vld [vmem:[%s3014 + $0xb0] sm:$0xff]
        %v3038 = vld [vmem:[%s3014 + $0xb8] sm:$0xff]
        %v3039 = vld [vmem:[%s3014 + $0xc0] sm:$0xff]
        %v3040 = vld [vmem:[%s3014 + $0xc8] sm:$0xff]
        %v3041 = vld [vmem:[%s3014 + $0xd0] sm:$0xff]
        %v3042 = vld [vmem:[%s3014 + $0xd8] sm:$0xff]
        %v3043 = vld [vmem:[%s3014 + $0xe0] sm:$0xff]
        %v3044 = vld [vmem:[%s3014 + $0xe8] sm:$0xff]
        %v3045 = vld [vmem:[%s3014 + $0xf0] sm:$0xff]
        %v3046 = vld [vmem:[%s3014 + $0xf8] sm:$0xff]
        %vm3047 = vsmask.f32 5376
        %v3049 = vshrl.u32 %v3002, 16
        %v3051 = vrot.slane %v3049, 2
        %v3052 = vshll.u32 %v3002, 16
        %v3054 = vrot.slane %v3052, 3
        %v3055 = vor.u32 %v3051, %v3054
        %v3057 = vshrl.u32 %v3004, 16
        %v3059 = vrot.slane %v3057, 2
        %v3060 = vshll.u32 %v3004, 16
        %v3062 = vrot.slane %v3060, 3
        %v3063 = vor.u32 %v3059, %v3062
        %v3064 = vsel %vm3047, %v3055, %v3063
        %v3066 = vshrl.u32 %v3003, 16
        %v3068 = vrot.slane %v3066, 2
        %v3069 = vshll.u32 %v3003, 16
        %v3071 = vrot.slane %v3069, 3
        %v3072 = vor.u32 %v3068, %v3071
        %v3074 = vshrl.u32 %v3005, 16
        %v3076 = vrot.slane %v3074, 2
        %v3077 = vshll.u32 %v3005, 16
        %v3079 = vrot.slane %v3077, 3
        %v3080 = vor.u32 %v3076, %v3079
        %v3081 = vsel %vm3047, %v3072, %v3080
        %v3083 = vshrl.u32 %v3006, 16
        %v3085 = vrot.slane %v3083, 2
        %v3086 = vshll.u32 %v3006, 16
        %v3088 = vrot.slane %v3086, 3
        %v3089 = vor.u32 %v3085, %v3088
        %v3090 = vsel %vm3047, %v3063, %v3089
        %v3092 = vshrl.u32 %v3007, 16
        %v3094 = vrot.slane %v3092, 2
        %v3095 = vshll.u32 %v3007, 16
        %v3097 = vrot.slane %v3095, 3
        %v3098 = vor.u32 %v3094, %v3097
        %v3099 = vsel %vm3047, %v3080, %v3098
        %v3101 = vshrl.u32 %v3008, 16
        %v3103 = vrot.slane %v3101, 2
        %v3104 = vshll.u32 %v3008, 16
        %v3106 = vrot.slane %v3104, 3
        %v3107 = vor.u32 %v3103, %v3106
        %v3108 = vsel %vm3047, %v3089, %v3107
        %v3110 = vshrl.u32 %v3009, 16
        %v3112 = vrot.slane %v3110, 2
        %v3113 = vshll.u32 %v3009, 16
        %v3115 = vrot.slane %v3113, 3
        %v3116 = vor.u32 %v3112, %v3115
        %v3117 = vsel %vm3047, %v3098, %v3116
        %v3119 = vshrl.u32 %v3010, 16
        %v3121 = vrot.slane %v3119, 2
        %v3122 = vshll.u32 %v3010, 16
        %v3124 = vrot.slane %v3122, 3
        %v3125 = vor.u32 %v3121, %v3124
        %v3126 = vsel %vm3047, %v3107, %v3125
        %v3128 = vshrl.u32 %v3011, 16
        %v3130 = vrot.slane %v3128, 2
        %v3131 = vshll.u32 %v3011, 16
        %v3133 = vrot.slane %v3131, 3
        %v3134 = vor.u32 %v3130, %v3133
        %v3135 = vsel %vm3047, %v3116, %v3134
        %v3137 = vshrl.u32 %v3012, 16
        %v3139 = vrot.slane %v3137, 2
        %v3140 = vshll.u32 %v3012, 16
        %v3142 = vrot.slane %v3140, 3
        %v3143 = vor.u32 %v3139, %v3142
        %v3144 = vsel %vm3047, %v3125, %v3143
        %v3146 = vshrl.u32 %v3013, 16
        %v3148 = vrot.slane %v3146, 2
        %v3149 = vshll.u32 %v3013, 16
        %v3151 = vrot.slane %v3149, 3
        %v3152 = vor.u32 %v3148, %v3151
        %v3153 = vsel %vm3047, %v3134, %v3152
        %v3196 = vunpack.c.l.b16 %v3015
        %v3197 = vunpack.c.h.b16 %v3015
        %v3198 = vunpack.c.l.b16 %v3016
        %v3199 = vunpack.c.h.b16 %v3016
        %v3200 = vunpack.c.l.b16 %v3017
        %v3201 = vunpack.c.h.b16 %v3017
        %v3202 = vunpack.c.l.b16 %v3018
        %v3203 = vunpack.c.h.b16 %v3018
        %v3204 = vunpack.c.l.b16 %v3019
        %v3205 = vunpack.c.h.b16 %v3019
        %v3206 = vunpack.c.l.b16 %v3020
        %v3207 = vunpack.c.h.b16 %v3020
        %v3208 = vunpack.c.l.b16 %v3021
        %v3209 = vunpack.c.h.b16 %v3021
        %v3210 = vunpack.c.l.b16 %v3022
        %v3211 = vunpack.c.h.b16 %v3022
        %v3212 = vunpack.c.l.b16 %v3023
        %v3213 = vunpack.c.h.b16 %v3023
        %v3214 = vunpack.c.l.b16 %v3024
        %v3215 = vunpack.c.h.b16 %v3024
        %v3216 = vunpack.c.l.b16 %v3025
        %v3217 = vunpack.c.h.b16 %v3025
        %v3218 = vunpack.c.l.b16 %v3026
        %v3219 = vunpack.c.h.b16 %v3026
        %v3220 = vunpack.c.l.b16 %v3027
        %v3221 = vunpack.c.h.b16 %v3027
        %v3222 = vunpack.c.l.b16 %v3028
        %v3223 = vunpack.c.h.b16 %v3028
        %v3224 = vunpack.c.l.b16 %v3029
        %v3225 = vunpack.c.h.b16 %v3029
        %v3226 = vunpack.c.l.b16 %v3030
        %v3227 = vunpack.c.h.b16 %v3030
        %v3228 = vunpack.c.l.b16 %v3031
        %v3229 = vunpack.c.h.b16 %v3031
        %v3230 = vunpack.c.l.b16 %v3032
        %v3231 = vunpack.c.h.b16 %v3032
        %v3232 = vunpack.c.l.b16 %v3033
        %v3233 = vunpack.c.h.b16 %v3033
        %v3234 = vunpack.c.l.b16 %v3034
        %v3235 = vunpack.c.h.b16 %v3034
        %v3236 = vunpack.c.l.b16 %v3035
        %v3237 = vunpack.c.h.b16 %v3035
        %v3238 = vunpack.c.l.b16 %v3036
        %v3239 = vunpack.c.h.b16 %v3036
        %v3240 = vunpack.c.l.b16 %v3037
        %v3241 = vunpack.c.h.b16 %v3037
        %v3242 = vunpack.c.l.b16 %v3038
        %v3243 = vunpack.c.h.b16 %v3038
        %v3244 = vunpack.c.l.b16 %v3039
        %v3245 = vunpack.c.h.b16 %v3039
        %v3246 = vunpack.c.l.b16 %v3040
        %v3247 = vunpack.c.h.b16 %v3040
        %v3248 = vunpack.c.l.b16 %v3041
        %v3249 = vunpack.c.h.b16 %v3041
        %v3250 = vunpack.c.l.b16 %v3042
        %v3251 = vunpack.c.h.b16 %v3042
        %v3252 = vunpack.c.l.b16 %v3043
        %v3253 = vunpack.c.h.b16 %v3043
        %v3254 = vunpack.c.l.b16 %v3044
        %v3255 = vunpack.c.h.b16 %v3044
        %v3256 = vunpack.c.l.b16 %v3045
        %v3257 = vunpack.c.h.b16 %v3045
        %v3258 = vunpack.c.l.b16 %v3046
        %v3259 = vunpack.c.h.b16 %v3046
        %v3260 = vpack.c.b16 %v3198, %v3196
        %v3261 = vpack.c.b16 %v3199, %v3197
        %v3262 = vpack.c.b16 %v3202, %v3200
        %v3263 = vpack.c.b16 %v3203, %v3201
        %v3264 = vpack.c.b16 %v3206, %v3204
        %v3265 = vpack.c.b16 %v3207, %v3205
        %v3266 = vpack.c.b16 %v3210, %v3208
        %v3267 = vpack.c.b16 %v3211, %v3209
        %v3268 = vpack.c.b16 %v3214, %v3212
        %v3269 = vpack.c.b16 %v3215, %v3213
        %v3270 = vpack.c.b16 %v3218, %v3216
        %v3271 = vpack.c.b16 %v3219, %v3217
        %v3272 = vpack.c.b16 %v3222, %v3220
        %v3273 = vpack.c.b16 %v3223, %v3221
        %v3274 = vpack.c.b16 %v3226, %v3224
        %v3275 = vpack.c.b16 %v3227, %v3225
        %v3276 = vpack.c.b16 %v3230, %v3228
        %v3277 = vpack.c.b16 %v3231, %v3229
        %v3278 = vpack.c.b16 %v3234, %v3232
        %v3279 = vpack.c.b16 %v3235, %v3233
        %v3280 = vpack.c.b16 %v3238, %v3236
        %v3281 = vpack.c.b16 %v3239, %v3237
        %v3282 = vpack.c.b16 %v3242, %v3240
        %v3283 = vpack.c.b16 %v3243, %v3241
        %v3284 = vpack.c.b16 %v3246, %v3244
        %v3285 = vpack.c.b16 %v3247, %v3245
        %v3286 = vpack.c.b16 %v3250, %v3248
        %v3287 = vpack.c.b16 %v3251, %v3249
        %v3288 = vpack.c.b16 %v3254, %v3252
        %v3289 = vpack.c.b16 %v3255, %v3253
        %v3290 = vpack.c.b16 %v3258, %v3256
        %v3291 = vpack.c.b16 %v3259, %v3257
        %3324 = vmatpush.bf16.msra.mxu0 %v3274
        %3325 = vmatpush.bf16.msra.mxu0 %v3272
        %3326 = vmatpush.bf16.msra.mxu0 %v3270
        %3327 = vmatpush.bf16.msra.mxu0 %v3268
        %3328 = vmatpush.bf16.msra.mxu0 %v3266
        %3329 = vmatpush.bf16.msra.mxu0 %v3264
        %3330 = vmatpush.bf16.msra.mxu0 %v3262
        %3331 = vmatpush.bf16.msra.mxu0 %v3260
        %3332 = vmatmul.bf16.gmra.mxu0 %v3064
        %v3333 = vpop.f32.mrf.mxu0
        %v3334 = vadd.f32 0.0, %v3333
        %v3335 = vpop.f32.mrf.mxu0
        %v3336 = vadd.f32 0.0, %v3335
        %3337 = vmatmul.bf16.gmra.mxu0 %v3090
        %v3338 = vpop.f32.mrf.mxu0
        %v3339 = vadd.f32 0.0, %v3338
        %v3340 = vpop.f32.mrf.mxu0
        %v3341 = vadd.f32 0.0, %v3340
        %3342 = vmatmul.bf16.gmra.mxu0 %v3108
        %v3343 = vpop.f32.mrf.mxu0
        %v3344 = vadd.f32 0.0, %v3343
        %v3345 = vpop.f32.mrf.mxu0
        %v3346 = vadd.f32 0.0, %v3345
        %3347 = vmatmul.bf16.gmra.mxu0 %v3126
        %v3348 = vpop.f32.mrf.mxu0
        %v3349 = vadd.f32 0.0, %v3348
        %v3350 = vpop.f32.mrf.mxu0
        %v3351 = vadd.f32 0.0, %v3350
        %3352 = vmatmul.bf16.gmra.mxu0 %v3144
        %v3353 = vpop.f32.mrf.mxu0
        %v3354 = vadd.f32 0.0, %v3353
        %v3355 = vpop.f32.mrf.mxu0
        %v3356 = vadd.f32 0.0, %v3355
        %3357 = vdwg.mxu0
        %3358 = vmatpush.bf16.msra.mxu0 %v3290
        %3359 = vmatpush.bf16.msra.mxu0 %v3288
        %3360 = vmatpush.bf16.msra.mxu0 %v3286
        %3361 = vmatpush.bf16.msra.mxu0 %v3284
        %3362 = vmatpush.bf16.msra.mxu0 %v3282
        %3363 = vmatpush.bf16.msra.mxu0 %v3280
        %3364 = vmatpush.bf16.msra.mxu0 %v3278
        %3365 = vmatpush.bf16.msra.mxu0 %v3276
        %3366 = vmatmul.bf16.gmra.mxu0 %v3081
        %v3367 = vpop.f32.mrf.mxu0
        %v3368 = vadd.f32 %v3334, %v3367
        %v3369 = vpop.f32.mrf.mxu0
        %v3370 = vadd.f32 %v3336, %v3369
        %3371 = vmatmul.bf16.gmra.mxu0 %v3099
        %v3372 = vpop.f32.mrf.mxu0
        %v3373 = vadd.f32 %v3339, %v3372
        %v3374 = vpop.f32.mrf.mxu0
        %v3375 = vadd.f32 %v3341, %v3374
        %3376 = vmatmul.bf16.gmra.mxu0 %v3117
        %v3377 = vpop.f32.mrf.mxu0
        %v3378 = vadd.f32 %v3344, %v3377
        %v3379 = vpop.f32.mrf.mxu0
        %v3380 = vadd.f32 %v3346, %v3379
        %3381 = vmatmul.bf16.gmra.mxu0 %v3135
        %v3382 = vpop.f32.mrf.mxu0
        %v3383 = vadd.f32 %v3349, %v3382
        %v3384 = vpop.f32.mrf.mxu0
        %v3385 = vadd.f32 %v3351, %v3384
        %3386 = vmatmul.bf16.gmra.mxu0 %v3153
        %v3387 = vpop.f32.mrf.mxu0
        %v3388 = vadd.f32 %v3354, %v3387
        %v3389 = vpop.f32.mrf.mxu0
        %v3390 = vadd.f32 %v3356, %v3389
        %3391 = vdwg.mxu0
        %3392 = vmatpush.bf16.msra.mxu0 %v3275
        %3393 = vmatpush.bf16.msra.mxu0 %v3273
        %3394 = vmatpush.bf16.msra.mxu0 %v3271
        %3395 = vmatpush.bf16.msra.mxu0 %v3269
        %3396 = vmatpush.bf16.msra.mxu0 %v3267
        %3397 = vmatpush.bf16.msra.mxu0 %v3265
        %3398 = vmatpush.bf16.msra.mxu0 %v3263
        %3399 = vmatpush.bf16.msra.mxu0 %v3261
        %3400 = vmatmul.bf16.gmra.mxu0 %v3064
        %v3401 = vpop.f32.mrf.mxu0
        %v3402 = vadd.f32 0.0, %v3401
        %v3403 = vpop.f32.mrf.mxu0
        %v3404 = vadd.f32 0.0, %v3403
        %3405 = vmatmul.bf16.gmra.mxu0 %v3090
        %v3406 = vpop.f32.mrf.mxu0
        %v3407 = vadd.f32 0.0, %v3406
        %v3408 = vpop.f32.mrf.mxu0
        %v3409 = vadd.f32 0.0, %v3408
        %3410 = vmatmul.bf16.gmra.mxu0 %v3108
        %v3411 = vpop.f32.mrf.mxu0
        %v3412 = vadd.f32 0.0, %v3411
        %v3413 = vpop.f32.mrf.mxu0
        %v3414 = vadd.f32 0.0, %v3413
        %3415 = vmatmul.bf16.gmra.mxu0 %v3126
        %v3416 = vpop.f32.mrf.mxu0
        %v3417 = vadd.f32 0.0, %v3416
        %v3418 = vpop.f32.mrf.mxu0
        %v3419 = vadd.f32 0.0, %v3418
        %3420 = vmatmul.bf16.gmra.mxu0 %v3144
        %v3421 = vpop.f32.mrf.mxu0
        %v3422 = vadd.f32 0.0, %v3421
        %v3423 = vpop.f32.mrf.mxu0
        %v3424 = vadd.f32 0.0, %v3423
        %3425 = vdwg.mxu0
        %3426 = vmatpush.bf16.msra.mxu0 %v3291
        %3427 = vmatpush.bf16.msra.mxu0 %v3289
        %3428 = vmatpush.bf16.msra.mxu0 %v3287
        %3429 = vmatpush.bf16.msra.mxu0 %v3285
        %3430 = vmatpush.bf16.msra.mxu0 %v3283
        %3431 = vmatpush.bf16.msra.mxu0 %v3281
        %3432 = vmatpush.bf16.msra.mxu0 %v3279
        %3433 = vmatpush.bf16.msra.mxu0 %v3277
        %3434 = vmatmul.bf16.gmra.mxu0 %v3081
        %v3435 = vpop.f32.mrf.mxu0
        %v3436 = vadd.f32 %v3402, %v3435
        %v3437 = vpop.f32.mrf.mxu0
        %v3438 = vadd.f32 %v3404, %v3437
        %3439 = vmatmul.bf16.gmra.mxu0 %v3099
        %v3440 = vpop.f32.mrf.mxu0
        %v3441 = vadd.f32 %v3407, %v3440
        %v3442 = vpop.f32.mrf.mxu0
        %v3443 = vadd.f32 %v3409, %v3442
        %3444 = vmatmul.bf16.gmra.mxu0 %v3117
        %v3445 = vpop.f32.mrf.mxu0
        %v3446 = vadd.f32 %v3412, %v3445
        %v3447 = vpop.f32.mrf.mxu0
        %v3448 = vadd.f32 %v3414, %v3447
        %3449 = vmatmul.bf16.gmra.mxu0 %v3135
        %v3450 = vpop.f32.mrf.mxu0
        %v3451 = vadd.f32 %v3417, %v3450
        %v3452 = vpop.f32.mrf.mxu0
        %v3453 = vadd.f32 %v3419, %v3452
        %3454 = vmatmul.bf16.gmra.mxu0 %v3153
        %v3455 = vpop.f32.mrf.mxu0
        %v3456 = vadd.f32 %v3422, %v3455
        %v3457 = vpop.f32.mrf.mxu0
        %v3458 = vadd.f32 %v3424, %v3457
        %3459 = vdwg.mxu0
        %v3460 = vadd.f32 %v2960, %v3368
        %v3461 = vadd.f32 %v2961, %v3436
        %v3462 = vadd.f32 %v2962, %v3370
        %v3463 = vadd.f32 %v2963, %v3438
        %v3464 = vadd.f32 %v2964, %v3373
        %v3465 = vadd.f32 %v2965, %v3441
        %v3466 = vadd.f32 %v2966, %v3375
        %v3467 = vadd.f32 %v2967, %v3443
        %v3468 = vadd.f32 %v2968, %v3378
        %v3469 = vadd.f32 %v2969, %v3446
        %v3470 = vadd.f32 %v2970, %v3380
        %v3471 = vadd.f32 %v2971, %v3448
        %v3472 = vadd.f32 %v2972, %v3383
        %v3473 = vadd.f32 %v2973, %v3451
        %v3474 = vadd.f32 %v2974, %v3385
        %v3475 = vadd.f32 %v2975, %v3453
        %v3476 = vadd.f32 %v2976, %v3388
        %v3477 = vadd.f32 %v2977, %v3456
        %v3478 = vadd.f32 %v2978, %v3390
        %v3479 = vadd.f32 %v2979, %v3458
        %3480 = vst [vmem:[#allocation3] sm:$0xff] %v3460
        %3481 = vst [vmem:[#allocation3 + $0x8] sm:$0xff] %v3461
        %3482 = vst [vmem:[#allocation3 + $0x10] sm:$0xff] %v3462
        %3483 = vst [vmem:[#allocation3 + $0x18] sm:$0xff] %v3463
        %3484 = vst [vmem:[#allocation3 + $0x20] sm:$0xff] %v3464
        %3485 = vst [vmem:[#allocation3 + $0x28] sm:$0xff] %v3465
        %3486 = vst [vmem:[#allocation3 + $0x30] sm:$0xff] %v3466
        %3487 = vst [vmem:[#allocation3 + $0x38] sm:$0xff] %v3467
        %3488 = vst [vmem:[#allocation3 + $0x40] sm:$0xff] %v3468
        %3489 = vst [vmem:[#allocation3 + $0x48] sm:$0xff] %v3469
        %3490 = vst [vmem:[#allocation3 + $0x50] sm:$0xff] %v3470
        %3491 = vst [vmem:[#allocation3 + $0x58] sm:$0xff] %v3471
        %3492 = vst [vmem:[#allocation3 + $0x60] sm:$0xff] %v3472
        %3493 = vst [vmem:[#allocation3 + $0x68] sm:$0xff] %v3473
        %3494 = vst [vmem:[#allocation3 + $0x70] sm:$0xff] %v3474
        %3495 = vst [vmem:[#allocation3 + $0x78] sm:$0xff] %v3475
        %3496 = vst [vmem:[#allocation3 + $0x80] sm:$0xff] %v3476
        %3497 = vst [vmem:[#allocation3 + $0x88] sm:$0xff] %v3477
        %3498 = vst [vmem:[#allocation3 + $0x90] sm:$0xff] %v3478
        %3499 = vst [vmem:[#allocation3 + $0x98] sm:$0xff] %v3479
        %v3500 = vld [vmem:[#allocation3] sm:$0xff]
        %v3501 = vld [vmem:[#allocation3 + $0x8] sm:$0xff]
        %v3502 = vld [vmem:[#allocation3 + $0x10] sm:$0xff]
        %v3503 = vld [vmem:[#allocation3 + $0x18] sm:$0xff]
        %v3504 = vld [vmem:[#allocation3 + $0x20] sm:$0xff]
        %v3505 = vld [vmem:[#allocation3 + $0x28] sm:$0xff]
        %v3506 = vld [vmem:[#allocation3 + $0x30] sm:$0xff]
        %v3507 = vld [vmem:[#allocation3 + $0x38] sm:$0xff]
        %v3508 = vld [vmem:[#allocation3 + $0x40] sm:$0xff]
        %v3509 = vld [vmem:[#allocation3 + $0x48] sm:$0xff]
        %v3510 = vld [vmem:[#allocation3 + $0x50] sm:$0xff]
        %v3511 = vld [vmem:[#allocation3 + $0x58] sm:$0xff]
        %v3512 = vld [vmem:[#allocation3 + $0x60] sm:$0xff]
        %v3513 = vld [vmem:[#allocation3 + $0x68] sm:$0xff]
        %v3514 = vld [vmem:[#allocation3 + $0x70] sm:$0xff]
        %v3515 = vld [vmem:[#allocation3 + $0x78] sm:$0xff]
        %v3516 = vld [vmem:[#allocation3 + $0x80] sm:$0xff]
        %v3517 = vld [vmem:[#allocation3 + $0x88] sm:$0xff]
        %v3518 = vld [vmem:[#allocation3 + $0x90] sm:$0xff]
        %v3519 = vld [vmem:[#allocation3 + $0x98] sm:$0xff]
        %v3520 = vld [vmem:[#allocation2] sm:$0xc0]
        %v3521 = vld [vmem:[#allocation2 + $0x8] sm:$0xc0]
        %v3522 = vld [vmem:[#allocation2 + $0x10] sm:$0xff]
        %v3523 = vld [vmem:[#allocation2 + $0x18] sm:$0xff]
        %v3524 = vld [vmem:[#allocation2 + $0x20] sm:$0xff]
        %v3525 = vld [vmem:[#allocation2 + $0x28] sm:$0xff]
        %v3526 = vld [vmem:[#allocation2 + $0x30] sm:$0xff]
        %v3527 = vld [vmem:[#allocation2 + $0x38] sm:$0xff]
        %v3528 = vld [vmem:[#allocation2 + $0x40] sm:$0xff]
        %v3529 = vld [vmem:[#allocation2 + $0x48] sm:$0xff]
        %v3530 = vld [vmem:[#allocation2 + $0x50] sm:$0xff]
        %v3531 = vld [vmem:[#allocation2 + $0x58] sm:$0xff]
        %v3532 = vld [vmem:[#allocation2 + $0x60] sm:$0xff]
        %v3533 = vld [vmem:[#allocation2 + $0x68] sm:$0xff]
        %v3534 = vld [vmem:[#allocation2 + $0x70] sm:$0xff]
        %v3535 = vld [vmem:[#allocation2 + $0x78] sm:$0xff]
        %v3536 = vld [vmem:[#allocation2 + $0x80] sm:$0xff]
        %v3537 = vld [vmem:[#allocation2 + $0x88] sm:$0xff]
        %v3538 = vld [vmem:[#allocation2 + $0x90] sm:$0xff]
        %v3539 = vld [vmem:[#allocation2 + $0x98] sm:$0xff]
        %v3540 = vld [vmem:[#allocation2 + $0xa0] sm:$0x3f]
        %v3541 = vld [vmem:[#allocation2 + $0xa8] sm:$0x3f]
        %v3542 = vpack.c.bf16 %v3522, %v3520
        %v3543 = vpack.c.bf16 %v3523, %v3521
        %v3544 = vpack.c.bf16 %v3526, %v3524
        %v3545 = vpack.c.bf16 %v3527, %v3525
        %v3546 = vpack.c.bf16 %v3530, %v3528
        %v3547 = vpack.c.bf16 %v3531, %v3529
        %v3548 = vpack.c.bf16 %v3534, %v3532
        %v3549 = vpack.c.bf16 %v3535, %v3533
        %v3550 = vpack.c.bf16 %v3538, %v3536
        %v3551 = vpack.c.bf16 %v3539, %v3537
        %v3552 = vpack.c.bf16 %v3540, %v3540
        %v3553 = vpack.c.bf16 %v3541, %v3541
        %s3554 = scalar_lea.vmem %s3, 1536
        %v3555 = vld [vmem:[%s3554] sm:$0xff]
        %v3556 = vld [vmem:[%s3554 + $0x8] sm:$0xff]
        %v3557 = vld [vmem:[%s3554 + $0x10] sm:$0xff]
        %v3558 = vld [vmem:[%s3554 + $0x18] sm:$0xff]
        %v3559 = vld [vmem:[%s3554 + $0x20] sm:$0xff]
        %v3560 = vld [vmem:[%s3554 + $0x28] sm:$0xff]
        %v3561 = vld [vmem:[%s3554 + $0x30] sm:$0xff]
        %v3562 = vld [vmem:[%s3554 + $0x38] sm:$0xff]
        %v3563 = vld [vmem:[%s3554 + $0x40] sm:$0xff]
        %v3564 = vld [vmem:[%s3554 + $0x48] sm:$0xff]
        %v3565 = vld [vmem:[%s3554 + $0x50] sm:$0xff]
        %v3566 = vld [vmem:[%s3554 + $0x58] sm:$0xff]
        %v3567 = vld [vmem:[%s3554 + $0x60] sm:$0xff]
        %v3568 = vld [vmem:[%s3554 + $0x68] sm:$0xff]
        %v3569 = vld [vmem:[%s3554 + $0x70] sm:$0xff]
        %v3570 = vld [vmem:[%s3554 + $0x78] sm:$0xff]
        %v3571 = vld [vmem:[%s3554 + $0x80] sm:$0xff]
        %v3572 = vld [vmem:[%s3554 + $0x88] sm:$0xff]
        %v3573 = vld [vmem:[%s3554 + $0x90] sm:$0xff]
        %v3574 = vld [vmem:[%s3554 + $0x98] sm:$0xff]
        %v3575 = vld [vmem:[%s3554 + $0xa0] sm:$0xff]
        %v3576 = vld [vmem:[%s3554 + $0xa8] sm:$0xff]
        %v3577 = vld [vmem:[%s3554 + $0xb0] sm:$0xff]
        %v3578 = vld [vmem:[%s3554 + $0xb8] sm:$0xff]
        %v3579 = vld [vmem:[%s3554 + $0xc0] sm:$0xff]
        %v3580 = vld [vmem:[%s3554 + $0xc8] sm:$0xff]
        %v3581 = vld [vmem:[%s3554 + $0xd0] sm:$0xff]
        %v3582 = vld [vmem:[%s3554 + $0xd8] sm:$0xff]
        %v3583 = vld [vmem:[%s3554 + $0xe0] sm:$0xff]
        %v3584 = vld [vmem:[%s3554 + $0xe8] sm:$0xff]
        %v3585 = vld [vmem:[%s3554 + $0xf0] sm:$0xff]
        %v3586 = vld [vmem:[%s3554 + $0xf8] sm:$0xff]
        %vm3599 = vcmask 1044480
        %v3600 = vrot.slane %v3542, 3
        %v3601 = vrot.slane %v3544, 3
        %v3602 = vsel %vm3599, %v3600, %v3601
        %v3603 = vrot.slane %v3543, 3
        %v3604 = vrot.slane %v3545, 3
        %v3605 = vsel %vm3599, %v3603, %v3604
        %v3606 = vrot.slane %v3546, 3
        %v3607 = vsel %vm3599, %v3601, %v3606
        %v3608 = vrot.slane %v3547, 3
        %v3609 = vsel %vm3599, %v3604, %v3608
        %v3610 = vrot.slane %v3548, 3
        %v3611 = vsel %vm3599, %v3606, %v3610
        %v3612 = vrot.slane %v3549, 3
        %v3613 = vsel %vm3599, %v3608, %v3612
        %v3614 = vrot.slane %v3550, 3
        %v3615 = vsel %vm3599, %v3610, %v3614
        %v3616 = vrot.slane %v3551, 3
        %v3617 = vsel %vm3599, %v3612, %v3616
        %v3618 = vrot.slane %v3552, 3
        %v3619 = vsel %vm3599, %v3614, %v3618
        %v3620 = vrot.slane %v3553, 3
        %v3621 = vsel %vm3599, %v3616, %v3620
        %v3664 = vunpack.c.l.b16 %v3555
        %v3665 = vunpack.c.h.b16 %v3555
        %v3666 = vunpack.c.l.b16 %v3556
        %v3667 = vunpack.c.h.b16 %v3556
        %v3668 = vunpack.c.l.b16 %v3557
        %v3669 = vunpack.c.h.b16 %v3557
        %v3670 = vunpack.c.l.b16 %v3558
        %v3671 = vunpack.c.h.b16 %v3558
        %v3672 = vunpack.c.l.b16 %v3559
        %v3673 = vunpack.c.h.b16 %v3559
        %v3674 = vunpack.c.l.b16 %v3560
        %v3675 = vunpack.c.h.b16 %v3560
        %v3676 = vunpack.c.l.b16 %v3561
        %v3677 = vunpack.c.h.b16 %v3561
        %v3678 = vunpack.c.l.b16 %v3562
        %v3679 = vunpack.c.h.b16 %v3562
        %v3680 = vunpack.c.l.b16 %v3563
        %v3681 = vunpack.c.h.b16 %v3563
        %v3682 = vunpack.c.l.b16 %v3564
        %v3683 = vunpack.c.h.b16 %v3564
        %v3684 = vunpack.c.l.b16 %v3565
        %v3685 = vunpack.c.h.b16 %v3565
        %v3686 = vunpack.c.l.b16 %v3566
        %v3687 = vunpack.c.h.b16 %v3566
        %v3688 = vunpack.c.l.b16 %v3567
        %v3689 = vunpack.c.h.b16 %v3567
        %v3690 = vunpack.c.l.b16 %v3568
        %v3691 = vunpack.c.h.b16 %v3568
        %v3692 = vunpack.c.l.b16 %v3569
        %v3693 = vunpack.c.h.b16 %v3569
        %v3694 = vunpack.c.l.b16 %v3570
        %v3695 = vunpack.c.h.b16 %v3570
        %v3696 = vunpack.c.l.b16 %v3571
        %v3697 = vunpack.c.h.b16 %v3571
        %v3698 = vunpack.c.l.b16 %v3572
        %v3699 = vunpack.c.h.b16 %v3572
        %v3700 = vunpack.c.l.b16 %v3573
        %v3701 = vunpack.c.h.b16 %v3573
        %v3702 = vunpack.c.l.b16 %v3574
        %v3703 = vunpack.c.h.b16 %v3574
        %v3704 = vunpack.c.l.b16 %v3575
        %v3705 = vunpack.c.h.b16 %v3575
        %v3706 = vunpack.c.l.b16 %v3576
        %v3707 = vunpack.c.h.b16 %v3576
        %v3708 = vunpack.c.l.b16 %v3577
        %v3709 = vunpack.c.h.b16 %v3577
        %v3710 = vunpack.c.l.b16 %v3578
        %v3711 = vunpack.c.h.b16 %v3578
        %v3712 = vunpack.c.l.b16 %v3579
        %v3713 = vunpack.c.h.b16 %v3579
        %v3714 = vunpack.c.l.b16 %v3580
        %v3715 = vunpack.c.h.b16 %v3580
        %v3716 = vunpack.c.l.b16 %v3581
        %v3717 = vunpack.c.h.b16 %v3581
        %v3718 = vunpack.c.l.b16 %v3582
        %v3719 = vunpack.c.h.b16 %v3582
        %v3720 = vunpack.c.l.b16 %v3583
        %v3721 = vunpack.c.h.b16 %v3583
        %v3722 = vunpack.c.l.b16 %v3584
        %v3723 = vunpack.c.h.b16 %v3584
        %v3724 = vunpack.c.l.b16 %v3585
        %v3725 = vunpack.c.h.b16 %v3585
        %v3726 = vunpack.c.l.b16 %v3586
        %v3727 = vunpack.c.h.b16 %v3586
        %v3728 = vpack.c.b16 %v3666, %v3664
        %v3729 = vpack.c.b16 %v3667, %v3665
        %v3730 = vpack.c.b16 %v3670, %v3668
        %v3731 = vpack.c.b16 %v3671, %v3669
        %v3732 = vpack.c.b16 %v3674, %v3672
        %v3733 = vpack.c.b16 %v3675, %v3673
        %v3734 = vpack.c.b16 %v3678, %v3676
        %v3735 = vpack.c.b16 %v3679, %v3677
        %v3736 = vpack.c.b16 %v3682, %v3680
        %v3737 = vpack.c.b16 %v3683, %v3681
        %v3738 = vpack.c.b16 %v3686, %v3684
        %v3739 = vpack.c.b16 %v3687, %v3685
        %v3740 = vpack.c.b16 %v3690, %v3688
        %v3741 = vpack.c.b16 %v3691, %v3689
        %v3742 = vpack.c.b16 %v3694, %v3692
        %v3743 = vpack.c.b16 %v3695, %v3693
        %v3744 = vpack.c.b16 %v3698, %v3696
        %v3745 = vpack.c.b16 %v3699, %v3697
        %v3746 = vpack.c.b16 %v3702, %v3700
        %v3747 = vpack.c.b16 %v3703, %v3701
        %v3748 = vpack.c.b16 %v3706, %v3704
        %v3749 = vpack.c.b16 %v3707, %v3705
        %v3750 = vpack.c.b16 %v3710, %v3708
        %v3751 = vpack.c.b16 %v3711, %v3709
        %v3752 = vpack.c.b16 %v3714, %v3712
        %v3753 = vpack.c.b16 %v3715, %v3713
        %v3754 = vpack.c.b16 %v3718, %v3716
        %v3755 = vpack.c.b16 %v3719, %v3717
        %v3756 = vpack.c.b16 %v3722, %v3720
        %v3757 = vpack.c.b16 %v3723, %v3721
        %v3758 = vpack.c.b16 %v3726, %v3724
        %v3759 = vpack.c.b16 %v3727, %v3725
        %3792 = vmatpush.bf16.msra.mxu0 %v3742
        %3793 = vmatpush.bf16.msra.mxu0 %v3740
        %3794 = vmatpush.bf16.msra.mxu0 %v3738
        %3795 = vmatpush.bf16.msra.mxu0 %v3736
        %3796 = vmatpush.bf16.msra.mxu0 %v3734
        %3797 = vmatpush.bf16.msra.mxu0 %v3732
        %3798 = vmatpush.bf16.msra.mxu0 %v3730
        %3799 = vmatpush.bf16.msra.mxu0 %v3728
        %3800 = vmatmul.bf16.gmra.mxu0 %v3602
        %v3801 = vpop.f32.mrf.mxu0
        %v3802 = vadd.f32 0.0, %v3801
        %v3803 = vpop.f32.mrf.mxu0
        %v3804 = vadd.f32 0.0, %v3803
        %3805 = vmatmul.bf16.gmra.mxu0 %v3607
        %v3806 = vpop.f32.mrf.mxu0
        %v3807 = vadd.f32 0.0, %v3806
        %v3808 = vpop.f32.mrf.mxu0
        %v3809 = vadd.f32 0.0, %v3808
        %3810 = vmatmul.bf16.gmra.mxu0 %v3611
        %v3811 = vpop.f32.mrf.mxu0
        %v3812 = vadd.f32 0.0, %v3811
        %v3813 = vpop.f32.mrf.mxu0
        %v3814 = vadd.f32 0.0, %v3813
        %3815 = vmatmul.bf16.gmra.mxu0 %v3615
        %v3816 = vpop.f32.mrf.mxu0
        %v3817 = vadd.f32 0.0, %v3816
        %v3818 = vpop.f32.mrf.mxu0
        %v3819 = vadd.f32 0.0, %v3818
        %3820 = vmatmul.bf16.gmra.mxu0 %v3619
        %v3821 = vpop.f32.mrf.mxu0
        %v3822 = vadd.f32 0.0, %v3821
        %v3823 = vpop.f32.mrf.mxu0
        %v3824 = vadd.f32 0.0, %v3823
        %3825 = vdwg.mxu0
        %3826 = vmatpush.bf16.msra.mxu0 %v3758
        %3827 = vmatpush.bf16.msra.mxu0 %v3756
        %3828 = vmatpush.bf16.msra.mxu0 %v3754
        %3829 = vmatpush.bf16.msra.mxu0 %v3752
        %3830 = vmatpush.bf16.msra.mxu0 %v3750
        %3831 = vmatpush.bf16.msra.mxu0 %v3748
        %3832 = vmatpush.bf16.msra.mxu0 %v3746
        %3833 = vmatpush.bf16.msra.mxu0 %v3744
        %3834 = vmatmul.bf16.gmra.mxu0 %v3605
        %v3835 = vpop.f32.mrf.mxu0
        %v3836 = vadd.f32 %v3802, %v3835
        %v3837 = vpop.f32.mrf.mxu0
        %v3838 = vadd.f32 %v3804, %v3837
        %3839 = vmatmul.bf16.gmra.mxu0 %v3609
        %v3840 = vpop.f32.mrf.mxu0
        %v3841 = vadd.f32 %v3807, %v3840
        %v3842 = vpop.f32.mrf.mxu0
        %v3843 = vadd.f32 %v3809, %v3842
        %3844 = vmatmul.bf16.gmra.mxu0 %v3613
        %v3845 = vpop.f32.mrf.mxu0
        %v3846 = vadd.f32 %v3812, %v3845
        %v3847 = vpop.f32.mrf.mxu0
        %v3848 = vadd.f32 %v3814, %v3847
        %3849 = vmatmul.bf16.gmra.mxu0 %v3617
        %v3850 = vpop.f32.mrf.mxu0
        %v3851 = vadd.f32 %v3817, %v3850
        %v3852 = vpop.f32.mrf.mxu0
        %v3853 = vadd.f32 %v3819, %v3852
        %3854 = vmatmul.bf16.gmra.mxu0 %v3621
        %v3855 = vpop.f32.mrf.mxu0
        %v3856 = vadd.f32 %v3822, %v3855
        %v3857 = vpop.f32.mrf.mxu0
        %v3858 = vadd.f32 %v3824, %v3857
        %3859 = vdwg.mxu0
        %3860 = vmatpush.bf16.msra.mxu0 %v3743
        %3861 = vmatpush.bf16.msra.mxu0 %v3741
        %3862 = vmatpush.bf16.msra.mxu0 %v3739
        %3863 = vmatpush.bf16.msra.mxu0 %v3737
        %3864 = vmatpush.bf16.msra.mxu0 %v3735
        %3865 = vmatpush.bf16.msra.mxu0 %v3733
        %3866 = vmatpush.bf16.msra.mxu0 %v3731
        %3867 = vmatpush.bf16.msra.mxu0 %v3729
        %3868 = vmatmul.bf16.gmra.mxu0 %v3602
        %v3869 = vpop.f32.mrf.mxu0
        %v3870 = vadd.f32 0.0, %v3869
        %v3871 = vpop.f32.mrf.mxu0
        %v3872 = vadd.f32 0.0, %v3871
        %3873 = vmatmul.bf16.gmra.mxu0 %v3607
        %v3874 = vpop.f32.mrf.mxu0
        %v3875 = vadd.f32 0.0, %v3874
        %v3876 = vpop.f32.mrf.mxu0
        %v3877 = vadd.f32 0.0, %v3876
        %3878 = vmatmul.bf16.gmra.mxu0 %v3611
        %v3879 = vpop.f32.mrf.mxu0
        %v3880 = vadd.f32 0.0, %v3879
        %v3881 = vpop.f32.mrf.mxu0
        %v3882 = vadd.f32 0.0, %v3881
        %3883 = vmatmul.bf16.gmra.mxu0 %v3615
        %v3884 = vpop.f32.mrf.mxu0
        %v3885 = vadd.f32 0.0, %v3884
        %v3886 = vpop.f32.mrf.mxu0
        %v3887 = vadd.f32 0.0, %v3886
        %3888 = vmatmul.bf16.gmra.mxu0 %v3619
        %v3889 = vpop.f32.mrf.mxu0
        %v3890 = vadd.f32 0.0, %v3889
        %v3891 = vpop.f32.mrf.mxu0
        %v3892 = vadd.f32 0.0, %v3891
        %3893 = vdwg.mxu0
        %3894 = vmatpush.bf16.msra.mxu0 %v3759
        %3895 = vmatpush.bf16.msra.mxu0 %v3757
        %3896 = vmatpush.bf16.msra.mxu0 %v3755
        %3897 = vmatpush.bf16.msra.mxu0 %v3753
        %3898 = vmatpush.bf16.msra.mxu0 %v3751
        %3899 = vmatpush.bf16.msra.mxu0 %v3749
        %3900 = vmatpush.bf16.msra.mxu0 %v3747
        %3901 = vmatpush.bf16.msra.mxu0 %v3745
        %3902 = vmatmul.bf16.gmra.mxu0 %v3605
        %v3903 = vpop.f32.mrf.mxu0
        %v3904 = vadd.f32 %v3870, %v3903
        %v3905 = vpop.f32.mrf.mxu0
        %v3906 = vadd.f32 %v3872, %v3905
        %3907 = vmatmul.bf16.gmra.mxu0 %v3609
        %v3908 = vpop.f32.mrf.mxu0
        %v3909 = vadd.f32 %v3875, %v3908
        %v3910 = vpop.f32.mrf.mxu0
        %v3911 = vadd.f32 %v3877, %v3910
        %3912 = vmatmul.bf16.gmra.mxu0 %v3613
        %v3913 = vpop.f32.mrf.mxu0
        %v3914 = vadd.f32 %v3880, %v3913
        %v3915 = vpop.f32.mrf.mxu0
        %v3916 = vadd.f32 %v3882, %v3915
        %3917 = vmatmul.bf16.gmra.mxu0 %v3617
        %v3918 = vpop.f32.mrf.mxu0
        %v3919 = vadd.f32 %v3885, %v3918
        %v3920 = vpop.f32.mrf.mxu0
        %v3921 = vadd.f32 %v3887, %v3920
        %3922 = vmatmul.bf16.gmra.mxu0 %v3621
        %v3923 = vpop.f32.mrf.mxu0
        %v3924 = vadd.f32 %v3890, %v3923
        %v3925 = vpop.f32.mrf.mxu0
        %v3926 = vadd.f32 %v3892, %v3925
        %3927 = vdwg.mxu0
        %v3928 = vadd.f32 %v3500, %v3836
        %v3929 = vadd.f32 %v3501, %v3904
        %v3930 = vadd.f32 %v3502, %v3838
        %v3931 = vadd.f32 %v3503, %v3906
        %v3932 = vadd.f32 %v3504, %v3841
        %v3933 = vadd.f32 %v3505, %v3909
        %v3934 = vadd.f32 %v3506, %v3843
        %v3935 = vadd.f32 %v3507, %v3911
        %v3936 = vadd.f32 %v3508, %v3846
        %v3937 = vadd.f32 %v3509, %v3914
        %v3938 = vadd.f32 %v3510, %v3848
        %v3939 = vadd.f32 %v3511, %v3916
        %v3940 = vadd.f32 %v3512, %v3851
        %v3941 = vadd.f32 %v3513, %v3919
        %v3942 = vadd.f32 %v3514, %v3853
        %v3943 = vadd.f32 %v3515, %v3921
        %v3944 = vadd.f32 %v3516, %v3856
        %v3945 = vadd.f32 %v3517, %v3924
        %v3946 = vadd.f32 %v3518, %v3858
        %v3947 = vadd.f32 %v3519, %v3926
        %3948 = vst [vmem:[#allocation3] sm:$0xff] %v3928
        %3949 = vst [vmem:[#allocation3 + $0x8] sm:$0xff] %v3929
        %3950 = vst [vmem:[#allocation3 + $0x10] sm:$0xff] %v3930
        %3951 = vst [vmem:[#allocation3 + $0x18] sm:$0xff] %v3931
        %3952 = vst [vmem:[#allocation3 + $0x20] sm:$0xff] %v3932
        %3953 = vst [vmem:[#allocation3 + $0x28] sm:$0xff] %v3933
        %3954 = vst [vmem:[#allocation3 + $0x30] sm:$0xff] %v3934
        %3955 = vst [vmem:[#allocation3 + $0x38] sm:$0xff] %v3935
        %3956 = vst [vmem:[#allocation3 + $0x40] sm:$0xff] %v3936
        %3957 = vst [vmem:[#allocation3 + $0x48] sm:$0xff] %v3937
        %3958 = vst [vmem:[#allocation3 + $0x50] sm:$0xff] %v3938
        %3959 = vst [vmem:[#allocation3 + $0x58] sm:$0xff] %v3939
        %3960 = vst [vmem:[#allocation3 + $0x60] sm:$0xff] %v3940
        %3961 = vst [vmem:[#allocation3 + $0x68] sm:$0xff] %v3941
        %3962 = vst [vmem:[#allocation3 + $0x70] sm:$0xff] %v3942
        %3963 = vst [vmem:[#allocation3 + $0x78] sm:$0xff] %v3943
        %3964 = vst [vmem:[#allocation3 + $0x80] sm:$0xff] %v3944
        %3965 = vst [vmem:[#allocation3 + $0x88] sm:$0xff] %v3945
        %3966 = vst [vmem:[#allocation3 + $0x90] sm:$0xff] %v3946
        %3967 = vst [vmem:[#allocation3 + $0x98] sm:$0xff] %v3947
        %v3968 = vld [vmem:[#allocation3] sm:$0xff]
        %v3969 = vld [vmem:[#allocation3 + $0x8] sm:$0xff]
        %v3970 = vld [vmem:[#allocation3 + $0x10] sm:$0xff]
        %v3971 = vld [vmem:[#allocation3 + $0x18] sm:$0xff]
        %v3972 = vld [vmem:[#allocation3 + $0x20] sm:$0xff]
        %v3973 = vld [vmem:[#allocation3 + $0x28] sm:$0xff]
        %v3974 = vld [vmem:[#allocation3 + $0x30] sm:$0xff]
        %v3975 = vld [vmem:[#allocation3 + $0x38] sm:$0xff]
        %v3976 = vld [vmem:[%s438] sm:$0xff]
        %v3977 = vld [vmem:[%s438 + $0x8] sm:$0xff]
        %v3978 = vld [vmem:[%s438 + $0x10] sm:$0xff]
        %v3979 = vld [vmem:[%s438 + $0x18] sm:$0xff]
        %v3980 = vld [vmem:[%s438 + $0x20] sm:$0xff]
        %v3981 = vld [vmem:[%s438 + $0x28] sm:$0xff]
        %v3982 = vld [vmem:[%s438 + $0x30] sm:$0xff]
        %v3983 = vld [vmem:[%s438 + $0x38] sm:$0xff]
        %v3984 = vadd.f32 %v3976, %v3968
        %v3985 = vadd.f32 %v3977, %v3969
        %v3986 = vadd.f32 %v3978, %v3970
        %v3987 = vadd.f32 %v3979, %v3971
        %v3988 = vadd.f32 %v3980, %v3972
        %v3989 = vadd.f32 %v3981, %v3973
        %v3990 = vadd.f32 %v3982, %v3974
        %v3991 = vadd.f32 %v3983, %v3975
        %v3992 = vmax.f32 %v3984, 0.0
        %v3993 = vmax.f32 %v3985, 0.0
        %v3994 = vmax.f32 %v3986, 0.0
        %v3995 = vmax.f32 %v3987, 0.0
        %v3996 = vmax.f32 %v3988, 0.0
        %v3997 = vmax.f32 %v3989, 0.0
        %v3998 = vmax.f32 %v3990, 0.0
        %v3999 = vmax.f32 %v3991, 0.0
        %4000 = vst [vmem:[#allocation4] sm:$0xff] %v3992
        %4001 = vst [vmem:[#allocation4 + $0x8] sm:$0xff] %v3993
        %4002 = vst [vmem:[#allocation4 + $0x10] sm:$0xff] %v3994
        %4003 = vst [vmem:[#allocation4 + $0x18] sm:$0xff] %v3995
        %4004 = vst [vmem:[#allocation4 + $0x20] sm:$0xff] %v3996
        %4005 = vst [vmem:[#allocation4 + $0x28] sm:$0xff] %v3997
        %4006 = vst [vmem:[#allocation4 + $0x30] sm:$0xff] %v3998
        %4007 = vst [vmem:[#allocation4 + $0x38] sm:$0xff] %v3999
        %v4008 = vld [vmem:[%s445] sm:$0xff]
        %v4009 = vld [vmem:[%s445 + $0x8] sm:$0xff]
        %v4010 = vld [vmem:[%s445 + $0x10] sm:$0xff]
        %v4011 = vld [vmem:[%s445 + $0x18] sm:$0xff]
        %v4012 = vld [vmem:[%s445 + $0x20] sm:$0xff]
        %v4013 = vld [vmem:[%s445 + $0x28] sm:$0xff]
        %v4014 = vld [vmem:[%s445 + $0x30] sm:$0xff]
        %v4015 = vld [vmem:[%s445 + $0x38] sm:$0xff]
        %v4016 = vmul.f32 %v3968, %v4008
        %v4017 = vmul.f32 %v3969, %v4009
        %v4018 = vmul.f32 %v3970, %v4010
        %v4019 = vmul.f32 %v3971, %v4011
        %v4020 = vmul.f32 %v3972, %v4012
        %v4021 = vmul.f32 %v3973, %v4013
        %v4022 = vmul.f32 %v3974, %v4014
        %v4023 = vmul.f32 %v3975, %v4015
        %v4024 = vmax.f32 %v4016, 0.0
        %v4025 = vmax.f32 %v4017, 0.0
        %v4026 = vmax.f32 %v4018, 0.0
        %v4027 = vmax.f32 %v4019, 0.0
        %v4028 = vmax.f32 %v4020, 0.0
        %v4029 = vmax.f32 %v4021, 0.0
        %v4030 = vmax.f32 %v4022, 0.0
        %v4031 = vmax.f32 %v4023, 0.0
        %v4040 = vrot.slane %v4024, 5
        %v4041 = vrot.slane %v4025, 5
        %v4042 = vrot.slane %v4026, 5
        %v4043 = vsel %vm492, %v4040, %v4042
        %v4044 = vrot.slane %v4027, 5
        %v4045 = vsel %vm492, %v4041, %v4044
        %v4046 = vrot.slane %v4028, 5
        %v4047 = vsel %vm492, %v4042, %v4046
        %v4048 = vrot.slane %v4029, 5
        %v4049 = vsel %vm492, %v4044, %v4048
        %v4050 = vrot.slane %v4030, 5
        %v4051 = vsel %vm492, %v4046, %v4050
        %v4052 = vrot.slane %v4031, 5
        %v4053 = vsel %vm492, %v4048, %v4052
        %4064 = vst [vmem:[#allocation2] sm:$0xf8] %v4040
        %4065 = vst [vmem:[#allocation2 + $0x8] sm:$0xf8] %v4041
        %4066 = vst [vmem:[#allocation2 + $0x10] sm:$0xff] %v4043
        %4067 = vst [vmem:[#allocation2 + $0x18] sm:$0xff] %v4045
        %4068 = vst [vmem:[#allocation2 + $0x20] sm:$0xff] %v4047
        %4069 = vst [vmem:[#allocation2 + $0x28] sm:$0xff] %v4049
        %4070 = vst [vmem:[#allocation2 + $0x30] sm:$0xff] %v4051
        %4071 = vst [vmem:[#allocation2 + $0x38] sm:$0xff] %v4053
        %4072 = vst [vmem:[#allocation2 + $0x40] sm:$0x7] %v4050
        %4073 = vst [vmem:[#allocation2 + $0x48] sm:$0x7] %v4052
        %v4074 = vld [vmem:[#allocation3 + $0x50] sm:$0xff]
        %v4075 = vld [vmem:[#allocation3 + $0x58] sm:$0xff]
        %v4076 = vld [vmem:[#allocation3 + $0x60] sm:$0xff]
        %v4077 = vld [vmem:[#allocation3 + $0x68] sm:$0xff]
        %v4078 = vld [vmem:[#allocation3 + $0x70] sm:$0xff]
        %v4079 = vld [vmem:[#allocation3 + $0x78] sm:$0xff]
        %v4080 = vld [vmem:[#allocation3 + $0x80] sm:$0xff]
        %v4081 = vld [vmem:[#allocation3 + $0x88] sm:$0xff]
        %s4082 = scalar_lea.vmem %s438, 64
        %v4083 = vld [vmem:[%s4082] sm:$0xff]
        %v4084 = vld [vmem:[%s4082 + $0x8] sm:$0xff]
        %v4085 = vld [vmem:[%s4082 + $0x10] sm:$0xff]
        %v4086 = vld [vmem:[%s4082 + $0x18] sm:$0xff]
        %v4087 = vld [vmem:[%s4082 + $0x20] sm:$0xff]
        %v4088 = vld [vmem:[%s4082 + $0x28] sm:$0xff]
        %v4089 = vld [vmem:[%s4082 + $0x30] sm:$0xff]
        %v4090 = vld [vmem:[%s4082 + $0x38] sm:$0xff]
        %v4091 = vadd.f32 %v4083, %v4074
        %v4092 = vadd.f32 %v4084, %v4075
        %v4093 = vadd.f32 %v4085, %v4076
        %v4094 = vadd.f32 %v4086, %v4077
        %v4095 = vadd.f32 %v4087, %v4078
        %v4096 = vadd.f32 %v4088, %v4079
        %v4097 = vadd.f32 %v4089, %v4080
        %v4098 = vadd.f32 %v4090, %v4081
        %v4099 = vmax.f32 %v4091, 0.0
        %v4100 = vmax.f32 %v4092, 0.0
        %v4101 = vmax.f32 %v4093, 0.0
        %v4102 = vmax.f32 %v4094, 0.0
        %v4103 = vmax.f32 %v4095, 0.0
        %v4104 = vmax.f32 %v4096, 0.0
        %v4105 = vmax.f32 %v4097, 0.0
        %v4106 = vmax.f32 %v4098, 0.0
        %s4107 = scalar_lea.vmem [#allocation4], 64
        %4108 = vst [vmem:[%s4107] sm:$0xff] %v4099
        %4109 = vst [vmem:[%s4107 + $0x8] sm:$0xff] %v4100
        %4110 = vst [vmem:[%s4107 + $0x10] sm:$0xff] %v4101
        %4111 = vst [vmem:[%s4107 + $0x18] sm:$0xff] %v4102
        %4112 = vst [vmem:[%s4107 + $0x20] sm:$0xff] %v4103
        %4113 = vst [vmem:[%s4107 + $0x28] sm:$0xff] %v4104
        %4114 = vst [vmem:[%s4107 + $0x30] sm:$0xff] %v4105
        %4115 = vst [vmem:[%s4107 + $0x38] sm:$0xff] %v4106
        %s4116 = scalar_lea.vmem %s445, 64
        %v4117 = vld [vmem:[%s4116] sm:$0xff]
        %v4118 = vld [vmem:[%s4116 + $0x8] sm:$0xff]
        %v4119 = vld [vmem:[%s4116 + $0x10] sm:$0xff]
        %v4120 = vld [vmem:[%s4116 + $0x18] sm:$0xff]
        %v4121 = vld [vmem:[%s4116 + $0x20] sm:$0xff]
        %v4122 = vld [vmem:[%s4116 + $0x28] sm:$0xff]
        %v4123 = vld [vmem:[%s4116 + $0x30] sm:$0xff]
        %v4124 = vld [vmem:[%s4116 + $0x38] sm:$0xff]
        %v4125 = vmul.f32 %v4074, %v4117
        %v4126 = vmul.f32 %v4075, %v4118
        %v4127 = vmul.f32 %v4076, %v4119
        %v4128 = vmul.f32 %v4077, %v4120
        %v4129 = vmul.f32 %v4078, %v4121
        %v4130 = vmul.f32 %v4079, %v4122
        %v4131 = vmul.f32 %v4080, %v4123
        %v4132 = vmul.f32 %v4081, %v4124
        %v4133 = vmax.f32 %v4125, 0.0
        %v4134 = vmax.f32 %v4126, 0.0
        %v4135 = vmax.f32 %v4127, 0.0
        %v4136 = vmax.f32 %v4128, 0.0
        %v4137 = vmax.f32 %v4129, 0.0
        %v4138 = vmax.f32 %v4130, 0.0
        %v4139 = vmax.f32 %v4131, 0.0
        %v4140 = vmax.f32 %v4132, 0.0
        %v4149 = vrot.slane %v4133, 5
        %v4150 = vrot.slane %v4134, 5
        %v4151 = vrot.slane %v4135, 5
        %v4152 = vsel %vm492, %v4149, %v4151
        %v4153 = vrot.slane %v4136, 5
        %v4154 = vsel %vm492, %v4150, %v4153
        %v4155 = vrot.slane %v4137, 5
        %v4156 = vsel %vm492, %v4151, %v4155
        %v4157 = vrot.slane %v4138, 5
        %v4158 = vsel %vm492, %v4153, %v4157
        %v4159 = vrot.slane %v4139, 5
        %v4160 = vsel %vm492, %v4155, %v4159
        %v4161 = vrot.slane %v4140, 5
        %v4162 = vsel %vm492, %v4157, %v4161
        %4173 = vst [vmem:[#allocation2 + $0x50] sm:$0xf8] %v4149
        %4174 = vst [vmem:[#allocation2 + $0x58] sm:$0xf8] %v4150
        %4175 = vst [vmem:[#allocation2 + $0x60] sm:$0xff] %v4152
        %4176 = vst [vmem:[#allocation2 + $0x68] sm:$0xff] %v4154
        %4177 = vst [vmem:[#allocation2 + $0x70] sm:$0xff] %v4156
        %4178 = vst [vmem:[#allocation2 + $0x78] sm:$0xff] %v4158
        %4179 = vst [vmem:[#allocation2 + $0x80] sm:$0xff] %v4160
        %4180 = vst [vmem:[#allocation2 + $0x88] sm:$0xff] %v4162
        %4181 = vst [vmem:[#allocation2 + $0x90] sm:$0x7] %v4159
        %4182 = vst [vmem:[#allocation2 + $0x98] sm:$0x7] %v4161
        %v4183 = vld [vmem:[#allocation2] sm:$0xff]
        %v4184 = vld [vmem:[#allocation2 + $0x8] sm:$0xff]
        %v4185 = vld [vmem:[#allocation2 + $0x10] sm:$0xff]
        %v4186 = vld [vmem:[#allocation2 + $0x18] sm:$0xff]
        %v4187 = vld [vmem:[#allocation2 + $0x20] sm:$0xff]
        %v4188 = vld [vmem:[#allocation2 + $0x28] sm:$0xff]
        %v4189 = vld [vmem:[#allocation2 + $0x30] sm:$0xff]
        %v4190 = vld [vmem:[#allocation2 + $0x38] sm:$0xff]
        %v4191 = vld [vmem:[#allocation2 + $0x40] sm:$0xff]
        %v4192 = vld [vmem:[#allocation2 + $0x48] sm:$0xff]
        %v4193 = vld [vmem:[#allocation2 + $0x50] sm:$0xff]
        %v4194 = vld [vmem:[#allocation2 + $0x58] sm:$0xff]
        %v4195 = vld [vmem:[#allocation2 + $0x60] sm:$0xff]
        %v4196 = vld [vmem:[#allocation2 + $0x68] sm:$0xff]
        %v4197 = vld [vmem:[#allocation2 + $0x70] sm:$0xff]
        %v4198 = vld [vmem:[#allocation2 + $0x78] sm:$0xff]
        %v4199 = vld [vmem:[#allocation2 + $0x80] sm:$0xff]
        %v4200 = vld [vmem:[#allocation2 + $0x88] sm:$0xff]
        %v4201 = vld [vmem:[#allocation2 + $0x90] sm:$0xff]
        %v4202 = vld [vmem:[#allocation2 + $0x98] sm:$0xff]
        %v4203 = vpack.c.bf16 %v4185, %v4183
        %v4204 = vpack.c.bf16 %v4186, %v4184
        %v4205 = vpack.c.bf16 %v4189, %v4187
        %v4206 = vpack.c.bf16 %v4190, %v4188
        %v4207 = vpack.c.bf16 %v4193, %v4191
        %v4208 = vpack.c.bf16 %v4194, %v4192
        %v4209 = vpack.c.bf16 %v4197, %v4195
        %v4210 = vpack.c.bf16 %v4198, %v4196
        %v4211 = vpack.c.bf16 %v4201, %v4199
        %v4212 = vpack.c.bf16 %v4202, %v4200
        %v4213 = vld [vmem:[#allocation5] sm:$0xff]
        %v4214 = vld [vmem:[#allocation5 + $0x8] sm:$0xff]
        %v4215 = vld [vmem:[#allocation5 + $0x10] sm:$0xff]
        %v4216 = vld [vmem:[#allocation5 + $0x18] sm:$0xff]
        %v4217 = vld [vmem:[#allocation5 + $0x20] sm:$0xff]
        %v4218 = vld [vmem:[#allocation5 + $0x28] sm:$0xff]
        %v4219 = vld [vmem:[#allocation5 + $0x30] sm:$0xff]
        %v4220 = vld [vmem:[#allocation5 + $0x38] sm:$0xff]
        %v4221 = vld [vmem:[#allocation5 + $0x40] sm:$0xff]
        %v4222 = vld [vmem:[#allocation5 + $0x48] sm:$0xff]
        %v4223 = vld [vmem:[#allocation5 + $0x50] sm:$0xff]
        %v4224 = vld [vmem:[#allocation5 + $0x58] sm:$0xff]
        %v4225 = vld [vmem:[#allocation5 + $0x60] sm:$0xff]
        %v4226 = vld [vmem:[#allocation5 + $0x68] sm:$0xff]
        %v4227 = vld [vmem:[#allocation5 + $0x70] sm:$0xff]
        %v4228 = vld [vmem:[#allocation5 + $0x78] sm:$0xff]
        %v4229 = vld [vmem:[#allocation5 + $0x80] sm:$0xff]
        %v4230 = vld [vmem:[#allocation5 + $0x88] sm:$0xff]
        %v4231 = vld [vmem:[#allocation5 + $0x90] sm:$0xff]
        %v4232 = vld [vmem:[#allocation5 + $0x98] sm:$0xff]
        %v4233 = vld [vmem:[#allocation5 + $0xa0] sm:$0xff]
        %v4234 = vld [vmem:[#allocation5 + $0xa8] sm:$0xff]
        %v4235 = vld [vmem:[#allocation5 + $0xb0] sm:$0xff]
        %v4236 = vld [vmem:[#allocation5 + $0xb8] sm:$0xff]
        %v4237 = vld [vmem:[#allocation5 + $0xc0] sm:$0xff]
        %v4238 = vld [vmem:[#allocation5 + $0xc8] sm:$0xff]
        %v4239 = vld [vmem:[#allocation5 + $0xd0] sm:$0xff]
        %v4240 = vld [vmem:[#allocation5 + $0xd8] sm:$0xff]
        %v4241 = vld [vmem:[#allocation5 + $0xe0] sm:$0xff]
        %v4242 = vld [vmem:[#allocation5 + $0xe8] sm:$0xff]
        %v4243 = vld [vmem:[#allocation5 + $0xf0] sm:$0xff]
        %v4244 = vld [vmem:[#allocation5 + $0xf8] sm:$0xff]
        %v4245 = vld [vmem:[#allocation9] sm:$0x3]
        %v4247 = vperm.slane %v4245, 0
        %v4248 = vperm.slane %v4245, 1
        %v4283 = vunpack.c.l.b16 %v4213
        %v4284 = vunpack.c.h.b16 %v4213
        %v4285 = vunpack.c.l.b16 %v4214
        %v4286 = vunpack.c.h.b16 %v4214
        %v4287 = vunpack.c.l.b16 %v4215
        %v4288 = vunpack.c.h.b16 %v4215
        %v4289 = vunpack.c.l.b16 %v4216
        %v4290 = vunpack.c.h.b16 %v4216
        %v4291 = vunpack.c.l.b16 %v4217
        %v4292 = vunpack.c.h.b16 %v4217
        %v4293 = vunpack.c.l.b16 %v4218
        %v4294 = vunpack.c.h.b16 %v4218
        %v4295 = vunpack.c.l.b16 %v4219
        %v4296 = vunpack.c.h.b16 %v4219
        %v4297 = vunpack.c.l.b16 %v4220
        %v4298 = vunpack.c.h.b16 %v4220
        %v4299 = vunpack.c.l.b16 %v4221
        %v4300 = vunpack.c.h.b16 %v4221
        %v4301 = vunpack.c.l.b16 %v4222
        %v4302 = vunpack.c.h.b16 %v4222
        %v4303 = vunpack.c.l.b16 %v4223
        %v4304 = vunpack.c.h.b16 %v4223
        %v4305 = vunpack.c.l.b16 %v4224
        %v4306 = vunpack.c.h.b16 %v4224
        %v4307 = vunpack.c.l.b16 %v4225
        %v4308 = vunpack.c.h.b16 %v4225
        %v4309 = vunpack.c.l.b16 %v4226
        %v4310 = vunpack.c.h.b16 %v4226
        %v4311 = vunpack.c.l.b16 %v4227
        %v4312 = vunpack.c.h.b16 %v4227
        %v4313 = vunpack.c.l.b16 %v4228
        %v4314 = vunpack.c.h.b16 %v4228
        %v4315 = vunpack.c.l.b16 %v4229
        %v4316 = vunpack.c.h.b16 %v4229
        %v4317 = vunpack.c.l.b16 %v4230
        %v4318 = vunpack.c.h.b16 %v4230
        %v4319 = vunpack.c.l.b16 %v4231
        %v4320 = vunpack.c.h.b16 %v4231
        %v4321 = vunpack.c.l.b16 %v4232
        %v4322 = vunpack.c.h.b16 %v4232
        %v4323 = vunpack.c.l.b16 %v4233
        %v4324 = vunpack.c.h.b16 %v4233
        %v4325 = vunpack.c.l.b16 %v4234
        %v4326 = vunpack.c.h.b16 %v4234
        %v4327 = vunpack.c.l.b16 %v4235
        %v4328 = vunpack.c.h.b16 %v4235
        %v4329 = vunpack.c.l.b16 %v4236
        %v4330 = vunpack.c.h.b16 %v4236
        %v4331 = vunpack.c.l.b16 %v4237
        %v4332 = vunpack.c.h.b16 %v4237
        %v4333 = vunpack.c.l.b16 %v4238
        %v4334 = vunpack.c.h.b16 %v4238
        %v4335 = vunpack.c.l.b16 %v4239
        %v4336 = vunpack.c.h.b16 %v4239
        %v4337 = vunpack.c.l.b16 %v4240
        %v4338 = vunpack.c.h.b16 %v4240
        %v4339 = vunpack.c.l.b16 %v4241
        %v4340 = vunpack.c.h.b16 %v4241
        %v4341 = vunpack.c.l.b16 %v4242
        %v4342 = vunpack.c.h.b16 %v4242
        %v4343 = vunpack.c.l.b16 %v4243
        %v4344 = vunpack.c.h.b16 %v4243
        %v4345 = vunpack.c.l.b16 %v4244
        %v4346 = vunpack.c.h.b16 %v4244
        %v4347 = vpack.c.b16 %v4285, %v4283
        %v4348 = vpack.c.b16 %v4286, %v4284
        %v4349 = vpack.c.b16 %v4289, %v4287
        %v4350 = vpack.c.b16 %v4290, %v4288
        %v4351 = vpack.c.b16 %v4293, %v4291
        %v4352 = vpack.c.b16 %v4294, %v4292
        %v4353 = vpack.c.b16 %v4297, %v4295
        %v4354 = vpack.c.b16 %v4298, %v4296
        %v4355 = vpack.c.b16 %v4301, %v4299
        %v4356 = vpack.c.b16 %v4302, %v4300
        %v4357 = vpack.c.b16 %v4305, %v4303
        %v4358 = vpack.c.b16 %v4306, %v4304
        %v4359 = vpack.c.b16 %v4309, %v4307
        %v4360 = vpack.c.b16 %v4310, %v4308
        %v4361 = vpack.c.b16 %v4313, %v4311
        %v4362 = vpack.c.b16 %v4314, %v4312
        %v4363 = vpack.c.b16 %v4317, %v4315
        %v4364 = vpack.c.b16 %v4318, %v4316
        %v4365 = vpack.c.b16 %v4321, %v4319
        %v4366 = vpack.c.b16 %v4322, %v4320
        %v4367 = vpack.c.b16 %v4325, %v4323
        %v4368 = vpack.c.b16 %v4326, %v4324
        %v4369 = vpack.c.b16 %v4329, %v4327
        %v4370 = vpack.c.b16 %v4330, %v4328
        %v4371 = vpack.c.b16 %v4333, %v4331
        %v4372 = vpack.c.b16 %v4334, %v4332
        %v4373 = vpack.c.b16 %v4337, %v4335
        %v4374 = vpack.c.b16 %v4338, %v4336
        %v4375 = vpack.c.b16 %v4341, %v4339
        %v4376 = vpack.c.b16 %v4342, %v4340
        %v4377 = vpack.c.b16 %v4345, %v4343
        %v4378 = vpack.c.b16 %v4346, %v4344
        %4411 = vmatpush.bf16.msra.mxu0 %v4361
        %4412 = vmatpush.bf16.msra.mxu0 %v4359
        %4413 = vmatpush.bf16.msra.mxu0 %v4357
        %4414 = vmatpush.bf16.msra.mxu0 %v4355
        %4415 = vmatpush.bf16.msra.mxu0 %v4353
        %4416 = vmatpush.bf16.msra.mxu0 %v4351
        %4417 = vmatpush.bf16.msra.mxu0 %v4349
        %4418 = vmatpush.bf16.msra.mxu0 %v4347
        %4419 = vmatmul.bf16.gmra.mxu0 %v4203
        %v4420 = vpop.f32.mrf.mxu0
        %v4421 = vadd.f32 %v4247, %v4420
        %v4422 = vpop.f32.mrf.mxu0
        %v4423 = vadd.f32 %v4247, %v4422
        %4424 = vmatmul.bf16.gmra.mxu0 %v4205
        %v4425 = vpop.f32.mrf.mxu0
        %v4426 = vadd.f32 %v4247, %v4425
        %v4427 = vpop.f32.mrf.mxu0
        %v4428 = vadd.f32 %v4247, %v4427
        %4429 = vmatmul.bf16.gmra.mxu0 %v4207
        %v4430 = vpop.f32.mrf.mxu0
        %v4431 = vadd.f32 %v4247, %v4430
        %v4432 = vpop.f32.mrf.mxu0
        %v4433 = vadd.f32 %v4247, %v4432
        %4434 = vmatmul.bf16.gmra.mxu0 %v4209
        %v4435 = vpop.f32.mrf.mxu0
        %v4436 = vadd.f32 %v4247, %v4435
        %v4437 = vpop.f32.mrf.mxu0
        %v4438 = vadd.f32 %v4247, %v4437
        %4439 = vmatmul.bf16.gmra.mxu0 %v4211
        %v4440 = vpop.f32.mrf.mxu0
        %v4441 = vadd.f32 %v4247, %v4440
        %v4442 = vpop.f32.mrf.mxu0
        %v4443 = vadd.f32 %v4247, %v4442
        %4444 = vdwg.mxu0
        %4445 = vmatpush.bf16.msra.mxu0 %v4377
        %4446 = vmatpush.bf16.msra.mxu0 %v4375
        %4447 = vmatpush.bf16.msra.mxu0 %v4373
        %4448 = vmatpush.bf16.msra.mxu0 %v4371
        %4449 = vmatpush.bf16.msra.mxu0 %v4369
        %4450 = vmatpush.bf16.msra.mxu0 %v4367
        %4451 = vmatpush.bf16.msra.mxu0 %v4365
        %4452 = vmatpush.bf16.msra.mxu0 %v4363
        %4453 = vmatmul.bf16.gmra.mxu0 %v4204
        %v4454 = vpop.f32.mrf.mxu0
        %v4455 = vadd.f32 %v4421, %v4454
        %v4456 = vpop.f32.mrf.mxu0
        %v4457 = vadd.f32 %v4423, %v4456
        %4458 = vmatmul.bf16.gmra.mxu0 %v4206
        %v4459 = vpop.f32.mrf.mxu0
        %v4460 = vadd.f32 %v4426, %v4459
        %v4461 = vpop.f32.mrf.mxu0
        %v4462 = vadd.f32 %v4428, %v4461
        %4463 = vmatmul.bf16.gmra.mxu0 %v4208
        %v4464 = vpop.f32.mrf.mxu0
        %v4465 = vadd.f32 %v4431, %v4464
        %v4466 = vpop.f32.mrf.mxu0
        %v4467 = vadd.f32 %v4433, %v4466
        %4468 = vmatmul.bf16.gmra.mxu0 %v4210
        %v4469 = vpop.f32.mrf.mxu0
        %v4470 = vadd.f32 %v4436, %v4469
        %v4471 = vpop.f32.mrf.mxu0
        %v4472 = vadd.f32 %v4438, %v4471
        %4473 = vmatmul.bf16.gmra.mxu0 %v4212
        %v4474 = vpop.f32.mrf.mxu0
        %v4475 = vadd.f32 %v4441, %v4474
        %v4476 = vpop.f32.mrf.mxu0
        %v4477 = vadd.f32 %v4443, %v4476
        %4478 = vdwg.mxu0
        %4479 = vmatpush.bf16.msra.mxu0 %v4362
        %4480 = vmatpush.bf16.msra.mxu0 %v4360
        %4481 = vmatpush.bf16.msra.mxu0 %v4358
        %4482 = vmatpush.bf16.msra.mxu0 %v4356
        %4483 = vmatpush.bf16.msra.mxu0 %v4354
        %4484 = vmatpush.bf16.msra.mxu0 %v4352
        %4485 = vmatpush.bf16.msra.mxu0 %v4350
        %4486 = vmatpush.bf16.msra.mxu0 %v4348
        %4487 = vmatmul.bf16.gmra.mxu0 %v4203
        %v4488 = vpop.f32.mrf.mxu0
        %v4489 = vadd.f32 %v4248, %v4488
        %v4490 = vpop.f32.mrf.mxu0
        %v4491 = vadd.f32 %v4248, %v4490
        %4492 = vmatmul.bf16.gmra.mxu0 %v4205
        %v4493 = vpop.f32.mrf.mxu0
        %v4494 = vadd.f32 %v4248, %v4493
        %v4495 = vpop.f32.mrf.mxu0
        %v4496 = vadd.f32 %v4248, %v4495
        %4497 = vmatmul.bf16.gmra.mxu0 %v4207
        %v4498 = vpop.f32.mrf.mxu0
        %v4499 = vadd.f32 %v4248, %v4498
        %v4500 = vpop.f32.mrf.mxu0
        %v4501 = vadd.f32 %v4248, %v4500
        %4502 = vmatmul.bf16.gmra.mxu0 %v4209
        %v4503 = vpop.f32.mrf.mxu0
        %v4504 = vadd.f32 %v4248, %v4503
        %v4505 = vpop.f32.mrf.mxu0
        %v4506 = vadd.f32 %v4248, %v4505
        %4507 = vmatmul.bf16.gmra.mxu0 %v4211
        %v4508 = vpop.f32.mrf.mxu0
        %v4509 = vadd.f32 %v4248, %v4508
        %v4510 = vpop.f32.mrf.mxu0
        %v4511 = vadd.f32 %v4248, %v4510
        %4512 = vdwg.mxu0
        %4513 = vmatpush.bf16.msra.mxu0 %v4378
        %4514 = vmatpush.bf16.msra.mxu0 %v4376
        %4515 = vmatpush.bf16.msra.mxu0 %v4374
        %4516 = vmatpush.bf16.msra.mxu0 %v4372
        %4517 = vmatpush.bf16.msra.mxu0 %v4370
        %4518 = vmatpush.bf16.msra.mxu0 %v4368
        %4519 = vmatpush.bf16.msra.mxu0 %v4366
        %4520 = vmatpush.bf16.msra.mxu0 %v4364
        %4521 = vmatmul.bf16.gmra.mxu0 %v4204
        %v4522 = vpop.f32.mrf.mxu0
        %v4523 = vadd.f32 %v4489, %v4522
        %v4524 = vpop.f32.mrf.mxu0
        %v4525 = vadd.f32 %v4491, %v4524
        %4526 = vmatmul.bf16.gmra.mxu0 %v4206
        %v4527 = vpop.f32.mrf.mxu0
        %v4528 = vadd.f32 %v4494, %v4527
        %v4529 = vpop.f32.mrf.mxu0
        %v4530 = vadd.f32 %v4496, %v4529
        %4531 = vmatmul.bf16.gmra.mxu0 %v4208
        %v4532 = vpop.f32.mrf.mxu0
        %v4533 = vadd.f32 %v4499, %v4532
        %v4534 = vpop.f32.mrf.mxu0
        %v4535 = vadd.f32 %v4501, %v4534
        %4536 = vmatmul.bf16.gmra.mxu0 %v4210
        %v4537 = vpop.f32.mrf.mxu0
        %v4538 = vadd.f32 %v4504, %v4537
        %v4539 = vpop.f32.mrf.mxu0
        %v4540 = vadd.f32 %v4506, %v4539
        %4541 = vmatmul.bf16.gmra.mxu0 %v4212
        %v4542 = vpop.f32.mrf.mxu0
        %v4543 = vadd.f32 %v4509, %v4542
        %v4544 = vpop.f32.mrf.mxu0
        %v4545 = vadd.f32 %v4511, %v4544
        %4546 = vdwg.mxu0
        %4547 = vst [vmem:[#allocation3] sm:$0xff] %v4455
        %4548 = vst [vmem:[#allocation3 + $0x8] sm:$0xff] %v4523
        %4549 = vst [vmem:[#allocation3 + $0x10] sm:$0xff] %v4457
        %4550 = vst [vmem:[#allocation3 + $0x18] sm:$0xff] %v4525
        %4551 = vst [vmem:[#allocation3 + $0x20] sm:$0xff] %v4460
        %4552 = vst [vmem:[#allocation3 + $0x28] sm:$0xff] %v4528
        %4553 = vst [vmem:[#allocation3 + $0x30] sm:$0xff] %v4462
        %4554 = vst [vmem:[#allocation3 + $0x38] sm:$0xff] %v4530
        %4555 = vst [vmem:[#allocation3 + $0x40] sm:$0xff] %v4465
        %4556 = vst [vmem:[#allocation3 + $0x48] sm:$0xff] %v4533
        %4557 = vst [vmem:[#allocation3 + $0x50] sm:$0xff] %v4467
        %4558 = vst [vmem:[#allocation3 + $0x58] sm:$0xff] %v4535
        %4559 = vst [vmem:[#allocation3 + $0x60] sm:$0xff] %v4470
        %4560 = vst [vmem:[#allocation3 + $0x68] sm:$0xff] %v4538
        %4561 = vst [vmem:[#allocation3 + $0x70] sm:$0xff] %v4472
        %4562 = vst [vmem:[#allocation3 + $0x78] sm:$0xff] %v4540
        %4563 = vst [vmem:[#allocation3 + $0x80] sm:$0xff] %v4475
        %4564 = vst [vmem:[#allocation3 + $0x88] sm:$0xff] %v4543
        %4565 = vst [vmem:[#allocation3 + $0x90] sm:$0xff] %v4477
        %4566 = vst [vmem:[#allocation3 + $0x98] sm:$0xff] %v4545
        %v4567 = vld [vmem:[#allocation3] sm:$0xff]
        %v4568 = vld [vmem:[#allocation3 + $0x8] sm:$0xff]
        %v4569 = vld [vmem:[#allocation3 + $0x10] sm:$0xff]
        %v4570 = vld [vmem:[#allocation3 + $0x18] sm:$0xff]
        %v4571 = vld [vmem:[#allocation3 + $0x20] sm:$0xff]
        %v4572 = vld [vmem:[#allocation3 + $0x28] sm:$0xff]
        %v4573 = vld [vmem:[#allocation3 + $0x30] sm:$0xff]
        %v4574 = vld [vmem:[#allocation3 + $0x38] sm:$0xff]
        %v4575 = vld [vmem:[#allocation3 + $0x40] sm:$0xff]
        %v4576 = vld [vmem:[#allocation3 + $0x48] sm:$0xff]
        %v4577 = vld [vmem:[#allocation3 + $0x50] sm:$0xff]
        %v4578 = vld [vmem:[#allocation3 + $0x58] sm:$0xff]
        %v4579 = vld [vmem:[#allocation3 + $0x60] sm:$0xff]
        %v4580 = vld [vmem:[#allocation3 + $0x68] sm:$0xff]
        %v4581 = vld [vmem:[#allocation3 + $0x70] sm:$0xff]
        %v4582 = vld [vmem:[#allocation3 + $0x78] sm:$0xff]
        %v4583 = vld [vmem:[#allocation3 + $0x80] sm:$0xff]
        %v4584 = vld [vmem:[#allocation3 + $0x88] sm:$0xff]
        %v4585 = vld [vmem:[#allocation3 + $0x90] sm:$0xff]
        %v4586 = vld [vmem:[#allocation3 + $0x98] sm:$0xff]
        %v4587 = vld [vmem:[#allocation2] sm:$0xfe]
        %v4588 = vld [vmem:[#allocation2 + $0x8] sm:$0xfe]
        %v4589 = vld [vmem:[#allocation2 + $0x10] sm:$0xff]
        %v4590 = vld [vmem:[#allocation2 + $0x18] sm:$0xff]
        %v4591 = vld [vmem:[#allocation2 + $0x20] sm:$0xff]
        %v4592 = vld [vmem:[#allocation2 + $0x28] sm:$0xff]
        %v4593 = vld [vmem:[#allocation2 + $0x30] sm:$0xff]
        %v4594 = vld [vmem:[#allocation2 + $0x38] sm:$0xff]
        %v4595 = vld [vmem:[#allocation2 + $0x40] sm:$0xff]
        %v4596 = vld [vmem:[#allocation2 + $0x48] sm:$0xff]
        %v4597 = vld [vmem:[#allocation2 + $0x50] sm:$0xff]
        %v4598 = vld [vmem:[#allocation2 + $0x58] sm:$0xff]
        %v4599 = vld [vmem:[#allocation2 + $0x60] sm:$0xff]
        %v4600 = vld [vmem:[#allocation2 + $0x68] sm:$0xff]
        %v4601 = vld [vmem:[#allocation2 + $0x70] sm:$0xff]
        %v4602 = vld [vmem:[#allocation2 + $0x78] sm:$0xff]
        %v4603 = vld [vmem:[#allocation2 + $0x80] sm:$0xff]
        %v4604 = vld [vmem:[#allocation2 + $0x88] sm:$0xff]
        %v4605 = vld [vmem:[#allocation2 + $0x90] sm:$0xff]
        %v4606 = vld [vmem:[#allocation2 + $0x98] sm:$0xff]
        %v4607 = vld [vmem:[#allocation2 + $0xa0] sm:$0x1]
        %v4608 = vld [vmem:[#allocation2 + $0xa8] sm:$0x1]
        %v4609 = vpack.c.bf16 %v4589, %v4587
        %v4610 = vpack.c.bf16 %v4590, %v4588
        %v4611 = vpack.c.bf16 %v4593, %v4591
        %v4612 = vpack.c.bf16 %v4594, %v4592
        %v4613 = vpack.c.bf16 %v4597, %v4595
        %v4614 = vpack.c.bf16 %v4598, %v4596
        %v4615 = vpack.c.bf16 %v4601, %v4599
        %v4616 = vpack.c.bf16 %v4602, %v4600
        %v4617 = vpack.c.bf16 %v4605, %v4603
        %v4618 = vpack.c.bf16 %v4606, %v4604
        %v4619 = vpack.c.bf16 %v4607, %v4607
        %v4620 = vpack.c.bf16 %v4608, %v4608
        %s4621 = scalar_lea.vmem [#allocation5], 256
        %v4622 = vld [vmem:[%s4621] sm:$0xff]
        %v4623 = vld [vmem:[%s4621 + $0x8] sm:$0xff]
        %v4624 = vld [vmem:[%s4621 + $0x10] sm:$0xff]
        %v4625 = vld [vmem:[%s4621 + $0x18] sm:$0xff]
        %v4626 = vld [vmem:[%s4621 + $0x20] sm:$0xff]
        %v4627 = vld [vmem:[%s4621 + $0x28] sm:$0xff]
        %v4628 = vld [vmem:[%s4621 + $0x30] sm:$0xff]
        %v4629 = vld [vmem:[%s4621 + $0x38] sm:$0xff]
        %v4630 = vld [vmem:[%s4621 + $0x40] sm:$0xff]
        %v4631 = vld [vmem:[%s4621 + $0x48] sm:$0xff]
        %v4632 = vld [vmem:[%s4621 + $0x50] sm:$0xff]
        %v4633 = vld [vmem:[%s4621 + $0x58] sm:$0xff]
        %v4634 = vld [vmem:[%s4621 + $0x60] sm:$0xff]
        %v4635 = vld [vmem:[%s4621 + $0x68] sm:$0xff]
        %v4636 = vld [vmem:[%s4621 + $0x70] sm:$0xff]
        %v4637 = vld [vmem:[%s4621 + $0x78] sm:$0xff]
        %v4638 = vld [vmem:[%s4621 + $0x80] sm:$0xff]
        %v4639 = vld [vmem:[%s4621 + $0x88] sm:$0xff]
        %v4640 = vld [vmem:[%s4621 + $0x90] sm:$0xff]
        %v4641 = vld [vmem:[%s4621 + $0x98] sm:$0xff]
        %v4642 = vld [vmem:[%s4621 + $0xa0] sm:$0xff]
        %v4643 = vld [vmem:[%s4621 + $0xa8] sm:$0xff]
        %v4644 = vld [vmem:[%s4621 + $0xb0] sm:$0xff]
        %v4645 = vld [vmem:[%s4621 + $0xb8] sm:$0xff]
        %v4646 = vld [vmem:[%s4621 + $0xc0] sm:$0xff]
        %v4647 = vld [vmem:[%s4621 + $0xc8] sm:$0xff]
        %v4648 = vld [vmem:[%s4621 + $0xd0] sm:$0xff]
        %v4649 = vld [vmem:[%s4621 + $0xd8] sm:$0xff]
        %v4650 = vld [vmem:[%s4621 + $0xe0] sm:$0xff]
        %v4651 = vld [vmem:[%s4621 + $0xe8] sm:$0xff]
        %v4652 = vld [vmem:[%s4621 + $0xf0] sm:$0xff]
        %v4653 = vld [vmem:[%s4621 + $0xf8] sm:$0xff]
        %v4655 = vshrl.u32 %v4609, 16
        %v4657 = vshll.u32 %v4609, 16
        %v4659 = vrot.slane %v4657, 1
        %v4660 = vor.u32 %v4655, %v4659
        %v4662 = vshll.u32 %v4611, 16
        %v4664 = vrot.slane %v4662, 1
        %v4665 = vsel %vm1049, %v4660, %v4664
        %v4667 = vshrl.u32 %v4610, 16
        %v4669 = vshll.u32 %v4610, 16
        %v4671 = vrot.slane %v4669, 1
        %v4672 = vor.u32 %v4667, %v4671
        %v4674 = vshll.u32 %v4612, 16
        %v4676 = vrot.slane %v4674, 1
        %v4677 = vsel %vm1049, %v4672, %v4676
        %v4678 = vshrl.u32 %v4611, 16
        %v4680 = vor.u32 %v4678, %v4664
        %v4682 = vshll.u32 %v4613, 16
        %v4684 = vrot.slane %v4682, 1
        %v4685 = vsel %vm1049, %v4680, %v4684
        %v4686 = vshrl.u32 %v4612, 16
        %v4688 = vor.u32 %v4686, %v4676
        %v4690 = vshll.u32 %v4614, 16
        %v4692 = vrot.slane %v4690, 1
        %v4693 = vsel %vm1049, %v4688, %v4692
        %v4694 = vshrl.u32 %v4613, 16
        %v4696 = vor.u32 %v4694, %v4684
        %v4698 = vshll.u32 %v4615, 16
        %v4700 = vrot.slane %v4698, 1
        %v4701 = vsel %vm1049, %v4696, %v4700
        %v4702 = vshrl.u32 %v4614, 16
        %v4704 = vor.u32 %v4702, %v4692
        %v4706 = vshll.u32 %v4616, 16
        %v4708 = vrot.slane %v4706, 1
        %v4709 = vsel %vm1049, %v4704, %v4708
        %v4710 = vshrl.u32 %v4615, 16
        %v4712 = vor.u32 %v4710, %v4700
        %v4714 = vshll.u32 %v4617, 16
        %v4716 = vrot.slane %v4714, 1
        %v4717 = vsel %vm1049, %v4712, %v4716
        %v4718 = vshrl.u32 %v4616, 16
        %v4720 = vor.u32 %v4718, %v4708
        %v4722 = vshll.u32 %v4618, 16
        %v4724 = vrot.slane %v4722, 1
        %v4725 = vsel %vm1049, %v4720, %v4724
        %v4726 = vshrl.u32 %v4617, 16
        %v4728 = vor.u32 %v4726, %v4716
        %v4730 = vshll.u32 %v4619, 16
        %v4732 = vrot.slane %v4730, 1
        %v4733 = vsel %vm1049, %v4728, %v4732
        %v4734 = vshrl.u32 %v4618, 16
        %v4736 = vor.u32 %v4734, %v4724
        %v4738 = vshll.u32 %v4620, 16
        %v4740 = vrot.slane %v4738, 1
        %v4741 = vsel %vm1049, %v4736, %v4740
        %v4784 = vunpack.c.l.b16 %v4622
        %v4785 = vunpack.c.h.b16 %v4622
        %v4786 = vunpack.c.l.b16 %v4623
        %v4787 = vunpack.c.h.b16 %v4623
        %v4788 = vunpack.c.l.b16 %v4624
        %v4789 = vunpack.c.h.b16 %v4624
        %v4790 = vunpack.c.l.b16 %v4625
        %v4791 = vunpack.c.h.b16 %v4625
        %v4792 = vunpack.c.l.b16 %v4626
        %v4793 = vunpack.c.h.b16 %v4626
        %v4794 = vunpack.c.l.b16 %v4627
        %v4795 = vunpack.c.h.b16 %v4627
        %v4796 = vunpack.c.l.b16 %v4628
        %v4797 = vunpack.c.h.b16 %v4628
        %v4798 = vunpack.c.l.b16 %v4629
        %v4799 = vunpack.c.h.b16 %v4629
        %v4800 = vunpack.c.l.b16 %v4630
        %v4801 = vunpack.c.h.b16 %v4630
        %v4802 = vunpack.c.l.b16 %v4631
        %v4803 = vunpack.c.h.b16 %v4631
        %v4804 = vunpack.c.l.b16 %v4632
        %v4805 = vunpack.c.h.b16 %v4632
        %v4806 = vunpack.c.l.b16 %v4633
        %v4807 = vunpack.c.h.b16 %v4633
        %v4808 = vunpack.c.l.b16 %v4634
        %v4809 = vunpack.c.h.b16 %v4634
        %v4810 = vunpack.c.l.b16 %v4635
        %v4811 = vunpack.c.h.b16 %v4635
        %v4812 = vunpack.c.l.b16 %v4636
        %v4813 = vunpack.c.h.b16 %v4636
        %v4814 = vunpack.c.l.b16 %v4637
        %v4815 = vunpack.c.h.b16 %v4637
        %v4816 = vunpack.c.l.b16 %v4638
        %v4817 = vunpack.c.h.b16 %v4638
        %v4818 = vunpack.c.l.b16 %v4639
        %v4819 = vunpack.c.h.b16 %v4639
        %v4820 = vunpack.c.l.b16 %v4640
        %v4821 = vunpack.c.h.b16 %v4640
        %v4822 = vunpack.c.l.b16 %v4641
        %v4823 = vunpack.c.h.b16 %v4641
        %v4824 = vunpack.c.l.b16 %v4642
        %v4825 = vunpack.c.h.b16 %v4642
        %v4826 = vunpack.c.l.b16 %v4643
        %v4827 = vunpack.c.h.b16 %v4643
        %v4828 = vunpack.c.l.b16 %v4644
        %v4829 = vunpack.c.h.b16 %v4644
        %v4830 = vunpack.c.l.b16 %v4645
        %v4831 = vunpack.c.h.b16 %v4645
        %v4832 = vunpack.c.l.b16 %v4646
        %v4833 = vunpack.c.h.b16 %v4646
        %v4834 = vunpack.c.l.b16 %v4647
        %v4835 = vunpack.c.h.b16 %v4647
        %v4836 = vunpack.c.l.b16 %v4648
        %v4837 = vunpack.c.h.b16 %v4648
        %v4838 = vunpack.c.l.b16 %v4649
        %v4839 = vunpack.c.h.b16 %v4649
        %v4840 = vunpack.c.l.b16 %v4650
        %v4841 = vunpack.c.h.b16 %v4650
        %v4842 = vunpack.c.l.b16 %v4651
        %v4843 = vunpack.c.h.b16 %v4651
        %v4844 = vunpack.c.l.b16 %v4652
        %v4845 = vunpack.c.h.b16 %v4652
        %v4846 = vunpack.c.l.b16 %v4653
        %v4847 = vunpack.c.h.b16 %v4653
        %v4848 = vpack.c.b16 %v4786, %v4784
        %v4849 = vpack.c.b16 %v4787, %v4785
        %v4850 = vpack.c.b16 %v4790, %v4788
        %v4851 = vpack.c.b16 %v4791, %v4789
        %v4852 = vpack.c.b16 %v4794, %v4792
        %v4853 = vpack.c.b16 %v4795, %v4793
        %v4854 = vpack.c.b16 %v4798, %v4796
        %v4855 = vpack.c.b16 %v4799, %v4797
        %v4856 = vpack.c.b16 %v4802, %v4800
        %v4857 = vpack.c.b16 %v4803, %v4801
        %v4858 = vpack.c.b16 %v4806, %v4804
        %v4859 = vpack.c.b16 %v4807, %v4805
        %v4860 = vpack.c.b16 %v4810, %v4808
        %v4861 = vpack.c.b16 %v4811, %v4809
        %v4862 = vpack.c.b16 %v4814, %v4812
        %v4863 = vpack.c.b16 %v4815, %v4813
        %v4864 = vpack.c.b16 %v4818, %v4816
        %v4865 = vpack.c.b16 %v4819, %v4817
        %v4866 = vpack.c.b16 %v4822, %v4820
        %v4867 = vpack.c.b16 %v4823, %v4821
        %v4868 = vpack.c.b16 %v4826, %v4824
        %v4869 = vpack.c.b16 %v4827, %v4825
        %v4870 = vpack.c.b16 %v4830, %v4828
        %v4871 = vpack.c.b16 %v4831, %v4829
        %v4872 = vpack.c.b16 %v4834, %v4832
        %v4873 = vpack.c.b16 %v4835, %v4833
        %v4874 = vpack.c.b16 %v4838, %v4836
        %v4875 = vpack.c.b16 %v4839, %v4837
        %v4876 = vpack.c.b16 %v4842, %v4840
        %v4877 = vpack.c.b16 %v4843, %v4841
        %v4878 = vpack.c.b16 %v4846, %v4844
        %v4879 = vpack.c.b16 %v4847, %v4845
        %4912 = vmatpush.bf16.msra.mxu0 %v4862
        %4913 = vmatpush.bf16.msra.mxu0 %v4860
        %4914 = vmatpush.bf16.msra.mxu0 %v4858
        %4915 = vmatpush.bf16.msra.mxu0 %v4856
        %4916 = vmatpush.bf16.msra.mxu0 %v4854
        %4917 = vmatpush.bf16.msra.mxu0 %v4852
        %4918 = vmatpush.bf16.msra.mxu0 %v4850
        %4919 = vmatpush.bf16.msra.mxu0 %v4848
        %4920 = vmatmul.bf16.gmra.mxu0 %v4665
        %v4921 = vpop.f32.mrf.mxu0
        %v4922 = vadd.f32 0.0, %v4921
        %v4923 = vpop.f32.mrf.mxu0
        %v4924 = vadd.f32 0.0, %v4923
        %4925 = vmatmul.bf16.gmra.mxu0 %v4685
        %v4926 = vpop.f32.mrf.mxu0
        %v4927 = vadd.f32 0.0, %v4926
        %v4928 = vpop.f32.mrf.mxu0
        %v4929 = vadd.f32 0.0, %v4928
        %4930 = vmatmul.bf16.gmra.mxu0 %v4701
        %v4931 = vpop.f32.mrf.mxu0
        %v4932 = vadd.f32 0.0, %v4931
        %v4933 = vpop.f32.mrf.mxu0
        %v4934 = vadd.f32 0.0, %v4933
        %4935 = vmatmul.bf16.gmra.mxu0 %v4717
        %v4936 = vpop.f32.mrf.mxu0
        %v4937 = vadd.f32 0.0, %v4936
        %v4938 = vpop.f32.mrf.mxu0
        %v4939 = vadd.f32 0.0, %v4938
        %4940 = vmatmul.bf16.gmra.mxu0 %v4733
        %v4941 = vpop.f32.mrf.mxu0
        %v4942 = vadd.f32 0.0, %v4941
        %v4943 = vpop.f32.mrf.mxu0
        %v4944 = vadd.f32 0.0, %v4943
        %4945 = vdwg.mxu0
        %4946 = vmatpush.bf16.msra.mxu0 %v4878
        %4947 = vmatpush.bf16.msra.mxu0 %v4876
        %4948 = vmatpush.bf16.msra.mxu0 %v4874
        %4949 = vmatpush.bf16.msra.mxu0 %v4872
        %4950 = vmatpush.bf16.msra.mxu0 %v4870
        %4951 = vmatpush.bf16.msra.mxu0 %v4868
        %4952 = vmatpush.bf16.msra.mxu0 %v4866
        %4953 = vmatpush.bf16.msra.mxu0 %v4864
        %4954 = vmatmul.bf16.gmra.mxu0 %v4677
        %v4955 = vpop.f32.mrf.mxu0
        %v4956 = vadd.f32 %v4922, %v4955
        %v4957 = vpop.f32.mrf.mxu0
        %v4958 = vadd.f32 %v4924, %v4957
        %4959 = vmatmul.bf16.gmra.mxu0 %v4693
        %v4960 = vpop.f32.mrf.mxu0
        %v4961 = vadd.f32 %v4927, %v4960
        %v4962 = vpop.f32.mrf.mxu0
        %v4963 = vadd.f32 %v4929, %v4962
        %4964 = vmatmul.bf16.gmra.mxu0 %v4709
        %v4965 = vpop.f32.mrf.mxu0
        %v4966 = vadd.f32 %v4932, %v4965
        %v4967 = vpop.f32.mrf.mxu0
        %v4968 = vadd.f32 %v4934, %v4967
        %4969 = vmatmul.bf16.gmra.mxu0 %v4725
        %v4970 = vpop.f32.mrf.mxu0
        %v4971 = vadd.f32 %v4937, %v4970
        %v4972 = vpop.f32.mrf.mxu0
        %v4973 = vadd.f32 %v4939, %v4972
        %4974 = vmatmul.bf16.gmra.mxu0 %v4741
        %v4975 = vpop.f32.mrf.mxu0
        %v4976 = vadd.f32 %v4942, %v4975
        %v4977 = vpop.f32.mrf.mxu0
        %v4978 = vadd.f32 %v4944, %v4977
        %4979 = vdwg.mxu0
        %4980 = vmatpush.bf16.msra.mxu0 %v4863
        %4981 = vmatpush.bf16.msra.mxu0 %v4861
        %4982 = vmatpush.bf16.msra.mxu0 %v4859
        %4983 = vmatpush.bf16.msra.mxu0 %v4857
        %4984 = vmatpush.bf16.msra.mxu0 %v4855
        %4985 = vmatpush.bf16.msra.mxu0 %v4853
        %4986 = vmatpush.bf16.msra.mxu0 %v4851
        %4987 = vmatpush.bf16.msra.mxu0 %v4849
        %4988 = vmatmul.bf16.gmra.mxu0 %v4665
        %v4989 = vpop.f32.mrf.mxu0
        %v4990 = vadd.f32 0.0, %v4989
        %v4991 = vpop.f32.mrf.mxu0
        %v4992 = vadd.f32 0.0, %v4991
        %4993 = vmatmul.bf16.gmra.mxu0 %v4685
        %v4994 = vpop.f32.mrf.mxu0
        %v4995 = vadd.f32 0.0, %v4994
        %v4996 = vpop.f32.mrf.mxu0
        %v4997 = vadd.f32 0.0, %v4996
        %4998 = vmatmul.bf16.gmra.mxu0 %v4701
        %v4999 = vpop.f32.mrf.mxu0
        %v5000 = vadd.f32 0.0, %v4999
        %v5001 = vpop.f32.mrf.mxu0
        %v5002 = vadd.f32 0.0, %v5001
        %5003 = vmatmul.bf16.gmra.mxu0 %v4717
        %v5004 = vpop.f32.mrf.mxu0
        %v5005 = vadd.f32 0.0, %v5004
        %v5006 = vpop.f32.mrf.mxu0
        %v5007 = vadd.f32 0.0, %v5006
        %5008 = vmatmul.bf16.gmra.mxu0 %v4733
        %v5009 = vpop.f32.mrf.mxu0
        %v5010 = vadd.f32 0.0, %v5009
        %v5011 = vpop.f32.mrf.mxu0
        %v5012 = vadd.f32 0.0, %v5011
        %5013 = vdwg.mxu0
        %5014 = vmatpush.bf16.msra.mxu0 %v4879
        %5015 = vmatpush.bf16.msra.mxu0 %v4877
        %5016 = vmatpush.bf16.msra.mxu0 %v4875
        %5017 = vmatpush.bf16.msra.mxu0 %v4873
        %5018 = vmatpush.bf16.msra.mxu0 %v4871
        %5019 = vmatpush.bf16.msra.mxu0 %v4869
        %5020 = vmatpush.bf16.msra.mxu0 %v4867
        %5021 = vmatpush.bf16.msra.mxu0 %v4865
        %5022 = vmatmul.bf16.gmra.mxu0 %v4677
        %v5023 = vpop.f32.mrf.mxu0
        %v5024 = vadd.f32 %v4990, %v5023
        %v5025 = vpop.f32.mrf.mxu0
        %v5026 = vadd.f32 %v4992, %v5025
        %5027 = vmatmul.bf16.gmra.mxu0 %v4693
        %v5028 = vpop.f32.mrf.mxu0
        %v5029 = vadd.f32 %v4995, %v5028
        %v5030 = vpop.f32.mrf.mxu0
        %v5031 = vadd.f32 %v4997, %v5030
        %5032 = vmatmul.bf16.gmra.mxu0 %v4709
        %v5033 = vpop.f32.mrf.mxu0
        %v5034 = vadd.f32 %v5000, %v5033
        %v5035 = vpop.f32.mrf.mxu0
        %v5036 = vadd.f32 %v5002, %v5035
        %5037 = vmatmul.bf16.gmra.mxu0 %v4725
        %v5038 = vpop.f32.mrf.mxu0
        %v5039 = vadd.f32 %v5005, %v5038
        %v5040 = vpop.f32.mrf.mxu0
        %v5041 = vadd.f32 %v5007, %v5040
        %5042 = vmatmul.bf16.gmra.mxu0 %v4741
        %v5043 = vpop.f32.mrf.mxu0
        %v5044 = vadd.f32 %v5010, %v5043
        %v5045 = vpop.f32.mrf.mxu0
        %v5046 = vadd.f32 %v5012, %v5045
        %5047 = vdwg.mxu0
        %v5048 = vadd.f32 %v4567, %v4956
        %v5049 = vadd.f32 %v4568, %v5024
        %v5050 = vadd.f32 %v4569, %v4958
        %v5051 = vadd.f32 %v4570, %v5026
        %v5052 = vadd.f32 %v4571, %v4961
        %v5053 = vadd.f32 %v4572, %v5029
        %v5054 = vadd.f32 %v4573, %v4963
        %v5055 = vadd.f32 %v4574, %v5031
        %v5056 = vadd.f32 %v4575, %v4966
        %v5057 = vadd.f32 %v4576, %v5034
        %v5058 = vadd.f32 %v4577, %v4968
        %v5059 = vadd.f32 %v4578, %v5036
        %v5060 = vadd.f32 %v4579, %v4971
        %v5061 = vadd.f32 %v4580, %v5039
        %v5062 = vadd.f32 %v4581, %v4973
        %v5063 = vadd.f32 %v4582, %v5041
        %v5064 = vadd.f32 %v4583, %v4976
        %v5065 = vadd.f32 %v4584, %v5044
        %v5066 = vadd.f32 %v4585, %v4978
        %v5067 = vadd.f32 %v4586, %v5046
        %5068 = vst [vmem:[#allocation3] sm:$0xff] %v5048
        %5069 = vst [vmem:[#allocation3 + $0x8] sm:$0xff] %v5049
        %5070 = vst [vmem:[#allocation3 + $0x10] sm:$0xff] %v5050
        %5071 = vst [vmem:[#allocation3 + $0x18] sm:$0xff] %v5051
        %5072 = vst [vmem:[#allocation3 + $0x20] sm:$0xff] %v5052
        %5073 = vst [vmem:[#allocation3 + $0x28] sm:$0xff] %v5053
        %5074 = vst [vmem:[#allocation3 + $0x30] sm:$0xff] %v5054
        %5075 = vst [vmem:[#allocation3 + $0x38] sm:$0xff] %v5055
        %5076 = vst [vmem:[#allocation3 + $0x40] sm:$0xff] %v5056
        %5077 = vst [vmem:[#allocation3 + $0x48] sm:$0xff] %v5057
        %5078 = vst [vmem:[#allocation3 + $0x50] sm:$0xff] %v5058
        %5079 = vst [vmem:[#allocation3 + $0x58] sm:$0xff] %v5059
        %5080 = vst [vmem:[#allocation3 + $0x60] sm:$0xff] %v5060
        %5081 = vst [vmem:[#allocation3 + $0x68] sm:$0xff] %v5061
        %5082 = vst [vmem:[#allocation3 + $0x70] sm:$0xff] %v5062
        %5083 = vst [vmem:[#allocation3 + $0x78] sm:$0xff] %v5063
        %5084 = vst [vmem:[#allocation3 + $0x80] sm:$0xff] %v5064
        %5085 = vst [vmem:[#allocation3 + $0x88] sm:$0xff] %v5065
        %5086 = vst [vmem:[#allocation3 + $0x90] sm:$0xff] %v5066
        %5087 = vst [vmem:[#allocation3 + $0x98] sm:$0xff] %v5067
        %v5088 = vld [vmem:[#allocation3] sm:$0xff]
        %v5089 = vld [vmem:[#allocation3 + $0x8] sm:$0xff]
        %v5090 = vld [vmem:[#allocation3 + $0x10] sm:$0xff]
        %v5091 = vld [vmem:[#allocation3 + $0x18] sm:$0xff]
        %v5092 = vld [vmem:[#allocation3 + $0x20] sm:$0xff]
        %v5093 = vld [vmem:[#allocation3 + $0x28] sm:$0xff]
        %v5094 = vld [vmem:[#allocation3 + $0x30] sm:$0xff]
        %v5095 = vld [vmem:[#allocation3 + $0x38] sm:$0xff]
        %v5096 = vld [vmem:[#allocation3 + $0x40] sm:$0xff]
        %v5097 = vld [vmem:[#allocation3 + $0x48] sm:$0xff]
        %v5098 = vld [vmem:[#allocation3 + $0x50] sm:$0xff]
        %v5099 = vld [vmem:[#allocation3 + $0x58] sm:$0xff]
        %v5100 = vld [vmem:[#allocation3 + $0x60] sm:$0xff]
        %v5101 = vld [vmem:[#allocation3 + $0x68] sm:$0xff]
        %v5102 = vld [vmem:[#allocation3 + $0x70] sm:$0xff]
        %v5103 = vld [vmem:[#allocation3 + $0x78] sm:$0xff]
        %v5104 = vld [vmem:[#allocation3 + $0x80] sm:$0xff]
        %v5105 = vld [vmem:[#allocation3 + $0x88] sm:$0xff]
        %v5106 = vld [vmem:[#allocation3 + $0x90] sm:$0xff]
        %v5107 = vld [vmem:[#allocation3 + $0x98] sm:$0xff]
        %v5108 = vld [vmem:[#allocation2] sm:$0xfc]
        %v5109 = vld [vmem:[#allocation2 + $0x8] sm:$0xfc]
        %v5110 = vld [vmem:[#allocation2 + $0x10] sm:$0xff]
        %v5111 = vld [vmem:[#allocation2 + $0x18] sm:$0xff]
        %v5112 = vld [vmem:[#allocation2 + $0x20] sm:$0xff]
        %v5113 = vld [vmem:[#allocation2 + $0x28] sm:$0xff]
        %v5114 = vld [vmem:[#allocation2 + $0x30] sm:$0xff]
        %v5115 = vld [vmem:[#allocation2 + $0x38] sm:$0xff]
        %v5116 = vld [vmem:[#allocation2 + $0x40] sm:$0xff]
        %v5117 = vld [vmem:[#allocation2 + $0x48] sm:$0xff]
        %v5118 = vld [vmem:[#allocation2 + $0x50] sm:$0xff]
        %v5119 = vld [vmem:[#allocation2 + $0x58] sm:$0xff]
        %v5120 = vld [vmem:[#allocation2 + $0x60] sm:$0xff]
        %v5121 = vld [vmem:[#allocation2 + $0x68] sm:$0xff]
        %v5122 = vld [vmem:[#allocation2 + $0x70] sm:$0xff]
        %v5123 = vld [vmem:[#allocation2 + $0x78] sm:$0xff]
        %v5124 = vld [vmem:[#allocation2 + $0x80] sm:$0xff]
        %v5125 = vld [vmem:[#allocation2 + $0x88] sm:$0xff]
        %v5126 = vld [vmem:[#allocation2 + $0x90] sm:$0xff]
        %v5127 = vld [vmem:[#allocation2 + $0x98] sm:$0xff]
        %v5128 = vld [vmem:[#allocation2 + $0xa0] sm:$0x3]
        %v5129 = vld [vmem:[#allocation2 + $0xa8] sm:$0x3]
        %v5130 = vpack.c.bf16 %v5110, %v5108
        %v5131 = vpack.c.bf16 %v5111, %v5109
        %v5132 = vpack.c.bf16 %v5114, %v5112
        %v5133 = vpack.c.bf16 %v5115, %v5113
        %v5134 = vpack.c.bf16 %v5118, %v5116
        %v5135 = vpack.c.bf16 %v5119, %v5117
        %v5136 = vpack.c.bf16 %v5122, %v5120
        %v5137 = vpack.c.bf16 %v5123, %v5121
        %v5138 = vpack.c.bf16 %v5126, %v5124
        %v5139 = vpack.c.bf16 %v5127, %v5125
        %v5140 = vpack.c.bf16 %v5128, %v5128
        %v5141 = vpack.c.bf16 %v5129, %v5129
        %s5142 = scalar_lea.vmem [#allocation5], 512
        %v5143 = vld [vmem:[%s5142] sm:$0xff]
        %v5144 = vld [vmem:[%s5142 + $0x8] sm:$0xff]
        %v5145 = vld [vmem:[%s5142 + $0x10] sm:$0xff]
        %v5146 = vld [vmem:[%s5142 + $0x18] sm:$0xff]
        %v5147 = vld [vmem:[%s5142 + $0x20] sm:$0xff]
        %v5148 = vld [vmem:[%s5142 + $0x28] sm:$0xff]
        %v5149 = vld [vmem:[%s5142 + $0x30] sm:$0xff]
        %v5150 = vld [vmem:[%s5142 + $0x38] sm:$0xff]
        %v5151 = vld [vmem:[%s5142 + $0x40] sm:$0xff]
        %v5152 = vld [vmem:[%s5142 + $0x48] sm:$0xff]
        %v5153 = vld [vmem:[%s5142 + $0x50] sm:$0xff]
        %v5154 = vld [vmem:[%s5142 + $0x58] sm:$0xff]
        %v5155 = vld [vmem:[%s5142 + $0x60] sm:$0xff]
        %v5156 = vld [vmem:[%s5142 + $0x68] sm:$0xff]
        %v5157 = vld [vmem:[%s5142 + $0x70] sm:$0xff]
        %v5158 = vld [vmem:[%s5142 + $0x78] sm:$0xff]
        %v5159 = vld [vmem:[%s5142 + $0x80] sm:$0xff]
        %v5160 = vld [vmem:[%s5142 + $0x88] sm:$0xff]
        %v5161 = vld [vmem:[%s5142 + $0x90] sm:$0xff]
        %v5162 = vld [vmem:[%s5142 + $0x98] sm:$0xff]
        %v5163 = vld [vmem:[%s5142 + $0xa0] sm:$0xff]
        %v5164 = vld [vmem:[%s5142 + $0xa8] sm:$0xff]
        %v5165 = vld [vmem:[%s5142 + $0xb0] sm:$0xff]
        %v5166 = vld [vmem:[%s5142 + $0xb8] sm:$0xff]
        %v5167 = vld [vmem:[%s5142 + $0xc0] sm:$0xff]
        %v5168 = vld [vmem:[%s5142 + $0xc8] sm:$0xff]
        %v5169 = vld [vmem:[%s5142 + $0xd0] sm:$0xff]
        %v5170 = vld [vmem:[%s5142 + $0xd8] sm:$0xff]
        %v5171 = vld [vmem:[%s5142 + $0xe0] sm:$0xff]
        %v5172 = vld [vmem:[%s5142 + $0xe8] sm:$0xff]
        %v5173 = vld [vmem:[%s5142 + $0xf0] sm:$0xff]
        %v5174 = vld [vmem:[%s5142 + $0xf8] sm:$0xff]
        %v5187 = vrot.slane %v5130, 1
        %v5188 = vrot.slane %v5132, 1
        %v5189 = vsel %vm1583, %v5187, %v5188
        %v5190 = vrot.slane %v5131, 1
        %v5191 = vrot.slane %v5133, 1
        %v5192 = vsel %vm1583, %v5190, %v5191
        %v5193 = vrot.slane %v5134, 1
        %v5194 = vsel %vm1583, %v5188, %v5193
        %v5195 = vrot.slane %v5135, 1
        %v5196 = vsel %vm1583, %v5191, %v5195
        %v5197 = vrot.slane %v5136, 1
        %v5198 = vsel %vm1583, %v5193, %v5197
        %v5199 = vrot.slane %v5137, 1
        %v5200 = vsel %vm1583, %v5195, %v5199
        %v5201 = vrot.slane %v5138, 1
        %v5202 = vsel %vm1583, %v5197, %v5201
        %v5203 = vrot.slane %v5139, 1
        %v5204 = vsel %vm1583, %v5199, %v5203
        %v5205 = vrot.slane %v5140, 1
        %v5206 = vsel %vm1583, %v5201, %v5205
        %v5207 = vrot.slane %v5141, 1
        %v5208 = vsel %vm1583, %v5203, %v5207
        %v5251 = vunpack.c.l.b16 %v5143
        %v5252 = vunpack.c.h.b16 %v5143
        %v5253 = vunpack.c.l.b16 %v5144
        %v5254 = vunpack.c.h.b16 %v5144
        %v5255 = vunpack.c.l.b16 %v5145
        %v5256 = vunpack.c.h.b16 %v5145
        %v5257 = vunpack.c.l.b16 %v5146
        %v5258 = vunpack.c.h.b16 %v5146
        %v5259 = vunpack.c.l.b16 %v5147
        %v5260 = vunpack.c.h.b16 %v5147
        %v5261 = vunpack.c.l.b16 %v5148
        %v5262 = vunpack.c.h.b16 %v5148
        %v5263 = vunpack.c.l.b16 %v5149
        %v5264 = vunpack.c.h.b16 %v5149
        %v5265 = vunpack.c.l.b16 %v5150
        %v5266 = vunpack.c.h.b16 %v5150
        %v5267 = vunpack.c.l.b16 %v5151
        %v5268 = vunpack.c.h.b16 %v5151
        %v5269 = vunpack.c.l.b16 %v5152
        %v5270 = vunpack.c.h.b16 %v5152
        %v5271 = vunpack.c.l.b16 %v5153
        %v5272 = vunpack.c.h.b16 %v5153
        %v5273 = vunpack.c.l.b16 %v5154
        %v5274 = vunpack.c.h.b16 %v5154
        %v5275 = vunpack.c.l.b16 %v5155
        %v5276 = vunpack.c.h.b16 %v5155
        %v5277 = vunpack.c.l.b16 %v5156
        %v5278 = vunpack.c.h.b16 %v5156
        %v5279 = vunpack.c.l.b16 %v5157
        %v5280 = vunpack.c.h.b16 %v5157
        %v5281 = vunpack.c.l.b16 %v5158
        %v5282 = vunpack.c.h.b16 %v5158
        %v5283 = vunpack.c.l.b16 %v5159
        %v5284 = vunpack.c.h.b16 %v5159
        %v5285 = vunpack.c.l.b16 %v5160
        %v5286 = vunpack.c.h.b16 %v5160
        %v5287 = vunpack.c.l.b16 %v5161
        %v5288 = vunpack.c.h.b16 %v5161
        %v5289 = vunpack.c.l.b16 %v5162
        %v5290 = vunpack.c.h.b16 %v5162
        %v5291 = vunpack.c.l.b16 %v5163
        %v5292 = vunpack.c.h.b16 %v5163
        %v5293 = vunpack.c.l.b16 %v5164
        %v5294 = vunpack.c.h.b16 %v5164
        %v5295 = vunpack.c.l.b16 %v5165
        %v5296 = vunpack.c.h.b16 %v5165
        %v5297 = vunpack.c.l.b16 %v5166
        %v5298 = vunpack.c.h.b16 %v5166
        %v5299 = vunpack.c.l.b16 %v5167
        %v5300 = vunpack.c.h.b16 %v5167
        %v5301 = vunpack.c.l.b16 %v5168
        %v5302 = vunpack.c.h.b16 %v5168
        %v5303 = vunpack.c.l.b16 %v5169
        %v5304 = vunpack.c.h.b16 %v5169
        %v5305 = vunpack.c.l.b16 %v5170
        %v5306 = vunpack.c.h.b16 %v5170
        %v5307 = vunpack.c.l.b16 %v5171
        %v5308 = vunpack.c.h.b16 %v5171
        %v5309 = vunpack.c.l.b16 %v5172
        %v5310 = vunpack.c.h.b16 %v5172
        %v5311 = vunpack.c.l.b16 %v5173
        %v5312 = vunpack.c.h.b16 %v5173
        %v5313 = vunpack.c.l.b16 %v5174
        %v5314 = vunpack.c.h.b16 %v5174
        %v5315 = vpack.c.b16 %v5253, %v5251
        %v5316 = vpack.c.b16 %v5254, %v5252
        %v5317 = vpack.c.b16 %v5257, %v5255
        %v5318 = vpack.c.b16 %v5258, %v5256
        %v5319 = vpack.c.b16 %v5261, %v5259
        %v5320 = vpack.c.b16 %v5262, %v5260
        %v5321 = vpack.c.b16 %v5265, %v5263
        %v5322 = vpack.c.b16 %v5266, %v5264
        %v5323 = vpack.c.b16 %v5269, %v5267
        %v5324 = vpack.c.b16 %v5270, %v5268
        %v5325 = vpack.c.b16 %v5273, %v5271
        %v5326 = vpack.c.b16 %v5274, %v5272
        %v5327 = vpack.c.b16 %v5277, %v5275
        %v5328 = vpack.c.b16 %v5278, %v5276
        %v5329 = vpack.c.b16 %v5281, %v5279
        %v5330 = vpack.c.b16 %v5282, %v5280
        %v5331 = vpack.c.b16 %v5285, %v5283
        %v5332 = vpack.c.b16 %v5286, %v5284
        %v5333 = vpack.c.b16 %v5289, %v5287
        %v5334 = vpack.c.b16 %v5290, %v5288
        %v5335 = vpack.c.b16 %v5293, %v5291
        %v5336 = vpack.c.b16 %v5294, %v5292
        %v5337 = vpack.c.b16 %v5297, %v5295
        %v5338 = vpack.c.b16 %v5298, %v5296
        %v5339 = vpack.c.b16 %v5301, %v5299
        %v5340 = vpack.c.b16 %v5302, %v5300
        %v5341 = vpack.c.b16 %v5305, %v5303
        %v5342 = vpack.c.b16 %v5306, %v5304
        %v5343 = vpack.c.b16 %v5309, %v5307
        %v5344 = vpack.c.b16 %v5310, %v5308
        %v5345 = vpack.c.b16 %v5313, %v5311
        %v5346 = vpack.c.b16 %v5314, %v5312
        %5379 = vmatpush.bf16.msra.mxu0 %v5329
        %5380 = vmatpush.bf16.msra.mxu0 %v5327
        %5381 = vmatpush.bf16.msra.mxu0 %v5325
        %5382 = vmatpush.bf16.msra.mxu0 %v5323
        %5383 = vmatpush.bf16.msra.mxu0 %v5321
        %5384 = vmatpush.bf16.msra.mxu0 %v5319
        %5385 = vmatpush.bf16.msra.mxu0 %v5317
        %5386 = vmatpush.bf16.msra.mxu0 %v5315
        %5387 = vmatmul.bf16.gmra.mxu0 %v5189
        %v5388 = vpop.f32.mrf.mxu0
        %v5389 = vadd.f32 0.0, %v5388
        %v5390 = vpop.f32.mrf.mxu0
        %v5391 = vadd.f32 0.0, %v5390
        %5392 = vmatmul.bf16.gmra.mxu0 %v5194
        %v5393 = vpop.f32.mrf.mxu0
        %v5394 = vadd.f32 0.0, %v5393
        %v5395 = vpop.f32.mrf.mxu0
        %v5396 = vadd.f32 0.0, %v5395
        %5397 = vmatmul.bf16.gmra.mxu0 %v5198
        %v5398 = vpop.f32.mrf.mxu0
        %v5399 = vadd.f32 0.0, %v5398
        %v5400 = vpop.f32.mrf.mxu0
        %v5401 = vadd.f32 0.0, %v5400
        %5402 = vmatmul.bf16.gmra.mxu0 %v5202
        %v5403 = vpop.f32.mrf.mxu0
        %v5404 = vadd.f32 0.0, %v5403
        %v5405 = vpop.f32.mrf.mxu0
        %v5406 = vadd.f32 0.0, %v5405
        %5407 = vmatmul.bf16.gmra.mxu0 %v5206
        %v5408 = vpop.f32.mrf.mxu0
        %v5409 = vadd.f32 0.0, %v5408
        %v5410 = vpop.f32.mrf.mxu0
        %v5411 = vadd.f32 0.0, %v5410
        %5412 = vdwg.mxu0
        %5413 = vmatpush.bf16.msra.mxu0 %v5345
        %5414 = vmatpush.bf16.msra.mxu0 %v5343
        %5415 = vmatpush.bf16.msra.mxu0 %v5341
        %5416 = vmatpush.bf16.msra.mxu0 %v5339
        %5417 = vmatpush.bf16.msra.mxu0 %v5337
        %5418 = vmatpush.bf16.msra.mxu0 %v5335
        %5419 = vmatpush.bf16.msra.mxu0 %v5333
        %5420 = vmatpush.bf16.msra.mxu0 %v5331
        %5421 = vmatmul.bf16.gmra.mxu0 %v5192
        %v5422 = vpop.f32.mrf.mxu0
        %v5423 = vadd.f32 %v5389, %v5422
        %v5424 = vpop.f32.mrf.mxu0
        %v5425 = vadd.f32 %v5391, %v5424
        %5426 = vmatmul.bf16.gmra.mxu0 %v5196
        %v5427 = vpop.f32.mrf.mxu0
        %v5428 = vadd.f32 %v5394, %v5427
        %v5429 = vpop.f32.mrf.mxu0
        %v5430 = vadd.f32 %v5396, %v5429
        %5431 = vmatmul.bf16.gmra.mxu0 %v5200
        %v5432 = vpop.f32.mrf.mxu0
        %v5433 = vadd.f32 %v5399, %v5432
        %v5434 = vpop.f32.mrf.mxu0
        %v5435 = vadd.f32 %v5401, %v5434
        %5436 = vmatmul.bf16.gmra.mxu0 %v5204
        %v5437 = vpop.f32.mrf.mxu0
        %v5438 = vadd.f32 %v5404, %v5437
        %v5439 = vpop.f32.mrf.mxu0
        %v5440 = vadd.f32 %v5406, %v5439
        %5441 = vmatmul.bf16.gmra.mxu0 %v5208
        %v5442 = vpop.f32.mrf.mxu0
        %v5443 = vadd.f32 %v5409, %v5442
        %v5444 = vpop.f32.mrf.mxu0
        %v5445 = vadd.f32 %v5411, %v5444
        %5446 = vdwg.mxu0
        %5447 = vmatpush.bf16.msra.mxu0 %v5330
        %5448 = vmatpush.bf16.msra.mxu0 %v5328
        %5449 = vmatpush.bf16.msra.mxu0 %v5326
        %5450 = vmatpush.bf16.msra.mxu0 %v5324
        %5451 = vmatpush.bf16.msra.mxu0 %v5322
        %5452 = vmatpush.bf16.msra.mxu0 %v5320
        %5453 = vmatpush.bf16.msra.mxu0 %v5318
        %5454 = vmatpush.bf16.msra.mxu0 %v5316
        %5455 = vmatmul.bf16.gmra.mxu0 %v5189
        %v5456 = vpop.f32.mrf.mxu0
        %v5457 = vadd.f32 0.0, %v5456
        %v5458 = vpop.f32.mrf.mxu0
        %v5459 = vadd.f32 0.0, %v5458
        %5460 = vmatmul.bf16.gmra.mxu0 %v5194
        %v5461 = vpop.f32.mrf.mxu0
        %v5462 = vadd.f32 0.0, %v5461
        %v5463 = vpop.f32.mrf.mxu0
        %v5464 = vadd.f32 0.0, %v5463
        %5465 = vmatmul.bf16.gmra.mxu0 %v5198
        %v5466 = vpop.f32.mrf.mxu0
        %v5467 = vadd.f32 0.0, %v5466
        %v5468 = vpop.f32.mrf.mxu0
        %v5469 = vadd.f32 0.0, %v5468
        %5470 = vmatmul.bf16.gmra.mxu0 %v5202
        %v5471 = vpop.f32.mrf.mxu0
        %v5472 = vadd.f32 0.0, %v5471
        %v5473 = vpop.f32.mrf.mxu0
        %v5474 = vadd.f32 0.0, %v5473
        %5475 = vmatmul.bf16.gmra.mxu0 %v5206
        %v5476 = vpop.f32.mrf.mxu0
        %v5477 = vadd.f32 0.0, %v5476
        %v5478 = vpop.f32.mrf.mxu0
        %v5479 = vadd.f32 0.0, %v5478
        %5480 = vdwg.mxu0
        %5481 = vmatpush.bf16.msra.mxu0 %v5346
        %5482 = vmatpush.bf16.msra.mxu0 %v5344
        %5483 = vmatpush.bf16.msra.mxu0 %v5342
        %5484 = vmatpush.bf16.msra.mxu0 %v5340
        %5485 = vmatpush.bf16.msra.mxu0 %v5338
        %5486 = vmatpush.bf16.msra.mxu0 %v5336
        %5487 = vmatpush.bf16.msra.mxu0 %v5334
        %5488 = vmatpush.bf16.msra.mxu0 %v5332
        %5489 = vmatmul.bf16.gmra.mxu0 %v5192
        %v5490 = vpop.f32.mrf.mxu0
        %v5491 = vadd.f32 %v5457, %v5490
        %v5492 = vpop.f32.mrf.mxu0
        %v5493 = vadd.f32 %v5459, %v5492
        %5494 = vmatmul.bf16.gmra.mxu0 %v5196
        %v5495 = vpop.f32.mrf.mxu0
        %v5496 = vadd.f32 %v5462, %v5495
        %v5497 = vpop.f32.mrf.mxu0
        %v5498 = vadd.f32 %v5464, %v5497
        %5499 = vmatmul.bf16.gmra.mxu0 %v5200
        %v5500 = vpop.f32.mrf.mxu0
        %v5501 = vadd.f32 %v5467, %v5500
        %v5502 = vpop.f32.mrf.mxu0
        %v5503 = vadd.f32 %v5469, %v5502
        %5504 = vmatmul.bf16.gmra.mxu0 %v5204
        %v5505 = vpop.f32.mrf.mxu0
        %v5506 = vadd.f32 %v5472, %v5505
        %v5507 = vpop.f32.mrf.mxu0
        %v5508 = vadd.f32 %v5474, %v5507
        %5509 = vmatmul.bf16.gmra.mxu0 %v5208
        %v5510 = vpop.f32.mrf.mxu0
        %v5511 = vadd.f32 %v5477, %v5510
        %v5512 = vpop.f32.mrf.mxu0
        %v5513 = vadd.f32 %v5479, %v5512
        %5514 = vdwg.mxu0
        %v5515 = vadd.f32 %v5088, %v5423
        %v5516 = vadd.f32 %v5089, %v5491
        %v5517 = vadd.f32 %v5090, %v5425
        %v5518 = vadd.f32 %v5091, %v5493
        %v5519 = vadd.f32 %v5092, %v5428
        %v5520 = vadd.f32 %v5093, %v5496
        %v5521 = vadd.f32 %v5094, %v5430
        %v5522 = vadd.f32 %v5095, %v5498
        %v5523 = vadd.f32 %v5096, %v5433
        %v5524 = vadd.f32 %v5097, %v5501
        %v5525 = vadd.f32 %v5098, %v5435
        %v5526 = vadd.f32 %v5099, %v5503
        %v5527 = vadd.f32 %v5100, %v5438
        %v5528 = vadd.f32 %v5101, %v5506
        %v5529 = vadd.f32 %v5102, %v5440
        %v5530 = vadd.f32 %v5103, %v5508
        %v5531 = vadd.f32 %v5104, %v5443
        %v5532 = vadd.f32 %v5105, %v5511
        %v5533 = vadd.f32 %v5106, %v5445
        %v5534 = vadd.f32 %v5107, %v5513
        %5535 = vst [vmem:[#allocation3] sm:$0xff] %v5515
        %5536 = vst [vmem:[#allocation3 + $0x8] sm:$0xff] %v5516
        %5537 = vst [vmem:[#allocation3 + $0x10] sm:$0xff] %v5517
        %5538 = vst [vmem:[#allocation3 + $0x18] sm:$0xff] %v5518
        %5539 = vst [vmem:[#allocation3 + $0x20] sm:$0xff] %v5519
        %5540 = vst [vmem:[#allocation3 + $0x28] sm:$0xff] %v5520
        %5541 = vst [vmem:[#allocation3 + $0x30] sm:$0xff] %v5521
        %5542 = vst [vmem:[#allocation3 + $0x38] sm:$0xff] %v5522
        %5543 = vst [vmem:[#allocation3 + $0x40] sm:$0xff] %v5523
        %5544 = vst [vmem:[#allocation3 + $0x48] sm:$0xff] %v5524
        %5545 = vst [vmem:[#allocation3 + $0x50] sm:$0xff] %v5525
        %5546 = vst [vmem:[#allocation3 + $0x58] sm:$0xff] %v5526
        %5547 = vst [vmem:[#allocation3 + $0x60] sm:$0xff] %v5527
        %5548 = vst [vmem:[#allocation3 + $0x68] sm:$0xff] %v5528
        %5549 = vst [vmem:[#allocation3 + $0x70] sm:$0xff] %v5529
        %5550 = vst [vmem:[#allocation3 + $0x78] sm:$0xff] %v5530
        %5551 = vst [vmem:[#allocation3 + $0x80] sm:$0xff] %v5531
        %5552 = vst [vmem:[#allocation3 + $0x88] sm:$0xff] %v5532
        %5553 = vst [vmem:[#allocation3 + $0x90] sm:$0xff] %v5533
        %5554 = vst [vmem:[#allocation3 + $0x98] sm:$0xff] %v5534
        %v5555 = vld [vmem:[#allocation3] sm:$0xff]
        %v5556 = vld [vmem:[#allocation3 + $0x8] sm:$0xff]
        %v5557 = vld [vmem:[#allocation3 + $0x10] sm:$0xff]
        %v5558 = vld [vmem:[#allocation3 + $0x18] sm:$0xff]
        %v5559 = vld [vmem:[#allocation3 + $0x20] sm:$0xff]
        %v5560 = vld [vmem:[#allocation3 + $0x28] sm:$0xff]
        %v5561 = vld [vmem:[#allocation3 + $0x30] sm:$0xff]
        %v5562 = vld [vmem:[#allocation3 + $0x38] sm:$0xff]
        %v5563 = vld [vmem:[#allocation3 + $0x40] sm:$0xff]
        %v5564 = vld [vmem:[#allocation3 + $0x48] sm:$0xff]
        %v5565 = vld [vmem:[#allocation3 + $0x50] sm:$0xff]
        %v5566 = vld [vmem:[#allocation3 + $0x58] sm:$0xff]
        %v5567 = vld [vmem:[#allocation3 + $0x60] sm:$0xff]
        %v5568 = vld [vmem:[#allocation3 + $0x68] sm:$0xff]
        %v5569 = vld [vmem:[#allocation3 + $0x70] sm:$0xff]
        %v5570 = vld [vmem:[#allocation3 + $0x78] sm:$0xff]
        %v5571 = vld [vmem:[#allocation3 + $0x80] sm:$0xff]
        %v5572 = vld [vmem:[#allocation3 + $0x88] sm:$0xff]
        %v5573 = vld [vmem:[#allocation3 + $0x90] sm:$0xff]
        %v5574 = vld [vmem:[#allocation3 + $0x98] sm:$0xff]
        %v5575 = vld [vmem:[#allocation2] sm:$0xf8]
        %v5576 = vld [vmem:[#allocation2 + $0x8] sm:$0xf8]
        %v5577 = vld [vmem:[#allocation2 + $0x10] sm:$0xff]
        %v5578 = vld [vmem:[#allocation2 + $0x18] sm:$0xff]
        %v5579 = vld [vmem:[#allocation2 + $0x20] sm:$0xff]
        %v5580 = vld [vmem:[#allocation2 + $0x28] sm:$0xff]
        %v5581 = vld [vmem:[#allocation2 + $0x30] sm:$0xff]
        %v5582 = vld [vmem:[#allocation2 + $0x38] sm:$0xff]
        %v5583 = vld [vmem:[#allocation2 + $0x40] sm:$0xff]
        %v5584 = vld [vmem:[#allocation2 + $0x48] sm:$0xff]
        %v5585 = vld [vmem:[#allocation2 + $0x50] sm:$0xff]
        %v5586 = vld [vmem:[#allocation2 + $0x58] sm:$0xff]
        %v5587 = vld [vmem:[#allocation2 + $0x60] sm:$0xff]
        %v5588 = vld [vmem:[#allocation2 + $0x68] sm:$0xff]
        %v5589 = vld [vmem:[#allocation2 + $0x70] sm:$0xff]
        %v5590 = vld [vmem:[#allocation2 + $0x78] sm:$0xff]
        %v5591 = vld [vmem:[#allocation2 + $0x80] sm:$0xff]
        %v5592 = vld [vmem:[#allocation2 + $0x88] sm:$0xff]
        %v5593 = vld [vmem:[#allocation2 + $0x90] sm:$0xff]
        %v5594 = vld [vmem:[#allocation2 + $0x98] sm:$0xff]
        %v5595 = vld [vmem:[#allocation2 + $0xa0] sm:$0x7]
        %v5596 = vld [vmem:[#allocation2 + $0xa8] sm:$0x7]
        %v5597 = vpack.c.bf16 %v5577, %v5575
        %v5598 = vpack.c.bf16 %v5578, %v5576
        %v5599 = vpack.c.bf16 %v5581, %v5579
        %v5600 = vpack.c.bf16 %v5582, %v5580
        %v5601 = vpack.c.bf16 %v5585, %v5583
        %v5602 = vpack.c.bf16 %v5586, %v5584
        %v5603 = vpack.c.bf16 %v5589, %v5587
        %v5604 = vpack.c.bf16 %v5590, %v5588
        %v5605 = vpack.c.bf16 %v5593, %v5591
        %v5606 = vpack.c.bf16 %v5594, %v5592
        %v5607 = vpack.c.bf16 %v5595, %v5595
        %v5608 = vpack.c.bf16 %v5596, %v5596
        %s5609 = scalar_lea.vmem [#allocation5], 768
        %v5610 = vld [vmem:[%s5609] sm:$0xff]
        %v5611 = vld [vmem:[%s5609 + $0x8] sm:$0xff]
        %v5612 = vld [vmem:[%s5609 + $0x10] sm:$0xff]
        %v5613 = vld [vmem:[%s5609 + $0x18] sm:$0xff]
        %v5614 = vld [vmem:[%s5609 + $0x20] sm:$0xff]
        %v5615 = vld [vmem:[%s5609 + $0x28] sm:$0xff]
        %v5616 = vld [vmem:[%s5609 + $0x30] sm:$0xff]
        %v5617 = vld [vmem:[%s5609 + $0x38] sm:$0xff]
        %v5618 = vld [vmem:[%s5609 + $0x40] sm:$0xff]
        %v5619 = vld [vmem:[%s5609 + $0x48] sm:$0xff]
        %v5620 = vld [vmem:[%s5609 + $0x50] sm:$0xff]
        %v5621 = vld [vmem:[%s5609 + $0x58] sm:$0xff]
        %v5622 = vld [vmem:[%s5609 + $0x60] sm:$0xff]
        %v5623 = vld [vmem:[%s5609 + $0x68] sm:$0xff]
        %v5624 = vld [vmem:[%s5609 + $0x70] sm:$0xff]
        %v5625 = vld [vmem:[%s5609 + $0x78] sm:$0xff]
        %v5626 = vld [vmem:[%s5609 + $0x80] sm:$0xff]
        %v5627 = vld [vmem:[%s5609 + $0x88] sm:$0xff]
        %v5628 = vld [vmem:[%s5609 + $0x90] sm:$0xff]
        %v5629 = vld [vmem:[%s5609 + $0x98] sm:$0xff]
        %v5630 = vld [vmem:[%s5609 + $0xa0] sm:$0xff]
        %v5631 = vld [vmem:[%s5609 + $0xa8] sm:$0xff]
        %v5632 = vld [vmem:[%s5609 + $0xb0] sm:$0xff]
        %v5633 = vld [vmem:[%s5609 + $0xb8] sm:$0xff]
        %v5634 = vld [vmem:[%s5609 + $0xc0] sm:$0xff]
        %v5635 = vld [vmem:[%s5609 + $0xc8] sm:$0xff]
        %v5636 = vld [vmem:[%s5609 + $0xd0] sm:$0xff]
        %v5637 = vld [vmem:[%s5609 + $0xd8] sm:$0xff]
        %v5638 = vld [vmem:[%s5609 + $0xe0] sm:$0xff]
        %v5639 = vld [vmem:[%s5609 + $0xe8] sm:$0xff]
        %v5640 = vld [vmem:[%s5609 + $0xf0] sm:$0xff]
        %v5641 = vld [vmem:[%s5609 + $0xf8] sm:$0xff]
        %v5643 = vshrl.u32 %v5597, 16
        %v5645 = vrot.slane %v5643, 1
        %v5646 = vshll.u32 %v5597, 16
        %v5648 = vrot.slane %v5646, 2
        %v5649 = vor.u32 %v5645, %v5648
        %v5651 = vshrl.u32 %v5599, 16
        %v5653 = vrot.slane %v5651, 1
        %v5654 = vshll.u32 %v5599, 16
        %v5656 = vrot.slane %v5654, 2
        %v5657 = vor.u32 %v5653, %v5656
        %v5658 = vsel %vm2039, %v5649, %v5657
        %v5660 = vshrl.u32 %v5598, 16
        %v5662 = vrot.slane %v5660, 1
        %v5663 = vshll.u32 %v5598, 16
        %v5665 = vrot.slane %v5663, 2
        %v5666 = vor.u32 %v5662, %v5665
        %v5668 = vshrl.u32 %v5600, 16
        %v5670 = vrot.slane %v5668, 1
        %v5671 = vshll.u32 %v5600, 16
        %v5673 = vrot.slane %v5671, 2
        %v5674 = vor.u32 %v5670, %v5673
        %v5675 = vsel %vm2039, %v5666, %v5674
        %v5677 = vshrl.u32 %v5601, 16
        %v5679 = vrot.slane %v5677, 1
        %v5680 = vshll.u32 %v5601, 16
        %v5682 = vrot.slane %v5680, 2
        %v5683 = vor.u32 %v5679, %v5682
        %v5684 = vsel %vm2039, %v5657, %v5683
        %v5686 = vshrl.u32 %v5602, 16
        %v5688 = vrot.slane %v5686, 1
        %v5689 = vshll.u32 %v5602, 16
        %v5691 = vrot.slane %v5689, 2
        %v5692 = vor.u32 %v5688, %v5691
        %v5693 = vsel %vm2039, %v5674, %v5692
        %v5695 = vshrl.u32 %v5603, 16
        %v5697 = vrot.slane %v5695, 1
        %v5698 = vshll.u32 %v5603, 16
        %v5700 = vrot.slane %v5698, 2
        %v5701 = vor.u32 %v5697, %v5700
        %v5702 = vsel %vm2039, %v5683, %v5701
        %v5704 = vshrl.u32 %v5604, 16
        %v5706 = vrot.slane %v5704, 1
        %v5707 = vshll.u32 %v5604, 16
        %v5709 = vrot.slane %v5707, 2
        %v5710 = vor.u32 %v5706, %v5709
        %v5711 = vsel %vm2039, %v5692, %v5710
        %v5713 = vshrl.u32 %v5605, 16
        %v5715 = vrot.slane %v5713, 1
        %v5716 = vshll.u32 %v5605, 16
        %v5718 = vrot.slane %v5716, 2
        %v5719 = vor.u32 %v5715, %v5718
        %v5720 = vsel %vm2039, %v5701, %v5719
        %v5722 = vshrl.u32 %v5606, 16
        %v5724 = vrot.slane %v5722, 1
        %v5725 = vshll.u32 %v5606, 16
        %v5727 = vrot.slane %v5725, 2
        %v5728 = vor.u32 %v5724, %v5727
        %v5729 = vsel %vm2039, %v5710, %v5728
        %v5731 = vshrl.u32 %v5607, 16
        %v5733 = vrot.slane %v5731, 1
        %v5734 = vshll.u32 %v5607, 16
        %v5736 = vrot.slane %v5734, 2
        %v5737 = vor.u32 %v5733, %v5736
        %v5738 = vsel %vm2039, %v5719, %v5737
        %v5740 = vshrl.u32 %v5608, 16
        %v5742 = vrot.slane %v5740, 1
        %v5743 = vshll.u32 %v5608, 16
        %v5745 = vrot.slane %v5743, 2
        %v5746 = vor.u32 %v5742, %v5745
        %v5747 = vsel %vm2039, %v5728, %v5746
        %v5790 = vunpack.c.l.b16 %v5610
        %v5791 = vunpack.c.h.b16 %v5610
        %v5792 = vunpack.c.l.b16 %v5611
        %v5793 = vunpack.c.h.b16 %v5611
        %v5794 = vunpack.c.l.b16 %v5612
        %v5795 = vunpack.c.h.b16 %v5612
        %v5796 = vunpack.c.l.b16 %v5613
        %v5797 = vunpack.c.h.b16 %v5613
        %v5798 = vunpack.c.l.b16 %v5614
        %v5799 = vunpack.c.h.b16 %v5614
        %v5800 = vunpack.c.l.b16 %v5615
        %v5801 = vunpack.c.h.b16 %v5615
        %v5802 = vunpack.c.l.b16 %v5616
        %v5803 = vunpack.c.h.b16 %v5616
        %v5804 = vunpack.c.l.b16 %v5617
        %v5805 = vunpack.c.h.b16 %v5617
        %v5806 = vunpack.c.l.b16 %v5618
        %v5807 = vunpack.c.h.b16 %v5618
        %v5808 = vunpack.c.l.b16 %v5619
        %v5809 = vunpack.c.h.b16 %v5619
        %v5810 = vunpack.c.l.b16 %v5620
        %v5811 = vunpack.c.h.b16 %v5620
        %v5812 = vunpack.c.l.b16 %v5621
        %v5813 = vunpack.c.h.b16 %v5621
        %v5814 = vunpack.c.l.b16 %v5622
        %v5815 = vunpack.c.h.b16 %v5622
        %v5816 = vunpack.c.l.b16 %v5623
        %v5817 = vunpack.c.h.b16 %v5623
        %v5818 = vunpack.c.l.b16 %v5624
        %v5819 = vunpack.c.h.b16 %v5624
        %v5820 = vunpack.c.l.b16 %v5625
        %v5821 = vunpack.c.h.b16 %v5625
        %v5822 = vunpack.c.l.b16 %v5626
        %v5823 = vunpack.c.h.b16 %v5626
        %v5824 = vunpack.c.l.b16 %v5627
        %v5825 = vunpack.c.h.b16 %v5627
        %v5826 = vunpack.c.l.b16 %v5628
        %v5827 = vunpack.c.h.b16 %v5628
        %v5828 = vunpack.c.l.b16 %v5629
        %v5829 = vunpack.c.h.b16 %v5629
        %v5830 = vunpack.c.l.b16 %v5630
        %v5831 = vunpack.c.h.b16 %v5630
        %v5832 = vunpack.c.l.b16 %v5631
        %v5833 = vunpack.c.h.b16 %v5631
        %v5834 = vunpack.c.l.b16 %v5632
        %v5835 = vunpack.c.h.b16 %v5632
        %v5836 = vunpack.c.l.b16 %v5633
        %v5837 = vunpack.c.h.b16 %v5633
        %v5838 = vunpack.c.l.b16 %v5634
        %v5839 = vunpack.c.h.b16 %v5634
        %v5840 = vunpack.c.l.b16 %v5635
        %v5841 = vunpack.c.h.b16 %v5635
        %v5842 = vunpack.c.l.b16 %v5636
        %v5843 = vunpack.c.h.b16 %v5636
        %v5844 = vunpack.c.l.b16 %v5637
        %v5845 = vunpack.c.h.b16 %v5637
        %v5846 = vunpack.c.l.b16 %v5638
        %v5847 = vunpack.c.h.b16 %v5638
        %v5848 = vunpack.c.l.b16 %v5639
        %v5849 = vunpack.c.h.b16 %v5639
        %v5850 = vunpack.c.l.b16 %v5640
        %v5851 = vunpack.c.h.b16 %v5640
        %v5852 = vunpack.c.l.b16 %v5641
        %v5853 = vunpack.c.h.b16 %v5641
        %v5854 = vpack.c.b16 %v5792, %v5790
        %v5855 = vpack.c.b16 %v5793, %v5791
        %v5856 = vpack.c.b16 %v5796, %v5794
        %v5857 = vpack.c.b16 %v5797, %v5795
        %v5858 = vpack.c.b16 %v5800, %v5798
        %v5859 = vpack.c.b16 %v5801, %v5799
        %v5860 = vpack.c.b16 %v5804, %v5802
        %v5861 = vpack.c.b16 %v5805, %v5803
        %v5862 = vpack.c.b16 %v5808, %v5806
        %v5863 = vpack.c.b16 %v5809, %v5807
        %v5864 = vpack.c.b16 %v5812, %v5810
        %v5865 = vpack.c.b16 %v5813, %v5811
        %v5866 = vpack.c.b16 %v5816, %v5814
        %v5867 = vpack.c.b16 %v5817, %v5815
        %v5868 = vpack.c.b16 %v5820, %v5818
        %v5869 = vpack.c.b16 %v5821, %v5819
        %v5870 = vpack.c.b16 %v5824, %v5822
        %v5871 = vpack.c.b16 %v5825, %v5823
        %v5872 = vpack.c.b16 %v5828, %v5826
        %v5873 = vpack.c.b16 %v5829, %v5827
        %v5874 = vpack.c.b16 %v5832, %v5830
        %v5875 = vpack.c.b16 %v5833, %v5831
        %v5876 = vpack.c.b16 %v5836, %v5834
        %v5877 = vpack.c.b16 %v5837, %v5835
        %v5878 = vpack.c.b16 %v5840, %v5838
        %v5879 = vpack.c.b16 %v5841, %v5839
        %v5880 = vpack.c.b16 %v5844, %v5842
        %v5881 = vpack.c.b16 %v5845, %v5843
        %v5882 = vpack.c.b16 %v5848, %v5846
        %v5883 = vpack.c.b16 %v5849, %v5847
        %v5884 = vpack.c.b16 %v5852, %v5850
        %v5885 = vpack.c.b16 %v5853, %v5851
        %5918 = vmatpush.bf16.msra.mxu0 %v5868
        %5919 = vmatpush.bf16.msra.mxu0 %v5866
        %5920 = vmatpush.bf16.msra.mxu0 %v5864
        %5921 = vmatpush.bf16.msra.mxu0 %v5862
        %5922 = vmatpush.bf16.msra.mxu0 %v5860
        %5923 = vmatpush.bf16.msra.mxu0 %v5858
        %5924 = vmatpush.bf16.msra.mxu0 %v5856
        %5925 = vmatpush.bf16.msra.mxu0 %v5854
        %5926 = vmatmul.bf16.gmra.mxu0 %v5658
        %v5927 = vpop.f32.mrf.mxu0
        %v5928 = vadd.f32 0.0, %v5927
        %v5929 = vpop.f32.mrf.mxu0
        %v5930 = vadd.f32 0.0, %v5929
        %5931 = vmatmul.bf16.gmra.mxu0 %v5684
        %v5932 = vpop.f32.mrf.mxu0
        %v5933 = vadd.f32 0.0, %v5932
        %v5934 = vpop.f32.mrf.mxu0
        %v5935 = vadd.f32 0.0, %v5934
        %5936 = vmatmul.bf16.gmra.mxu0 %v5702
        %v5937 = vpop.f32.mrf.mxu0
        %v5938 = vadd.f32 0.0, %v5937
        %v5939 = vpop.f32.mrf.mxu0
        %v5940 = vadd.f32 0.0, %v5939
        %5941 = vmatmul.bf16.gmra.mxu0 %v5720
        %v5942 = vpop.f32.mrf.mxu0
        %v5943 = vadd.f32 0.0, %v5942
        %v5944 = vpop.f32.mrf.mxu0
        %v5945 = vadd.f32 0.0, %v5944
        %5946 = vmatmul.bf16.gmra.mxu0 %v5738
        %v5947 = vpop.f32.mrf.mxu0
        %v5948 = vadd.f32 0.0, %v5947
        %v5949 = vpop.f32.mrf.mxu0
        %v5950 = vadd.f32 0.0, %v5949
        %5951 = vdwg.mxu0
        %5952 = vmatpush.bf16.msra.mxu0 %v5884
        %5953 = vmatpush.bf16.msra.mxu0 %v5882
        %5954 = vmatpush.bf16.msra.mxu0 %v5880
        %5955 = vmatpush.bf16.msra.mxu0 %v5878
        %5956 = vmatpush.bf16.msra.mxu0 %v5876
        %5957 = vmatpush.bf16.msra.mxu0 %v5874
        %5958 = vmatpush.bf16.msra.mxu0 %v5872
        %5959 = vmatpush.bf16.msra.mxu0 %v5870
        %5960 = vmatmul.bf16.gmra.mxu0 %v5675
        %v5961 = vpop.f32.mrf.mxu0
        %v5962 = vadd.f32 %v5928, %v5961
        %v5963 = vpop.f32.mrf.mxu0
        %v5964 = vadd.f32 %v5930, %v5963
        %5965 = vmatmul.bf16.gmra.mxu0 %v5693
        %v5966 = vpop.f32.mrf.mxu0
        %v5967 = vadd.f32 %v5933, %v5966
        %v5968 = vpop.f32.mrf.mxu0
        %v5969 = vadd.f32 %v5935, %v5968
        %5970 = vmatmul.bf16.gmra.mxu0 %v5711
        %v5971 = vpop.f32.mrf.mxu0
        %v5972 = vadd.f32 %v5938, %v5971
        %v5973 = vpop.f32.mrf.mxu0
        %v5974 = vadd.f32 %v5940, %v5973
        %5975 = vmatmul.bf16.gmra.mxu0 %v5729
        %v5976 = vpop.f32.mrf.mxu0
        %v5977 = vadd.f32 %v5943, %v5976
        %v5978 = vpop.f32.mrf.mxu0
        %v5979 = vadd.f32 %v5945, %v5978
        %5980 = vmatmul.bf16.gmra.mxu0 %v5747
        %v5981 = vpop.f32.mrf.mxu0
        %v5982 = vadd.f32 %v5948, %v5981
        %v5983 = vpop.f32.mrf.mxu0
        %v5984 = vadd.f32 %v5950, %v5983
        %5985 = vdwg.mxu0
        %5986 = vmatpush.bf16.msra.mxu0 %v5869
        %5987 = vmatpush.bf16.msra.mxu0 %v5867
        %5988 = vmatpush.bf16.msra.mxu0 %v5865
        %5989 = vmatpush.bf16.msra.mxu0 %v5863
        %5990 = vmatpush.bf16.msra.mxu0 %v5861
        %5991 = vmatpush.bf16.msra.mxu0 %v5859
        %5992 = vmatpush.bf16.msra.mxu0 %v5857
        %5993 = vmatpush.bf16.msra.mxu0 %v5855
        %5994 = vmatmul.bf16.gmra.mxu0 %v5658
        %v5995 = vpop.f32.mrf.mxu0
        %v5996 = vadd.f32 0.0, %v5995
        %v5997 = vpop.f32.mrf.mxu0
        %v5998 = vadd.f32 0.0, %v5997
        %5999 = vmatmul.bf16.gmra.mxu0 %v5684
        %v6000 = vpop.f32.mrf.mxu0
        %v6001 = vadd.f32 0.0, %v6000
        %v6002 = vpop.f32.mrf.mxu0
        %v6003 = vadd.f32 0.0, %v6002
        %6004 = vmatmul.bf16.gmra.mxu0 %v5702
        %v6005 = vpop.f32.mrf.mxu0
        %v6006 = vadd.f32 0.0, %v6005
        %v6007 = vpop.f32.mrf.mxu0
        %v6008 = vadd.f32 0.0, %v6007
        %6009 = vmatmul.bf16.gmra.mxu0 %v5720
        %v6010 = vpop.f32.mrf.mxu0
        %v6011 = vadd.f32 0.0, %v6010
        %v6012 = vpop.f32.mrf.mxu0
        %v6013 = vadd.f32 0.0, %v6012
        %6014 = vmatmul.bf16.gmra.mxu0 %v5738
        %v6015 = vpop.f32.mrf.mxu0
        %v6016 = vadd.f32 0.0, %v6015
        %v6017 = vpop.f32.mrf.mxu0
        %v6018 = vadd.f32 0.0, %v6017
        %6019 = vdwg.mxu0
        %6020 = vmatpush.bf16.msra.mxu0 %v5885
        %6021 = vmatpush.bf16.msra.mxu0 %v5883
        %6022 = vmatpush.bf16.msra.mxu0 %v5881
        %6023 = vmatpush.bf16.msra.mxu0 %v5879
        %6024 = vmatpush.bf16.msra.mxu0 %v5877
        %6025 = vmatpush.bf16.msra.mxu0 %v5875
        %6026 = vmatpush.bf16.msra.mxu0 %v5873
        %6027 = vmatpush.bf16.msra.mxu0 %v5871
        %6028 = vmatmul.bf16.gmra.mxu0 %v5675
        %v6029 = vpop.f32.mrf.mxu0
        %v6030 = vadd.f32 %v5996, %v6029
        %v6031 = vpop.f32.mrf.mxu0
        %v6032 = vadd.f32 %v5998, %v6031
        %6033 = vmatmul.bf16.gmra.mxu0 %v5693
        %v6034 = vpop.f32.mrf.mxu0
        %v6035 = vadd.f32 %v6001, %v6034
        %v6036 = vpop.f32.mrf.mxu0
        %v6037 = vadd.f32 %v6003, %v6036
        %6038 = vmatmul.bf16.gmra.mxu0 %v5711
        %v6039 = vpop.f32.mrf.mxu0
        %v6040 = vadd.f32 %v6006, %v6039
        %v6041 = vpop.f32.mrf.mxu0
        %v6042 = vadd.f32 %v6008, %v6041
        %6043 = vmatmul.bf16.gmra.mxu0 %v5729
        %v6044 = vpop.f32.mrf.mxu0
        %v6045 = vadd.f32 %v6011, %v6044
        %v6046 = vpop.f32.mrf.mxu0
        %v6047 = vadd.f32 %v6013, %v6046
        %6048 = vmatmul.bf16.gmra.mxu0 %v5747
        %v6049 = vpop.f32.mrf.mxu0
        %v6050 = vadd.f32 %v6016, %v6049
        %v6051 = vpop.f32.mrf.mxu0
        %v6052 = vadd.f32 %v6018, %v6051
        %6053 = vdwg.mxu0
        %v6054 = vadd.f32 %v5555, %v5962
        %v6055 = vadd.f32 %v5556, %v6030
        %v6056 = vadd.f32 %v5557, %v5964
        %v6057 = vadd.f32 %v5558, %v6032
        %v6058 = vadd.f32 %v5559, %v5967
        %v6059 = vadd.f32 %v5560, %v6035
        %v6060 = vadd.f32 %v5561, %v5969
        %v6061 = vadd.f32 %v5562, %v6037
        %v6062 = vadd.f32 %v5563, %v5972
        %v6063 = vadd.f32 %v5564, %v6040
        %v6064 = vadd.f32 %v5565, %v5974
        %v6065 = vadd.f32 %v5566, %v6042
        %v6066 = vadd.f32 %v5567, %v5977
        %v6067 = vadd.f32 %v5568, %v6045
        %v6068 = vadd.f32 %v5569, %v5979
        %v6069 = vadd.f32 %v5570, %v6047
        %v6070 = vadd.f32 %v5571, %v5982
        %v6071 = vadd.f32 %v5572, %v6050
        %v6072 = vadd.f32 %v5573, %v5984
        %v6073 = vadd.f32 %v5574, %v6052
        %6074 = vst [vmem:[#allocation3] sm:$0xff] %v6054
        %6075 = vst [vmem:[#allocation3 + $0x8] sm:$0xff] %v6055
        %6076 = vst [vmem:[#allocation3 + $0x10] sm:$0xff] %v6056
        %6077 = vst [vmem:[#allocation3 + $0x18] sm:$0xff] %v6057
        %6078 = vst [vmem:[#allocation3 + $0x20] sm:$0xff] %v6058
        %6079 = vst [vmem:[#allocation3 + $0x28] sm:$0xff] %v6059
        %6080 = vst [vmem:[#allocation3 + $0x30] sm:$0xff] %v6060
        %6081 = vst [vmem:[#allocation3 + $0x38] sm:$0xff] %v6061
        %6082 = vst [vmem:[#allocation3 + $0x40] sm:$0xff] %v6062
        %6083 = vst [vmem:[#allocation3 + $0x48] sm:$0xff] %v6063
        %6084 = vst [vmem:[#allocation3 + $0x50] sm:$0xff] %v6064
        %6085 = vst [vmem:[#allocation3 + $0x58] sm:$0xff] %v6065
        %6086 = vst [vmem:[#allocation3 + $0x60] sm:$0xff] %v6066
        %6087 = vst [vmem:[#allocation3 + $0x68] sm:$0xff] %v6067
        %6088 = vst [vmem:[#allocation3 + $0x70] sm:$0xff] %v6068
        %6089 = vst [vmem:[#allocation3 + $0x78] sm:$0xff] %v6069
        %6090 = vst [vmem:[#allocation3 + $0x80] sm:$0xff] %v6070
        %6091 = vst [vmem:[#allocation3 + $0x88] sm:$0xff] %v6071
        %6092 = vst [vmem:[#allocation3 + $0x90] sm:$0xff] %v6072
        %6093 = vst [vmem:[#allocation3 + $0x98] sm:$0xff] %v6073
        %v6094 = vld [vmem:[#allocation3] sm:$0xff]
        %v6095 = vld [vmem:[#allocation3 + $0x8] sm:$0xff]
        %v6096 = vld [vmem:[#allocation3 + $0x10] sm:$0xff]
        %v6097 = vld [vmem:[#allocation3 + $0x18] sm:$0xff]
        %v6098 = vld [vmem:[#allocation3 + $0x20] sm:$0xff]
        %v6099 = vld [vmem:[#allocation3 + $0x28] sm:$0xff]
        %v6100 = vld [vmem:[#allocation3 + $0x30] sm:$0xff]
        %v6101 = vld [vmem:[#allocation3 + $0x38] sm:$0xff]
        %v6102 = vld [vmem:[#allocation3 + $0x40] sm:$0xff]
        %v6103 = vld [vmem:[#allocation3 + $0x48] sm:$0xff]
        %v6104 = vld [vmem:[#allocation3 + $0x50] sm:$0xff]
        %v6105 = vld [vmem:[#allocation3 + $0x58] sm:$0xff]
        %v6106 = vld [vmem:[#allocation3 + $0x60] sm:$0xff]
        %v6107 = vld [vmem:[#allocation3 + $0x68] sm:$0xff]
        %v6108 = vld [vmem:[#allocation3 + $0x70] sm:$0xff]
        %v6109 = vld [vmem:[#allocation3 + $0x78] sm:$0xff]
        %v6110 = vld [vmem:[#allocation3 + $0x80] sm:$0xff]
        %v6111 = vld [vmem:[#allocation3 + $0x88] sm:$0xff]
        %v6112 = vld [vmem:[#allocation3 + $0x90] sm:$0xff]
        %v6113 = vld [vmem:[#allocation3 + $0x98] sm:$0xff]
        %v6114 = vld [vmem:[#allocation2] sm:$0xf0]
        %v6115 = vld [vmem:[#allocation2 + $0x8] sm:$0xf0]
        %v6116 = vld [vmem:[#allocation2 + $0x10] sm:$0xff]
        %v6117 = vld [vmem:[#allocation2 + $0x18] sm:$0xff]
        %v6118 = vld [vmem:[#allocation2 + $0x20] sm:$0xff]
        %v6119 = vld [vmem:[#allocation2 + $0x28] sm:$0xff]
        %v6120 = vld [vmem:[#allocation2 + $0x30] sm:$0xff]
        %v6121 = vld [vmem:[#allocation2 + $0x38] sm:$0xff]
        %v6122 = vld [vmem:[#allocation2 + $0x40] sm:$0xff]
        %v6123 = vld [vmem:[#allocation2 + $0x48] sm:$0xff]
        %v6124 = vld [vmem:[#allocation2 + $0x50] sm:$0xff]
        %v6125 = vld [vmem:[#allocation2 + $0x58] sm:$0xff]
        %v6126 = vld [vmem:[#allocation2 + $0x60] sm:$0xff]
        %v6127 = vld [vmem:[#allocation2 + $0x68] sm:$0xff]
        %v6128 = vld [vmem:[#allocation2 + $0x70] sm:$0xff]
        %v6129 = vld [vmem:[#allocation2 + $0x78] sm:$0xff]
        %v6130 = vld [vmem:[#allocation2 + $0x80] sm:$0xff]
        %v6131 = vld [vmem:[#allocation2 + $0x88] sm:$0xff]
        %v6132 = vld [vmem:[#allocation2 + $0x90] sm:$0xff]
        %v6133 = vld [vmem:[#allocation2 + $0x98] sm:$0xff]
        %v6134 = vld [vmem:[#allocation2 + $0xa0] sm:$0xf]
        %v6135 = vld [vmem:[#allocation2 + $0xa8] sm:$0xf]
        %v6136 = vpack.c.bf16 %v6116, %v6114
        %v6137 = vpack.c.bf16 %v6117, %v6115
        %v6138 = vpack.c.bf16 %v6120, %v6118
        %v6139 = vpack.c.bf16 %v6121, %v6119
        %v6140 = vpack.c.bf16 %v6124, %v6122
        %v6141 = vpack.c.bf16 %v6125, %v6123
        %v6142 = vpack.c.bf16 %v6128, %v6126
        %v6143 = vpack.c.bf16 %v6129, %v6127
        %v6144 = vpack.c.bf16 %v6132, %v6130
        %v6145 = vpack.c.bf16 %v6133, %v6131
        %v6146 = vpack.c.bf16 %v6134, %v6134
        %v6147 = vpack.c.bf16 %v6135, %v6135
        %s6148 = scalar_lea.vmem [#allocation5], 1024
        %v6149 = vld [vmem:[%s6148] sm:$0xff]
        %v6150 = vld [vmem:[%s6148 + $0x8] sm:$0xff]
        %v6151 = vld [vmem:[%s6148 + $0x10] sm:$0xff]
        %v6152 = vld [vmem:[%s6148 + $0x18] sm:$0xff]
        %v6153 = vld [vmem:[%s6148 + $0x20] sm:$0xff]
        %v6154 = vld [vmem:[%s6148 + $0x28] sm:$0xff]
        %v6155 = vld [vmem:[%s6148 + $0x30] sm:$0xff]
        %v6156 = vld [vmem:[%s6148 + $0x38] sm:$0xff]
        %v6157 = vld [vmem:[%s6148 + $0x40] sm:$0xff]
        %v6158 = vld [vmem:[%s6148 + $0x48] sm:$0xff]
        %v6159 = vld [vmem:[%s6148 + $0x50] sm:$0xff]
        %v6160 = vld [vmem:[%s6148 + $0x58] sm:$0xff]
        %v6161 = vld [vmem:[%s6148 + $0x60] sm:$0xff]
        %v6162 = vld [vmem:[%s6148 + $0x68] sm:$0xff]
        %v6163 = vld [vmem:[%s6148 + $0x70] sm:$0xff]
        %v6164 = vld [vmem:[%s6148 + $0x78] sm:$0xff]
        %v6165 = vld [vmem:[%s6148 + $0x80] sm:$0xff]
        %v6166 = vld [vmem:[%s6148 + $0x88] sm:$0xff]
        %v6167 = vld [vmem:[%s6148 + $0x90] sm:$0xff]
        %v6168 = vld [vmem:[%s6148 + $0x98] sm:$0xff]
        %v6169 = vld [vmem:[%s6148 + $0xa0] sm:$0xff]
        %v6170 = vld [vmem:[%s6148 + $0xa8] sm:$0xff]
        %v6171 = vld [vmem:[%s6148 + $0xb0] sm:$0xff]
        %v6172 = vld [vmem:[%s6148 + $0xb8] sm:$0xff]
        %v6173 = vld [vmem:[%s6148 + $0xc0] sm:$0xff]
        %v6174 = vld [vmem:[%s6148 + $0xc8] sm:$0xff]
        %v6175 = vld [vmem:[%s6148 + $0xd0] sm:$0xff]
        %v6176 = vld [vmem:[%s6148 + $0xd8] sm:$0xff]
        %v6177 = vld [vmem:[%s6148 + $0xe0] sm:$0xff]
        %v6178 = vld [vmem:[%s6148 + $0xe8] sm:$0xff]
        %v6179 = vld [vmem:[%s6148 + $0xf0] sm:$0xff]
        %v6180 = vld [vmem:[%s6148 + $0xf8] sm:$0xff]
        %v6193 = vrot.slane %v6136, 2
        %v6194 = vrot.slane %v6138, 2
        %v6195 = vsel %vm2591, %v6193, %v6194
        %v6196 = vrot.slane %v6137, 2
        %v6197 = vrot.slane %v6139, 2
        %v6198 = vsel %vm2591, %v6196, %v6197
        %v6199 = vrot.slane %v6140, 2
        %v6200 = vsel %vm2591, %v6194, %v6199
        %v6201 = vrot.slane %v6141, 2
        %v6202 = vsel %vm2591, %v6197, %v6201
        %v6203 = vrot.slane %v6142, 2
        %v6204 = vsel %vm2591, %v6199, %v6203
        %v6205 = vrot.slane %v6143, 2
        %v6206 = vsel %vm2591, %v6201, %v6205
        %v6207 = vrot.slane %v6144, 2
        %v6208 = vsel %vm2591, %v6203, %v6207
        %v6209 = vrot.slane %v6145, 2
        %v6210 = vsel %vm2591, %v6205, %v6209
        %v6211 = vrot.slane %v6146, 2
        %v6212 = vsel %vm2591, %v6207, %v6211
        %v6213 = vrot.slane %v6147, 2
        %v6214 = vsel %vm2591, %v6209, %v6213
        %v6257 = vunpack.c.l.b16 %v6149
        %v6258 = vunpack.c.h.b16 %v6149
        %v6259 = vunpack.c.l.b16 %v6150
        %v6260 = vunpack.c.h.b16 %v6150
        %v6261 = vunpack.c.l.b16 %v6151
        %v6262 = vunpack.c.h.b16 %v6151
        %v6263 = vunpack.c.l.b16 %v6152
        %v6264 = vunpack.c.h.b16 %v6152
        %v6265 = vunpack.c.l.b16 %v6153
        %v6266 = vunpack.c.h.b16 %v6153
        %v6267 = vunpack.c.l.b16 %v6154
        %v6268 = vunpack.c.h.b16 %v6154
        %v6269 = vunpack.c.l.b16 %v6155
        %v6270 = vunpack.c.h.b16 %v6155
        %v6271 = vunpack.c.l.b16 %v6156
        %v6272 = vunpack.c.h.b16 %v6156
        %v6273 = vunpack.c.l.b16 %v6157
        %v6274 = vunpack.c.h.b16 %v6157
        %v6275 = vunpack.c.l.b16 %v6158
        %v6276 = vunpack.c.h.b16 %v6158
        %v6277 = vunpack.c.l.b16 %v6159
        %v6278 = vunpack.c.h.b16 %v6159
        %v6279 = vunpack.c.l.b16 %v6160
        %v6280 = vunpack.c.h.b16 %v6160
        %v6281 = vunpack.c.l.b16 %v6161
        %v6282 = vunpack.c.h.b16 %v6161
        %v6283 = vunpack.c.l.b16 %v6162
        %v6284 = vunpack.c.h.b16 %v6162
        %v6285 = vunpack.c.l.b16 %v6163
        %v6286 = vunpack.c.h.b16 %v6163
        %v6287 = vunpack.c.l.b16 %v6164
        %v6288 = vunpack.c.h.b16 %v6164
        %v6289 = vunpack.c.l.b16 %v6165
        %v6290 = vunpack.c.h.b16 %v6165
        %v6291 = vunpack.c.l.b16 %v6166
        %v6292 = vunpack.c.h.b16 %v6166
        %v6293 = vunpack.c.l.b16 %v6167
        %v6294 = vunpack.c.h.b16 %v6167
        %v6295 = vunpack.c.l.b16 %v6168
        %v6296 = vunpack.c.h.b16 %v6168
        %v6297 = vunpack.c.l.b16 %v6169
        %v6298 = vunpack.c.h.b16 %v6169
        %v6299 = vunpack.c.l.b16 %v6170
        %v6300 = vunpack.c.h.b16 %v6170
        %v6301 = vunpack.c.l.b16 %v6171
        %v6302 = vunpack.c.h.b16 %v6171
        %v6303 = vunpack.c.l.b16 %v6172
        %v6304 = vunpack.c.h.b16 %v6172
        %v6305 = vunpack.c.l.b16 %v6173
        %v6306 = vunpack.c.h.b16 %v6173
        %v6307 = vunpack.c.l.b16 %v6174
        %v6308 = vunpack.c.h.b16 %v6174
        %v6309 = vunpack.c.l.b16 %v6175
        %v6310 = vunpack.c.h.b16 %v6175
        %v6311 = vunpack.c.l.b16 %v6176
        %v6312 = vunpack.c.h.b16 %v6176
        %v6313 = vunpack.c.l.b16 %v6177
        %v6314 = vunpack.c.h.b16 %v6177
        %v6315 = vunpack.c.l.b16 %v6178
        %v6316 = vunpack.c.h.b16 %v6178
        %v6317 = vunpack.c.l.b16 %v6179
        %v6318 = vunpack.c.h.b16 %v6179
        %v6319 = vunpack.c.l.b16 %v6180
        %v6320 = vunpack.c.h.b16 %v6180
        %v6321 = vpack.c.b16 %v6259, %v6257
        %v6322 = vpack.c.b16 %v6260, %v6258
        %v6323 = vpack.c.b16 %v6263, %v6261
        %v6324 = vpack.c.b16 %v6264, %v6262
        %v6325 = vpack.c.b16 %v6267, %v6265
        %v6326 = vpack.c.b16 %v6268, %v6266
        %v6327 = vpack.c.b16 %v6271, %v6269
        %v6328 = vpack.c.b16 %v6272, %v6270
        %v6329 = vpack.c.b16 %v6275, %v6273
        %v6330 = vpack.c.b16 %v6276, %v6274
        %v6331 = vpack.c.b16 %v6279, %v6277
        %v6332 = vpack.c.b16 %v6280, %v6278
        %v6333 = vpack.c.b16 %v6283, %v6281
        %v6334 = vpack.c.b16 %v6284, %v6282
        %v6335 = vpack.c.b16 %v6287, %v6285
        %v6336 = vpack.c.b16 %v6288, %v6286
        %v6337 = vpack.c.b16 %v6291, %v6289
        %v6338 = vpack.c.b16 %v6292, %v6290
        %v6339 = vpack.c.b16 %v6295, %v6293
        %v6340 = vpack.c.b16 %v6296, %v6294
        %v6341 = vpack.c.b16 %v6299, %v6297
        %v6342 = vpack.c.b16 %v6300, %v6298
        %v6343 = vpack.c.b16 %v6303, %v6301
        %v6344 = vpack.c.b16 %v6304, %v6302
        %v6345 = vpack.c.b16 %v6307, %v6305
        %v6346 = vpack.c.b16 %v6308, %v6306
        %v6347 = vpack.c.b16 %v6311, %v6309
        %v6348 = vpack.c.b16 %v6312, %v6310
        %v6349 = vpack.c.b16 %v6315, %v6313
        %v6350 = vpack.c.b16 %v6316, %v6314
        %v6351 = vpack.c.b16 %v6319, %v6317
        %v6352 = vpack.c.b16 %v6320, %v6318
        %6385 = vmatpush.bf16.msra.mxu0 %v6335
        %6386 = vmatpush.bf16.msra.mxu0 %v6333
        %6387 = vmatpush.bf16.msra.mxu0 %v6331
        %6388 = vmatpush.bf16.msra.mxu0 %v6329
        %6389 = vmatpush.bf16.msra.mxu0 %v6327
        %6390 = vmatpush.bf16.msra.mxu0 %v6325
        %6391 = vmatpush.bf16.msra.mxu0 %v6323
        %6392 = vmatpush.bf16.msra.mxu0 %v6321
        %6393 = vmatmul.bf16.gmra.mxu0 %v6195
        %v6394 = vpop.f32.mrf.mxu0
        %v6395 = vadd.f32 0.0, %v6394
        %v6396 = vpop.f32.mrf.mxu0
        %v6397 = vadd.f32 0.0, %v6396
        %6398 = vmatmul.bf16.gmra.mxu0 %v6200
        %v6399 = vpop.f32.mrf.mxu0
        %v6400 = vadd.f32 0.0, %v6399
        %v6401 = vpop.f32.mrf.mxu0
        %v6402 = vadd.f32 0.0, %v6401
        %6403 = vmatmul.bf16.gmra.mxu0 %v6204
        %v6404 = vpop.f32.mrf.mxu0
        %v6405 = vadd.f32 0.0, %v6404
        %v6406 = vpop.f32.mrf.mxu0
        %v6407 = vadd.f32 0.0, %v6406
        %6408 = vmatmul.bf16.gmra.mxu0 %v6208
        %v6409 = vpop.f32.mrf.mxu0
        %v6410 = vadd.f32 0.0, %v6409
        %v6411 = vpop.f32.mrf.mxu0
        %v6412 = vadd.f32 0.0, %v6411
        %6413 = vmatmul.bf16.gmra.mxu0 %v6212
        %v6414 = vpop.f32.mrf.mxu0
        %v6415 = vadd.f32 0.0, %v6414
        %v6416 = vpop.f32.mrf.mxu0
        %v6417 = vadd.f32 0.0, %v6416
        %6418 = vdwg.mxu0
        %6419 = vmatpush.bf16.msra.mxu0 %v6351
        %6420 = vmatpush.bf16.msra.mxu0 %v6349
        %6421 = vmatpush.bf16.msra.mxu0 %v6347
        %6422 = vmatpush.bf16.msra.mxu0 %v6345
        %6423 = vmatpush.bf16.msra.mxu0 %v6343
        %6424 = vmatpush.bf16.msra.mxu0 %v6341
        %6425 = vmatpush.bf16.msra.mxu0 %v6339
        %6426 = vmatpush.bf16.msra.mxu0 %v6337
        %6427 = vmatmul.bf16.gmra.mxu0 %v6198
        %v6428 = vpop.f32.mrf.mxu0
        %v6429 = vadd.f32 %v6395, %v6428
        %v6430 = vpop.f32.mrf.mxu0
        %v6431 = vadd.f32 %v6397, %v6430
        %6432 = vmatmul.bf16.gmra.mxu0 %v6202
        %v6433 = vpop.f32.mrf.mxu0
        %v6434 = vadd.f32 %v6400, %v6433
        %v6435 = vpop.f32.mrf.mxu0
        %v6436 = vadd.f32 %v6402, %v6435
        %6437 = vmatmul.bf16.gmra.mxu0 %v6206
        %v6438 = vpop.f32.mrf.mxu0
        %v6439 = vadd.f32 %v6405, %v6438
        %v6440 = vpop.f32.mrf.mxu0
        %v6441 = vadd.f32 %v6407, %v6440
        %6442 = vmatmul.bf16.gmra.mxu0 %v6210
        %v6443 = vpop.f32.mrf.mxu0
        %v6444 = vadd.f32 %v6410, %v6443
        %v6445 = vpop.f32.mrf.mxu0
        %v6446 = vadd.f32 %v6412, %v6445
        %6447 = vmatmul.bf16.gmra.mxu0 %v6214
        %v6448 = vpop.f32.mrf.mxu0
        %v6449 = vadd.f32 %v6415, %v6448
        %v6450 = vpop.f32.mrf.mxu0
        %v6451 = vadd.f32 %v6417, %v6450
        %6452 = vdwg.mxu0
        %6453 = vmatpush.bf16.msra.mxu0 %v6336
        %6454 = vmatpush.bf16.msra.mxu0 %v6334
        %6455 = vmatpush.bf16.msra.mxu0 %v6332
        %6456 = vmatpush.bf16.msra.mxu0 %v6330
        %6457 = vmatpush.bf16.msra.mxu0 %v6328
        %6458 = vmatpush.bf16.msra.mxu0 %v6326
        %6459 = vmatpush.bf16.msra.mxu0 %v6324
        %6460 = vmatpush.bf16.msra.mxu0 %v6322
        %6461 = vmatmul.bf16.gmra.mxu0 %v6195
        %v6462 = vpop.f32.mrf.mxu0
        %v6463 = vadd.f32 0.0, %v6462
        %v6464 = vpop.f32.mrf.mxu0
        %v6465 = vadd.f32 0.0, %v6464
        %6466 = vmatmul.bf16.gmra.mxu0 %v6200
        %v6467 = vpop.f32.mrf.mxu0
        %v6468 = vadd.f32 0.0, %v6467
        %v6469 = vpop.f32.mrf.mxu0
        %v6470 = vadd.f32 0.0, %v6469
        %6471 = vmatmul.bf16.gmra.mxu0 %v6204
        %v6472 = vpop.f32.mrf.mxu0
        %v6473 = vadd.f32 0.0, %v6472
        %v6474 = vpop.f32.mrf.mxu0
        %v6475 = vadd.f32 0.0, %v6474
        %6476 = vmatmul.bf16.gmra.mxu0 %v6208
        %v6477 = vpop.f32.mrf.mxu0
        %v6478 = vadd.f32 0.0, %v6477
        %v6479 = vpop.f32.mrf.mxu0
        %v6480 = vadd.f32 0.0, %v6479
        %6481 = vmatmul.bf16.gmra.mxu0 %v6212
        %v6482 = vpop.f32.mrf.mxu0
        %v6483 = vadd.f32 0.0, %v6482
        %v6484 = vpop.f32.mrf.mxu0
        %v6485 = vadd.f32 0.0, %v6484
        %6486 = vdwg.mxu0
        %6487 = vmatpush.bf16.msra.mxu0 %v6352
        %6488 = vmatpush.bf16.msra.mxu0 %v6350
        %6489 = vmatpush.bf16.msra.mxu0 %v6348
        %6490 = vmatpush.bf16.msra.mxu0 %v6346
        %6491 = vmatpush.bf16.msra.mxu0 %v6344
        %6492 = vmatpush.bf16.msra.mxu0 %v6342
        %6493 = vmatpush.bf16.msra.mxu0 %v6340
        %6494 = vmatpush.bf16.msra.mxu0 %v6338
        %6495 = vmatmul.bf16.gmra.mxu0 %v6198
        %v6496 = vpop.f32.mrf.mxu0
        %v6497 = vadd.f32 %v6463, %v6496
        %v6498 = vpop.f32.mrf.mxu0
        %v6499 = vadd.f32 %v6465, %v6498
        %6500 = vmatmul.bf16.gmra.mxu0 %v6202
        %v6501 = vpop.f32.mrf.mxu0
        %v6502 = vadd.f32 %v6468, %v6501
        %v6503 = vpop.f32.mrf.mxu0
        %v6504 = vadd.f32 %v6470, %v6503
        %6505 = vmatmul.bf16.gmra.mxu0 %v6206
        %v6506 = vpop.f32.mrf.mxu0
        %v6507 = vadd.f32 %v6473, %v6506
        %v6508 = vpop.f32.mrf.mxu0
        %v6509 = vadd.f32 %v6475, %v6508
        %6510 = vmatmul.bf16.gmra.mxu0 %v6210
        %v6511 = vpop.f32.mrf.mxu0
        %v6512 = vadd.f32 %v6478, %v6511
        %v6513 = vpop.f32.mrf.mxu0
        %v6514 = vadd.f32 %v6480, %v6513
        %6515 = vmatmul.bf16.gmra.mxu0 %v6214
        %v6516 = vpop.f32.mrf.mxu0
        %v6517 = vadd.f32 %v6483, %v6516
        %v6518 = vpop.f32.mrf.mxu0
        %v6519 = vadd.f32 %v6485, %v6518
        %6520 = vdwg.mxu0
        %v6521 = vadd.f32 %v6094, %v6429
        %v6522 = vadd.f32 %v6095, %v6497
        %v6523 = vadd.f32 %v6096, %v6431
        %v6524 = vadd.f32 %v6097, %v6499
        %v6525 = vadd.f32 %v6098, %v6434
        %v6526 = vadd.f32 %v6099, %v6502
        %v6527 = vadd.f32 %v6100, %v6436
        %v6528 = vadd.f32 %v6101, %v6504
        %v6529 = vadd.f32 %v6102, %v6439
        %v6530 = vadd.f32 %v6103, %v6507
        %v6531 = vadd.f32 %v6104, %v6441
        %v6532 = vadd.f32 %v6105, %v6509
        %v6533 = vadd.f32 %v6106, %v6444
        %v6534 = vadd.f32 %v6107, %v6512
        %v6535 = vadd.f32 %v6108, %v6446
        %v6536 = vadd.f32 %v6109, %v6514
        %v6537 = vadd.f32 %v6110, %v6449
        %v6538 = vadd.f32 %v6111, %v6517
        %v6539 = vadd.f32 %v6112, %v6451
        %v6540 = vadd.f32 %v6113, %v6519
        %6541 = vst [vmem:[#allocation3] sm:$0xff] %v6521
        %6542 = vst [vmem:[#allocation3 + $0x8] sm:$0xff] %v6522
        %6543 = vst [vmem:[#allocation3 + $0x10] sm:$0xff] %v6523
        %6544 = vst [vmem:[#allocation3 + $0x18] sm:$0xff] %v6524
        %6545 = vst [vmem:[#allocation3 + $0x20] sm:$0xff] %v6525
        %6546 = vst [vmem:[#allocation3 + $0x28] sm:$0xff] %v6526
        %6547 = vst [vmem:[#allocation3 + $0x30] sm:$0xff] %v6527
        %6548 = vst [vmem:[#allocation3 + $0x38] sm:$0xff] %v6528
        %6549 = vst [vmem:[#allocation3 + $0x40] sm:$0xff] %v6529
        %6550 = vst [vmem:[#allocation3 + $0x48] sm:$0xff] %v6530
        %6551 = vst [vmem:[#allocation3 + $0x50] sm:$0xff] %v6531
        %6552 = vst [vmem:[#allocation3 + $0x58] sm:$0xff] %v6532
        %6553 = vst [vmem:[#allocation3 + $0x60] sm:$0xff] %v6533
        %6554 = vst [vmem:[#allocation3 + $0x68] sm:$0xff] %v6534
        %6555 = vst [vmem:[#allocation3 + $0x70] sm:$0xff] %v6535
        %6556 = vst [vmem:[#allocation3 + $0x78] sm:$0xff] %v6536
        %6557 = vst [vmem:[#allocation3 + $0x80] sm:$0xff] %v6537
        %6558 = vst [vmem:[#allocation3 + $0x88] sm:$0xff] %v6538
        %6559 = vst [vmem:[#allocation3 + $0x90] sm:$0xff] %v6539
        %6560 = vst [vmem:[#allocation3 + $0x98] sm:$0xff] %v6540
        %v6561 = vld [vmem:[#allocation3] sm:$0xff]
        %v6562 = vld [vmem:[#allocation3 + $0x8] sm:$0xff]
        %v6563 = vld [vmem:[#allocation3 + $0x10] sm:$0xff]
        %v6564 = vld [vmem:[#allocation3 + $0x18] sm:$0xff]
        %v6565 = vld [vmem:[#allocation3 + $0x20] sm:$0xff]
        %v6566 = vld [vmem:[#allocation3 + $0x28] sm:$0xff]
        %v6567 = vld [vmem:[#allocation3 + $0x30] sm:$0xff]
        %v6568 = vld [vmem:[#allocation3 + $0x38] sm:$0xff]
        %v6569 = vld [vmem:[#allocation3 + $0x40] sm:$0xff]
        %v6570 = vld [vmem:[#allocation3 + $0x48] sm:$0xff]
        %v6571 = vld [vmem:[#allocation3 + $0x50] sm:$0xff]
        %v6572 = vld [vmem:[#allocation3 + $0x58] sm:$0xff]
        %v6573 = vld [vmem:[#allocation3 + $0x60] sm:$0xff]
        %v6574 = vld [vmem:[#allocation3 + $0x68] sm:$0xff]
        %v6575 = vld [vmem:[#allocation3 + $0x70] sm:$0xff]
        %v6576 = vld [vmem:[#allocation3 + $0x78] sm:$0xff]
        %v6577 = vld [vmem:[#allocation3 + $0x80] sm:$0xff]
        %v6578 = vld [vmem:[#allocation3 + $0x88] sm:$0xff]
        %v6579 = vld [vmem:[#allocation3 + $0x90] sm:$0xff]
        %v6580 = vld [vmem:[#allocation3 + $0x98] sm:$0xff]
        %v6581 = vld [vmem:[#allocation2] sm:$0xe0]
        %v6582 = vld [vmem:[#allocation2 + $0x8] sm:$0xe0]
        %v6583 = vld [vmem:[#allocation2 + $0x10] sm:$0xff]
        %v6584 = vld [vmem:[#allocation2 + $0x18] sm:$0xff]
        %v6585 = vld [vmem:[#allocation2 + $0x20] sm:$0xff]
        %v6586 = vld [vmem:[#allocation2 + $0x28] sm:$0xff]
        %v6587 = vld [vmem:[#allocation2 + $0x30] sm:$0xff]
        %v6588 = vld [vmem:[#allocation2 + $0x38] sm:$0xff]
        %v6589 = vld [vmem:[#allocation2 + $0x40] sm:$0xff]
        %v6590 = vld [vmem:[#allocation2 + $0x48] sm:$0xff]
        %v6591 = vld [vmem:[#allocation2 + $0x50] sm:$0xff]
        %v6592 = vld [vmem:[#allocation2 + $0x58] sm:$0xff]
        %v6593 = vld [vmem:[#allocation2 + $0x60] sm:$0xff]
        %v6594 = vld [vmem:[#allocation2 + $0x68] sm:$0xff]
        %v6595 = vld [vmem:[#allocation2 + $0x70] sm:$0xff]
        %v6596 = vld [vmem:[#allocation2 + $0x78] sm:$0xff]
        %v6597 = vld [vmem:[#allocation2 + $0x80] sm:$0xff]
        %v6598 = vld [vmem:[#allocation2 + $0x88] sm:$0xff]
        %v6599 = vld [vmem:[#allocation2 + $0x90] sm:$0xff]
        %v6600 = vld [vmem:[#allocation2 + $0x98] sm:$0xff]
        %v6601 = vld [vmem:[#allocation2 + $0xa0] sm:$0x1f]
        %v6602 = vld [vmem:[#allocation2 + $0xa8] sm:$0x1f]
        %v6603 = vpack.c.bf16 %v6583, %v6581
        %v6604 = vpack.c.bf16 %v6584, %v6582
        %v6605 = vpack.c.bf16 %v6587, %v6585
        %v6606 = vpack.c.bf16 %v6588, %v6586
        %v6607 = vpack.c.bf16 %v6591, %v6589
        %v6608 = vpack.c.bf16 %v6592, %v6590
        %v6609 = vpack.c.bf16 %v6595, %v6593
        %v6610 = vpack.c.bf16 %v6596, %v6594
        %v6611 = vpack.c.bf16 %v6599, %v6597
        %v6612 = vpack.c.bf16 %v6600, %v6598
        %v6613 = vpack.c.bf16 %v6601, %v6601
        %v6614 = vpack.c.bf16 %v6602, %v6602
        %s6615 = scalar_lea.vmem [#allocation5], 1280
        %v6616 = vld [vmem:[%s6615] sm:$0xff]
        %v6617 = vld [vmem:[%s6615 + $0x8] sm:$0xff]
        %v6618 = vld [vmem:[%s6615 + $0x10] sm:$0xff]
        %v6619 = vld [vmem:[%s6615 + $0x18] sm:$0xff]
        %v6620 = vld [vmem:[%s6615 + $0x20] sm:$0xff]
        %v6621 = vld [vmem:[%s6615 + $0x28] sm:$0xff]
        %v6622 = vld [vmem:[%s6615 + $0x30] sm:$0xff]
        %v6623 = vld [vmem:[%s6615 + $0x38] sm:$0xff]
        %v6624 = vld [vmem:[%s6615 + $0x40] sm:$0xff]
        %v6625 = vld [vmem:[%s6615 + $0x48] sm:$0xff]
        %v6626 = vld [vmem:[%s6615 + $0x50] sm:$0xff]
        %v6627 = vld [vmem:[%s6615 + $0x58] sm:$0xff]
        %v6628 = vld [vmem:[%s6615 + $0x60] sm:$0xff]
        %v6629 = vld [vmem:[%s6615 + $0x68] sm:$0xff]
        %v6630 = vld [vmem:[%s6615 + $0x70] sm:$0xff]
        %v6631 = vld [vmem:[%s6615 + $0x78] sm:$0xff]
        %v6632 = vld [vmem:[%s6615 + $0x80] sm:$0xff]
        %v6633 = vld [vmem:[%s6615 + $0x88] sm:$0xff]
        %v6634 = vld [vmem:[%s6615 + $0x90] sm:$0xff]
        %v6635 = vld [vmem:[%s6615 + $0x98] sm:$0xff]
        %v6636 = vld [vmem:[%s6615 + $0xa0] sm:$0xff]
        %v6637 = vld [vmem:[%s6615 + $0xa8] sm:$0xff]
        %v6638 = vld [vmem:[%s6615 + $0xb0] sm:$0xff]
        %v6639 = vld [vmem:[%s6615 + $0xb8] sm:$0xff]
        %v6640 = vld [vmem:[%s6615 + $0xc0] sm:$0xff]
        %v6641 = vld [vmem:[%s6615 + $0xc8] sm:$0xff]
        %v6642 = vld [vmem:[%s6615 + $0xd0] sm:$0xff]
        %v6643 = vld [vmem:[%s6615 + $0xd8] sm:$0xff]
        %v6644 = vld [vmem:[%s6615 + $0xe0] sm:$0xff]
        %v6645 = vld [vmem:[%s6615 + $0xe8] sm:$0xff]
        %v6646 = vld [vmem:[%s6615 + $0xf0] sm:$0xff]
        %v6647 = vld [vmem:[%s6615 + $0xf8] sm:$0xff]
        %v6649 = vshrl.u32 %v6603, 16
        %v6651 = vrot.slane %v6649, 2
        %v6652 = vshll.u32 %v6603, 16
        %v6654 = vrot.slane %v6652, 3
        %v6655 = vor.u32 %v6651, %v6654
        %v6657 = vshrl.u32 %v6605, 16
        %v6659 = vrot.slane %v6657, 2
        %v6660 = vshll.u32 %v6605, 16
        %v6662 = vrot.slane %v6660, 3
        %v6663 = vor.u32 %v6659, %v6662
        %v6664 = vsel %vm3047, %v6655, %v6663
        %v6666 = vshrl.u32 %v6604, 16
        %v6668 = vrot.slane %v6666, 2
        %v6669 = vshll.u32 %v6604, 16
        %v6671 = vrot.slane %v6669, 3
        %v6672 = vor.u32 %v6668, %v6671
        %v6674 = vshrl.u32 %v6606, 16
        %v6676 = vrot.slane %v6674, 2
        %v6677 = vshll.u32 %v6606, 16
        %v6679 = vrot.slane %v6677, 3
        %v6680 = vor.u32 %v6676, %v6679
        %v6681 = vsel %vm3047, %v6672, %v6680
        %v6683 = vshrl.u32 %v6607, 16
        %v6685 = vrot.slane %v6683, 2
        %v6686 = vshll.u32 %v6607, 16
        %v6688 = vrot.slane %v6686, 3
        %v6689 = vor.u32 %v6685, %v6688
        %v6690 = vsel %vm3047, %v6663, %v6689
        %v6692 = vshrl.u32 %v6608, 16
        %v6694 = vrot.slane %v6692, 2
        %v6695 = vshll.u32 %v6608, 16
        %v6697 = vrot.slane %v6695, 3
        %v6698 = vor.u32 %v6694, %v6697
        %v6699 = vsel %vm3047, %v6680, %v6698
        %v6701 = vshrl.u32 %v6609, 16
        %v6703 = vrot.slane %v6701, 2
        %v6704 = vshll.u32 %v6609, 16
        %v6706 = vrot.slane %v6704, 3
        %v6707 = vor.u32 %v6703, %v6706
        %v6708 = vsel %vm3047, %v6689, %v6707
        %v6710 = vshrl.u32 %v6610, 16
        %v6712 = vrot.slane %v6710, 2
        %v6713 = vshll.u32 %v6610, 16
        %v6715 = vrot.slane %v6713, 3
        %v6716 = vor.u32 %v6712, %v6715
        %v6717 = vsel %vm3047, %v6698, %v6716
        %v6719 = vshrl.u32 %v6611, 16
        %v6721 = vrot.slane %v6719, 2
        %v6722 = vshll.u32 %v6611, 16
        %v6724 = vrot.slane %v6722, 3
        %v6725 = vor.u32 %v6721, %v6724
        %v6726 = vsel %vm3047, %v6707, %v6725
        %v6728 = vshrl.u32 %v6612, 16
        %v6730 = vrot.slane %v6728, 2
        %v6731 = vshll.u32 %v6612, 16
        %v6733 = vrot.slane %v6731, 3
        %v6734 = vor.u32 %v6730, %v6733
        %v6735 = vsel %vm3047, %v6716, %v6734
        %v6737 = vshrl.u32 %v6613, 16
        %v6739 = vrot.slane %v6737, 2
        %v6740 = vshll.u32 %v6613, 16
        %v6742 = vrot.slane %v6740, 3
        %v6743 = vor.u32 %v6739, %v6742
        %v6744 = vsel %vm3047, %v6725, %v6743
        %v6746 = vshrl.u32 %v6614, 16
        %v6748 = vrot.slane %v6746, 2
        %v6749 = vshll.u32 %v6614, 16
        %v6751 = vrot.slane %v6749, 3
        %v6752 = vor.u32 %v6748, %v6751
        %v6753 = vsel %vm3047, %v6734, %v6752
        %v6796 = vunpack.c.l.b16 %v6616
        %v6797 = vunpack.c.h.b16 %v6616
        %v6798 = vunpack.c.l.b16 %v6617
        %v6799 = vunpack.c.h.b16 %v6617
        %v6800 = vunpack.c.l.b16 %v6618
        %v6801 = vunpack.c.h.b16 %v6618
        %v6802 = vunpack.c.l.b16 %v6619
        %v6803 = vunpack.c.h.b16 %v6619
        %v6804 = vunpack.c.l.b16 %v6620
        %v6805 = vunpack.c.h.b16 %v6620
        %v6806 = vunpack.c.l.b16 %v6621
        %v6807 = vunpack.c.h.b16 %v6621
        %v6808 = vunpack.c.l.b16 %v6622
        %v6809 = vunpack.c.h.b16 %v6622
        %v6810 = vunpack.c.l.b16 %v6623
        %v6811 = vunpack.c.h.b16 %v6623
        %v6812 = vunpack.c.l.b16 %v6624
        %v6813 = vunpack.c.h.b16 %v6624
        %v6814 = vunpack.c.l.b16 %v6625
        %v6815 = vunpack.c.h.b16 %v6625
        %v6816 = vunpack.c.l.b16 %v6626
        %v6817 = vunpack.c.h.b16 %v6626
        %v6818 = vunpack.c.l.b16 %v6627
        %v6819 = vunpack.c.h.b16 %v6627
        %v6820 = vunpack.c.l.b16 %v6628
        %v6821 = vunpack.c.h.b16 %v6628
        %v6822 = vunpack.c.l.b16 %v6629
        %v6823 = vunpack.c.h.b16 %v6629
        %v6824 = vunpack.c.l.b16 %v6630
        %v6825 = vunpack.c.h.b16 %v6630
        %v6826 = vunpack.c.l.b16 %v6631
        %v6827 = vunpack.c.h.b16 %v6631
        %v6828 = vunpack.c.l.b16 %v6632
        %v6829 = vunpack.c.h.b16 %v6632
        %v6830 = vunpack.c.l.b16 %v6633
        %v6831 = vunpack.c.h.b16 %v6633
        %v6832 = vunpack.c.l.b16 %v6634
        %v6833 = vunpack.c.h.b16 %v6634
        %v6834 = vunpack.c.l.b16 %v6635
        %v6835 = vunpack.c.h.b16 %v6635
        %v6836 = vunpack.c.l.b16 %v6636
        %v6837 = vunpack.c.h.b16 %v6636
        %v6838 = vunpack.c.l.b16 %v6637
        %v6839 = vunpack.c.h.b16 %v6637
        %v6840 = vunpack.c.l.b16 %v6638
        %v6841 = vunpack.c.h.b16 %v6638
        %v6842 = vunpack.c.l.b16 %v6639
        %v6843 = vunpack.c.h.b16 %v6639
        %v6844 = vunpack.c.l.b16 %v6640
        %v6845 = vunpack.c.h.b16 %v6640
        %v6846 = vunpack.c.l.b16 %v6641
        %v6847 = vunpack.c.h.b16 %v6641
        %v6848 = vunpack.c.l.b16 %v6642
        %v6849 = vunpack.c.h.b16 %v6642
        %v6850 = vunpack.c.l.b16 %v6643
        %v6851 = vunpack.c.h.b16 %v6643
        %v6852 = vunpack.c.l.b16 %v6644
        %v6853 = vunpack.c.h.b16 %v6644
        %v6854 = vunpack.c.l.b16 %v6645
        %v6855 = vunpack.c.h.b16 %v6645
        %v6856 = vunpack.c.l.b16 %v6646
        %v6857 = vunpack.c.h.b16 %v6646
        %v6858 = vunpack.c.l.b16 %v6647
        %v6859 = vunpack.c.h.b16 %v6647
        %v6860 = vpack.c.b16 %v6798, %v6796
        %v6861 = vpack.c.b16 %v6799, %v6797
        %v6862 = vpack.c.b16 %v6802, %v6800
        %v6863 = vpack.c.b16 %v6803, %v6801
        %v6864 = vpack.c.b16 %v6806, %v6804
        %v6865 = vpack.c.b16 %v6807, %v6805
        %v6866 = vpack.c.b16 %v6810, %v6808
        %v6867 = vpack.c.b16 %v6811, %v6809
        %v6868 = vpack.c.b16 %v6814, %v6812
        %v6869 = vpack.c.b16 %v6815, %v6813
        %v6870 = vpack.c.b16 %v6818, %v6816
        %v6871 = vpack.c.b16 %v6819, %v6817
        %v6872 = vpack.c.b16 %v6822, %v6820
        %v6873 = vpack.c.b16 %v6823, %v6821
        %v6874 = vpack.c.b16 %v6826, %v6824
        %v6875 = vpack.c.b16 %v6827, %v6825
        %v6876 = vpack.c.b16 %v6830, %v6828
        %v6877 = vpack.c.b16 %v6831, %v6829
        %v6878 = vpack.c.b16 %v6834, %v6832
        %v6879 = vpack.c.b16 %v6835, %v6833
        %v6880 = vpack.c.b16 %v6838, %v6836
        %v6881 = vpack.c.b16 %v6839, %v6837
        %v6882 = vpack.c.b16 %v6842, %v6840
        %v6883 = vpack.c.b16 %v6843, %v6841
        %v6884 = vpack.c.b16 %v6846, %v6844
        %v6885 = vpack.c.b16 %v6847, %v6845
        %v6886 = vpack.c.b16 %v6850, %v6848
        %v6887 = vpack.c.b16 %v6851, %v6849
        %v6888 = vpack.c.b16 %v6854, %v6852
        %v6889 = vpack.c.b16 %v6855, %v6853
        %v6890 = vpack.c.b16 %v6858, %v6856
        %v6891 = vpack.c.b16 %v6859, %v6857
        %6924 = vmatpush.bf16.msra.mxu0 %v6874
        %6925 = vmatpush.bf16.msra.mxu0 %v6872
        %6926 = vmatpush.bf16.msra.mxu0 %v6870
        %6927 = vmatpush.bf16.msra.mxu0 %v6868
        %6928 = vmatpush.bf16.msra.mxu0 %v6866
        %6929 = vmatpush.bf16.msra.mxu0 %v6864
        %6930 = vmatpush.bf16.msra.mxu0 %v6862
        %6931 = vmatpush.bf16.msra.mxu0 %v6860
        %6932 = vmatmul.bf16.gmra.mxu0 %v6664
        %v6933 = vpop.f32.mrf.mxu0
        %v6934 = vadd.f32 0.0, %v6933
        %v6935 = vpop.f32.mrf.mxu0
        %v6936 = vadd.f32 0.0, %v6935
        %6937 = vmatmul.bf16.gmra.mxu0 %v6690
        %v6938 = vpop.f32.mrf.mxu0
        %v6939 = vadd.f32 0.0, %v6938
        %v6940 = vpop.f32.mrf.mxu0
        %v6941 = vadd.f32 0.0, %v6940
        %6942 = vmatmul.bf16.gmra.mxu0 %v6708
        %v6943 = vpop.f32.mrf.mxu0
        %v6944 = vadd.f32 0.0, %v6943
        %v6945 = vpop.f32.mrf.mxu0
        %v6946 = vadd.f32 0.0, %v6945
        %6947 = vmatmul.bf16.gmra.mxu0 %v6726
        %v6948 = vpop.f32.mrf.mxu0
        %v6949 = vadd.f32 0.0, %v6948
        %v6950 = vpop.f32.mrf.mxu0
        %v6951 = vadd.f32 0.0, %v6950
        %6952 = vmatmul.bf16.gmra.mxu0 %v6744
        %v6953 = vpop.f32.mrf.mxu0
        %v6954 = vadd.f32 0.0, %v6953
        %v6955 = vpop.f32.mrf.mxu0
        %v6956 = vadd.f32 0.0, %v6955
        %6957 = vdwg.mxu0
        %6958 = vmatpush.bf16.msra.mxu0 %v6890
        %6959 = vmatpush.bf16.msra.mxu0 %v6888
        %6960 = vmatpush.bf16.msra.mxu0 %v6886
        %6961 = vmatpush.bf16.msra.mxu0 %v6884
        %6962 = vmatpush.bf16.msra.mxu0 %v6882
        %6963 = vmatpush.bf16.msra.mxu0 %v6880
        %6964 = vmatpush.bf16.msra.mxu0 %v6878
        %6965 = vmatpush.bf16.msra.mxu0 %v6876
        %6966 = vmatmul.bf16.gmra.mxu0 %v6681
        %v6967 = vpop.f32.mrf.mxu0
        %v6968 = vadd.f32 %v6934, %v6967
        %v6969 = vpop.f32.mrf.mxu0
        %v6970 = vadd.f32 %v6936, %v6969
        %6971 = vmatmul.bf16.gmra.mxu0 %v6699
        %v6972 = vpop.f32.mrf.mxu0
        %v6973 = vadd.f32 %v6939, %v6972
        %v6974 = vpop.f32.mrf.mxu0
        %v6975 = vadd.f32 %v6941, %v6974
        %6976 = vmatmul.bf16.gmra.mxu0 %v6717
        %v6977 = vpop.f32.mrf.mxu0
        %v6978 = vadd.f32 %v6944, %v6977
        %v6979 = vpop.f32.mrf.mxu0
        %v6980 = vadd.f32 %v6946, %v6979
        %6981 = vmatmul.bf16.gmra.mxu0 %v6735
        %v6982 = vpop.f32.mrf.mxu0
        %v6983 = vadd.f32 %v6949, %v6982
        %v6984 = vpop.f32.mrf.mxu0
        %v6985 = vadd.f32 %v6951, %v6984
        %6986 = vmatmul.bf16.gmra.mxu0 %v6753
        %v6987 = vpop.f32.mrf.mxu0
        %v6988 = vadd.f32 %v6954, %v6987
        %v6989 = vpop.f32.mrf.mxu0
        %v6990 = vadd.f32 %v6956, %v6989
        %6991 = vdwg.mxu0
        %6992 = vmatpush.bf16.msra.mxu0 %v6875
        %6993 = vmatpush.bf16.msra.mxu0 %v6873
        %6994 = vmatpush.bf16.msra.mxu0 %v6871
        %6995 = vmatpush.bf16.msra.mxu0 %v6869
        %6996 = vmatpush.bf16.msra.mxu0 %v6867
        %6997 = vmatpush.bf16.msra.mxu0 %v6865
        %6998 = vmatpush.bf16.msra.mxu0 %v6863
        %6999 = vmatpush.bf16.msra.mxu0 %v6861
        %7000 = vmatmul.bf16.gmra.mxu0 %v6664
        %v7001 = vpop.f32.mrf.mxu0
        %v7002 = vadd.f32 0.0, %v7001
        %v7003 = vpop.f32.mrf.mxu0
        %v7004 = vadd.f32 0.0, %v7003
        %7005 = vmatmul.bf16.gmra.mxu0 %v6690
        %v7006 = vpop.f32.mrf.mxu0
        %v7007 = vadd.f32 0.0, %v7006
        %v7008 = vpop.f32.mrf.mxu0
        %v7009 = vadd.f32 0.0, %v7008
        %7010 = vmatmul.bf16.gmra.mxu0 %v6708
        %v7011 = vpop.f32.mrf.mxu0
        %v7012 = vadd.f32 0.0, %v7011
        %v7013 = vpop.f32.mrf.mxu0
        %v7014 = vadd.f32 0.0, %v7013
        %7015 = vmatmul.bf16.gmra.mxu0 %v6726
        %v7016 = vpop.f32.mrf.mxu0
        %v7017 = vadd.f32 0.0, %v7016
        %v7018 = vpop.f32.mrf.mxu0
        %v7019 = vadd.f32 0.0, %v7018
        %7020 = vmatmul.bf16.gmra.mxu0 %v6744
        %v7021 = vpop.f32.mrf.mxu0
        %v7022 = vadd.f32 0.0, %v7021
        %v7023 = vpop.f32.mrf.mxu0
        %v7024 = vadd.f32 0.0, %v7023
        %7025 = vdwg.mxu0
        %7026 = vmatpush.bf16.msra.mxu0 %v6891
        %7027 = vmatpush.bf16.msra.mxu0 %v6889
        %7028 = vmatpush.bf16.msra.mxu0 %v6887
        %7029 = vmatpush.bf16.msra.mxu0 %v6885
        %7030 = vmatpush.bf16.msra.mxu0 %v6883
        %7031 = vmatpush.bf16.msra.mxu0 %v6881
        %7032 = vmatpush.bf16.msra.mxu0 %v6879
        %7033 = vmatpush.bf16.msra.mxu0 %v6877
        %7034 = vmatmul.bf16.gmra.mxu0 %v6681
        %v7035 = vpop.f32.mrf.mxu0
        %v7036 = vadd.f32 %v7002, %v7035
        %v7037 = vpop.f32.mrf.mxu0
        %v7038 = vadd.f32 %v7004, %v7037
        %7039 = vmatmul.bf16.gmra.mxu0 %v6699
        %v7040 = vpop.f32.mrf.mxu0
        %v7041 = vadd.f32 %v7007, %v7040
        %v7042 = vpop.f32.mrf.mxu0
        %v7043 = vadd.f32 %v7009, %v7042
        %7044 = vmatmul.bf16.gmra.mxu0 %v6717
        %v7045 = vpop.f32.mrf.mxu0
        %v7046 = vadd.f32 %v7012, %v7045
        %v7047 = vpop.f32.mrf.mxu0
        %v7048 = vadd.f32 %v7014, %v7047
        %7049 = vmatmul.bf16.gmra.mxu0 %v6735
        %v7050 = vpop.f32.mrf.mxu0
        %v7051 = vadd.f32 %v7017, %v7050
        %v7052 = vpop.f32.mrf.mxu0
        %v7053 = vadd.f32 %v7019, %v7052
        %7054 = vmatmul.bf16.gmra.mxu0 %v6753
        %v7055 = vpop.f32.mrf.mxu0
        %v7056 = vadd.f32 %v7022, %v7055
        %v7057 = vpop.f32.mrf.mxu0
        %v7058 = vadd.f32 %v7024, %v7057
        %7059 = vdwg.mxu0
        %v7060 = vadd.f32 %v6561, %v6968
        %v7061 = vadd.f32 %v6562, %v7036
        %v7062 = vadd.f32 %v6563, %v6970
        %v7063 = vadd.f32 %v6564, %v7038
        %v7064 = vadd.f32 %v6565, %v6973
        %v7065 = vadd.f32 %v6566, %v7041
        %v7066 = vadd.f32 %v6567, %v6975
        %v7067 = vadd.f32 %v6568, %v7043
        %v7068 = vadd.f32 %v6569, %v6978
        %v7069 = vadd.f32 %v6570, %v7046
        %v7070 = vadd.f32 %v6571, %v6980
        %v7071 = vadd.f32 %v6572, %v7048
        %v7072 = vadd.f32 %v6573, %v6983
        %v7073 = vadd.f32 %v6574, %v7051
        %v7074 = vadd.f32 %v6575, %v6985
        %v7075 = vadd.f32 %v6576, %v7053
        %v7076 = vadd.f32 %v6577, %v6988
        %v7077 = vadd.f32 %v6578, %v7056
        %v7078 = vadd.f32 %v6579, %v6990
        %v7079 = vadd.f32 %v6580, %v7058
        %7080 = vst [vmem:[#allocation3] sm:$0xff] %v7060
        %7081 = vst [vmem:[#allocation3 + $0x8] sm:$0xff] %v7061
        %7082 = vst [vmem:[#allocation3 + $0x10] sm:$0xff] %v7062
        %7083 = vst [vmem:[#allocation3 + $0x18] sm:$0xff] %v7063
        %7084 = vst [vmem:[#allocation3 + $0x20] sm:$0xff] %v7064
        %7085 = vst [vmem:[#allocation3 + $0x28] sm:$0xff] %v7065
        %7086 = vst [vmem:[#allocation3 + $0x30] sm:$0xff] %v7066
        %7087 = vst [vmem:[#allocation3 + $0x38] sm:$0xff] %v7067
        %7088 = vst [vmem:[#allocation3 + $0x40] sm:$0xff] %v7068
        %7089 = vst [vmem:[#allocation3 + $0x48] sm:$0xff] %v7069
        %7090 = vst [vmem:[#allocation3 + $0x50] sm:$0xff] %v7070
        %7091 = vst [vmem:[#allocation3 + $0x58] sm:$0xff] %v7071
        %7092 = vst [vmem:[#allocation3 + $0x60] sm:$0xff] %v7072
        %7093 = vst [vmem:[#allocation3 + $0x68] sm:$0xff] %v7073
        %7094 = vst [vmem:[#allocation3 + $0x70] sm:$0xff] %v7074
        %7095 = vst [vmem:[#allocation3 + $0x78] sm:$0xff] %v7075
        %7096 = vst [vmem:[#allocation3 + $0x80] sm:$0xff] %v7076
        %7097 = vst [vmem:[#allocation3 + $0x88] sm:$0xff] %v7077
        %7098 = vst [vmem:[#allocation3 + $0x90] sm:$0xff] %v7078
        %7099 = vst [vmem:[#allocation3 + $0x98] sm:$0xff] %v7079
        %v7100 = vld [vmem:[#allocation3] sm:$0xff]
        %v7101 = vld [vmem:[#allocation3 + $0x8] sm:$0xff]
        %v7102 = vld [vmem:[#allocation3 + $0x10] sm:$0xff]
        %v7103 = vld [vmem:[#allocation3 + $0x18] sm:$0xff]
        %v7104 = vld [vmem:[#allocation3 + $0x20] sm:$0xff]
        %v7105 = vld [vmem:[#allocation3 + $0x28] sm:$0xff]
        %v7106 = vld [vmem:[#allocation3 + $0x30] sm:$0xff]
        %v7107 = vld [vmem:[#allocation3 + $0x38] sm:$0xff]
        %v7108 = vld [vmem:[#allocation3 + $0x40] sm:$0xff]
        %v7109 = vld [vmem:[#allocation3 + $0x48] sm:$0xff]
        %v7110 = vld [vmem:[#allocation3 + $0x50] sm:$0xff]
        %v7111 = vld [vmem:[#allocation3 + $0x58] sm:$0xff]
        %v7112 = vld [vmem:[#allocation3 + $0x60] sm:$0xff]
        %v7113 = vld [vmem:[#allocation3 + $0x68] sm:$0xff]
        %v7114 = vld [vmem:[#allocation3 + $0x70] sm:$0xff]
        %v7115 = vld [vmem:[#allocation3 + $0x78] sm:$0xff]
        %v7116 = vld [vmem:[#allocation3 + $0x80] sm:$0xff]
        %v7117 = vld [vmem:[#allocation3 + $0x88] sm:$0xff]
        %v7118 = vld [vmem:[#allocation3 + $0x90] sm:$0xff]
        %v7119 = vld [vmem:[#allocation3 + $0x98] sm:$0xff]
        %v7120 = vld [vmem:[#allocation2] sm:$0xc0]
        %v7121 = vld [vmem:[#allocation2 + $0x8] sm:$0xc0]
        %v7122 = vld [vmem:[#allocation2 + $0x10] sm:$0xff]
        %v7123 = vld [vmem:[#allocation2 + $0x18] sm:$0xff]
        %v7124 = vld [vmem:[#allocation2 + $0x20] sm:$0xff]
        %v7125 = vld [vmem:[#allocation2 + $0x28] sm:$0xff]
        %v7126 = vld [vmem:[#allocation2 + $0x30] sm:$0xff]
        %v7127 = vld [vmem:[#allocation2 + $0x38] sm:$0xff]
        %v7128 = vld [vmem:[#allocation2 + $0x40] sm:$0xff]
        %v7129 = vld [vmem:[#allocation2 + $0x48] sm:$0xff]
        %v7130 = vld [vmem:[#allocation2 + $0x50] sm:$0xff]
        %v7131 = vld [vmem:[#allocation2 + $0x58] sm:$0xff]
        %v7132 = vld [vmem:[#allocation2 + $0x60] sm:$0xff]
        %v7133 = vld [vmem:[#allocation2 + $0x68] sm:$0xff]
        %v7134 = vld [vmem:[#allocation2 + $0x70] sm:$0xff]
        %v7135 = vld [vmem:[#allocation2 + $0x78] sm:$0xff]
        %v7136 = vld [vmem:[#allocation2 + $0x80] sm:$0xff]
        %v7137 = vld [vmem:[#allocation2 + $0x88] sm:$0xff]
        %v7138 = vld [vmem:[#allocation2 + $0x90] sm:$0xff]
        %v7139 = vld [vmem:[#allocation2 + $0x98] sm:$0xff]
        %v7140 = vld [vmem:[#allocation2 + $0xa0] sm:$0x3f]
        %v7141 = vld [vmem:[#allocation2 + $0xa8] sm:$0x3f]
        %v7142 = vpack.c.bf16 %v7122, %v7120
        %v7143 = vpack.c.bf16 %v7123, %v7121
        %v7144 = vpack.c.bf16 %v7126, %v7124
        %v7145 = vpack.c.bf16 %v7127, %v7125
        %v7146 = vpack.c.bf16 %v7130, %v7128
        %v7147 = vpack.c.bf16 %v7131, %v7129
        %v7148 = vpack.c.bf16 %v7134, %v7132
        %v7149 = vpack.c.bf16 %v7135, %v7133
        %v7150 = vpack.c.bf16 %v7138, %v7136
        %v7151 = vpack.c.bf16 %v7139, %v7137
        %v7152 = vpack.c.bf16 %v7140, %v7140
        %v7153 = vpack.c.bf16 %v7141, %v7141
        %s7154 = scalar_lea.vmem [#allocation5], 1536
        %v7155 = vld [vmem:[%s7154] sm:$0xff]
        %v7156 = vld [vmem:[%s7154 + $0x8] sm:$0xff]
        %v7157 = vld [vmem:[%s7154 + $0x10] sm:$0xff]
        %v7158 = vld [vmem:[%s7154 + $0x18] sm:$0xff]
        %v7159 = vld [vmem:[%s7154 + $0x20] sm:$0xff]
        %v7160 = vld [vmem:[%s7154 + $0x28] sm:$0xff]
        %v7161 = vld [vmem:[%s7154 + $0x30] sm:$0xff]
        %v7162 = vld [vmem:[%s7154 + $0x38] sm:$0xff]
        %v7163 = vld [vmem:[%s7154 + $0x40] sm:$0xff]
        %v7164 = vld [vmem:[%s7154 + $0x48] sm:$0xff]
        %v7165 = vld [vmem:[%s7154 + $0x50] sm:$0xff]
        %v7166 = vld [vmem:[%s7154 + $0x58] sm:$0xff]
        %v7167 = vld [vmem:[%s7154 + $0x60] sm:$0xff]
        %v7168 = vld [vmem:[%s7154 + $0x68] sm:$0xff]
        %v7169 = vld [vmem:[%s7154 + $0x70] sm:$0xff]
        %v7170 = vld [vmem:[%s7154 + $0x78] sm:$0xff]
        %v7171 = vld [vmem:[%s7154 + $0x80] sm:$0xff]
        %v7172 = vld [vmem:[%s7154 + $0x88] sm:$0xff]
        %v7173 = vld [vmem:[%s7154 + $0x90] sm:$0xff]
        %v7174 = vld [vmem:[%s7154 + $0x98] sm:$0xff]
        %v7175 = vld [vmem:[%s7154 + $0xa0] sm:$0xff]
        %v7176 = vld [vmem:[%s7154 + $0xa8] sm:$0xff]
        %v7177 = vld [vmem:[%s7154 + $0xb0] sm:$0xff]
        %v7178 = vld [vmem:[%s7154 + $0xb8] sm:$0xff]
        %v7179 = vld [vmem:[%s7154 + $0xc0] sm:$0xff]
        %v7180 = vld [vmem:[%s7154 + $0xc8] sm:$0xff]
        %v7181 = vld [vmem:[%s7154 + $0xd0] sm:$0xff]
        %v7182 = vld [vmem:[%s7154 + $0xd8] sm:$0xff]
        %v7183 = vld [vmem:[%s7154 + $0xe0] sm:$0xff]
        %v7184 = vld [vmem:[%s7154 + $0xe8] sm:$0xff]
        %v7185 = vld [vmem:[%s7154 + $0xf0] sm:$0xff]
        %v7186 = vld [vmem:[%s7154 + $0xf8] sm:$0xff]
        %v7199 = vrot.slane %v7142, 3
        %v7200 = vrot.slane %v7144, 3
        %v7201 = vsel %vm3599, %v7199, %v7200
        %v7202 = vrot.slane %v7143, 3
        %v7203 = vrot.slane %v7145, 3
        %v7204 = vsel %vm3599, %v7202, %v7203
        %v7205 = vrot.slane %v7146, 3
        %v7206 = vsel %vm3599, %v7200, %v7205
        %v7207 = vrot.slane %v7147, 3
        %v7208 = vsel %vm3599, %v7203, %v7207
        %v7209 = vrot.slane %v7148, 3
        %v7210 = vsel %vm3599, %v7205, %v7209
        %v7211 = vrot.slane %v7149, 3
        %v7212 = vsel %vm3599, %v7207, %v7211
        %v7213 = vrot.slane %v7150, 3
        %v7214 = vsel %vm3599, %v7209, %v7213
        %v7215 = vrot.slane %v7151, 3
        %v7216 = vsel %vm3599, %v7211, %v7215
        %v7217 = vrot.slane %v7152, 3
        %v7218 = vsel %vm3599, %v7213, %v7217
        %v7219 = vrot.slane %v7153, 3
        %v7220 = vsel %vm3599, %v7215, %v7219
        %v7263 = vunpack.c.l.b16 %v7155
        %v7264 = vunpack.c.h.b16 %v7155
        %v7265 = vunpack.c.l.b16 %v7156
        %v7266 = vunpack.c.h.b16 %v7156
        %v7267 = vunpack.c.l.b16 %v7157
        %v7268 = vunpack.c.h.b16 %v7157
        %v7269 = vunpack.c.l.b16 %v7158
        %v7270 = vunpack.c.h.b16 %v7158
        %v7271 = vunpack.c.l.b16 %v7159
        %v7272 = vunpack.c.h.b16 %v7159
        %v7273 = vunpack.c.l.b16 %v7160
        %v7274 = vunpack.c.h.b16 %v7160
        %v7275 = vunpack.c.l.b16 %v7161
        %v7276 = vunpack.c.h.b16 %v7161
        %v7277 = vunpack.c.l.b16 %v7162
        %v7278 = vunpack.c.h.b16 %v7162
        %v7279 = vunpack.c.l.b16 %v7163
        %v7280 = vunpack.c.h.b16 %v7163
        %v7281 = vunpack.c.l.b16 %v7164
        %v7282 = vunpack.c.h.b16 %v7164
        %v7283 = vunpack.c.l.b16 %v7165
        %v7284 = vunpack.c.h.b16 %v7165
        %v7285 = vunpack.c.l.b16 %v7166
        %v7286 = vunpack.c.h.b16 %v7166
        %v7287 = vunpack.c.l.b16 %v7167
        %v7288 = vunpack.c.h.b16 %v7167
        %v7289 = vunpack.c.l.b16 %v7168
        %v7290 = vunpack.c.h.b16 %v7168
        %v7291 = vunpack.c.l.b16 %v7169
        %v7292 = vunpack.c.h.b16 %v7169
        %v7293 = vunpack.c.l.b16 %v7170
        %v7294 = vunpack.c.h.b16 %v7170
        %v7295 = vunpack.c.l.b16 %v7171
        %v7296 = vunpack.c.h.b16 %v7171
        %v7297 = vunpack.c.l.b16 %v7172
        %v7298 = vunpack.c.h.b16 %v7172
        %v7299 = vunpack.c.l.b16 %v7173
        %v7300 = vunpack.c.h.b16 %v7173
        %v7301 = vunpack.c.l.b16 %v7174
        %v7302 = vunpack.c.h.b16 %v7174
        %v7303 = vunpack.c.l.b16 %v7175
        %v7304 = vunpack.c.h.b16 %v7175
        %v7305 = vunpack.c.l.b16 %v7176
        %v7306 = vunpack.c.h.b16 %v7176
        %v7307 = vunpack.c.l.b16 %v7177
        %v7308 = vunpack.c.h.b16 %v7177
        %v7309 = vunpack.c.l.b16 %v7178
        %v7310 = vunpack.c.h.b16 %v7178
        %v7311 = vunpack.c.l.b16 %v7179
        %v7312 = vunpack.c.h.b16 %v7179
        %v7313 = vunpack.c.l.b16 %v7180
        %v7314 = vunpack.c.h.b16 %v7180
        %v7315 = vunpack.c.l.b16 %v7181
        %v7316 = vunpack.c.h.b16 %v7181
        %v7317 = vunpack.c.l.b16 %v7182
        %v7318 = vunpack.c.h.b16 %v7182
        %v7319 = vunpack.c.l.b16 %v7183
        %v7320 = vunpack.c.h.b16 %v7183
        %v7321 = vunpack.c.l.b16 %v7184
        %v7322 = vunpack.c.h.b16 %v7184
        %v7323 = vunpack.c.l.b16 %v7185
        %v7324 = vunpack.c.h.b16 %v7185
        %v7325 = vunpack.c.l.b16 %v7186
        %v7326 = vunpack.c.h.b16 %v7186
        %v7327 = vpack.c.b16 %v7265, %v7263
        %v7328 = vpack.c.b16 %v7266, %v7264
        %v7329 = vpack.c.b16 %v7269, %v7267
        %v7330 = vpack.c.b16 %v7270, %v7268
        %v7331 = vpack.c.b16 %v7273, %v7271
        %v7332 = vpack.c.b16 %v7274, %v7272
        %v7333 = vpack.c.b16 %v7277, %v7275
        %v7334 = vpack.c.b16 %v7278, %v7276
        %v7335 = vpack.c.b16 %v7281, %v7279
        %v7336 = vpack.c.b16 %v7282, %v7280
        %v7337 = vpack.c.b16 %v7285, %v7283
        %v7338 = vpack.c.b16 %v7286, %v7284
        %v7339 = vpack.c.b16 %v7289, %v7287
        %v7340 = vpack.c.b16 %v7290, %v7288
        %v7341 = vpack.c.b16 %v7293, %v7291
        %v7342 = vpack.c.b16 %v7294, %v7292
        %v7343 = vpack.c.b16 %v7297, %v7295
        %v7344 = vpack.c.b16 %v7298, %v7296
        %v7345 = vpack.c.b16 %v7301, %v7299
        %v7346 = vpack.c.b16 %v7302, %v7300
        %v7347 = vpack.c.b16 %v7305, %v7303
        %v7348 = vpack.c.b16 %v7306, %v7304
        %v7349 = vpack.c.b16 %v7309, %v7307
        %v7350 = vpack.c.b16 %v7310, %v7308
        %v7351 = vpack.c.b16 %v7313, %v7311
        %v7352 = vpack.c.b16 %v7314, %v7312
        %v7353 = vpack.c.b16 %v7317, %v7315
        %v7354 = vpack.c.b16 %v7318, %v7316
        %v7355 = vpack.c.b16 %v7321, %v7319
        %v7356 = vpack.c.b16 %v7322, %v7320
        %v7357 = vpack.c.b16 %v7325, %v7323
        %v7358 = vpack.c.b16 %v7326, %v7324
        %7391 = vmatpush.bf16.msra.mxu0 %v7341
        %7392 = vmatpush.bf16.msra.mxu0 %v7339
        %7393 = vmatpush.bf16.msra.mxu0 %v7337
        %7394 = vmatpush.bf16.msra.mxu0 %v7335
        %7395 = vmatpush.bf16.msra.mxu0 %v7333
        %7396 = vmatpush.bf16.msra.mxu0 %v7331
        %7397 = vmatpush.bf16.msra.mxu0 %v7329
        %7398 = vmatpush.bf16.msra.mxu0 %v7327
        %7399 = vmatmul.bf16.gmra.mxu0 %v7201
        %v7400 = vpop.f32.mrf.mxu0
        %v7401 = vadd.f32 0.0, %v7400
        %v7402 = vpop.f32.mrf.mxu0
        %v7403 = vadd.f32 0.0, %v7402
        %7404 = vmatmul.bf16.gmra.mxu0 %v7206
        %v7405 = vpop.f32.mrf.mxu0
        %v7406 = vadd.f32 0.0, %v7405
        %v7407 = vpop.f32.mrf.mxu0
        %v7408 = vadd.f32 0.0, %v7407
        %7409 = vmatmul.bf16.gmra.mxu0 %v7210
        %v7410 = vpop.f32.mrf.mxu0
        %v7411 = vadd.f32 0.0, %v7410
        %v7412 = vpop.f32.mrf.mxu0
        %v7413 = vadd.f32 0.0, %v7412
        %7414 = vmatmul.bf16.gmra.mxu0 %v7214
        %v7415 = vpop.f32.mrf.mxu0
        %v7416 = vadd.f32 0.0, %v7415
        %v7417 = vpop.f32.mrf.mxu0
        %v7418 = vadd.f32 0.0, %v7417
        %7419 = vmatmul.bf16.gmra.mxu0 %v7218
        %v7420 = vpop.f32.mrf.mxu0
        %v7421 = vadd.f32 0.0, %v7420
        %v7422 = vpop.f32.mrf.mxu0
        %v7423 = vadd.f32 0.0, %v7422
        %7424 = vdwg.mxu0
        %7425 = vmatpush.bf16.msra.mxu0 %v7357
        %7426 = vmatpush.bf16.msra.mxu0 %v7355
        %7427 = vmatpush.bf16.msra.mxu0 %v7353
        %7428 = vmatpush.bf16.msra.mxu0 %v7351
        %7429 = vmatpush.bf16.msra.mxu0 %v7349
        %7430 = vmatpush.bf16.msra.mxu0 %v7347
        %7431 = vmatpush.bf16.msra.mxu0 %v7345
        %7432 = vmatpush.bf16.msra.mxu0 %v7343
        %7433 = vmatmul.bf16.gmra.mxu0 %v7204
        %v7434 = vpop.f32.mrf.mxu0
        %v7435 = vadd.f32 %v7401, %v7434
        %v7436 = vpop.f32.mrf.mxu0
        %v7437 = vadd.f32 %v7403, %v7436
        %7438 = vmatmul.bf16.gmra.mxu0 %v7208
        %v7439 = vpop.f32.mrf.mxu0
        %v7440 = vadd.f32 %v7406, %v7439
        %v7441 = vpop.f32.mrf.mxu0
        %v7442 = vadd.f32 %v7408, %v7441
        %7443 = vmatmul.bf16.gmra.mxu0 %v7212
        %v7444 = vpop.f32.mrf.mxu0
        %v7445 = vadd.f32 %v7411, %v7444
        %v7446 = vpop.f32.mrf.mxu0
        %v7447 = vadd.f32 %v7413, %v7446
        %7448 = vmatmul.bf16.gmra.mxu0 %v7216
        %v7449 = vpop.f32.mrf.mxu0
        %v7450 = vadd.f32 %v7416, %v7449
        %v7451 = vpop.f32.mrf.mxu0
        %v7452 = vadd.f32 %v7418, %v7451
        %7453 = vmatmul.bf16.gmra.mxu0 %v7220
        %v7454 = vpop.f32.mrf.mxu0
        %v7455 = vadd.f32 %v7421, %v7454
        %v7456 = vpop.f32.mrf.mxu0
        %v7457 = vadd.f32 %v7423, %v7456
        %7458 = vdwg.mxu0
        %7459 = vmatpush.bf16.msra.mxu0 %v7342
        %7460 = vmatpush.bf16.msra.mxu0 %v7340
        %7461 = vmatpush.bf16.msra.mxu0 %v7338
        %7462 = vmatpush.bf16.msra.mxu0 %v7336
        %7463 = vmatpush.bf16.msra.mxu0 %v7334
        %7464 = vmatpush.bf16.msra.mxu0 %v7332
        %7465 = vmatpush.bf16.msra.mxu0 %v7330
        %7466 = vmatpush.bf16.msra.mxu0 %v7328
        %7467 = vmatmul.bf16.gmra.mxu0 %v7201
        %v7468 = vpop.f32.mrf.mxu0
        %v7469 = vadd.f32 0.0, %v7468
        %v7470 = vpop.f32.mrf.mxu0
        %v7471 = vadd.f32 0.0, %v7470
        %7472 = vmatmul.bf16.gmra.mxu0 %v7206
        %v7473 = vpop.f32.mrf.mxu0
        %v7474 = vadd.f32 0.0, %v7473
        %v7475 = vpop.f32.mrf.mxu0
        %v7476 = vadd.f32 0.0, %v7475
        %7477 = vmatmul.bf16.gmra.mxu0 %v7210
        %v7478 = vpop.f32.mrf.mxu0
        %v7479 = vadd.f32 0.0, %v7478
        %v7480 = vpop.f32.mrf.mxu0
        %v7481 = vadd.f32 0.0, %v7480
        %7482 = vmatmul.bf16.gmra.mxu0 %v7214
        %v7483 = vpop.f32.mrf.mxu0
        %v7484 = vadd.f32 0.0, %v7483
        %v7485 = vpop.f32.mrf.mxu0
        %v7486 = vadd.f32 0.0, %v7485
        %7487 = vmatmul.bf16.gmra.mxu0 %v7218
        %v7488 = vpop.f32.mrf.mxu0
        %v7489 = vadd.f32 0.0, %v7488
        %v7490 = vpop.f32.mrf.mxu0
        %v7491 = vadd.f32 0.0, %v7490
        %7492 = vdwg.mxu0
        %7493 = vmatpush.bf16.msra.mxu0 %v7358
        %7494 = vmatpush.bf16.msra.mxu0 %v7356
        %7495 = vmatpush.bf16.msra.mxu0 %v7354
        %7496 = vmatpush.bf16.msra.mxu0 %v7352
        %7497 = vmatpush.bf16.msra.mxu0 %v7350
        %7498 = vmatpush.bf16.msra.mxu0 %v7348
        %7499 = vmatpush.bf16.msra.mxu0 %v7346
        %7500 = vmatpush.bf16.msra.mxu0 %v7344
        %7501 = vmatmul.bf16.gmra.mxu0 %v7204
        %v7502 = vpop.f32.mrf.mxu0
        %v7503 = vadd.f32 %v7469, %v7502
        %v7504 = vpop.f32.mrf.mxu0
        %v7505 = vadd.f32 %v7471, %v7504
        %7506 = vmatmul.bf16.gmra.mxu0 %v7208
        %v7507 = vpop.f32.mrf.mxu0
        %v7508 = vadd.f32 %v7474, %v7507
        %v7509 = vpop.f32.mrf.mxu0
        %v7510 = vadd.f32 %v7476, %v7509
        %7511 = vmatmul.bf16.gmra.mxu0 %v7212
        %v7512 = vpop.f32.mrf.mxu0
        %v7513 = vadd.f32 %v7479, %v7512
        %v7514 = vpop.f32.mrf.mxu0
        %v7515 = vadd.f32 %v7481, %v7514
        %7516 = vmatmul.bf16.gmra.mxu0 %v7216
        %v7517 = vpop.f32.mrf.mxu0
        %v7518 = vadd.f32 %v7484, %v7517
        %v7519 = vpop.f32.mrf.mxu0
        %v7520 = vadd.f32 %v7486, %v7519
        %7521 = vmatmul.bf16.gmra.mxu0 %v7220
        %v7522 = vpop.f32.mrf.mxu0
        %v7523 = vadd.f32 %v7489, %v7522
        %v7524 = vpop.f32.mrf.mxu0
        %v7525 = vadd.f32 %v7491, %v7524
        %7526 = vdwg.mxu0
        %v7527 = vadd.f32 %v7100, %v7435
        %v7528 = vadd.f32 %v7101, %v7503
        %v7529 = vadd.f32 %v7102, %v7437
        %v7530 = vadd.f32 %v7103, %v7505
        %v7531 = vadd.f32 %v7104, %v7440
        %v7532 = vadd.f32 %v7105, %v7508
        %v7533 = vadd.f32 %v7106, %v7442
        %v7534 = vadd.f32 %v7107, %v7510
        %v7535 = vadd.f32 %v7108, %v7445
        %v7536 = vadd.f32 %v7109, %v7513
        %v7537 = vadd.f32 %v7110, %v7447
        %v7538 = vadd.f32 %v7111, %v7515
        %v7539 = vadd.f32 %v7112, %v7450
        %v7540 = vadd.f32 %v7113, %v7518
        %v7541 = vadd.f32 %v7114, %v7452
        %v7542 = vadd.f32 %v7115, %v7520
        %v7543 = vadd.f32 %v7116, %v7455
        %v7544 = vadd.f32 %v7117, %v7523
        %v7545 = vadd.f32 %v7118, %v7457
        %v7546 = vadd.f32 %v7119, %v7525
        %7547 = vst [vmem:[#allocation3] sm:$0xff] %v7527
        %7548 = vst [vmem:[#allocation3 + $0x8] sm:$0xff] %v7528
        %7549 = vst [vmem:[#allocation3 + $0x10] sm:$0xff] %v7529
        %7550 = vst [vmem:[#allocation3 + $0x18] sm:$0xff] %v7530
        %7551 = vst [vmem:[#allocation3 + $0x20] sm:$0xff] %v7531
        %7552 = vst [vmem:[#allocation3 + $0x28] sm:$0xff] %v7532
        %7553 = vst [vmem:[#allocation3 + $0x30] sm:$0xff] %v7533
        %7554 = vst [vmem:[#allocation3 + $0x38] sm:$0xff] %v7534
        %7555 = vst [vmem:[#allocation3 + $0x40] sm:$0xff] %v7535
        %7556 = vst [vmem:[#allocation3 + $0x48] sm:$0xff] %v7536
        %7557 = vst [vmem:[#allocation3 + $0x50] sm:$0xff] %v7537
        %7558 = vst [vmem:[#allocation3 + $0x58] sm:$0xff] %v7538
        %7559 = vst [vmem:[#allocation3 + $0x60] sm:$0xff] %v7539
        %7560 = vst [vmem:[#allocation3 + $0x68] sm:$0xff] %v7540
        %7561 = vst [vmem:[#allocation3 + $0x70] sm:$0xff] %v7541
        %7562 = vst [vmem:[#allocation3 + $0x78] sm:$0xff] %v7542
        %7563 = vst [vmem:[#allocation3 + $0x80] sm:$0xff] %v7543
        %7564 = vst [vmem:[#allocation3 + $0x88] sm:$0xff] %v7544
        %7565 = vst [vmem:[#allocation3 + $0x90] sm:$0xff] %v7545
        %7566 = vst [vmem:[#allocation3 + $0x98] sm:$0xff] %v7546
        %v7567 = vld [vmem:[#allocation3] sm:$0xff]
        %v7568 = vld [vmem:[#allocation3 + $0x8] sm:$0xff]
        %v7569 = vld [vmem:[#allocation3 + $0x10] sm:$0xff]
        %v7570 = vld [vmem:[#allocation3 + $0x18] sm:$0xff]
        %v7571 = vld [vmem:[#allocation3 + $0x20] sm:$0xff]
        %v7572 = vld [vmem:[#allocation3 + $0x28] sm:$0xff]
        %v7573 = vld [vmem:[#allocation3 + $0x30] sm:$0xff]
        %v7574 = vld [vmem:[#allocation3 + $0x38] sm:$0xff]
        %v7575 = vld [vmem:[#allocation4] sm:$0xff]
        %v7576 = vld [vmem:[#allocation4 + $0x8] sm:$0xff]
        %v7577 = vld [vmem:[#allocation4 + $0x10] sm:$0xff]
        %v7578 = vld [vmem:[#allocation4 + $0x18] sm:$0xff]
        %v7579 = vld [vmem:[#allocation4 + $0x20] sm:$0xff]
        %v7580 = vld [vmem:[#allocation4 + $0x28] sm:$0xff]
        %v7581 = vld [vmem:[#allocation4 + $0x30] sm:$0xff]
        %v7582 = vld [vmem:[#allocation4 + $0x38] sm:$0xff]
        %v7583 = vadd.f32 %v7575, %v7567
        %v7584 = vadd.f32 %v7576, %v7568
        %v7585 = vadd.f32 %v7577, %v7569
        %v7586 = vadd.f32 %v7578, %v7570
        %v7587 = vadd.f32 %v7579, %v7571
        %v7588 = vadd.f32 %v7580, %v7572
        %v7589 = vadd.f32 %v7581, %v7573
        %v7590 = vadd.f32 %v7582, %v7574
        %v7591 = vmax.f32 %v7583, 0.0
        %v7592 = vmax.f32 %v7584, 0.0
        %v7593 = vmax.f32 %v7585, 0.0
        %v7594 = vmax.f32 %v7586, 0.0
        %v7595 = vmax.f32 %v7587, 0.0
        %v7596 = vmax.f32 %v7588, 0.0
        %v7597 = vmax.f32 %v7589, 0.0
        %v7598 = vmax.f32 %v7590, 0.0
        %v7607 = vrot.slane %v7591, 5
        %v7608 = vrot.slane %v7592, 5
        %v7609 = vrot.slane %v7593, 5
        %v7610 = vsel %vm492, %v7607, %v7609
        %v7611 = vrot.slane %v7594, 5
        %v7612 = vsel %vm492, %v7608, %v7611
        %v7613 = vrot.slane %v7595, 5
        %v7614 = vsel %vm492, %v7609, %v7613
        %v7615 = vrot.slane %v7596, 5
        %v7616 = vsel %vm492, %v7611, %v7615
        %v7617 = vrot.slane %v7597, 5
        %v7618 = vsel %vm492, %v7613, %v7617
        %v7619 = vrot.slane %v7598, 5
        %v7620 = vsel %vm492, %v7615, %v7619
        %7631 = vst [vmem:[#allocation2] sm:$0xf8] %v7607
        %7632 = vst [vmem:[#allocation2 + $0x8] sm:$0xf8] %v7608
        %7633 = vst [vmem:[#allocation2 + $0x10] sm:$0xff] %v7610
        %7634 = vst [vmem:[#allocation2 + $0x18] sm:$0xff] %v7612
        %7635 = vst [vmem:[#allocation2 + $0x20] sm:$0xff] %v7614
        %7636 = vst [vmem:[#allocation2 + $0x28] sm:$0xff] %v7616
        %7637 = vst [vmem:[#allocation2 + $0x30] sm:$0xff] %v7618
        %7638 = vst [vmem:[#allocation2 + $0x38] sm:$0xff] %v7620
        %7639 = vst [vmem:[#allocation2 + $0x40] sm:$0x7] %v7617
        %7640 = vst [vmem:[#allocation2 + $0x48] sm:$0x7] %v7619
        %v7641 = vld [vmem:[#allocation3 + $0x50] sm:$0xff]
        %v7642 = vld [vmem:[#allocation3 + $0x58] sm:$0xff]
        %v7643 = vld [vmem:[#allocation3 + $0x60] sm:$0xff]
        %v7644 = vld [vmem:[#allocation3 + $0x68] sm:$0xff]
        %v7645 = vld [vmem:[#allocation3 + $0x70] sm:$0xff]
        %v7646 = vld [vmem:[#allocation3 + $0x78] sm:$0xff]
        %v7647 = vld [vmem:[#allocation3 + $0x80] sm:$0xff]
        %v7648 = vld [vmem:[#allocation3 + $0x88] sm:$0xff]
        %v7649 = vld [vmem:[%s4107] sm:$0xff]
        %v7650 = vld [vmem:[%s4107 + $0x8] sm:$0xff]
        %v7651 = vld [vmem:[%s4107 + $0x10] sm:$0xff]
        %v7652 = vld [vmem:[%s4107 + $0x18] sm:$0xff]
        %v7653 = vld [vmem:[%s4107 + $0x20] sm:$0xff]
        %v7654 = vld [vmem:[%s4107 + $0x28] sm:$0xff]
        %v7655 = vld [vmem:[%s4107 + $0x30] sm:$0xff]
        %v7656 = vld [vmem:[%s4107 + $0x38] sm:$0xff]
        %v7657 = vadd.f32 %v7649, %v7641
        %v7658 = vadd.f32 %v7650, %v7642
        %v7659 = vadd.f32 %v7651, %v7643
        %v7660 = vadd.f32 %v7652, %v7644
        %v7661 = vadd.f32 %v7653, %v7645
        %v7662 = vadd.f32 %v7654, %v7646
        %v7663 = vadd.f32 %v7655, %v7647
        %v7664 = vadd.f32 %v7656, %v7648
        %v7665 = vmax.f32 %v7657, 0.0
        %v7666 = vmax.f32 %v7658, 0.0
        %v7667 = vmax.f32 %v7659, 0.0
        %v7668 = vmax.f32 %v7660, 0.0
        %v7669 = vmax.f32 %v7661, 0.0
        %v7670 = vmax.f32 %v7662, 0.0
        %v7671 = vmax.f32 %v7663, 0.0
        %v7672 = vmax.f32 %v7664, 0.0
        %v7681 = vrot.slane %v7665, 5
        %v7682 = vrot.slane %v7666, 5
        %v7683 = vrot.slane %v7667, 5
        %v7684 = vsel %vm492, %v7681, %v7683
        %v7685 = vrot.slane %v7668, 5
        %v7686 = vsel %vm492, %v7682, %v7685
        %v7687 = vrot.slane %v7669, 5
        %v7688 = vsel %vm492, %v7683, %v7687
        %v7689 = vrot.slane %v7670, 5
        %v7690 = vsel %vm492, %v7685, %v7689
        %v7691 = vrot.slane %v7671, 5
        %v7692 = vsel %vm492, %v7687, %v7691
        %v7693 = vrot.slane %v7672, 5
        %v7694 = vsel %vm492, %v7689, %v7693
        %7705 = vst [vmem:[#allocation2 + $0x50] sm:$0xf8] %v7681
        %7706 = vst [vmem:[#allocation2 + $0x58] sm:$0xf8] %v7682
        %7707 = vst [vmem:[#allocation2 + $0x60] sm:$0xff] %v7684
        %7708 = vst [vmem:[#allocation2 + $0x68] sm:$0xff] %v7686
        %7709 = vst [vmem:[#allocation2 + $0x70] sm:$0xff] %v7688
        %7710 = vst [vmem:[#allocation2 + $0x78] sm:$0xff] %v7690
        %7711 = vst [vmem:[#allocation2 + $0x80] sm:$0xff] %v7692
        %7712 = vst [vmem:[#allocation2 + $0x88] sm:$0xff] %v7694
        %7713 = vst [vmem:[#allocation2 + $0x90] sm:$0x7] %v7691
        %7714 = vst [vmem:[#allocation2 + $0x98] sm:$0x7] %v7693
        %v7715 = vld [vmem:[#allocation2] sm:$0xff]
        %v7716 = vld [vmem:[#allocation2 + $0x8] sm:$0xff]
        %v7717 = vld [vmem:[#allocation2 + $0x10] sm:$0xff]
        %v7718 = vld [vmem:[#allocation2 + $0x18] sm:$0xff]
        %v7719 = vld [vmem:[#allocation2 + $0x20] sm:$0xff]
        %v7720 = vld [vmem:[#allocation2 + $0x28] sm:$0xff]
        %v7721 = vld [vmem:[#allocation2 + $0x30] sm:$0xff]
        %v7722 = vld [vmem:[#allocation2 + $0x38] sm:$0xff]
        %v7723 = vld [vmem:[#allocation2 + $0x40] sm:$0xff]
        %v7724 = vld [vmem:[#allocation2 + $0x48] sm:$0xff]
        %v7725 = vld [vmem:[#allocation2 + $0x50] sm:$0xff]
        %v7726 = vld [vmem:[#allocation2 + $0x58] sm:$0xff]
        %v7727 = vld [vmem:[#allocation2 + $0x60] sm:$0xff]
        %v7728 = vld [vmem:[#allocation2 + $0x68] sm:$0xff]
        %v7729 = vld [vmem:[#allocation2 + $0x70] sm:$0xff]
        %v7730 = vld [vmem:[#allocation2 + $0x78] sm:$0xff]
        %v7731 = vld [vmem:[#allocation2 + $0x80] sm:$0xff]
        %v7732 = vld [vmem:[#allocation2 + $0x88] sm:$0xff]
        %v7733 = vld [vmem:[#allocation2 + $0x90] sm:$0xff]
        %v7734 = vld [vmem:[#allocation2 + $0x98] sm:$0xff]
        %v7735 = vpack.c.bf16 %v7717, %v7715
        %v7736 = vpack.c.bf16 %v7718, %v7716
        %v7737 = vpack.c.bf16 %v7721, %v7719
        %v7738 = vpack.c.bf16 %v7722, %v7720
        %v7739 = vpack.c.bf16 %v7725, %v7723
        %v7740 = vpack.c.bf16 %v7726, %v7724
        %v7741 = vpack.c.bf16 %v7729, %v7727
        %v7742 = vpack.c.bf16 %v7730, %v7728
        %v7743 = vpack.c.bf16 %v7733, %v7731
        %v7744 = vpack.c.bf16 %v7734, %v7732
        %v7745 = vld [vmem:[#allocation7] sm:$0xff]
        %v7746 = vld [vmem:[#allocation7 + $0x8] sm:$0xff]
        %v7747 = vld [vmem:[#allocation7 + $0x10] sm:$0xff]
        %v7748 = vld [vmem:[#allocation7 + $0x18] sm:$0xff]
        %v7749 = vld [vmem:[#allocation7 + $0x20] sm:$0xff]
        %v7750 = vld [vmem:[#allocation7 + $0x28] sm:$0xff]
        %v7751 = vld [vmem:[#allocation7 + $0x30] sm:$0xff]
        %v7752 = vld [vmem:[#allocation7 + $0x38] sm:$0xff]
        %v7753 = vld [vmem:[#allocation7 + $0x40] sm:$0xff]
        %v7754 = vld [vmem:[#allocation7 + $0x48] sm:$0xff]
        %v7755 = vld [vmem:[#allocation7 + $0x50] sm:$0xff]
        %v7756 = vld [vmem:[#allocation7 + $0x58] sm:$0xff]
        %v7757 = vld [vmem:[#allocation7 + $0x60] sm:$0xff]
        %v7758 = vld [vmem:[#allocation7 + $0x68] sm:$0xff]
        %v7759 = vld [vmem:[#allocation7 + $0x70] sm:$0xff]
        %v7760 = vld [vmem:[#allocation7 + $0x78] sm:$0xff]
        %v7761 = vld [vmem:[#allocation7 + $0x80] sm:$0xff]
        %v7762 = vld [vmem:[#allocation7 + $0x88] sm:$0xff]
        %v7763 = vld [vmem:[#allocation7 + $0x90] sm:$0xff]
        %v7764 = vld [vmem:[#allocation7 + $0x98] sm:$0xff]
        %v7765 = vld [vmem:[#allocation7 + $0xa0] sm:$0xff]
        %v7766 = vld [vmem:[#allocation7 + $0xa8] sm:$0xff]
        %v7767 = vld [vmem:[#allocation7 + $0xb0] sm:$0xff]
        %v7768 = vld [vmem:[#allocation7 + $0xb8] sm:$0xff]
        %v7769 = vld [vmem:[#allocation7 + $0xc0] sm:$0xff]
        %v7770 = vld [vmem:[#allocation7 + $0xc8] sm:$0xff]
        %v7771 = vld [vmem:[#allocation7 + $0xd0] sm:$0xff]
        %v7772 = vld [vmem:[#allocation7 + $0xd8] sm:$0xff]
        %v7773 = vld [vmem:[#allocation7 + $0xe0] sm:$0xff]
        %v7774 = vld [vmem:[#allocation7 + $0xe8] sm:$0xff]
        %v7775 = vld [vmem:[#allocation7 + $0xf0] sm:$0xff]
        %v7776 = vld [vmem:[#allocation7 + $0xf8] sm:$0xff]
        %v7777 = vld [vmem:[#allocation10] sm:$0x3]
        %v7779 = vperm.slane %v7777, 0
        %v7780 = vperm.slane %v7777, 1
        %v7815 = vunpack.c.l.b16 %v7745
        %v7816 = vunpack.c.h.b16 %v7745
        %v7817 = vunpack.c.l.b16 %v7746
        %v7818 = vunpack.c.h.b16 %v7746
        %v7819 = vunpack.c.l.b16 %v7747
        %v7820 = vunpack.c.h.b16 %v7747
        %v7821 = vunpack.c.l.b16 %v7748
        %v7822 = vunpack.c.h.b16 %v7748
        %v7823 = vunpack.c.l.b16 %v7749
        %v7824 = vunpack.c.h.b16 %v7749
        %v7825 = vunpack.c.l.b16 %v7750
        %v7826 = vunpack.c.h.b16 %v7750
        %v7827 = vunpack.c.l.b16 %v7751
        %v7828 = vunpack.c.h.b16 %v7751
        %v7829 = vunpack.c.l.b16 %v7752
        %v7830 = vunpack.c.h.b16 %v7752
        %v7831 = vunpack.c.l.b16 %v7753
        %v7832 = vunpack.c.h.b16 %v7753
        %v7833 = vunpack.c.l.b16 %v7754
        %v7834 = vunpack.c.h.b16 %v7754
        %v7835 = vunpack.c.l.b16 %v7755
        %v7836 = vunpack.c.h.b16 %v7755
        %v7837 = vunpack.c.l.b16 %v7756
        %v7838 = vunpack.c.h.b16 %v7756
        %v7839 = vunpack.c.l.b16 %v7757
        %v7840 = vunpack.c.h.b16 %v7757
        %v7841 = vunpack.c.l.b16 %v7758
        %v7842 = vunpack.c.h.b16 %v7758
        %v7843 = vunpack.c.l.b16 %v7759
        %v7844 = vunpack.c.h.b16 %v7759
        %v7845 = vunpack.c.l.b16 %v7760
        %v7846 = vunpack.c.h.b16 %v7760
        %v7847 = vunpack.c.l.b16 %v7761
        %v7848 = vunpack.c.h.b16 %v7761
        %v7849 = vunpack.c.l.b16 %v7762
        %v7850 = vunpack.c.h.b16 %v7762
        %v7851 = vunpack.c.l.b16 %v7763
        %v7852 = vunpack.c.h.b16 %v7763
        %v7853 = vunpack.c.l.b16 %v7764
        %v7854 = vunpack.c.h.b16 %v7764
        %v7855 = vunpack.c.l.b16 %v7765
        %v7856 = vunpack.c.h.b16 %v7765
        %v7857 = vunpack.c.l.b16 %v7766
        %v7858 = vunpack.c.h.b16 %v7766
        %v7859 = vunpack.c.l.b16 %v7767
        %v7860 = vunpack.c.h.b16 %v7767
        %v7861 = vunpack.c.l.b16 %v7768
        %v7862 = vunpack.c.h.b16 %v7768
        %v7863 = vunpack.c.l.b16 %v7769
        %v7864 = vunpack.c.h.b16 %v7769
        %v7865 = vunpack.c.l.b16 %v7770
        %v7866 = vunpack.c.h.b16 %v7770
        %v7867 = vunpack.c.l.b16 %v7771
        %v7868 = vunpack.c.h.b16 %v7771
        %v7869 = vunpack.c.l.b16 %v7772
        %v7870 = vunpack.c.h.b16 %v7772
        %v7871 = vunpack.c.l.b16 %v7773
        %v7872 = vunpack.c.h.b16 %v7773
        %v7873 = vunpack.c.l.b16 %v7774
        %v7874 = vunpack.c.h.b16 %v7774
        %v7875 = vunpack.c.l.b16 %v7775
        %v7876 = vunpack.c.h.b16 %v7775
        %v7877 = vunpack.c.l.b16 %v7776
        %v7878 = vunpack.c.h.b16 %v7776
        %v7879 = vpack.c.b16 %v7817, %v7815
        %v7880 = vpack.c.b16 %v7818, %v7816
        %v7881 = vpack.c.b16 %v7821, %v7819
        %v7882 = vpack.c.b16 %v7822, %v7820
        %v7883 = vpack.c.b16 %v7825, %v7823
        %v7884 = vpack.c.b16 %v7826, %v7824
        %v7885 = vpack.c.b16 %v7829, %v7827
        %v7886 = vpack.c.b16 %v7830, %v7828
        %v7887 = vpack.c.b16 %v7833, %v7831
        %v7888 = vpack.c.b16 %v7834, %v7832
        %v7889 = vpack.c.b16 %v7837, %v7835
        %v7890 = vpack.c.b16 %v7838, %v7836
        %v7891 = vpack.c.b16 %v7841, %v7839
        %v7892 = vpack.c.b16 %v7842, %v7840
        %v7893 = vpack.c.b16 %v7845, %v7843
        %v7894 = vpack.c.b16 %v7846, %v7844
        %v7895 = vpack.c.b16 %v7849, %v7847
        %v7896 = vpack.c.b16 %v7850, %v7848
        %v7897 = vpack.c.b16 %v7853, %v7851
        %v7898 = vpack.c.b16 %v7854, %v7852
        %v7899 = vpack.c.b16 %v7857, %v7855
        %v7900 = vpack.c.b16 %v7858, %v7856
        %v7901 = vpack.c.b16 %v7861, %v7859
        %v7902 = vpack.c.b16 %v7862, %v7860
        %v7903 = vpack.c.b16 %v7865, %v7863
        %v7904 = vpack.c.b16 %v7866, %v7864
        %v7905 = vpack.c.b16 %v7869, %v7867
        %v7906 = vpack.c.b16 %v7870, %v7868
        %v7907 = vpack.c.b16 %v7873, %v7871
        %v7908 = vpack.c.b16 %v7874, %v7872
        %v7909 = vpack.c.b16 %v7877, %v7875
        %v7910 = vpack.c.b16 %v7878, %v7876
        %7943 = vmatpush.bf16.msra.mxu0 %v7893
        %7944 = vmatpush.bf16.msra.mxu0 %v7891
        %7945 = vmatpush.bf16.msra.mxu0 %v7889
        %7946 = vmatpush.bf16.msra.mxu0 %v7887
        %7947 = vmatpush.bf16.msra.mxu0 %v7885
        %7948 = vmatpush.bf16.msra.mxu0 %v7883
        %7949 = vmatpush.bf16.msra.mxu0 %v7881
        %7950 = vmatpush.bf16.msra.mxu0 %v7879
        %7951 = vmatmul.bf16.gmra.mxu0 %v7735
        %v7952 = vpop.f32.mrf.mxu0
        %v7953 = vadd.f32 %v7779, %v7952
        %v7954 = vpop.f32.mrf.mxu0
        %v7955 = vadd.f32 %v7779, %v7954
        %7956 = vmatmul.bf16.gmra.mxu0 %v7737
        %v7957 = vpop.f32.mrf.mxu0
        %v7958 = vadd.f32 %v7779, %v7957
        %v7959 = vpop.f32.mrf.mxu0
        %v7960 = vadd.f32 %v7779, %v7959
        %7961 = vmatmul.bf16.gmra.mxu0 %v7739
        %v7962 = vpop.f32.mrf.mxu0
        %v7963 = vadd.f32 %v7779, %v7962
        %v7964 = vpop.f32.mrf.mxu0
        %v7965 = vadd.f32 %v7779, %v7964
        %7966 = vmatmul.bf16.gmra.mxu0 %v7741
        %v7967 = vpop.f32.mrf.mxu0
        %v7968 = vadd.f32 %v7779, %v7967
        %v7969 = vpop.f32.mrf.mxu0
        %v7970 = vadd.f32 %v7779, %v7969
        %7971 = vmatmul.bf16.gmra.mxu0 %v7743
        %v7972 = vpop.f32.mrf.mxu0
        %v7973 = vadd.f32 %v7779, %v7972
        %v7974 = vpop.f32.mrf.mxu0
        %v7975 = vadd.f32 %v7779, %v7974
        %7976 = vdwg.mxu0
        %7977 = vmatpush.bf16.msra.mxu0 %v7909
        %7978 = vmatpush.bf16.msra.mxu0 %v7907
        %7979 = vmatpush.bf16.msra.mxu0 %v7905
        %7980 = vmatpush.bf16.msra.mxu0 %v7903
        %7981 = vmatpush.bf16.msra.mxu0 %v7901
        %7982 = vmatpush.bf16.msra.mxu0 %v7899
        %7983 = vmatpush.bf16.msra.mxu0 %v7897
        %7984 = vmatpush.bf16.msra.mxu0 %v7895
        %7985 = vmatmul.bf16.gmra.mxu0 %v7736
        %v7986 = vpop.f32.mrf.mxu0
        %v7987 = vadd.f32 %v7953, %v7986
        %v7988 = vpop.f32.mrf.mxu0
        %v7989 = vadd.f32 %v7955, %v7988
        %7990 = vmatmul.bf16.gmra.mxu0 %v7738
        %v7991 = vpop.f32.mrf.mxu0
        %v7992 = vadd.f32 %v7958, %v7991
        %v7993 = vpop.f32.mrf.mxu0
        %v7994 = vadd.f32 %v7960, %v7993
        %7995 = vmatmul.bf16.gmra.mxu0 %v7740
        %v7996 = vpop.f32.mrf.mxu0
        %v7997 = vadd.f32 %v7963, %v7996
        %v7998 = vpop.f32.mrf.mxu0
        %v7999 = vadd.f32 %v7965, %v7998
        %8000 = vmatmul.bf16.gmra.mxu0 %v7742
        %v8001 = vpop.f32.mrf.mxu0
        %v8002 = vadd.f32 %v7968, %v8001
        %v8003 = vpop.f32.mrf.mxu0
        %v8004 = vadd.f32 %v7970, %v8003
        %8005 = vmatmul.bf16.gmra.mxu0 %v7744
        %v8006 = vpop.f32.mrf.mxu0
        %v8007 = vadd.f32 %v7973, %v8006
        %v8008 = vpop.f32.mrf.mxu0
        %v8009 = vadd.f32 %v7975, %v8008
        %8010 = vdwg.mxu0
        %8011 = vmatpush.bf16.msra.mxu0 %v7894
        %8012 = vmatpush.bf16.msra.mxu0 %v7892
        %8013 = vmatpush.bf16.msra.mxu0 %v7890
        %8014 = vmatpush.bf16.msra.mxu0 %v7888
        %8015 = vmatpush.bf16.msra.mxu0 %v7886
        %8016 = vmatpush.bf16.msra.mxu0 %v7884
        %8017 = vmatpush.bf16.msra.mxu0 %v7882
        %8018 = vmatpush.bf16.msra.mxu0 %v7880
        %8019 = vmatmul.bf16.gmra.mxu0 %v7735
        %v8020 = vpop.f32.mrf.mxu0
        %v8021 = vadd.f32 %v7780, %v8020
        %v8022 = vpop.f32.mrf.mxu0
        %v8023 = vadd.f32 %v7780, %v8022
        %8024 = vmatmul.bf16.gmra.mxu0 %v7737
        %v8025 = vpop.f32.mrf.mxu0
        %v8026 = vadd.f32 %v7780, %v8025
        %v8027 = vpop.f32.mrf.mxu0
        %v8028 = vadd.f32 %v7780, %v8027
        %8029 = vmatmul.bf16.gmra.mxu0 %v7739
        %v8030 = vpop.f32.mrf.mxu0
        %v8031 = vadd.f32 %v7780, %v8030
        %v8032 = vpop.f32.mrf.mxu0
        %v8033 = vadd.f32 %v7780, %v8032
        %8034 = vmatmul.bf16.gmra.mxu0 %v7741
        %v8035 = vpop.f32.mrf.mxu0
        %v8036 = vadd.f32 %v7780, %v8035
        %v8037 = vpop.f32.mrf.mxu0
        %v8038 = vadd.f32 %v7780, %v8037
        %8039 = vmatmul.bf16.gmra.mxu0 %v7743
        %v8040 = vpop.f32.mrf.mxu0
        %v8041 = vadd.f32 %v7780, %v8040
        %v8042 = vpop.f32.mrf.mxu0
        %v8043 = vadd.f32 %v7780, %v8042
        %8044 = vdwg.mxu0
        %8045 = vmatpush.bf16.msra.mxu0 %v7910
        %8046 = vmatpush.bf16.msra.mxu0 %v7908
        %8047 = vmatpush.bf16.msra.mxu0 %v7906
        %8048 = vmatpush.bf16.msra.mxu0 %v7904
        %8049 = vmatpush.bf16.msra.mxu0 %v7902
        %8050 = vmatpush.bf16.msra.mxu0 %v7900
        %8051 = vmatpush.bf16.msra.mxu0 %v7898
        %8052 = vmatpush.bf16.msra.mxu0 %v7896
        %8053 = vmatmul.bf16.gmra.mxu0 %v7736
        %v8054 = vpop.f32.mrf.mxu0
        %v8055 = vadd.f32 %v8021, %v8054
        %v8056 = vpop.f32.mrf.mxu0
        %v8057 = vadd.f32 %v8023, %v8056
        %8058 = vmatmul.bf16.gmra.mxu0 %v7738
        %v8059 = vpop.f32.mrf.mxu0
        %v8060 = vadd.f32 %v8026, %v8059
        %v8061 = vpop.f32.mrf.mxu0
        %v8062 = vadd.f32 %v8028, %v8061
        %8063 = vmatmul.bf16.gmra.mxu0 %v7740
        %v8064 = vpop.f32.mrf.mxu0
        %v8065 = vadd.f32 %v8031, %v8064
        %v8066 = vpop.f32.mrf.mxu0
        %v8067 = vadd.f32 %v8033, %v8066
        %8068 = vmatmul.bf16.gmra.mxu0 %v7742
        %v8069 = vpop.f32.mrf.mxu0
        %v8070 = vadd.f32 %v8036, %v8069
        %v8071 = vpop.f32.mrf.mxu0
        %v8072 = vadd.f32 %v8038, %v8071
        %8073 = vmatmul.bf16.gmra.mxu0 %v7744
        %v8074 = vpop.f32.mrf.mxu0
        %v8075 = vadd.f32 %v8041, %v8074
        %v8076 = vpop.f32.mrf.mxu0
        %v8077 = vadd.f32 %v8043, %v8076
        %8078 = vdwg.mxu0
        %8079 = vst [vmem:[#allocation3] sm:$0xff] %v7987
        %8080 = vst [vmem:[#allocation3 + $0x8] sm:$0xff] %v8055
        %8081 = vst [vmem:[#allocation3 + $0x10] sm:$0xff] %v7989
        %8082 = vst [vmem:[#allocation3 + $0x18] sm:$0xff] %v8057
        %8083 = vst [vmem:[#allocation3 + $0x20] sm:$0xff] %v7992
        %8084 = vst [vmem:[#allocation3 + $0x28] sm:$0xff] %v8060
        %8085 = vst [vmem:[#allocation3 + $0x30] sm:$0xff] %v7994
        %8086 = vst [vmem:[#allocation3 + $0x38] sm:$0xff] %v8062
        %8087 = vst [vmem:[#allocation3 + $0x40] sm:$0xff] %v7997
        %8088 = vst [vmem:[#allocation3 + $0x48] sm:$0xff] %v8065
        %8089 = vst [vmem:[#allocation3 + $0x50] sm:$0xff] %v7999
        %8090 = vst [vmem:[#allocation3 + $0x58] sm:$0xff] %v8067
        %8091 = vst [vmem:[#allocation3 + $0x60] sm:$0xff] %v8002
        %8092 = vst [vmem:[#allocation3 + $0x68] sm:$0xff] %v8070
        %8093 = vst [vmem:[#allocation3 + $0x70] sm:$0xff] %v8004
        %8094 = vst [vmem:[#allocation3 + $0x78] sm:$0xff] %v8072
        %8095 = vst [vmem:[#allocation3 + $0x80] sm:$0xff] %v8007
        %8096 = vst [vmem:[#allocation3 + $0x88] sm:$0xff] %v8075
        %8097 = vst [vmem:[#allocation3 + $0x90] sm:$0xff] %v8009
        %8098 = vst [vmem:[#allocation3 + $0x98] sm:$0xff] %v8077
        %v8099 = vld [vmem:[#allocation3] sm:$0xff]
        %v8100 = vld [vmem:[#allocation3 + $0x8] sm:$0xff]
        %v8101 = vld [vmem:[#allocation3 + $0x10] sm:$0xff]
        %v8102 = vld [vmem:[#allocation3 + $0x18] sm:$0xff]
        %v8103 = vld [vmem:[#allocation3 + $0x20] sm:$0xff]
        %v8104 = vld [vmem:[#allocation3 + $0x28] sm:$0xff]
        %v8105 = vld [vmem:[#allocation3 + $0x30] sm:$0xff]
        %v8106 = vld [vmem:[#allocation3 + $0x38] sm:$0xff]
        %v8107 = vld [vmem:[#allocation3 + $0x40] sm:$0xff]
        %v8108 = vld [vmem:[#allocation3 + $0x48] sm:$0xff]
        %v8109 = vld [vmem:[#allocation3 + $0x50] sm:$0xff]
        %v8110 = vld [vmem:[#allocation3 + $0x58] sm:$0xff]
        %v8111 = vld [vmem:[#allocation3 + $0x60] sm:$0xff]
        %v8112 = vld [vmem:[#allocation3 + $0x68] sm:$0xff]
        %v8113 = vld [vmem:[#allocation3 + $0x70] sm:$0xff]
        %v8114 = vld [vmem:[#allocation3 + $0x78] sm:$0xff]
        %v8115 = vld [vmem:[#allocation3 + $0x80] sm:$0xff]
        %v8116 = vld [vmem:[#allocation3 + $0x88] sm:$0xff]
        %v8117 = vld [vmem:[#allocation3 + $0x90] sm:$0xff]
        %v8118 = vld [vmem:[#allocation3 + $0x98] sm:$0xff]
        %v8119 = vld [vmem:[#allocation2] sm:$0xfe]
        %v8120 = vld [vmem:[#allocation2 + $0x8] sm:$0xfe]
        %v8121 = vld [vmem:[#allocation2 + $0x10] sm:$0xff]
        %v8122 = vld [vmem:[#allocation2 + $0x18] sm:$0xff]
        %v8123 = vld [vmem:[#allocation2 + $0x20] sm:$0xff]
        %v8124 = vld [vmem:[#allocation2 + $0x28] sm:$0xff]
        %v8125 = vld [vmem:[#allocation2 + $0x30] sm:$0xff]
        %v8126 = vld [vmem:[#allocation2 + $0x38] sm:$0xff]
        %v8127 = vld [vmem:[#allocation2 + $0x40] sm:$0xff]
        %v8128 = vld [vmem:[#allocation2 + $0x48] sm:$0xff]
        %v8129 = vld [vmem:[#allocation2 + $0x50] sm:$0xff]
        %v8130 = vld [vmem:[#allocation2 + $0x58] sm:$0xff]
        %v8131 = vld [vmem:[#allocation2 + $0x60] sm:$0xff]
        %v8132 = vld [vmem:[#allocation2 + $0x68] sm:$0xff]
        %v8133 = vld [vmem:[#allocation2 + $0x70] sm:$0xff]
        %v8134 = vld [vmem:[#allocation2 + $0x78] sm:$0xff]
        %v8135 = vld [vmem:[#allocation2 + $0x80] sm:$0xff]
        %v8136 = vld [vmem:[#allocation2 + $0x88] sm:$0xff]
        %v8137 = vld [vmem:[#allocation2 + $0x90] sm:$0xff]
        %v8138 = vld [vmem:[#allocation2 + $0x98] sm:$0xff]
        %v8139 = vld [vmem:[#allocation2 + $0xa0] sm:$0x1]
        %v8140 = vld [vmem:[#allocation2 + $0xa8] sm:$0x1]
        %v8141 = vpack.c.bf16 %v8121, %v8119
        %v8142 = vpack.c.bf16 %v8122, %v8120
        %v8143 = vpack.c.bf16 %v8125, %v8123
        %v8144 = vpack.c.bf16 %v8126, %v8124
        %v8145 = vpack.c.bf16 %v8129, %v8127
        %v8146 = vpack.c.bf16 %v8130, %v8128
        %v8147 = vpack.c.bf16 %v8133, %v8131
        %v8148 = vpack.c.bf16 %v8134, %v8132
        %v8149 = vpack.c.bf16 %v8137, %v8135
        %v8150 = vpack.c.bf16 %v8138, %v8136
        %v8151 = vpack.c.bf16 %v8139, %v8139
        %v8152 = vpack.c.bf16 %v8140, %v8140
        %s8153 = scalar_lea.vmem [#allocation7], 256
        %v8154 = vld [vmem:[%s8153] sm:$0xff]
        %v8155 = vld [vmem:[%s8153 + $0x8] sm:$0xff]
        %v8156 = vld [vmem:[%s8153 + $0x10] sm:$0xff]
        %v8157 = vld [vmem:[%s8153 + $0x18] sm:$0xff]
        %v8158 = vld [vmem:[%s8153 + $0x20] sm:$0xff]
        %v8159 = vld [vmem:[%s8153 + $0x28] sm:$0xff]
        %v8160 = vld [vmem:[%s8153 + $0x30] sm:$0xff]
        %v8161 = vld [vmem:[%s8153 + $0x38] sm:$0xff]
        %v8162 = vld [vmem:[%s8153 + $0x40] sm:$0xff]
        %v8163 = vld [vmem:[%s8153 + $0x48] sm:$0xff]
        %v8164 = vld [vmem:[%s8153 + $0x50] sm:$0xff]
        %v8165 = vld [vmem:[%s8153 + $0x58] sm:$0xff]
        %v8166 = vld [vmem:[%s8153 + $0x60] sm:$0xff]
        %v8167 = vld [vmem:[%s8153 + $0x68] sm:$0xff]
        %v8168 = vld [vmem:[%s8153 + $0x70] sm:$0xff]
        %v8169 = vld [vmem:[%s8153 + $0x78] sm:$0xff]
        %v8170 = vld [vmem:[%s8153 + $0x80] sm:$0xff]
        %v8171 = vld [vmem:[%s8153 + $0x88] sm:$0xff]
        %v8172 = vld [vmem:[%s8153 + $0x90] sm:$0xff]
        %v8173 = vld [vmem:[%s8153 + $0x98] sm:$0xff]
        %v8174 = vld [vmem:[%s8153 + $0xa0] sm:$0xff]
        %v8175 = vld [vmem:[%s8153 + $0xa8] sm:$0xff]
        %v8176 = vld [vmem:[%s8153 + $0xb0] sm:$0xff]
        %v8177 = vld [vmem:[%s8153 + $0xb8] sm:$0xff]
        %v8178 = vld [vmem:[%s8153 + $0xc0] sm:$0xff]
        %v8179 = vld [vmem:[%s8153 + $0xc8] sm:$0xff]
        %v8180 = vld [vmem:[%s8153 + $0xd0] sm:$0xff]
        %v8181 = vld [vmem:[%s8153 + $0xd8] sm:$0xff]
        %v8182 = vld [vmem:[%s8153 + $0xe0] sm:$0xff]
        %v8183 = vld [vmem:[%s8153 + $0xe8] sm:$0xff]
        %v8184 = vld [vmem:[%s8153 + $0xf0] sm:$0xff]
        %v8185 = vld [vmem:[%s8153 + $0xf8] sm:$0xff]
        %v8187 = vshrl.u32 %v8141, 16
        %v8189 = vshll.u32 %v8141, 16
        %v8191 = vrot.slane %v8189, 1
        %v8192 = vor.u32 %v8187, %v8191
        %v8194 = vshll.u32 %v8143, 16
        %v8196 = vrot.slane %v8194, 1
        %v8197 = vsel %vm1049, %v8192, %v8196
        %v8199 = vshrl.u32 %v8142, 16
        %v8201 = vshll.u32 %v8142, 16
        %v8203 = vrot.slane %v8201, 1
        %v8204 = vor.u32 %v8199, %v8203
        %v8206 = vshll.u32 %v8144, 16
        %v8208 = vrot.slane %v8206, 1
        %v8209 = vsel %vm1049, %v8204, %v8208
        %v8210 = vshrl.u32 %v8143, 16
        %v8212 = vor.u32 %v8210, %v8196
        %v8214 = vshll.u32 %v8145, 16
        %v8216 = vrot.slane %v8214, 1
        %v8217 = vsel %vm1049, %v8212, %v8216
        %v8218 = vshrl.u32 %v8144, 16
        %v8220 = vor.u32 %v8218, %v8208
        %v8222 = vshll.u32 %v8146, 16
        %v8224 = vrot.slane %v8222, 1
        %v8225 = vsel %vm1049, %v8220, %v8224
        %v8226 = vshrl.u32 %v8145, 16
        %v8228 = vor.u32 %v8226, %v8216
        %v8230 = vshll.u32 %v8147, 16
        %v8232 = vrot.slane %v8230, 1
        %v8233 = vsel %vm1049, %v8228, %v8232
        %v8234 = vshrl.u32 %v8146, 16
        %v8236 = vor.u32 %v8234, %v8224
        %v8238 = vshll.u32 %v8148, 16
        %v8240 = vrot.slane %v8238, 1
        %v8241 = vsel %vm1049, %v8236, %v8240
        %v8242 = vshrl.u32 %v8147, 16
        %v8244 = vor.u32 %v8242, %v8232
        %v8246 = vshll.u32 %v8149, 16
        %v8248 = vrot.slane %v8246, 1
        %v8249 = vsel %vm1049, %v8244, %v8248
        %v8250 = vshrl.u32 %v8148, 16
        %v8252 = vor.u32 %v8250, %v8240
        %v8254 = vshll.u32 %v8150, 16
        %v8256 = vrot.slane %v8254, 1
        %v8257 = vsel %vm1049, %v8252, %v8256
        %v8258 = vshrl.u32 %v8149, 16
        %v8260 = vor.u32 %v8258, %v8248
        %v8262 = vshll.u32 %v8151, 16
        %v8264 = vrot.slane %v8262, 1
        %v8265 = vsel %vm1049, %v8260, %v8264
        %v8266 = vshrl.u32 %v8150, 16
        %v8268 = vor.u32 %v8266, %v8256
        %v8270 = vshll.u32 %v8152, 16
        %v8272 = vrot.slane %v8270, 1
        %v8273 = vsel %vm1049, %v8268, %v8272
        %v8316 = vunpack.c.l.b16 %v8154
        %v8317 = vunpack.c.h.b16 %v8154
        %v8318 = vunpack.c.l.b16 %v8155
        %v8319 = vunpack.c.h.b16 %v8155
        %v8320 = vunpack.c.l.b16 %v8156
        %v8321 = vunpack.c.h.b16 %v8156
        %v8322 = vunpack.c.l.b16 %v8157
        %v8323 = vunpack.c.h.b16 %v8157
        %v8324 = vunpack.c.l.b16 %v8158
        %v8325 = vunpack.c.h.b16 %v8158
        %v8326 = vunpack.c.l.b16 %v8159
        %v8327 = vunpack.c.h.b16 %v8159
        %v8328 = vunpack.c.l.b16 %v8160
        %v8329 = vunpack.c.h.b16 %v8160
        %v8330 = vunpack.c.l.b16 %v8161
        %v8331 = vunpack.c.h.b16 %v8161
        %v8332 = vunpack.c.l.b16 %v8162
        %v8333 = vunpack.c.h.b16 %v8162
        %v8334 = vunpack.c.l.b16 %v8163
        %v8335 = vunpack.c.h.b16 %v8163
        %v8336 = vunpack.c.l.b16 %v8164
        %v8337 = vunpack.c.h.b16 %v8164
        %v8338 = vunpack.c.l.b16 %v8165
        %v8339 = vunpack.c.h.b16 %v8165
        %v8340 = vunpack.c.l.b16 %v8166
        %v8341 = vunpack.c.h.b16 %v8166
        %v8342 = vunpack.c.l.b16 %v8167
        %v8343 = vunpack.c.h.b16 %v8167
        %v8344 = vunpack.c.l.b16 %v8168
        %v8345 = vunpack.c.h.b16 %v8168
        %v8346 = vunpack.c.l.b16 %v8169
        %v8347 = vunpack.c.h.b16 %v8169
        %v8348 = vunpack.c.l.b16 %v8170
        %v8349 = vunpack.c.h.b16 %v8170
        %v8350 = vunpack.c.l.b16 %v8171
        %v8351 = vunpack.c.h.b16 %v8171
        %v8352 = vunpack.c.l.b16 %v8172
        %v8353 = vunpack.c.h.b16 %v8172
        %v8354 = vunpack.c.l.b16 %v8173
        %v8355 = vunpack.c.h.b16 %v8173
        %v8356 = vunpack.c.l.b16 %v8174
        %v8357 = vunpack.c.h.b16 %v8174
        %v8358 = vunpack.c.l.b16 %v8175
        %v8359 = vunpack.c.h.b16 %v8175
        %v8360 = vunpack.c.l.b16 %v8176
        %v8361 = vunpack.c.h.b16 %v8176
        %v8362 = vunpack.c.l.b16 %v8177
        %v8363 = vunpack.c.h.b16 %v8177
        %v8364 = vunpack.c.l.b16 %v8178
        %v8365 = vunpack.c.h.b16 %v8178
        %v8366 = vunpack.c.l.b16 %v8179
        %v8367 = vunpack.c.h.b16 %v8179
        %v8368 = vunpack.c.l.b16 %v8180
        %v8369 = vunpack.c.h.b16 %v8180
        %v8370 = vunpack.c.l.b16 %v8181
        %v8371 = vunpack.c.h.b16 %v8181
        %v8372 = vunpack.c.l.b16 %v8182
        %v8373 = vunpack.c.h.b16 %v8182
        %v8374 = vunpack.c.l.b16 %v8183
        %v8375 = vunpack.c.h.b16 %v8183
        %v8376 = vunpack.c.l.b16 %v8184
        %v8377 = vunpack.c.h.b16 %v8184
        %v8378 = vunpack.c.l.b16 %v8185
        %v8379 = vunpack.c.h.b16 %v8185
        %v8380 = vpack.c.b16 %v8318, %v8316
        %v8381 = vpack.c.b16 %v8319, %v8317
        %v8382 = vpack.c.b16 %v8322, %v8320
        %v8383 = vpack.c.b16 %v8323, %v8321
        %v8384 = vpack.c.b16 %v8326, %v8324
        %v8385 = vpack.c.b16 %v8327, %v8325
        %v8386 = vpack.c.b16 %v8330, %v8328
        %v8387 = vpack.c.b16 %v8331, %v8329
        %v8388 = vpack.c.b16 %v8334, %v8332
        %v8389 = vpack.c.b16 %v8335, %v8333
        %v8390 = vpack.c.b16 %v8338, %v8336
        %v8391 = vpack.c.b16 %v8339, %v8337
        %v8392 = vpack.c.b16 %v8342, %v8340
        %v8393 = vpack.c.b16 %v8343, %v8341
        %v8394 = vpack.c.b16 %v8346, %v8344
        %v8395 = vpack.c.b16 %v8347, %v8345
        %v8396 = vpack.c.b16 %v8350, %v8348
        %v8397 = vpack.c.b16 %v8351, %v8349
        %v8398 = vpack.c.b16 %v8354, %v8352
        %v8399 = vpack.c.b16 %v8355, %v8353
        %v8400 = vpack.c.b16 %v8358, %v8356
        %v8401 = vpack.c.b16 %v8359, %v8357
        %v8402 = vpack.c.b16 %v8362, %v8360
        %v8403 = vpack.c.b16 %v8363, %v8361
        %v8404 = vpack.c.b16 %v8366, %v8364
        %v8405 = vpack.c.b16 %v8367, %v8365
        %v8406 = vpack.c.b16 %v8370, %v8368
        %v8407 = vpack.c.b16 %v8371, %v8369
        %v8408 = vpack.c.b16 %v8374, %v8372
        %v8409 = vpack.c.b16 %v8375, %v8373
        %v8410 = vpack.c.b16 %v8378, %v8376
        %v8411 = vpack.c.b16 %v8379, %v8377
        %8444 = vmatpush.bf16.msra.mxu0 %v8394
        %8445 = vmatpush.bf16.msra.mxu0 %v8392
        %8446 = vmatpush.bf16.msra.mxu0 %v8390
        %8447 = vmatpush.bf16.msra.mxu0 %v8388
        %8448 = vmatpush.bf16.msra.mxu0 %v8386
        %8449 = vmatpush.bf16.msra.mxu0 %v8384
        %8450 = vmatpush.bf16.msra.mxu0 %v8382
        %8451 = vmatpush.bf16.msra.mxu0 %v8380
        %8452 = vmatmul.bf16.gmra.mxu0 %v8197
        %v8453 = vpop.f32.mrf.mxu0
        %v8454 = vadd.f32 0.0, %v8453
        %v8455 = vpop.f32.mrf.mxu0
        %v8456 = vadd.f32 0.0, %v8455
        %8457 = vmatmul.bf16.gmra.mxu0 %v8217
        %v8458 = vpop.f32.mrf.mxu0
        %v8459 = vadd.f32 0.0, %v8458
        %v8460 = vpop.f32.mrf.mxu0
        %v8461 = vadd.f32 0.0, %v8460
        %8462 = vmatmul.bf16.gmra.mxu0 %v8233
        %v8463 = vpop.f32.mrf.mxu0
        %v8464 = vadd.f32 0.0, %v8463
        %v8465 = vpop.f32.mrf.mxu0
        %v8466 = vadd.f32 0.0, %v8465
        %8467 = vmatmul.bf16.gmra.mxu0 %v8249
        %v8468 = vpop.f32.mrf.mxu0
        %v8469 = vadd.f32 0.0, %v8468
        %v8470 = vpop.f32.mrf.mxu0
        %v8471 = vadd.f32 0.0, %v8470
        %8472 = vmatmul.bf16.gmra.mxu0 %v8265
        %v8473 = vpop.f32.mrf.mxu0
        %v8474 = vadd.f32 0.0, %v8473
        %v8475 = vpop.f32.mrf.mxu0
        %v8476 = vadd.f32 0.0, %v8475
        %8477 = vdwg.mxu0
        %8478 = vmatpush.bf16.msra.mxu0 %v8410
        %8479 = vmatpush.bf16.msra.mxu0 %v8408
        %8480 = vmatpush.bf16.msra.mxu0 %v8406
        %8481 = vmatpush.bf16.msra.mxu0 %v8404
        %8482 = vmatpush.bf16.msra.mxu0 %v8402
        %8483 = vmatpush.bf16.msra.mxu0 %v8400
        %8484 = vmatpush.bf16.msra.mxu0 %v8398
        %8485 = vmatpush.bf16.msra.mxu0 %v8396
        %8486 = vmatmul.bf16.gmra.mxu0 %v8209
        %v8487 = vpop.f32.mrf.mxu0
        %v8488 = vadd.f32 %v8454, %v8487
        %v8489 = vpop.f32.mrf.mxu0
        %v8490 = vadd.f32 %v8456, %v8489
        %8491 = vmatmul.bf16.gmra.mxu0 %v8225
        %v8492 = vpop.f32.mrf.mxu0
        %v8493 = vadd.f32 %v8459, %v8492
        %v8494 = vpop.f32.mrf.mxu0
        %v8495 = vadd.f32 %v8461, %v8494
        %8496 = vmatmul.bf16.gmra.mxu0 %v8241
        %v8497 = vpop.f32.mrf.mxu0
        %v8498 = vadd.f32 %v8464, %v8497
        %v8499 = vpop.f32.mrf.mxu0
        %v8500 = vadd.f32 %v8466, %v8499
        %8501 = vmatmul.bf16.gmra.mxu0 %v8257
        %v8502 = vpop.f32.mrf.mxu0
        %v8503 = vadd.f32 %v8469, %v8502
        %v8504 = vpop.f32.mrf.mxu0
        %v8505 = vadd.f32 %v8471, %v8504
        %8506 = vmatmul.bf16.gmra.mxu0 %v8273
        %v8507 = vpop.f32.mrf.mxu0
        %v8508 = vadd.f32 %v8474, %v8507
        %v8509 = vpop.f32.mrf.mxu0
        %v8510 = vadd.f32 %v8476, %v8509
        %8511 = vdwg.mxu0
        %8512 = vmatpush.bf16.msra.mxu0 %v8395
        %8513 = vmatpush.bf16.msra.mxu0 %v8393
        %8514 = vmatpush.bf16.msra.mxu0 %v8391
        %8515 = vmatpush.bf16.msra.mxu0 %v8389
        %8516 = vmatpush.bf16.msra.mxu0 %v8387
        %8517 = vmatpush.bf16.msra.mxu0 %v8385
        %8518 = vmatpush.bf16.msra.mxu0 %v8383
        %8519 = vmatpush.bf16.msra.mxu0 %v8381
        %8520 = vmatmul.bf16.gmra.mxu0 %v8197
        %v8521 = vpop.f32.mrf.mxu0
        %v8522 = vadd.f32 0.0, %v8521
        %v8523 = vpop.f32.mrf.mxu0
        %v8524 = vadd.f32 0.0, %v8523
        %8525 = vmatmul.bf16.gmra.mxu0 %v8217
        %v8526 = vpop.f32.mrf.mxu0
        %v8527 = vadd.f32 0.0, %v8526
        %v8528 = vpop.f32.mrf.mxu0
        %v8529 = vadd.f32 0.0, %v8528
        %8530 = vmatmul.bf16.gmra.mxu0 %v8233
        %v8531 = vpop.f32.mrf.mxu0
        %v8532 = vadd.f32 0.0, %v8531
        %v8533 = vpop.f32.mrf.mxu0
        %v8534 = vadd.f32 0.0, %v8533
        %8535 = vmatmul.bf16.gmra.mxu0 %v8249
        %v8536 = vpop.f32.mrf.mxu0
        %v8537 = vadd.f32 0.0, %v8536
        %v8538 = vpop.f32.mrf.mxu0
        %v8539 = vadd.f32 0.0, %v8538
        %8540 = vmatmul.bf16.gmra.mxu0 %v8265
        %v8541 = vpop.f32.mrf.mxu0
        %v8542 = vadd.f32 0.0, %v8541
        %v8543 = vpop.f32.mrf.mxu0
        %v8544 = vadd.f32 0.0, %v8543
        %8545 = vdwg.mxu0
        %8546 = vmatpush.bf16.msra.mxu0 %v8411
        %8547 = vmatpush.bf16.msra.mxu0 %v8409
        %8548 = vmatpush.bf16.msra.mxu0 %v8407
        %8549 = vmatpush.bf16.msra.mxu0 %v8405
        %8550 = vmatpush.bf16.msra.mxu0 %v8403
        %8551 = vmatpush.bf16.msra.mxu0 %v8401
        %8552 = vmatpush.bf16.msra.mxu0 %v8399
        %8553 = vmatpush.bf16.msra.mxu0 %v8397
        %8554 = vmatmul.bf16.gmra.mxu0 %v8209
        %v8555 = vpop.f32.mrf.mxu0
        %v8556 = vadd.f32 %v8522, %v8555
        %v8557 = vpop.f32.mrf.mxu0
        %v8558 = vadd.f32 %v8524, %v8557
        %8559 = vmatmul.bf16.gmra.mxu0 %v8225
        %v8560 = vpop.f32.mrf.mxu0
        %v8561 = vadd.f32 %v8527, %v8560
        %v8562 = vpop.f32.mrf.mxu0
        %v8563 = vadd.f32 %v8529, %v8562
        %8564 = vmatmul.bf16.gmra.mxu0 %v8241
        %v8565 = vpop.f32.mrf.mxu0
        %v8566 = vadd.f32 %v8532, %v8565
        %v8567 = vpop.f32.mrf.mxu0
        %v8568 = vadd.f32 %v8534, %v8567
        %8569 = vmatmul.bf16.gmra.mxu0 %v8257
        %v8570 = vpop.f32.mrf.mxu0
        %v8571 = vadd.f32 %v8537, %v8570
        %v8572 = vpop.f32.mrf.mxu0
        %v8573 = vadd.f32 %v8539, %v8572
        %8574 = vmatmul.bf16.gmra.mxu0 %v8273
        %v8575 = vpop.f32.mrf.mxu0
        %v8576 = vadd.f32 %v8542, %v8575
        %v8577 = vpop.f32.mrf.mxu0
        %v8578 = vadd.f32 %v8544, %v8577
        %8579 = vdwg.mxu0
        %v8580 = vadd.f32 %v8099, %v8488
        %v8581 = vadd.f32 %v8100, %v8556
        %v8582 = vadd.f32 %v8101, %v8490
        %v8583 = vadd.f32 %v8102, %v8558
        %v8584 = vadd.f32 %v8103, %v8493
        %v8585 = vadd.f32 %v8104, %v8561
        %v8586 = vadd.f32 %v8105, %v8495
        %v8587 = vadd.f32 %v8106, %v8563
        %v8588 = vadd.f32 %v8107, %v8498
        %v8589 = vadd.f32 %v8108, %v8566
        %v8590 = vadd.f32 %v8109, %v8500
        %v8591 = vadd.f32 %v8110, %v8568
        %v8592 = vadd.f32 %v8111, %v8503
        %v8593 = vadd.f32 %v8112, %v8571
        %v8594 = vadd.f32 %v8113, %v8505
        %v8595 = vadd.f32 %v8114, %v8573
        %v8596 = vadd.f32 %v8115, %v8508
        %v8597 = vadd.f32 %v8116, %v8576
        %v8598 = vadd.f32 %v8117, %v8510
        %v8599 = vadd.f32 %v8118, %v8578
        %8600 = vst [vmem:[#allocation3] sm:$0xff] %v8580
        %8601 = vst [vmem:[#allocation3 + $0x8] sm:$0xff] %v8581
        %8602 = vst [vmem:[#allocation3 + $0x10] sm:$0xff] %v8582
        %8603 = vst [vmem:[#allocation3 + $0x18] sm:$0xff] %v8583
        %8604 = vst [vmem:[#allocation3 + $0x20] sm:$0xff] %v8584
        %8605 = vst [vmem:[#allocation3 + $0x28] sm:$0xff] %v8585
        %8606 = vst [vmem:[#allocation3 + $0x30] sm:$0xff] %v8586
        %8607 = vst [vmem:[#allocation3 + $0x38] sm:$0xff] %v8587
        %8608 = vst [vmem:[#allocation3 + $0x40] sm:$0xff] %v8588
        %8609 = vst [vmem:[#allocation3 + $0x48] sm:$0xff] %v8589
        %8610 = vst [vmem:[#allocation3 + $0x50] sm:$0xff] %v8590
        %8611 = vst [vmem:[#allocation3 + $0x58] sm:$0xff] %v8591
        %8612 = vst [vmem:[#allocation3 + $0x60] sm:$0xff] %v8592
        %8613 = vst [vmem:[#allocation3 + $0x68] sm:$0xff] %v8593
        %8614 = vst [vmem:[#allocation3 + $0x70] sm:$0xff] %v8594
        %8615 = vst [vmem:[#allocation3 + $0x78] sm:$0xff] %v8595
        %8616 = vst [vmem:[#allocation3 + $0x80] sm:$0xff] %v8596
        %8617 = vst [vmem:[#allocation3 + $0x88] sm:$0xff] %v8597
        %8618 = vst [vmem:[#allocation3 + $0x90] sm:$0xff] %v8598
        %8619 = vst [vmem:[#allocation3 + $0x98] sm:$0xff] %v8599
        %v8620 = vld [vmem:[#allocation3] sm:$0xff]
        %v8621 = vld [vmem:[#allocation3 + $0x8] sm:$0xff]
        %v8622 = vld [vmem:[#allocation3 + $0x10] sm:$0xff]
        %v8623 = vld [vmem:[#allocation3 + $0x18] sm:$0xff]
        %v8624 = vld [vmem:[#allocation3 + $0x20] sm:$0xff]
        %v8625 = vld [vmem:[#allocation3 + $0x28] sm:$0xff]
        %v8626 = vld [vmem:[#allocation3 + $0x30] sm:$0xff]
        %v8627 = vld [vmem:[#allocation3 + $0x38] sm:$0xff]
        %v8628 = vld [vmem:[#allocation3 + $0x40] sm:$0xff]
        %v8629 = vld [vmem:[#allocation3 + $0x48] sm:$0xff]
        %v8630 = vld [vmem:[#allocation3 + $0x50] sm:$0xff]
        %v8631 = vld [vmem:[#allocation3 + $0x58] sm:$0xff]
        %v8632 = vld [vmem:[#allocation3 + $0x60] sm:$0xff]
        %v8633 = vld [vmem:[#allocation3 + $0x68] sm:$0xff]
        %v8634 = vld [vmem:[#allocation3 + $0x70] sm:$0xff]
        %v8635 = vld [vmem:[#allocation3 + $0x78] sm:$0xff]
        %v8636 = vld [vmem:[#allocation3 + $0x80] sm:$0xff]
        %v8637 = vld [vmem:[#allocation3 + $0x88] sm:$0xff]
        %v8638 = vld [vmem:[#allocation3 + $0x90] sm:$0xff]
        %v8639 = vld [vmem:[#allocation3 + $0x98] sm:$0xff]
        %v8640 = vld [vmem:[#allocation2] sm:$0xfc]
        %v8641 = vld [vmem:[#allocation2 + $0x8] sm:$0xfc]
        %v8642 = vld [vmem:[#allocation2 + $0x10] sm:$0xff]
        %v8643 = vld [vmem:[#allocation2 + $0x18] sm:$0xff]
        %v8644 = vld [vmem:[#allocation2 + $0x20] sm:$0xff]
        %v8645 = vld [vmem:[#allocation2 + $0x28] sm:$0xff]
        %v8646 = vld [vmem:[#allocation2 + $0x30] sm:$0xff]
        %v8647 = vld [vmem:[#allocation2 + $0x38] sm:$0xff]
        %v8648 = vld [vmem:[#allocation2 + $0x40] sm:$0xff]
        %v8649 = vld [vmem:[#allocation2 + $0x48] sm:$0xff]
        %v8650 = vld [vmem:[#allocation2 + $0x50] sm:$0xff]
        %v8651 = vld [vmem:[#allocation2 + $0x58] sm:$0xff]
        %v8652 = vld [vmem:[#allocation2 + $0x60] sm:$0xff]
        %v8653 = vld [vmem:[#allocation2 + $0x68] sm:$0xff]
        %v8654 = vld [vmem:[#allocation2 + $0x70] sm:$0xff]
        %v8655 = vld [vmem:[#allocation2 + $0x78] sm:$0xff]
        %v8656 = vld [vmem:[#allocation2 + $0x80] sm:$0xff]
        %v8657 = vld [vmem:[#allocation2 + $0x88] sm:$0xff]
        %v8658 = vld [vmem:[#allocation2 + $0x90] sm:$0xff]
        %v8659 = vld [vmem:[#allocation2 + $0x98] sm:$0xff]
        %v8660 = vld [vmem:[#allocation2 + $0xa0] sm:$0x3]
        %v8661 = vld [vmem:[#allocation2 + $0xa8] sm:$0x3]
        %v8662 = vpack.c.bf16 %v8642, %v8640
        %v8663 = vpack.c.bf16 %v8643, %v8641
        %v8664 = vpack.c.bf16 %v8646, %v8644
        %v8665 = vpack.c.bf16 %v8647, %v8645
        %v8666 = vpack.c.bf16 %v8650, %v8648
        %v8667 = vpack.c.bf16 %v8651, %v8649
        %v8668 = vpack.c.bf16 %v8654, %v8652
        %v8669 = vpack.c.bf16 %v8655, %v8653
        %v8670 = vpack.c.bf16 %v8658, %v8656
        %v8671 = vpack.c.bf16 %v8659, %v8657
        %v8672 = vpack.c.bf16 %v8660, %v8660
        %v8673 = vpack.c.bf16 %v8661, %v8661
        %s8674 = scalar_lea.vmem [#allocation7], 512
        %v8675 = vld [vmem:[%s8674] sm:$0xff]
        %v8676 = vld [vmem:[%s8674 + $0x8] sm:$0xff]
        %v8677 = vld [vmem:[%s8674 + $0x10] sm:$0xff]
        %v8678 = vld [vmem:[%s8674 + $0x18] sm:$0xff]
        %v8679 = vld [vmem:[%s8674 + $0x20] sm:$0xff]
        %v8680 = vld [vmem:[%s8674 + $0x28] sm:$0xff]
        %v8681 = vld [vmem:[%s8674 + $0x30] sm:$0xff]
        %v8682 = vld [vmem:[%s8674 + $0x38] sm:$0xff]
        %v8683 = vld [vmem:[%s8674 + $0x40] sm:$0xff]
        %v8684 = vld [vmem:[%s8674 + $0x48] sm:$0xff]
        %v8685 = vld [vmem:[%s8674 + $0x50] sm:$0xff]
        %v8686 = vld [vmem:[%s8674 + $0x58] sm:$0xff]
        %v8687 = vld [vmem:[%s8674 + $0x60] sm:$0xff]
        %v8688 = vld [vmem:[%s8674 + $0x68] sm:$0xff]
        %v8689 = vld [vmem:[%s8674 + $0x70] sm:$0xff]
        %v8690 = vld [vmem:[%s8674 + $0x78] sm:$0xff]
        %v8691 = vld [vmem:[%s8674 + $0x80] sm:$0xff]
        %v8692 = vld [vmem:[%s8674 + $0x88] sm:$0xff]
        %v8693 = vld [vmem:[%s8674 + $0x90] sm:$0xff]
        %v8694 = vld [vmem:[%s8674 + $0x98] sm:$0xff]
        %v8695 = vld [vmem:[%s8674 + $0xa0] sm:$0xff]
        %v8696 = vld [vmem:[%s8674 + $0xa8] sm:$0xff]
        %v8697 = vld [vmem:[%s8674 + $0xb0] sm:$0xff]
        %v8698 = vld [vmem:[%s8674 + $0xb8] sm:$0xff]
        %v8699 = vld [vmem:[%s8674 + $0xc0] sm:$0xff]
        %v8700 = vld [vmem:[%s8674 + $0xc8] sm:$0xff]
        %v8701 = vld [vmem:[%s8674 + $0xd0] sm:$0xff]
        %v8702 = vld [vmem:[%s8674 + $0xd8] sm:$0xff]
        %v8703 = vld [vmem:[%s8674 + $0xe0] sm:$0xff]
        %v8704 = vld [vmem:[%s8674 + $0xe8] sm:$0xff]
        %v8705 = vld [vmem:[%s8674 + $0xf0] sm:$0xff]
        %v8706 = vld [vmem:[%s8674 + $0xf8] sm:$0xff]
        %v8719 = vrot.slane %v8662, 1
        %v8720 = vrot.slane %v8664, 1
        %v8721 = vsel %vm1583, %v8719, %v8720
        %v8722 = vrot.slane %v8663, 1
        %v8723 = vrot.slane %v8665, 1
        %v8724 = vsel %vm1583, %v8722, %v8723
        %v8725 = vrot.slane %v8666, 1
        %v8726 = vsel %vm1583, %v8720, %v8725
        %v8727 = vrot.slane %v8667, 1
        %v8728 = vsel %vm1583, %v8723, %v8727
        %v8729 = vrot.slane %v8668, 1
        %v8730 = vsel %vm1583, %v8725, %v8729
        %v8731 = vrot.slane %v8669, 1
        %v8732 = vsel %vm1583, %v8727, %v8731
        %v8733 = vrot.slane %v8670, 1
        %v8734 = vsel %vm1583, %v8729, %v8733
        %v8735 = vrot.slane %v8671, 1
        %v8736 = vsel %vm1583, %v8731, %v8735
        %v8737 = vrot.slane %v8672, 1
        %v8738 = vsel %vm1583, %v8733, %v8737
        %v8739 = vrot.slane %v8673, 1
        %v8740 = vsel %vm1583, %v8735, %v8739
        %v8783 = vunpack.c.l.b16 %v8675
        %v8784 = vunpack.c.h.b16 %v8675
        %v8785 = vunpack.c.l.b16 %v8676
        %v8786 = vunpack.c.h.b16 %v8676
        %v8787 = vunpack.c.l.b16 %v8677
        %v8788 = vunpack.c.h.b16 %v8677
        %v8789 = vunpack.c.l.b16 %v8678
        %v8790 = vunpack.c.h.b16 %v8678
        %v8791 = vunpack.c.l.b16 %v8679
        %v8792 = vunpack.c.h.b16 %v8679
        %v8793 = vunpack.c.l.b16 %v8680
        %v8794 = vunpack.c.h.b16 %v8680
        %v8795 = vunpack.c.l.b16 %v8681
        %v8796 = vunpack.c.h.b16 %v8681
        %v8797 = vunpack.c.l.b16 %v8682
        %v8798 = vunpack.c.h.b16 %v8682
        %v8799 = vunpack.c.l.b16 %v8683
        %v8800 = vunpack.c.h.b16 %v8683
        %v8801 = vunpack.c.l.b16 %v8684
        %v8802 = vunpack.c.h.b16 %v8684
        %v8803 = vunpack.c.l.b16 %v8685
        %v8804 = vunpack.c.h.b16 %v8685
        %v8805 = vunpack.c.l.b16 %v8686
        %v8806 = vunpack.c.h.b16 %v8686
        %v8807 = vunpack.c.l.b16 %v8687
        %v8808 = vunpack.c.h.b16 %v8687
        %v8809 = vunpack.c.l.b16 %v8688
        %v8810 = vunpack.c.h.b16 %v8688
        %v8811 = vunpack.c.l.b16 %v8689
        %v8812 = vunpack.c.h.b16 %v8689
        %v8813 = vunpack.c.l.b16 %v8690
        %v8814 = vunpack.c.h.b16 %v8690
        %v8815 = vunpack.c.l.b16 %v8691
        %v8816 = vunpack.c.h.b16 %v8691
        %v8817 = vunpack.c.l.b16 %v8692
        %v8818 = vunpack.c.h.b16 %v8692
        %v8819 = vunpack.c.l.b16 %v8693
        %v8820 = vunpack.c.h.b16 %v8693
        %v8821 = vunpack.c.l.b16 %v8694
        %v8822 = vunpack.c.h.b16 %v8694
        %v8823 = vunpack.c.l.b16 %v8695
        %v8824 = vunpack.c.h.b16 %v8695
        %v8825 = vunpack.c.l.b16 %v8696
        %v8826 = vunpack.c.h.b16 %v8696
        %v8827 = vunpack.c.l.b16 %v8697
        %v8828 = vunpack.c.h.b16 %v8697
        %v8829 = vunpack.c.l.b16 %v8698
        %v8830 = vunpack.c.h.b16 %v8698
        %v8831 = vunpack.c.l.b16 %v8699
        %v8832 = vunpack.c.h.b16 %v8699
        %v8833 = vunpack.c.l.b16 %v8700
        %v8834 = vunpack.c.h.b16 %v8700
        %v8835 = vunpack.c.l.b16 %v8701
        %v8836 = vunpack.c.h.b16 %v8701
        %v8837 = vunpack.c.l.b16 %v8702
        %v8838 = vunpack.c.h.b16 %v8702
        %v8839 = vunpack.c.l.b16 %v8703
        %v8840 = vunpack.c.h.b16 %v8703
        %v8841 = vunpack.c.l.b16 %v8704
        %v8842 = vunpack.c.h.b16 %v8704
        %v8843 = vunpack.c.l.b16 %v8705
        %v8844 = vunpack.c.h.b16 %v8705
        %v8845 = vunpack.c.l.b16 %v8706
        %v8846 = vunpack.c.h.b16 %v8706
        %v8847 = vpack.c.b16 %v8785, %v8783
        %v8848 = vpack.c.b16 %v8786, %v8784
        %v8849 = vpack.c.b16 %v8789, %v8787
        %v8850 = vpack.c.b16 %v8790, %v8788
        %v8851 = vpack.c.b16 %v8793, %v8791
        %v8852 = vpack.c.b16 %v8794, %v8792
        %v8853 = vpack.c.b16 %v8797, %v8795
        %v8854 = vpack.c.b16 %v8798, %v8796
        %v8855 = vpack.c.b16 %v8801, %v8799
        %v8856 = vpack.c.b16 %v8802, %v8800
        %v8857 = vpack.c.b16 %v8805, %v8803
        %v8858 = vpack.c.b16 %v8806, %v8804
        %v8859 = vpack.c.b16 %v8809, %v8807
        %v8860 = vpack.c.b16 %v8810, %v8808
        %v8861 = vpack.c.b16 %v8813, %v8811
        %v8862 = vpack.c.b16 %v8814, %v8812
        %v8863 = vpack.c.b16 %v8817, %v8815
        %v8864 = vpack.c.b16 %v8818, %v8816
        %v8865 = vpack.c.b16 %v8821, %v8819
        %v8866 = vpack.c.b16 %v8822, %v8820
        %v8867 = vpack.c.b16 %v8825, %v8823
        %v8868 = vpack.c.b16 %v8826, %v8824
        %v8869 = vpack.c.b16 %v8829, %v8827
        %v8870 = vpack.c.b16 %v8830, %v8828
        %v8871 = vpack.c.b16 %v8833, %v8831
        %v8872 = vpack.c.b16 %v8834, %v8832
        %v8873 = vpack.c.b16 %v8837, %v8835
        %v8874 = vpack.c.b16 %v8838, %v8836
        %v8875 = vpack.c.b16 %v8841, %v8839
        %v8876 = vpack.c.b16 %v8842, %v8840
        %v8877 = vpack.c.b16 %v8845, %v8843
        %v8878 = vpack.c.b16 %v8846, %v8844
        %8911 = vmatpush.bf16.msra.mxu0 %v8861
        %8912 = vmatpush.bf16.msra.mxu0 %v8859
        %8913 = vmatpush.bf16.msra.mxu0 %v8857
        %8914 = vmatpush.bf16.msra.mxu0 %v8855
        %8915 = vmatpush.bf16.msra.mxu0 %v8853
        %8916 = vmatpush.bf16.msra.mxu0 %v8851
        %8917 = vmatpush.bf16.msra.mxu0 %v8849
        %8918 = vmatpush.bf16.msra.mxu0 %v8847
        %8919 = vmatmul.bf16.gmra.mxu0 %v8721
        %v8920 = vpop.f32.mrf.mxu0
        %v8921 = vadd.f32 0.0, %v8920
        %v8922 = vpop.f32.mrf.mxu0
        %v8923 = vadd.f32 0.0, %v8922
        %8924 = vmatmul.bf16.gmra.mxu0 %v8726
        %v8925 = vpop.f32.mrf.mxu0
        %v8926 = vadd.f32 0.0, %v8925
        %v8927 = vpop.f32.mrf.mxu0
        %v8928 = vadd.f32 0.0, %v8927
        %8929 = vmatmul.bf16.gmra.mxu0 %v8730
        %v8930 = vpop.f32.mrf.mxu0
        %v8931 = vadd.f32 0.0, %v8930
        %v8932 = vpop.f32.mrf.mxu0
        %v8933 = vadd.f32 0.0, %v8932
        %8934 = vmatmul.bf16.gmra.mxu0 %v8734
        %v8935 = vpop.f32.mrf.mxu0
        %v8936 = vadd.f32 0.0, %v8935
        %v8937 = vpop.f32.mrf.mxu0
        %v8938 = vadd.f32 0.0, %v8937
        %8939 = vmatmul.bf16.gmra.mxu0 %v8738
        %v8940 = vpop.f32.mrf.mxu0
        %v8941 = vadd.f32 0.0, %v8940
        %v8942 = vpop.f32.mrf.mxu0
        %v8943 = vadd.f32 0.0, %v8942
        %8944 = vdwg.mxu0
        %8945 = vmatpush.bf16.msra.mxu0 %v8877
        %8946 = vmatpush.bf16.msra.mxu0 %v8875
        %8947 = vmatpush.bf16.msra.mxu0 %v8873
        %8948 = vmatpush.bf16.msra.mxu0 %v8871
        %8949 = vmatpush.bf16.msra.mxu0 %v8869
        %8950 = vmatpush.bf16.msra.mxu0 %v8867
        %8951 = vmatpush.bf16.msra.mxu0 %v8865
        %8952 = vmatpush.bf16.msra.mxu0 %v8863
        %8953 = vmatmul.bf16.gmra.mxu0 %v8724
        %v8954 = vpop.f32.mrf.mxu0
        %v8955 = vadd.f32 %v8921, %v8954
        %v8956 = vpop.f32.mrf.mxu0
        %v8957 = vadd.f32 %v8923, %v8956
        %8958 = vmatmul.bf16.gmra.mxu0 %v8728
        %v8959 = vpop.f32.mrf.mxu0
        %v8960 = vadd.f32 %v8926, %v8959
        %v8961 = vpop.f32.mrf.mxu0
        %v8962 = vadd.f32 %v8928, %v8961
        %8963 = vmatmul.bf16.gmra.mxu0 %v8732
        %v8964 = vpop.f32.mrf.mxu0
        %v8965 = vadd.f32 %v8931, %v8964
        %v8966 = vpop.f32.mrf.mxu0
        %v8967 = vadd.f32 %v8933, %v8966
        %8968 = vmatmul.bf16.gmra.mxu0 %v8736
        %v8969 = vpop.f32.mrf.mxu0
        %v8970 = vadd.f32 %v8936, %v8969
        %v8971 = vpop.f32.mrf.mxu0
        %v8972 = vadd.f32 %v8938, %v8971
        %8973 = vmatmul.bf16.gmra.mxu0 %v8740
        %v8974 = vpop.f32.mrf.mxu0
        %v8975 = vadd.f32 %v8941, %v8974
        %v8976 = vpop.f32.mrf.mxu0
        %v8977 = vadd.f32 %v8943, %v8976
        %8978 = vdwg.mxu0
        %8979 = vmatpush.bf16.msra.mxu0 %v8862
        %8980 = vmatpush.bf16.msra.mxu0 %v8860
        %8981 = vmatpush.bf16.msra.mxu0 %v8858
        %8982 = vmatpush.bf16.msra.mxu0 %v8856
        %8983 = vmatpush.bf16.msra.mxu0 %v8854
        %8984 = vmatpush.bf16.msra.mxu0 %v8852
        %8985 = vmatpush.bf16.msra.mxu0 %v8850
        %8986 = vmatpush.bf16.msra.mxu0 %v8848
        %8987 = vmatmul.bf16.gmra.mxu0 %v8721
        %v8988 = vpop.f32.mrf.mxu0
        %v8989 = vadd.f32 0.0, %v8988
        %v8990 = vpop.f32.mrf.mxu0
        %v8991 = vadd.f32 0.0, %v8990
        %8992 = vmatmul.bf16.gmra.mxu0 %v8726
        %v8993 = vpop.f32.mrf.mxu0
        %v8994 = vadd.f32 0.0, %v8993
        %v8995 = vpop.f32.mrf.mxu0
        %v8996 = vadd.f32 0.0, %v8995
        %8997 = vmatmul.bf16.gmra.mxu0 %v8730
        %v8998 = vpop.f32.mrf.mxu0
        %v8999 = vadd.f32 0.0, %v8998
        %v9000 = vpop.f32.mrf.mxu0
        %v9001 = vadd.f32 0.0, %v9000
        %9002 = vmatmul.bf16.gmra.mxu0 %v8734
        %v9003 = vpop.f32.mrf.mxu0
        %v9004 = vadd.f32 0.0, %v9003
        %v9005 = vpop.f32.mrf.mxu0
        %v9006 = vadd.f32 0.0, %v9005
        %9007 = vmatmul.bf16.gmra.mxu0 %v8738
        %v9008 = vpop.f32.mrf.mxu0
        %v9009 = vadd.f32 0.0, %v9008
        %v9010 = vpop.f32.mrf.mxu0
        %v9011 = vadd.f32 0.0, %v9010
        %9012 = vdwg.mxu0
        %9013 = vmatpush.bf16.msra.mxu0 %v8878
        %9014 = vmatpush.bf16.msra.mxu0 %v8876
        %9015 = vmatpush.bf16.msra.mxu0 %v8874
        %9016 = vmatpush.bf16.msra.mxu0 %v8872
        %9017 = vmatpush.bf16.msra.mxu0 %v8870
        %9018 = vmatpush.bf16.msra.mxu0 %v8868
        %9019 = vmatpush.bf16.msra.mxu0 %v8866
        %9020 = vmatpush.bf16.msra.mxu0 %v8864
        %9021 = vmatmul.bf16.gmra.mxu0 %v8724
        %v9022 = vpop.f32.mrf.mxu0
        %v9023 = vadd.f32 %v8989, %v9022
        %v9024 = vpop.f32.mrf.mxu0
        %v9025 = vadd.f32 %v8991, %v9024
        %9026 = vmatmul.bf16.gmra.mxu0 %v8728
        %v9027 = vpop.f32.mrf.mxu0
        %v9028 = vadd.f32 %v8994, %v9027
        %v9029 = vpop.f32.mrf.mxu0
        %v9030 = vadd.f32 %v8996, %v9029
        %9031 = vmatmul.bf16.gmra.mxu0 %v8732
        %v9032 = vpop.f32.mrf.mxu0
        %v9033 = vadd.f32 %v8999, %v9032
        %v9034 = vpop.f32.mrf.mxu0
        %v9035 = vadd.f32 %v9001, %v9034
        %9036 = vmatmul.bf16.gmra.mxu0 %v8736
        %v9037 = vpop.f32.mrf.mxu0
        %v9038 = vadd.f32 %v9004, %v9037
        %v9039 = vpop.f32.mrf.mxu0
        %v9040 = vadd.f32 %v9006, %v9039
        %9041 = vmatmul.bf16.gmra.mxu0 %v8740
        %v9042 = vpop.f32.mrf.mxu0
        %v9043 = vadd.f32 %v9009, %v9042
        %v9044 = vpop.f32.mrf.mxu0
        %v9045 = vadd.f32 %v9011, %v9044
        %9046 = vdwg.mxu0
        %v9047 = vadd.f32 %v8620, %v8955
        %v9048 = vadd.f32 %v8621, %v9023
        %v9049 = vadd.f32 %v8622, %v8957
        %v9050 = vadd.f32 %v8623, %v9025
        %v9051 = vadd.f32 %v8624, %v8960
        %v9052 = vadd.f32 %v8625, %v9028
        %v9053 = vadd.f32 %v8626, %v8962
        %v9054 = vadd.f32 %v8627, %v9030
        %v9055 = vadd.f32 %v8628, %v8965
        %v9056 = vadd.f32 %v8629, %v9033
        %v9057 = vadd.f32 %v8630, %v8967
        %v9058 = vadd.f32 %v8631, %v9035
        %v9059 = vadd.f32 %v8632, %v8970
        %v9060 = vadd.f32 %v8633, %v9038
        %v9061 = vadd.f32 %v8634, %v8972
        %v9062 = vadd.f32 %v8635, %v9040
        %v9063 = vadd.f32 %v8636, %v8975
        %v9064 = vadd.f32 %v8637, %v9043
        %v9065 = vadd.f32 %v8638, %v8977
        %v9066 = vadd.f32 %v8639, %v9045
        %9067 = vst [vmem:[#allocation3] sm:$0xff] %v9047
        %9068 = vst [vmem:[#allocation3 + $0x8] sm:$0xff] %v9048
        %9069 = vst [vmem:[#allocation3 + $0x10] sm:$0xff] %v9049
        %9070 = vst [vmem:[#allocation3 + $0x18] sm:$0xff] %v9050
        %9071 = vst [vmem:[#allocation3 + $0x20] sm:$0xff] %v9051
        %9072 = vst [vmem:[#allocation3 + $0x28] sm:$0xff] %v9052
        %9073 = vst [vmem:[#allocation3 + $0x30] sm:$0xff] %v9053
        %9074 = vst [vmem:[#allocation3 + $0x38] sm:$0xff] %v9054
        %9075 = vst [vmem:[#allocation3 + $0x40] sm:$0xff] %v9055
        %9076 = vst [vmem:[#allocation3 + $0x48] sm:$0xff] %v9056
        %9077 = vst [vmem:[#allocation3 + $0x50] sm:$0xff] %v9057
        %9078 = vst [vmem:[#allocation3 + $0x58] sm:$0xff] %v9058
        %9079 = vst [vmem:[#allocation3 + $0x60] sm:$0xff] %v9059
        %9080 = vst [vmem:[#allocation3 + $0x68] sm:$0xff] %v9060
        %9081 = vst [vmem:[#allocation3 + $0x70] sm:$0xff] %v9061
        %9082 = vst [vmem:[#allocation3 + $0x78] sm:$0xff] %v9062
        %9083 = vst [vmem:[#allocation3 + $0x80] sm:$0xff] %v9063
        %9084 = vst [vmem:[#allocation3 + $0x88] sm:$0xff] %v9064
        %9085 = vst [vmem:[#allocation3 + $0x90] sm:$0xff] %v9065
        %9086 = vst [vmem:[#allocation3 + $0x98] sm:$0xff] %v9066
        %v9087 = vld [vmem:[#allocation3] sm:$0xff]
        %v9088 = vld [vmem:[#allocation3 + $0x8] sm:$0xff]
        %v9089 = vld [vmem:[#allocation3 + $0x10] sm:$0xff]
        %v9090 = vld [vmem:[#allocation3 + $0x18] sm:$0xff]
        %v9091 = vld [vmem:[#allocation3 + $0x20] sm:$0xff]
        %v9092 = vld [vmem:[#allocation3 + $0x28] sm:$0xff]
        %v9093 = vld [vmem:[#allocation3 + $0x30] sm:$0xff]
        %v9094 = vld [vmem:[#allocation3 + $0x38] sm:$0xff]
        %v9095 = vld [vmem:[#allocation3 + $0x40] sm:$0xff]
        %v9096 = vld [vmem:[#allocation3 + $0x48] sm:$0xff]
        %v9097 = vld [vmem:[#allocation3 + $0x50] sm:$0xff]
        %v9098 = vld [vmem:[#allocation3 + $0x58] sm:$0xff]
        %v9099 = vld [vmem:[#allocation3 + $0x60] sm:$0xff]
        %v9100 = vld [vmem:[#allocation3 + $0x68] sm:$0xff]
        %v9101 = vld [vmem:[#allocation3 + $0x70] sm:$0xff]
        %v9102 = vld [vmem:[#allocation3 + $0x78] sm:$0xff]
        %v9103 = vld [vmem:[#allocation3 + $0x80] sm:$0xff]
        %v9104 = vld [vmem:[#allocation3 + $0x88] sm:$0xff]
        %v9105 = vld [vmem:[#allocation3 + $0x90] sm:$0xff]
        %v9106 = vld [vmem:[#allocation3 + $0x98] sm:$0xff]
        %v9107 = vld [vmem:[#allocation2] sm:$0xf8]
        %v9108 = vld [vmem:[#allocation2 + $0x8] sm:$0xf8]
        %v9109 = vld [vmem:[#allocation2 + $0x10] sm:$0xff]
        %v9110 = vld [vmem:[#allocation2 + $0x18] sm:$0xff]
        %v9111 = vld [vmem:[#allocation2 + $0x20] sm:$0xff]
        %v9112 = vld [vmem:[#allocation2 + $0x28] sm:$0xff]
        %v9113 = vld [vmem:[#allocation2 + $0x30] sm:$0xff]
        %v9114 = vld [vmem:[#allocation2 + $0x38] sm:$0xff]
        %v9115 = vld [vmem:[#allocation2 + $0x40] sm:$0xff]
        %v9116 = vld [vmem:[#allocation2 + $0x48] sm:$0xff]
        %v9117 = vld [vmem:[#allocation2 + $0x50] sm:$0xff]
        %v9118 = vld [vmem:[#allocation2 + $0x58] sm:$0xff]
        %v9119 = vld [vmem:[#allocation2 + $0x60] sm:$0xff]
        %v9120 = vld [vmem:[#allocation2 + $0x68] sm:$0xff]
        %v9121 = vld [vmem:[#allocation2 + $0x70] sm:$0xff]
        %v9122 = vld [vmem:[#allocation2 + $0x78] sm:$0xff]
        %v9123 = vld [vmem:[#allocation2 + $0x80] sm:$0xff]
        %v9124 = vld [vmem:[#allocation2 + $0x88] sm:$0xff]
        %v9125 = vld [vmem:[#allocation2 + $0x90] sm:$0xff]
        %v9126 = vld [vmem:[#allocation2 + $0x98] sm:$0xff]
        %v9127 = vld [vmem:[#allocation2 + $0xa0] sm:$0x7]
        %v9128 = vld [vmem:[#allocation2 + $0xa8] sm:$0x7]
        %v9129 = vpack.c.bf16 %v9109, %v9107
        %v9130 = vpack.c.bf16 %v9110, %v9108
        %v9131 = vpack.c.bf16 %v9113, %v9111
        %v9132 = vpack.c.bf16 %v9114, %v9112
        %v9133 = vpack.c.bf16 %v9117, %v9115
        %v9134 = vpack.c.bf16 %v9118, %v9116
        %v9135 = vpack.c.bf16 %v9121, %v9119
        %v9136 = vpack.c.bf16 %v9122, %v9120
        %v9137 = vpack.c.bf16 %v9125, %v9123
        %v9138 = vpack.c.bf16 %v9126, %v9124
        %v9139 = vpack.c.bf16 %v9127, %v9127
        %v9140 = vpack.c.bf16 %v9128, %v9128
        %s9141 = scalar_lea.vmem [#allocation7], 768
        %v9142 = vld [vmem:[%s9141] sm:$0xff]
        %v9143 = vld [vmem:[%s9141 + $0x8] sm:$0xff]
        %v9144 = vld [vmem:[%s9141 + $0x10] sm:$0xff]
        %v9145 = vld [vmem:[%s9141 + $0x18] sm:$0xff]
        %v9146 = vld [vmem:[%s9141 + $0x20] sm:$0xff]
        %v9147 = vld [vmem:[%s9141 + $0x28] sm:$0xff]
        %v9148 = vld [vmem:[%s9141 + $0x30] sm:$0xff]
        %v9149 = vld [vmem:[%s9141 + $0x38] sm:$0xff]
        %v9150 = vld [vmem:[%s9141 + $0x40] sm:$0xff]
        %v9151 = vld [vmem:[%s9141 + $0x48] sm:$0xff]
        %v9152 = vld [vmem:[%s9141 + $0x50] sm:$0xff]
        %v9153 = vld [vmem:[%s9141 + $0x58] sm:$0xff]
        %v9154 = vld [vmem:[%s9141 + $0x60] sm:$0xff]
        %v9155 = vld [vmem:[%s9141 + $0x68] sm:$0xff]
        %v9156 = vld [vmem:[%s9141 + $0x70] sm:$0xff]
        %v9157 = vld [vmem:[%s9141 + $0x78] sm:$0xff]
        %v9158 = vld [vmem:[%s9141 + $0x80] sm:$0xff]
        %v9159 = vld [vmem:[%s9141 + $0x88] sm:$0xff]
        %v9160 = vld [vmem:[%s9141 + $0x90] sm:$0xff]
        %v9161 = vld [vmem:[%s9141 + $0x98] sm:$0xff]
        %v9162 = vld [vmem:[%s9141 + $0xa0] sm:$0xff]
        %v9163 = vld [vmem:[%s9141 + $0xa8] sm:$0xff]
        %v9164 = vld [vmem:[%s9141 + $0xb0] sm:$0xff]
        %v9165 = vld [vmem:[%s9141 + $0xb8] sm:$0xff]
        %v9166 = vld [vmem:[%s9141 + $0xc0] sm:$0xff]
        %v9167 = vld [vmem:[%s9141 + $0xc8] sm:$0xff]
        %v9168 = vld [vmem:[%s9141 + $0xd0] sm:$0xff]
        %v9169 = vld [vmem:[%s9141 + $0xd8] sm:$0xff]
        %v9170 = vld [vmem:[%s9141 + $0xe0] sm:$0xff]
        %v9171 = vld [vmem:[%s9141 + $0xe8] sm:$0xff]
        %v9172 = vld [vmem:[%s9141 + $0xf0] sm:$0xff]
        %v9173 = vld [vmem:[%s9141 + $0xf8] sm:$0xff]
        %v9175 = vshrl.u32 %v9129, 16
        %v9177 = vrot.slane %v9175, 1
        %v9178 = vshll.u32 %v9129, 16
        %v9180 = vrot.slane %v9178, 2
        %v9181 = vor.u32 %v9177, %v9180
        %v9183 = vshrl.u32 %v9131, 16
        %v9185 = vrot.slane %v9183, 1
        %v9186 = vshll.u32 %v9131, 16
        %v9188 = vrot.slane %v9186, 2
        %v9189 = vor.u32 %v9185, %v9188
        %v9190 = vsel %vm2039, %v9181, %v9189
        %v9192 = vshrl.u32 %v9130, 16
        %v9194 = vrot.slane %v9192, 1
        %v9195 = vshll.u32 %v9130, 16
        %v9197 = vrot.slane %v9195, 2
        %v9198 = vor.u32 %v9194, %v9197
        %v9200 = vshrl.u32 %v9132, 16
        %v9202 = vrot.slane %v9200, 1
        %v9203 = vshll.u32 %v9132, 16
        %v9205 = vrot.slane %v9203, 2
        %v9206 = vor.u32 %v9202, %v9205
        %v9207 = vsel %vm2039, %v9198, %v9206
        %v9209 = vshrl.u32 %v9133, 16
        %v9211 = vrot.slane %v9209, 1
        %v9212 = vshll.u32 %v9133, 16
        %v9214 = vrot.slane %v9212, 2
        %v9215 = vor.u32 %v9211, %v9214
        %v9216 = vsel %vm2039, %v9189, %v9215
        %v9218 = vshrl.u32 %v9134, 16
        %v9220 = vrot.slane %v9218, 1
        %v9221 = vshll.u32 %v9134, 16
        %v9223 = vrot.slane %v9221, 2
        %v9224 = vor.u32 %v9220, %v9223
        %v9225 = vsel %vm2039, %v9206, %v9224
        %v9227 = vshrl.u32 %v9135, 16
        %v9229 = vrot.slane %v9227, 1
        %v9230 = vshll.u32 %v9135, 16
        %v9232 = vrot.slane %v9230, 2
        %v9233 = vor.u32 %v9229, %v9232
        %v9234 = vsel %vm2039, %v9215, %v9233
        %v9236 = vshrl.u32 %v9136, 16
        %v9238 = vrot.slane %v9236, 1
        %v9239 = vshll.u32 %v9136, 16
        %v9241 = vrot.slane %v9239, 2
        %v9242 = vor.u32 %v9238, %v9241
        %v9243 = vsel %vm2039, %v9224, %v9242
        %v9245 = vshrl.u32 %v9137, 16
        %v9247 = vrot.slane %v9245, 1
        %v9248 = vshll.u32 %v9137, 16
        %v9250 = vrot.slane %v9248, 2
        %v9251 = vor.u32 %v9247, %v9250
        %v9252 = vsel %vm2039, %v9233, %v9251
        %v9254 = vshrl.u32 %v9138, 16
        %v9256 = vrot.slane %v9254, 1
        %v9257 = vshll.u32 %v9138, 16
        %v9259 = vrot.slane %v9257, 2
        %v9260 = vor.u32 %v9256, %v9259
        %v9261 = vsel %vm2039, %v9242, %v9260
        %v9263 = vshrl.u32 %v9139, 16
        %v9265 = vrot.slane %v9263, 1
        %v9266 = vshll.u32 %v9139, 16
        %v9268 = vrot.slane %v9266, 2
        %v9269 = vor.u32 %v9265, %v9268
        %v9270 = vsel %vm2039, %v9251, %v9269
        %v9272 = vshrl.u32 %v9140, 16
        %v9274 = vrot.slane %v9272, 1
        %v9275 = vshll.u32 %v9140, 16
        %v9277 = vrot.slane %v9275, 2
        %v9278 = vor.u32 %v9274, %v9277
        %v9279 = vsel %vm2039, %v9260, %v9278
        %v9322 = vunpack.c.l.b16 %v9142
        %v9323 = vunpack.c.h.b16 %v9142
        %v9324 = vunpack.c.l.b16 %v9143
        %v9325 = vunpack.c.h.b16 %v9143
        %v9326 = vunpack.c.l.b16 %v9144
        %v9327 = vunpack.c.h.b16 %v9144
        %v9328 = vunpack.c.l.b16 %v9145
        %v9329 = vunpack.c.h.b16 %v9145
        %v9330 = vunpack.c.l.b16 %v9146
        %v9331 = vunpack.c.h.b16 %v9146
        %v9332 = vunpack.c.l.b16 %v9147
        %v9333 = vunpack.c.h.b16 %v9147
        %v9334 = vunpack.c.l.b16 %v9148
        %v9335 = vunpack.c.h.b16 %v9148
        %v9336 = vunpack.c.l.b16 %v9149
        %v9337 = vunpack.c.h.b16 %v9149
        %v9338 = vunpack.c.l.b16 %v9150
        %v9339 = vunpack.c.h.b16 %v9150
        %v9340 = vunpack.c.l.b16 %v9151
        %v9341 = vunpack.c.h.b16 %v9151
        %v9342 = vunpack.c.l.b16 %v9152
        %v9343 = vunpack.c.h.b16 %v9152
        %v9344 = vunpack.c.l.b16 %v9153
        %v9345 = vunpack.c.h.b16 %v9153
        %v9346 = vunpack.c.l.b16 %v9154
        %v9347 = vunpack.c.h.b16 %v9154
        %v9348 = vunpack.c.l.b16 %v9155
        %v9349 = vunpack.c.h.b16 %v9155
        %v9350 = vunpack.c.l.b16 %v9156
        %v9351 = vunpack.c.h.b16 %v9156
        %v9352 = vunpack.c.l.b16 %v9157
        %v9353 = vunpack.c.h.b16 %v9157
        %v9354 = vunpack.c.l.b16 %v9158
        %v9355 = vunpack.c.h.b16 %v9158
        %v9356 = vunpack.c.l.b16 %v9159
        %v9357 = vunpack.c.h.b16 %v9159
        %v9358 = vunpack.c.l.b16 %v9160
        %v9359 = vunpack.c.h.b16 %v9160
        %v9360 = vunpack.c.l.b16 %v9161
        %v9361 = vunpack.c.h.b16 %v9161
        %v9362 = vunpack.c.l.b16 %v9162
        %v9363 = vunpack.c.h.b16 %v9162
        %v9364 = vunpack.c.l.b16 %v9163
        %v9365 = vunpack.c.h.b16 %v9163
        %v9366 = vunpack.c.l.b16 %v9164
        %v9367 = vunpack.c.h.b16 %v9164
        %v9368 = vunpack.c.l.b16 %v9165
        %v9369 = vunpack.c.h.b16 %v9165
        %v9370 = vunpack.c.l.b16 %v9166
        %v9371 = vunpack.c.h.b16 %v9166
        %v9372 = vunpack.c.l.b16 %v9167
        %v9373 = vunpack.c.h.b16 %v9167
        %v9374 = vunpack.c.l.b16 %v9168
        %v9375 = vunpack.c.h.b16 %v9168
        %v9376 = vunpack.c.l.b16 %v9169
        %v9377 = vunpack.c.h.b16 %v9169
        %v9378 = vunpack.c.l.b16 %v9170
        %v9379 = vunpack.c.h.b16 %v9170
        %v9380 = vunpack.c.l.b16 %v9171
        %v9381 = vunpack.c.h.b16 %v9171
        %v9382 = vunpack.c.l.b16 %v9172
        %v9383 = vunpack.c.h.b16 %v9172
        %v9384 = vunpack.c.l.b16 %v9173
        %v9385 = vunpack.c.h.b16 %v9173
        %v9386 = vpack.c.b16 %v9324, %v9322
        %v9387 = vpack.c.b16 %v9325, %v9323
        %v9388 = vpack.c.b16 %v9328, %v9326
        %v9389 = vpack.c.b16 %v9329, %v9327
        %v9390 = vpack.c.b16 %v9332, %v9330
        %v9391 = vpack.c.b16 %v9333, %v9331
        %v9392 = vpack.c.b16 %v9336, %v9334
        %v9393 = vpack.c.b16 %v9337, %v9335
        %v9394 = vpack.c.b16 %v9340, %v9338
        %v9395 = vpack.c.b16 %v9341, %v9339
        %v9396 = vpack.c.b16 %v9344, %v9342
        %v9397 = vpack.c.b16 %v9345, %v9343
        %v9398 = vpack.c.b16 %v9348, %v9346
        %v9399 = vpack.c.b16 %v9349, %v9347
        %v9400 = vpack.c.b16 %v9352, %v9350
        %v9401 = vpack.c.b16 %v9353, %v9351
        %v9402 = vpack.c.b16 %v9356, %v9354
        %v9403 = vpack.c.b16 %v9357, %v9355
        %v9404 = vpack.c.b16 %v9360, %v9358
        %v9405 = vpack.c.b16 %v9361, %v9359
        %v9406 = vpack.c.b16 %v9364, %v9362
        %v9407 = vpack.c.b16 %v9365, %v9363
        %v9408 = vpack.c.b16 %v9368, %v9366
        %v9409 = vpack.c.b16 %v9369, %v9367
        %v9410 = vpack.c.b16 %v9372, %v9370
        %v9411 = vpack.c.b16 %v9373, %v9371
        %v9412 = vpack.c.b16 %v9376, %v9374
        %v9413 = vpack.c.b16 %v9377, %v9375
        %v9414 = vpack.c.b16 %v9380, %v9378
        %v9415 = vpack.c.b16 %v9381, %v9379
        %v9416 = vpack.c.b16 %v9384, %v9382
        %v9417 = vpack.c.b16 %v9385, %v9383
        %9450 = vmatpush.bf16.msra.mxu0 %v9400
        %9451 = vmatpush.bf16.msra.mxu0 %v9398
        %9452 = vmatpush.bf16.msra.mxu0 %v9396
        %9453 = vmatpush.bf16.msra.mxu0 %v9394
        %9454 = vmatpush.bf16.msra.mxu0 %v9392
        %9455 = vmatpush.bf16.msra.mxu0 %v9390
        %9456 = vmatpush.bf16.msra.mxu0 %v9388
        %9457 = vmatpush.bf16.msra.mxu0 %v9386
        %9458 = vmatmul.bf16.gmra.mxu0 %v9190
        %v9459 = vpop.f32.mrf.mxu0
        %v9460 = vadd.f32 0.0, %v9459
        %v9461 = vpop.f32.mrf.mxu0
        %v9462 = vadd.f32 0.0, %v9461
        %9463 = vmatmul.bf16.gmra.mxu0 %v9216
        %v9464 = vpop.f32.mrf.mxu0
        %v9465 = vadd.f32 0.0, %v9464
        %v9466 = vpop.f32.mrf.mxu0
        %v9467 = vadd.f32 0.0, %v9466
        %9468 = vmatmul.bf16.gmra.mxu0 %v9234
        %v9469 = vpop.f32.mrf.mxu0
        %v9470 = vadd.f32 0.0, %v9469
        %v9471 = vpop.f32.mrf.mxu0
        %v9472 = vadd.f32 0.0, %v9471
        %9473 = vmatmul.bf16.gmra.mxu0 %v9252
        %v9474 = vpop.f32.mrf.mxu0
        %v9475 = vadd.f32 0.0, %v9474
        %v9476 = vpop.f32.mrf.mxu0
        %v9477 = vadd.f32 0.0, %v9476
        %9478 = vmatmul.bf16.gmra.mxu0 %v9270
        %v9479 = vpop.f32.mrf.mxu0
        %v9480 = vadd.f32 0.0, %v9479
        %v9481 = vpop.f32.mrf.mxu0
        %v9482 = vadd.f32 0.0, %v9481
        %9483 = vdwg.mxu0
        %9484 = vmatpush.bf16.msra.mxu0 %v9416
        %9485 = vmatpush.bf16.msra.mxu0 %v9414
        %9486 = vmatpush.bf16.msra.mxu0 %v9412
        %9487 = vmatpush.bf16.msra.mxu0 %v9410
        %9488 = vmatpush.bf16.msra.mxu0 %v9408
        %9489 = vmatpush.bf16.msra.mxu0 %v9406
        %9490 = vmatpush.bf16.msra.mxu0 %v9404
        %9491 = vmatpush.bf16.msra.mxu0 %v9402
        %9492 = vmatmul.bf16.gmra.mxu0 %v9207
        %v9493 = vpop.f32.mrf.mxu0
        %v9494 = vadd.f32 %v9460, %v9493
        %v9495 = vpop.f32.mrf.mxu0
        %v9496 = vadd.f32 %v9462, %v9495
        %9497 = vmatmul.bf16.gmra.mxu0 %v9225
        %v9498 = vpop.f32.mrf.mxu0
        %v9499 = vadd.f32 %v9465, %v9498
        %v9500 = vpop.f32.mrf.mxu0
        %v9501 = vadd.f32 %v9467, %v9500
        %9502 = vmatmul.bf16.gmra.mxu0 %v9243
        %v9503 = vpop.f32.mrf.mxu0
        %v9504 = vadd.f32 %v9470, %v9503
        %v9505 = vpop.f32.mrf.mxu0
        %v9506 = vadd.f32 %v9472, %v9505
        %9507 = vmatmul.bf16.gmra.mxu0 %v9261
        %v9508 = vpop.f32.mrf.mxu0
        %v9509 = vadd.f32 %v9475, %v9508
        %v9510 = vpop.f32.mrf.mxu0
        %v9511 = vadd.f32 %v9477, %v9510
        %9512 = vmatmul.bf16.gmra.mxu0 %v9279
        %v9513 = vpop.f32.mrf.mxu0
        %v9514 = vadd.f32 %v9480, %v9513
        %v9515 = vpop.f32.mrf.mxu0
        %v9516 = vadd.f32 %v9482, %v9515
        %9517 = vdwg.mxu0
        %9518 = vmatpush.bf16.msra.mxu0 %v9401
        %9519 = vmatpush.bf16.msra.mxu0 %v9399
        %9520 = vmatpush.bf16.msra.mxu0 %v9397
        %9521 = vmatpush.bf16.msra.mxu0 %v9395
        %9522 = vmatpush.bf16.msra.mxu0 %v9393
        %9523 = vmatpush.bf16.msra.mxu0 %v9391
        %9524 = vmatpush.bf16.msra.mxu0 %v9389
        %9525 = vmatpush.bf16.msra.mxu0 %v9387
        %9526 = vmatmul.bf16.gmra.mxu0 %v9190
        %v9527 = vpop.f32.mrf.mxu0
        %v9528 = vadd.f32 0.0, %v9527
        %v9529 = vpop.f32.mrf.mxu0
        %v9530 = vadd.f32 0.0, %v9529
        %9531 = vmatmul.bf16.gmra.mxu0 %v9216
        %v9532 = vpop.f32.mrf.mxu0
        %v9533 = vadd.f32 0.0, %v9532
        %v9534 = vpop.f32.mrf.mxu0
        %v9535 = vadd.f32 0.0, %v9534
        %9536 = vmatmul.bf16.gmra.mxu0 %v9234
        %v9537 = vpop.f32.mrf.mxu0
        %v9538 = vadd.f32 0.0, %v9537
        %v9539 = vpop.f32.mrf.mxu0
        %v9540 = vadd.f32 0.0, %v9539
        %9541 = vmatmul.bf16.gmra.mxu0 %v9252
        %v9542 = vpop.f32.mrf.mxu0
        %v9543 = vadd.f32 0.0, %v9542
        %v9544 = vpop.f32.mrf.mxu0
        %v9545 = vadd.f32 0.0, %v9544
        %9546 = vmatmul.bf16.gmra.mxu0 %v9270
        %v9547 = vpop.f32.mrf.mxu0
        %v9548 = vadd.f32 0.0, %v9547
        %v9549 = vpop.f32.mrf.mxu0
        %v9550 = vadd.f32 0.0, %v9549
        %9551 = vdwg.mxu0
        %9552 = vmatpush.bf16.msra.mxu0 %v9417
        %9553 = vmatpush.bf16.msra.mxu0 %v9415
        %9554 = vmatpush.bf16.msra.mxu0 %v9413
        %9555 = vmatpush.bf16.msra.mxu0 %v9411
        %9556 = vmatpush.bf16.msra.mxu0 %v9409
        %9557 = vmatpush.bf16.msra.mxu0 %v9407
        %9558 = vmatpush.bf16.msra.mxu0 %v9405
        %9559 = vmatpush.bf16.msra.mxu0 %v9403
        %9560 = vmatmul.bf16.gmra.mxu0 %v9207
        %v9561 = vpop.f32.mrf.mxu0
        %v9562 = vadd.f32 %v9528, %v9561
        %v9563 = vpop.f32.mrf.mxu0
        %v9564 = vadd.f32 %v9530, %v9563
        %9565 = vmatmul.bf16.gmra.mxu0 %v9225
        %v9566 = vpop.f32.mrf.mxu0
        %v9567 = vadd.f32 %v9533, %v9566
        %v9568 = vpop.f32.mrf.mxu0
        %v9569 = vadd.f32 %v9535, %v9568
        %9570 = vmatmul.bf16.gmra.mxu0 %v9243
        %v9571 = vpop.f32.mrf.mxu0
        %v9572 = vadd.f32 %v9538, %v9571
        %v9573 = vpop.f32.mrf.mxu0
        %v9574 = vadd.f32 %v9540, %v9573
        %9575 = vmatmul.bf16.gmra.mxu0 %v9261
        %v9576 = vpop.f32.mrf.mxu0
        %v9577 = vadd.f32 %v9543, %v9576
        %v9578 = vpop.f32.mrf.mxu0
        %v9579 = vadd.f32 %v9545, %v9578
        %9580 = vmatmul.bf16.gmra.mxu0 %v9279
        %v9581 = vpop.f32.mrf.mxu0
        %v9582 = vadd.f32 %v9548, %v9581
        %v9583 = vpop.f32.mrf.mxu0
        %v9584 = vadd.f32 %v9550, %v9583
        %9585 = vdwg.mxu0
        %v9586 = vadd.f32 %v9087, %v9494
        %v9587 = vadd.f32 %v9088, %v9562
        %v9588 = vadd.f32 %v9089, %v9496
        %v9589 = vadd.f32 %v9090, %v9564
        %v9590 = vadd.f32 %v9091, %v9499
        %v9591 = vadd.f32 %v9092, %v9567
        %v9592 = vadd.f32 %v9093, %v9501
        %v9593 = vadd.f32 %v9094, %v9569
        %v9594 = vadd.f32 %v9095, %v9504
        %v9595 = vadd.f32 %v9096, %v9572
        %v9596 = vadd.f32 %v9097, %v9506
        %v9597 = vadd.f32 %v9098, %v9574
        %v9598 = vadd.f32 %v9099, %v9509
        %v9599 = vadd.f32 %v9100, %v9577
        %v9600 = vadd.f32 %v9101, %v9511
        %v9601 = vadd.f32 %v9102, %v9579
        %v9602 = vadd.f32 %v9103, %v9514
        %v9603 = vadd.f32 %v9104, %v9582
        %v9604 = vadd.f32 %v9105, %v9516
        %v9605 = vadd.f32 %v9106, %v9584
        %9606 = vst [vmem:[#allocation3] sm:$0xff] %v9586
        %9607 = vst [vmem:[#allocation3 + $0x8] sm:$0xff] %v9587
        %9608 = vst [vmem:[#allocation3 + $0x10] sm:$0xff] %v9588
        %9609 = vst [vmem:[#allocation3 + $0x18] sm:$0xff] %v9589
        %9610 = vst [vmem:[#allocation3 + $0x20] sm:$0xff] %v9590
        %9611 = vst [vmem:[#allocation3 + $0x28] sm:$0xff] %v9591
        %9612 = vst [vmem:[#allocation3 + $0x30] sm:$0xff] %v9592
        %9613 = vst [vmem:[#allocation3 + $0x38] sm:$0xff] %v9593
        %9614 = vst [vmem:[#allocation3 + $0x40] sm:$0xff] %v9594
        %9615 = vst [vmem:[#allocation3 + $0x48] sm:$0xff] %v9595
        %9616 = vst [vmem:[#allocation3 + $0x50] sm:$0xff] %v9596
        %9617 = vst [vmem:[#allocation3 + $0x58] sm:$0xff] %v9597
        %9618 = vst [vmem:[#allocation3 + $0x60] sm:$0xff] %v9598
        %9619 = vst [vmem:[#allocation3 + $0x68] sm:$0xff] %v9599
        %9620 = vst [vmem:[#allocation3 + $0x70] sm:$0xff] %v9600
        %9621 = vst [vmem:[#allocation3 + $0x78] sm:$0xff] %v9601
        %9622 = vst [vmem:[#allocation3 + $0x80] sm:$0xff] %v9602
        %9623 = vst [vmem:[#allocation3 + $0x88] sm:$0xff] %v9603
        %9624 = vst [vmem:[#allocation3 + $0x90] sm:$0xff] %v9604
        %9625 = vst [vmem:[#allocation3 + $0x98] sm:$0xff] %v9605
        %v9626 = vld [vmem:[#allocation3] sm:$0xff]
        %v9627 = vld [vmem:[#allocation3 + $0x8] sm:$0xff]
        %v9628 = vld [vmem:[#allocation3 + $0x10] sm:$0xff]
        %v9629 = vld [vmem:[#allocation3 + $0x18] sm:$0xff]
        %v9630 = vld [vmem:[#allocation3 + $0x20] sm:$0xff]
        %v9631 = vld [vmem:[#allocation3 + $0x28] sm:$0xff]
        %v9632 = vld [vmem:[#allocation3 + $0x30] sm:$0xff]
        %v9633 = vld [vmem:[#allocation3 + $0x38] sm:$0xff]
        %v9634 = vld [vmem:[#allocation3 + $0x40] sm:$0xff]
        %v9635 = vld [vmem:[#allocation3 + $0x48] sm:$0xff]
        %v9636 = vld [vmem:[#allocation3 + $0x50] sm:$0xff]
        %v9637 = vld [vmem:[#allocation3 + $0x58] sm:$0xff]
        %v9638 = vld [vmem:[#allocation3 + $0x60] sm:$0xff]
        %v9639 = vld [vmem:[#allocation3 + $0x68] sm:$0xff]
        %v9640 = vld [vmem:[#allocation3 + $0x70] sm:$0xff]
        %v9641 = vld [vmem:[#allocation3 + $0x78] sm:$0xff]
        %v9642 = vld [vmem:[#allocation3 + $0x80] sm:$0xff]
        %v9643 = vld [vmem:[#allocation3 + $0x88] sm:$0xff]
        %v9644 = vld [vmem:[#allocation3 + $0x90] sm:$0xff]
        %v9645 = vld [vmem:[#allocation3 + $0x98] sm:$0xff]
        %v9646 = vld [vmem:[#allocation2] sm:$0xf0]
        %v9647 = vld [vmem:[#allocation2 + $0x8] sm:$0xf0]
        %v9648 = vld [vmem:[#allocation2 + $0x10] sm:$0xff]
        %v9649 = vld [vmem:[#allocation2 + $0x18] sm:$0xff]
        %v9650 = vld [vmem:[#allocation2 + $0x20] sm:$0xff]
        %v9651 = vld [vmem:[#allocation2 + $0x28] sm:$0xff]
        %v9652 = vld [vmem:[#allocation2 + $0x30] sm:$0xff]
        %v9653 = vld [vmem:[#allocation2 + $0x38] sm:$0xff]
        %v9654 = vld [vmem:[#allocation2 + $0x40] sm:$0xff]
        %v9655 = vld [vmem:[#allocation2 + $0x48] sm:$0xff]
        %v9656 = vld [vmem:[#allocation2 + $0x50] sm:$0xff]
        %v9657 = vld [vmem:[#allocation2 + $0x58] sm:$0xff]
        %v9658 = vld [vmem:[#allocation2 + $0x60] sm:$0xff]
        %v9659 = vld [vmem:[#allocation2 + $0x68] sm:$0xff]
        %v9660 = vld [vmem:[#allocation2 + $0x70] sm:$0xff]
        %v9661 = vld [vmem:[#allocation2 + $0x78] sm:$0xff]
        %v9662 = vld [vmem:[#allocation2 + $0x80] sm:$0xff]
        %v9663 = vld [vmem:[#allocation2 + $0x88] sm:$0xff]
        %v9664 = vld [vmem:[#allocation2 + $0x90] sm:$0xff]
        %v9665 = vld [vmem:[#allocation2 + $0x98] sm:$0xff]
        %v9666 = vld [vmem:[#allocation2 + $0xa0] sm:$0xf]
        %v9667 = vld [vmem:[#allocation2 + $0xa8] sm:$0xf]
        %v9668 = vpack.c.bf16 %v9648, %v9646
        %v9669 = vpack.c.bf16 %v9649, %v9647
        %v9670 = vpack.c.bf16 %v9652, %v9650
        %v9671 = vpack.c.bf16 %v9653, %v9651
        %v9672 = vpack.c.bf16 %v9656, %v9654
        %v9673 = vpack.c.bf16 %v9657, %v9655
        %v9674 = vpack.c.bf16 %v9660, %v9658
        %v9675 = vpack.c.bf16 %v9661, %v9659
        %v9676 = vpack.c.bf16 %v9664, %v9662
        %v9677 = vpack.c.bf16 %v9665, %v9663
        %v9678 = vpack.c.bf16 %v9666, %v9666
        %v9679 = vpack.c.bf16 %v9667, %v9667
        %s9680 = scalar_lea.vmem [#allocation7], 1024
        %v9681 = vld [vmem:[%s9680] sm:$0xff]
        %v9682 = vld [vmem:[%s9680 + $0x8] sm:$0xff]
        %v9683 = vld [vmem:[%s9680 + $0x10] sm:$0xff]
        %v9684 = vld [vmem:[%s9680 + $0x18] sm:$0xff]
        %v9685 = vld [vmem:[%s9680 + $0x20] sm:$0xff]
        %v9686 = vld [vmem:[%s9680 + $0x28] sm:$0xff]
        %v9687 = vld [vmem:[%s9680 + $0x30] sm:$0xff]
        %v9688 = vld [vmem:[%s9680 + $0x38] sm:$0xff]
        %v9689 = vld [vmem:[%s9680 + $0x40] sm:$0xff]
        %v9690 = vld [vmem:[%s9680 + $0x48] sm:$0xff]
        %v9691 = vld [vmem:[%s9680 + $0x50] sm:$0xff]
        %v9692 = vld [vmem:[%s9680 + $0x58] sm:$0xff]
        %v9693 = vld [vmem:[%s9680 + $0x60] sm:$0xff]
        %v9694 = vld [vmem:[%s9680 + $0x68] sm:$0xff]
        %v9695 = vld [vmem:[%s9680 + $0x70] sm:$0xff]
        %v9696 = vld [vmem:[%s9680 + $0x78] sm:$0xff]
        %v9697 = vld [vmem:[%s9680 + $0x80] sm:$0xff]
        %v9698 = vld [vmem:[%s9680 + $0x88] sm:$0xff]
        %v9699 = vld [vmem:[%s9680 + $0x90] sm:$0xff]
        %v9700 = vld [vmem:[%s9680 + $0x98] sm:$0xff]
        %v9701 = vld [vmem:[%s9680 + $0xa0] sm:$0xff]
        %v9702 = vld [vmem:[%s9680 + $0xa8] sm:$0xff]
        %v9703 = vld [vmem:[%s9680 + $0xb0] sm:$0xff]
        %v9704 = vld [vmem:[%s9680 + $0xb8] sm:$0xff]
        %v9705 = vld [vmem:[%s9680 + $0xc0] sm:$0xff]
        %v9706 = vld [vmem:[%s9680 + $0xc8] sm:$0xff]
        %v9707 = vld [vmem:[%s9680 + $0xd0] sm:$0xff]
        %v9708 = vld [vmem:[%s9680 + $0xd8] sm:$0xff]
        %v9709 = vld [vmem:[%s9680 + $0xe0] sm:$0xff]
        %v9710 = vld [vmem:[%s9680 + $0xe8] sm:$0xff]
        %v9711 = vld [vmem:[%s9680 + $0xf0] sm:$0xff]
        %v9712 = vld [vmem:[%s9680 + $0xf8] sm:$0xff]
        %v9725 = vrot.slane %v9668, 2
        %v9726 = vrot.slane %v9670, 2
        %v9727 = vsel %vm2591, %v9725, %v9726
        %v9728 = vrot.slane %v9669, 2
        %v9729 = vrot.slane %v9671, 2
        %v9730 = vsel %vm2591, %v9728, %v9729
        %v9731 = vrot.slane %v9672, 2
        %v9732 = vsel %vm2591, %v9726, %v9731
        %v9733 = vrot.slane %v9673, 2
        %v9734 = vsel %vm2591, %v9729, %v9733
        %v9735 = vrot.slane %v9674, 2
        %v9736 = vsel %vm2591, %v9731, %v9735
        %v9737 = vrot.slane %v9675, 2
        %v9738 = vsel %vm2591, %v9733, %v9737
        %v9739 = vrot.slane %v9676, 2
        %v9740 = vsel %vm2591, %v9735, %v9739
        %v9741 = vrot.slane %v9677, 2
        %v9742 = vsel %vm2591, %v9737, %v9741
        %v9743 = vrot.slane %v9678, 2
        %v9744 = vsel %vm2591, %v9739, %v9743
        %v9745 = vrot.slane %v9679, 2
        %v9746 = vsel %vm2591, %v9741, %v9745
        %v9789 = vunpack.c.l.b16 %v9681
        %v9790 = vunpack.c.h.b16 %v9681
        %v9791 = vunpack.c.l.b16 %v9682
        %v9792 = vunpack.c.h.b16 %v9682
        %v9793 = vunpack.c.l.b16 %v9683
        %v9794 = vunpack.c.h.b16 %v9683
        %v9795 = vunpack.c.l.b16 %v9684
        %v9796 = vunpack.c.h.b16 %v9684
        %v9797 = vunpack.c.l.b16 %v9685
        %v9798 = vunpack.c.h.b16 %v9685
        %v9799 = vunpack.c.l.b16 %v9686
        %v9800 = vunpack.c.h.b16 %v9686
        %v9801 = vunpack.c.l.b16 %v9687
        %v9802 = vunpack.c.h.b16 %v9687
        %v9803 = vunpack.c.l.b16 %v9688
        %v9804 = vunpack.c.h.b16 %v9688
        %v9805 = vunpack.c.l.b16 %v9689
        %v9806 = vunpack.c.h.b16 %v9689
        %v9807 = vunpack.c.l.b16 %v9690
        %v9808 = vunpack.c.h.b16 %v9690
        %v9809 = vunpack.c.l.b16 %v9691
        %v9810 = vunpack.c.h.b16 %v9691
        %v9811 = vunpack.c.l.b16 %v9692
        %v9812 = vunpack.c.h.b16 %v9692
        %v9813 = vunpack.c.l.b16 %v9693
        %v9814 = vunpack.c.h.b16 %v9693
        %v9815 = vunpack.c.l.b16 %v9694
        %v9816 = vunpack.c.h.b16 %v9694
        %v9817 = vunpack.c.l.b16 %v9695
        %v9818 = vunpack.c.h.b16 %v9695
        %v9819 = vunpack.c.l.b16 %v9696
        %v9820 = vunpack.c.h.b16 %v9696
        %v9821 = vunpack.c.l.b16 %v9697
        %v9822 = vunpack.c.h.b16 %v9697
        %v9823 = vunpack.c.l.b16 %v9698
        %v9824 = vunpack.c.h.b16 %v9698
        %v9825 = vunpack.c.l.b16 %v9699
        %v9826 = vunpack.c.h.b16 %v9699
        %v9827 = vunpack.c.l.b16 %v9700
        %v9828 = vunpack.c.h.b16 %v9700
        %v9829 = vunpack.c.l.b16 %v9701
        %v9830 = vunpack.c.h.b16 %v9701
        %v9831 = vunpack.c.l.b16 %v9702
        %v9832 = vunpack.c.h.b16 %v9702
        %v9833 = vunpack.c.l.b16 %v9703
        %v9834 = vunpack.c.h.b16 %v9703
        %v9835 = vunpack.c.l.b16 %v9704
        %v9836 = vunpack.c.h.b16 %v9704
        %v9837 = vunpack.c.l.b16 %v9705
        %v9838 = vunpack.c.h.b16 %v9705
        %v9839 = vunpack.c.l.b16 %v9706
        %v9840 = vunpack.c.h.b16 %v9706
        %v9841 = vunpack.c.l.b16 %v9707
        %v9842 = vunpack.c.h.b16 %v9707
        %v9843 = vunpack.c.l.b16 %v9708
        %v9844 = vunpack.c.h.b16 %v9708
        %v9845 = vunpack.c.l.b16 %v9709
        %v9846 = vunpack.c.h.b16 %v9709
        %v9847 = vunpack.c.l.b16 %v9710
        %v9848 = vunpack.c.h.b16 %v9710
        %v9849 = vunpack.c.l.b16 %v9711
        %v9850 = vunpack.c.h.b16 %v9711
        %v9851 = vunpack.c.l.b16 %v9712
        %v9852 = vunpack.c.h.b16 %v9712
        %v9853 = vpack.c.b16 %v9791, %v9789
        %v9854 = vpack.c.b16 %v9792, %v9790
        %v9855 = vpack.c.b16 %v9795, %v9793
        %v9856 = vpack.c.b16 %v9796, %v9794
        %v9857 = vpack.c.b16 %v9799, %v9797
        %v9858 = vpack.c.b16 %v9800, %v9798
        %v9859 = vpack.c.b16 %v9803, %v9801
        %v9860 = vpack.c.b16 %v9804, %v9802
        %v9861 = vpack.c.b16 %v9807, %v9805
        %v9862 = vpack.c.b16 %v9808, %v9806
        %v9863 = vpack.c.b16 %v9811, %v9809
        %v9864 = vpack.c.b16 %v9812, %v9810
        %v9865 = vpack.c.b16 %v9815, %v9813
        %v9866 = vpack.c.b16 %v9816, %v9814
        %v9867 = vpack.c.b16 %v9819, %v9817
        %v9868 = vpack.c.b16 %v9820, %v9818
        %v9869 = vpack.c.b16 %v9823, %v9821
        %v9870 = vpack.c.b16 %v9824, %v9822
        %v9871 = vpack.c.b16 %v9827, %v9825
        %v9872 = vpack.c.b16 %v9828, %v9826
        %v9873 = vpack.c.b16 %v9831, %v9829
        %v9874 = vpack.c.b16 %v9832, %v9830
        %v9875 = vpack.c.b16 %v9835, %v9833
        %v9876 = vpack.c.b16 %v9836, %v9834
        %v9877 = vpack.c.b16 %v9839, %v9837
        %v9878 = vpack.c.b16 %v9840, %v9838
        %v9879 = vpack.c.b16 %v9843, %v9841
        %v9880 = vpack.c.b16 %v9844, %v9842
        %v9881 = vpack.c.b16 %v9847, %v9845
        %v9882 = vpack.c.b16 %v9848, %v9846
        %v9883 = vpack.c.b16 %v9851, %v9849
        %v9884 = vpack.c.b16 %v9852, %v9850
        %9917 = vmatpush.bf16.msra.mxu0 %v9867
        %9918 = vmatpush.bf16.msra.mxu0 %v9865
        %9919 = vmatpush.bf16.msra.mxu0 %v9863
        %9920 = vmatpush.bf16.msra.mxu0 %v9861
        %9921 = vmatpush.bf16.msra.mxu0 %v9859
        %9922 = vmatpush.bf16.msra.mxu0 %v9857
        %9923 = vmatpush.bf16.msra.mxu0 %v9855
        %9924 = vmatpush.bf16.msra.mxu0 %v9853
        %9925 = vmatmul.bf16.gmra.mxu0 %v9727
        %v9926 = vpop.f32.mrf.mxu0
        %v9927 = vadd.f32 0.0, %v9926
        %v9928 = vpop.f32.mrf.mxu0
        %v9929 = vadd.f32 0.0, %v9928
        %9930 = vmatmul.bf16.gmra.mxu0 %v9732
        %v9931 = vpop.f32.mrf.mxu0
        %v9932 = vadd.f32 0.0, %v9931
        %v9933 = vpop.f32.mrf.mxu0
        %v9934 = vadd.f32 0.0, %v9933
        %9935 = vmatmul.bf16.gmra.mxu0 %v9736
        %v9936 = vpop.f32.mrf.mxu0
        %v9937 = vadd.f32 0.0, %v9936
        %v9938 = vpop.f32.mrf.mxu0
        %v9939 = vadd.f32 0.0, %v9938
        %9940 = vmatmul.bf16.gmra.mxu0 %v9740
        %v9941 = vpop.f32.mrf.mxu0
        %v9942 = vadd.f32 0.0, %v9941
        %v9943 = vpop.f32.mrf.mxu0
        %v9944 = vadd.f32 0.0, %v9943
        %9945 = vmatmul.bf16.gmra.mxu0 %v9744
        %v9946 = vpop.f32.mrf.mxu0
        %v9947 = vadd.f32 0.0, %v9946
        %v9948 = vpop.f32.mrf.mxu0
        %v9949 = vadd.f32 0.0, %v9948
        %9950 = vdwg.mxu0
        %9951 = vmatpush.bf16.msra.mxu0 %v9883
        %9952 = vmatpush.bf16.msra.mxu0 %v9881
        %9953 = vmatpush.bf16.msra.mxu0 %v9879
        %9954 = vmatpush.bf16.msra.mxu0 %v9877
        %9955 = vmatpush.bf16.msra.mxu0 %v9875
        %9956 = vmatpush.bf16.msra.mxu0 %v9873
        %9957 = vmatpush.bf16.msra.mxu0 %v9871
        %9958 = vmatpush.bf16.msra.mxu0 %v9869
        %9959 = vmatmul.bf16.gmra.mxu0 %v9730
        %v9960 = vpop.f32.mrf.mxu0
        %v9961 = vadd.f32 %v9927, %v9960
        %v9962 = vpop.f32.mrf.mxu0
        %v9963 = vadd.f32 %v9929, %v9962
        %9964 = vmatmul.bf16.gmra.mxu0 %v9734
        %v9965 = vpop.f32.mrf.mxu0
        %v9966 = vadd.f32 %v9932, %v9965
        %v9967 = vpop.f32.mrf.mxu0
        %v9968 = vadd.f32 %v9934, %v9967
        %9969 = vmatmul.bf16.gmra.mxu0 %v9738
        %v9970 = vpop.f32.mrf.mxu0
        %v9971 = vadd.f32 %v9937, %v9970
        %v9972 = vpop.f32.mrf.mxu0
        %v9973 = vadd.f32 %v9939, %v9972
        %9974 = vmatmul.bf16.gmra.mxu0 %v9742
        %v9975 = vpop.f32.mrf.mxu0
        %v9976 = vadd.f32 %v9942, %v9975
        %v9977 = vpop.f32.mrf.mxu0
        %v9978 = vadd.f32 %v9944, %v9977
        %9979 = vmatmul.bf16.gmra.mxu0 %v9746
        %v9980 = vpop.f32.mrf.mxu0
        %v9981 = vadd.f32 %v9947, %v9980
        %v9982 = vpop.f32.mrf.mxu0
        %v9983 = vadd.f32 %v9949, %v9982
        %9984 = vdwg.mxu0
        %9985 = vmatpush.bf16.msra.mxu0 %v9868
        %9986 = vmatpush.bf16.msra.mxu0 %v9866
        %9987 = vmatpush.bf16.msra.mxu0 %v9864
        %9988 = vmatpush.bf16.msra.mxu0 %v9862
        %9989 = vmatpush.bf16.msra.mxu0 %v9860
        %9990 = vmatpush.bf16.msra.mxu0 %v9858
        %9991 = vmatpush.bf16.msra.mxu0 %v9856
        %9992 = vmatpush.bf16.msra.mxu0 %v9854
        %9993 = vmatmul.bf16.gmra.mxu0 %v9727
        %v9994 = vpop.f32.mrf.mxu0
        %v9995 = vadd.f32 0.0, %v9994
        %v9996 = vpop.f32.mrf.mxu0
        %v9997 = vadd.f32 0.0, %v9996
        %9998 = vmatmul.bf16.gmra.mxu0 %v9732
        %v9999 = vpop.f32.mrf.mxu0
        %v10000 = vadd.f32 0.0, %v9999
        %v10001 = vpop.f32.mrf.mxu0
        %v10002 = vadd.f32 0.0, %v10001
        %10003 = vmatmul.bf16.gmra.mxu0 %v9736
        %v10004 = vpop.f32.mrf.mxu0
        %v10005 = vadd.f32 0.0, %v10004
        %v10006 = vpop.f32.mrf.mxu0
        %v10007 = vadd.f32 0.0, %v10006
        %10008 = vmatmul.bf16.gmra.mxu0 %v9740
        %v10009 = vpop.f32.mrf.mxu0
        %v10010 = vadd.f32 0.0, %v10009
        %v10011 = vpop.f32.mrf.mxu0
        %v10012 = vadd.f32 0.0, %v10011
        %10013 = vmatmul.bf16.gmra.mxu0 %v9744
        %v10014 = vpop.f32.mrf.mxu0
        %v10015 = vadd.f32 0.0, %v10014
        %v10016 = vpop.f32.mrf.mxu0
        %v10017 = vadd.f32 0.0, %v10016
        %10018 = vdwg.mxu0
        %10019 = vmatpush.bf16.msra.mxu0 %v9884
        %10020 = vmatpush.bf16.msra.mxu0 %v9882
        %10021 = vmatpush.bf16.msra.mxu0 %v9880
        %10022 = vmatpush.bf16.msra.mxu0 %v9878
        %10023 = vmatpush.bf16.msra.mxu0 %v9876
        %10024 = vmatpush.bf16.msra.mxu0 %v9874
        %10025 = vmatpush.bf16.msra.mxu0 %v9872
        %10026 = vmatpush.bf16.msra.mxu0 %v9870
        %10027 = vmatmul.bf16.gmra.mxu0 %v9730
        %v10028 = vpop.f32.mrf.mxu0
        %v10029 = vadd.f32 %v9995, %v10028
        %v10030 = vpop.f32.mrf.mxu0
        %v10031 = vadd.f32 %v9997, %v10030
        %10032 = vmatmul.bf16.gmra.mxu0 %v9734
        %v10033 = vpop.f32.mrf.mxu0
        %v10034 = vadd.f32 %v10000, %v10033
        %v10035 = vpop.f32.mrf.mxu0
        %v10036 = vadd.f32 %v10002, %v10035
        %10037 = vmatmul.bf16.gmra.mxu0 %v9738
        %v10038 = vpop.f32.mrf.mxu0
        %v10039 = vadd.f32 %v10005, %v10038
        %v10040 = vpop.f32.mrf.mxu0
        %v10041 = vadd.f32 %v10007, %v10040
        %10042 = vmatmul.bf16.gmra.mxu0 %v9742
        %v10043 = vpop.f32.mrf.mxu0
        %v10044 = vadd.f32 %v10010, %v10043
        %v10045 = vpop.f32.mrf.mxu0
        %v10046 = vadd.f32 %v10012, %v10045
        %10047 = vmatmul.bf16.gmra.mxu0 %v9746
        %v10048 = vpop.f32.mrf.mxu0
        %v10049 = vadd.f32 %v10015, %v10048
        %v10050 = vpop.f32.mrf.mxu0
        %v10051 = vadd.f32 %v10017, %v10050
        %10052 = vdwg.mxu0
        %v10053 = vadd.f32 %v9626, %v9961
        %v10054 = vadd.f32 %v9627, %v10029
        %v10055 = vadd.f32 %v9628, %v9963
        %v10056 = vadd.f32 %v9629, %v10031
        %v10057 = vadd.f32 %v9630, %v9966
        %v10058 = vadd.f32 %v9631, %v10034
        %v10059 = vadd.f32 %v9632, %v9968
        %v10060 = vadd.f32 %v9633, %v10036
        %v10061 = vadd.f32 %v9634, %v9971
        %v10062 = vadd.f32 %v9635, %v10039
        %v10063 = vadd.f32 %v9636, %v9973
        %v10064 = vadd.f32 %v9637, %v10041
        %v10065 = vadd.f32 %v9638, %v9976
        %v10066 = vadd.f32 %v9639, %v10044
        %v10067 = vadd.f32 %v9640, %v9978
        %v10068 = vadd.f32 %v9641, %v10046
        %v10069 = vadd.f32 %v9642, %v9981
        %v10070 = vadd.f32 %v9643, %v10049
        %v10071 = vadd.f32 %v9644, %v9983
        %v10072 = vadd.f32 %v9645, %v10051
        %10073 = vst [vmem:[#allocation3] sm:$0xff] %v10053
        %10074 = vst [vmem:[#allocation3 + $0x8] sm:$0xff] %v10054
        %10075 = vst [vmem:[#allocation3 + $0x10] sm:$0xff] %v10055
        %10076 = vst [vmem:[#allocation3 + $0x18] sm:$0xff] %v10056
        %10077 = vst [vmem:[#allocation3 + $0x20] sm:$0xff] %v10057
        %10078 = vst [vmem:[#allocation3 + $0x28] sm:$0xff] %v10058
        %10079 = vst [vmem:[#allocation3 + $0x30] sm:$0xff] %v10059
        %10080 = vst [vmem:[#allocation3 + $0x38] sm:$0xff] %v10060
        %10081 = vst [vmem:[#allocation3 + $0x40] sm:$0xff] %v10061
        %10082 = vst [vmem:[#allocation3 + $0x48] sm:$0xff] %v10062
        %10083 = vst [vmem:[#allocation3 + $0x50] sm:$0xff] %v10063
        %10084 = vst [vmem:[#allocation3 + $0x58] sm:$0xff] %v10064
        %10085 = vst [vmem:[#allocation3 + $0x60] sm:$0xff] %v10065
        %10086 = vst [vmem:[#allocation3 + $0x68] sm:$0xff] %v10066
        %10087 = vst [vmem:[#allocation3 + $0x70] sm:$0xff] %v10067
        %10088 = vst [vmem:[#allocation3 + $0x78] sm:$0xff] %v10068
        %10089 = vst [vmem:[#allocation3 + $0x80] sm:$0xff] %v10069
        %10090 = vst [vmem:[#allocation3 + $0x88] sm:$0xff] %v10070
        %10091 = vst [vmem:[#allocation3 + $0x90] sm:$0xff] %v10071
        %10092 = vst [vmem:[#allocation3 + $0x98] sm:$0xff] %v10072
        %v10093 = vld [vmem:[#allocation3] sm:$0xff]
        %v10094 = vld [vmem:[#allocation3 + $0x8] sm:$0xff]
        %v10095 = vld [vmem:[#allocation3 + $0x10] sm:$0xff]
        %v10096 = vld [vmem:[#allocation3 + $0x18] sm:$0xff]
        %v10097 = vld [vmem:[#allocation3 + $0x20] sm:$0xff]
        %v10098 = vld [vmem:[#allocation3 + $0x28] sm:$0xff]
        %v10099 = vld [vmem:[#allocation3 + $0x30] sm:$0xff]
        %v10100 = vld [vmem:[#allocation3 + $0x38] sm:$0xff]
        %v10101 = vld [vmem:[#allocation3 + $0x40] sm:$0xff]
        %v10102 = vld [vmem:[#allocation3 + $0x48] sm:$0xff]
        %v10103 = vld [vmem:[#allocation3 + $0x50] sm:$0xff]
        %v10104 = vld [vmem:[#allocation3 + $0x58] sm:$0xff]
        %v10105 = vld [vmem:[#allocation3 + $0x60] sm:$0xff]
        %v10106 = vld [vmem:[#allocation3 + $0x68] sm:$0xff]
        %v10107 = vld [vmem:[#allocation3 + $0x70] sm:$0xff]
        %v10108 = vld [vmem:[#allocation3 + $0x78] sm:$0xff]
        %v10109 = vld [vmem:[#allocation3 + $0x80] sm:$0xff]
        %v10110 = vld [vmem:[#allocation3 + $0x88] sm:$0xff]
        %v10111 = vld [vmem:[#allocation3 + $0x90] sm:$0xff]
        %v10112 = vld [vmem:[#allocation3 + $0x98] sm:$0xff]
        %v10113 = vld [vmem:[#allocation2] sm:$0xe0]
        %v10114 = vld [vmem:[#allocation2 + $0x8] sm:$0xe0]
        %v10115 = vld [vmem:[#allocation2 + $0x10] sm:$0xff]
        %v10116 = vld [vmem:[#allocation2 + $0x18] sm:$0xff]
        %v10117 = vld [vmem:[#allocation2 + $0x20] sm:$0xff]
        %v10118 = vld [vmem:[#allocation2 + $0x28] sm:$0xff]
        %v10119 = vld [vmem:[#allocation2 + $0x30] sm:$0xff]
        %v10120 = vld [vmem:[#allocation2 + $0x38] sm:$0xff]
        %v10121 = vld [vmem:[#allocation2 + $0x40] sm:$0xff]
        %v10122 = vld [vmem:[#allocation2 + $0x48] sm:$0xff]
        %v10123 = vld [vmem:[#allocation2 + $0x50] sm:$0xff]
        %v10124 = vld [vmem:[#allocation2 + $0x58] sm:$0xff]
        %v10125 = vld [vmem:[#allocation2 + $0x60] sm:$0xff]
        %v10126 = vld [vmem:[#allocation2 + $0x68] sm:$0xff]
        %v10127 = vld [vmem:[#allocation2 + $0x70] sm:$0xff]
        %v10128 = vld [vmem:[#allocation2 + $0x78] sm:$0xff]
        %v10129 = vld [vmem:[#allocation2 + $0x80] sm:$0xff]
        %v10130 = vld [vmem:[#allocation2 + $0x88] sm:$0xff]
        %v10131 = vld [vmem:[#allocation2 + $0x90] sm:$0xff]
        %v10132 = vld [vmem:[#allocation2 + $0x98] sm:$0xff]
        %v10133 = vld [vmem:[#allocation2 + $0xa0] sm:$0x1f]
        %v10134 = vld [vmem:[#allocation2 + $0xa8] sm:$0x1f]
        %v10135 = vpack.c.bf16 %v10115, %v10113
        %v10136 = vpack.c.bf16 %v10116, %v10114
        %v10137 = vpack.c.bf16 %v10119, %v10117
        %v10138 = vpack.c.bf16 %v10120, %v10118
        %v10139 = vpack.c.bf16 %v10123, %v10121
        %v10140 = vpack.c.bf16 %v10124, %v10122
        %v10141 = vpack.c.bf16 %v10127, %v10125
        %v10142 = vpack.c.bf16 %v10128, %v10126
        %v10143 = vpack.c.bf16 %v10131, %v10129
        %v10144 = vpack.c.bf16 %v10132, %v10130
        %v10145 = vpack.c.bf16 %v10133, %v10133
        %v10146 = vpack.c.bf16 %v10134, %v10134
        %s10147 = scalar_lea.vmem [#allocation7], 1280
        %v10148 = vld [vmem:[%s10147] sm:$0xff]
        %v10149 = vld [vmem:[%s10147 + $0x8] sm:$0xff]
        %v10150 = vld [vmem:[%s10147 + $0x10] sm:$0xff]
        %v10151 = vld [vmem:[%s10147 + $0x18] sm:$0xff]
        %v10152 = vld [vmem:[%s10147 + $0x20] sm:$0xff]
        %v10153 = vld [vmem:[%s10147 + $0x28] sm:$0xff]
        %v10154 = vld [vmem:[%s10147 + $0x30] sm:$0xff]
        %v10155 = vld [vmem:[%s10147 + $0x38] sm:$0xff]
        %v10156 = vld [vmem:[%s10147 + $0x40] sm:$0xff]
        %v10157 = vld [vmem:[%s10147 + $0x48] sm:$0xff]
        %v10158 = vld [vmem:[%s10147 + $0x50] sm:$0xff]
        %v10159 = vld [vmem:[%s10147 + $0x58] sm:$0xff]
        %v10160 = vld [vmem:[%s10147 + $0x60] sm:$0xff]
        %v10161 = vld [vmem:[%s10147 + $0x68] sm:$0xff]
        %v10162 = vld [vmem:[%s10147 + $0x70] sm:$0xff]
        %v10163 = vld [vmem:[%s10147 + $0x78] sm:$0xff]
        %v10164 = vld [vmem:[%s10147 + $0x80] sm:$0xff]
        %v10165 = vld [vmem:[%s10147 + $0x88] sm:$0xff]
        %v10166 = vld [vmem:[%s10147 + $0x90] sm:$0xff]
        %v10167 = vld [vmem:[%s10147 + $0x98] sm:$0xff]
        %v10168 = vld [vmem:[%s10147 + $0xa0] sm:$0xff]
        %v10169 = vld [vmem:[%s10147 + $0xa8] sm:$0xff]
        %v10170 = vld [vmem:[%s10147 + $0xb0] sm:$0xff]
        %v10171 = vld [vmem:[%s10147 + $0xb8] sm:$0xff]
        %v10172 = vld [vmem:[%s10147 + $0xc0] sm:$0xff]
        %v10173 = vld [vmem:[%s10147 + $0xc8] sm:$0xff]
        %v10174 = vld [vmem:[%s10147 + $0xd0] sm:$0xff]
        %v10175 = vld [vmem:[%s10147 + $0xd8] sm:$0xff]
        %v10176 = vld [vmem:[%s10147 + $0xe0] sm:$0xff]
        %v10177 = vld [vmem:[%s10147 + $0xe8] sm:$0xff]
        %v10178 = vld [vmem:[%s10147 + $0xf0] sm:$0xff]
        %v10179 = vld [vmem:[%s10147 + $0xf8] sm:$0xff]
        %v10181 = vshrl.u32 %v10135, 16
        %v10183 = vrot.slane %v10181, 2
        %v10184 = vshll.u32 %v10135, 16
        %v10186 = vrot.slane %v10184, 3
        %v10187 = vor.u32 %v10183, %v10186
        %v10189 = vshrl.u32 %v10137, 16
        %v10191 = vrot.slane %v10189, 2
        %v10192 = vshll.u32 %v10137, 16
        %v10194 = vrot.slane %v10192, 3
        %v10195 = vor.u32 %v10191, %v10194
        %v10196 = vsel %vm3047, %v10187, %v10195
        %v10198 = vshrl.u32 %v10136, 16
        %v10200 = vrot.slane %v10198, 2
        %v10201 = vshll.u32 %v10136, 16
        %v10203 = vrot.slane %v10201, 3
        %v10204 = vor.u32 %v10200, %v10203
        %v10206 = vshrl.u32 %v10138, 16
        %v10208 = vrot.slane %v10206, 2
        %v10209 = vshll.u32 %v10138, 16
        %v10211 = vrot.slane %v10209, 3
        %v10212 = vor.u32 %v10208, %v10211
        %v10213 = vsel %vm3047, %v10204, %v10212
        %v10215 = vshrl.u32 %v10139, 16
        %v10217 = vrot.slane %v10215, 2
        %v10218 = vshll.u32 %v10139, 16
        %v10220 = vrot.slane %v10218, 3
        %v10221 = vor.u32 %v10217, %v10220
        %v10222 = vsel %vm3047, %v10195, %v10221
        %v10224 = vshrl.u32 %v10140, 16
        %v10226 = vrot.slane %v10224, 2
        %v10227 = vshll.u32 %v10140, 16
        %v10229 = vrot.slane %v10227, 3
        %v10230 = vor.u32 %v10226, %v10229
        %v10231 = vsel %vm3047, %v10212, %v10230
        %v10233 = vshrl.u32 %v10141, 16
        %v10235 = vrot.slane %v10233, 2
        %v10236 = vshll.u32 %v10141, 16
        %v10238 = vrot.slane %v10236, 3
        %v10239 = vor.u32 %v10235, %v10238
        %v10240 = vsel %vm3047, %v10221, %v10239
        %v10242 = vshrl.u32 %v10142, 16
        %v10244 = vrot.slane %v10242, 2
        %v10245 = vshll.u32 %v10142, 16
        %v10247 = vrot.slane %v10245, 3
        %v10248 = vor.u32 %v10244, %v10247
        %v10249 = vsel %vm3047, %v10230, %v10248
        %v10251 = vshrl.u32 %v10143, 16
        %v10253 = vrot.slane %v10251, 2
        %v10254 = vshll.u32 %v10143, 16
        %v10256 = vrot.slane %v10254, 3
        %v10257 = vor.u32 %v10253, %v10256
        %v10258 = vsel %vm3047, %v10239, %v10257
        %v10260 = vshrl.u32 %v10144, 16
        %v10262 = vrot.slane %v10260, 2
        %v10263 = vshll.u32 %v10144, 16
        %v10265 = vrot.slane %v10263, 3
        %v10266 = vor.u32 %v10262, %v10265
        %v10267 = vsel %vm3047, %v10248, %v10266
        %v10269 = vshrl.u32 %v10145, 16
        %v10271 = vrot.slane %v10269, 2
        %v10272 = vshll.u32 %v10145, 16
        %v10274 = vrot.slane %v10272, 3
        %v10275 = vor.u32 %v10271, %v10274
        %v10276 = vsel %vm3047, %v10257, %v10275
        %v10278 = vshrl.u32 %v10146, 16
        %v10280 = vrot.slane %v10278, 2
        %v10281 = vshll.u32 %v10146, 16
        %v10283 = vrot.slane %v10281, 3
        %v10284 = vor.u32 %v10280, %v10283
        %v10285 = vsel %vm3047, %v10266, %v10284
        %v10328 = vunpack.c.l.b16 %v10148
        %v10329 = vunpack.c.h.b16 %v10148
        %v10330 = vunpack.c.l.b16 %v10149
        %v10331 = vunpack.c.h.b16 %v10149
        %v10332 = vunpack.c.l.b16 %v10150
        %v10333 = vunpack.c.h.b16 %v10150
        %v10334 = vunpack.c.l.b16 %v10151
        %v10335 = vunpack.c.h.b16 %v10151
        %v10336 = vunpack.c.l.b16 %v10152
        %v10337 = vunpack.c.h.b16 %v10152
        %v10338 = vunpack.c.l.b16 %v10153
        %v10339 = vunpack.c.h.b16 %v10153
        %v10340 = vunpack.c.l.b16 %v10154
        %v10341 = vunpack.c.h.b16 %v10154
        %v10342 = vunpack.c.l.b16 %v10155
        %v10343 = vunpack.c.h.b16 %v10155
        %v10344 = vunpack.c.l.b16 %v10156
        %v10345 = vunpack.c.h.b16 %v10156
        %v10346 = vunpack.c.l.b16 %v10157
        %v10347 = vunpack.c.h.b16 %v10157
        %v10348 = vunpack.c.l.b16 %v10158
        %v10349 = vunpack.c.h.b16 %v10158
        %v10350 = vunpack.c.l.b16 %v10159
        %v10351 = vunpack.c.h.b16 %v10159
        %v10352 = vunpack.c.l.b16 %v10160
        %v10353 = vunpack.c.h.b16 %v10160
        %v10354 = vunpack.c.l.b16 %v10161
        %v10355 = vunpack.c.h.b16 %v10161
        %v10356 = vunpack.c.l.b16 %v10162
        %v10357 = vunpack.c.h.b16 %v10162
        %v10358 = vunpack.c.l.b16 %v10163
        %v10359 = vunpack.c.h.b16 %v10163
        %v10360 = vunpack.c.l.b16 %v10164
        %v10361 = vunpack.c.h.b16 %v10164
        %v10362 = vunpack.c.l.b16 %v10165
        %v10363 = vunpack.c.h.b16 %v10165
        %v10364 = vunpack.c.l.b16 %v10166
        %v10365 = vunpack.c.h.b16 %v10166
        %v10366 = vunpack.c.l.b16 %v10167
        %v10367 = vunpack.c.h.b16 %v10167
        %v10368 = vunpack.c.l.b16 %v10168
        %v10369 = vunpack.c.h.b16 %v10168
        %v10370 = vunpack.c.l.b16 %v10169
        %v10371 = vunpack.c.h.b16 %v10169
        %v10372 = vunpack.c.l.b16 %v10170
        %v10373 = vunpack.c.h.b16 %v10170
        %v10374 = vunpack.c.l.b16 %v10171
        %v10375 = vunpack.c.h.b16 %v10171
        %v10376 = vunpack.c.l.b16 %v10172
        %v10377 = vunpack.c.h.b16 %v10172
        %v10378 = vunpack.c.l.b16 %v10173
        %v10379 = vunpack.c.h.b16 %v10173
        %v10380 = vunpack.c.l.b16 %v10174
        %v10381 = vunpack.c.h.b16 %v10174
        %v10382 = vunpack.c.l.b16 %v10175
        %v10383 = vunpack.c.h.b16 %v10175
        %v10384 = vunpack.c.l.b16 %v10176
        %v10385 = vunpack.c.h.b16 %v10176
        %v10386 = vunpack.c.l.b16 %v10177
        %v10387 = vunpack.c.h.b16 %v10177
        %v10388 = vunpack.c.l.b16 %v10178
        %v10389 = vunpack.c.h.b16 %v10178
        %v10390 = vunpack.c.l.b16 %v10179
        %v10391 = vunpack.c.h.b16 %v10179
        %v10392 = vpack.c.b16 %v10330, %v10328
        %v10393 = vpack.c.b16 %v10331, %v10329
        %v10394 = vpack.c.b16 %v10334, %v10332
        %v10395 = vpack.c.b16 %v10335, %v10333
        %v10396 = vpack.c.b16 %v10338, %v10336
        %v10397 = vpack.c.b16 %v10339, %v10337
        %v10398 = vpack.c.b16 %v10342, %v10340
        %v10399 = vpack.c.b16 %v10343, %v10341
        %v10400 = vpack.c.b16 %v10346, %v10344
        %v10401 = vpack.c.b16 %v10347, %v10345
        %v10402 = vpack.c.b16 %v10350, %v10348
        %v10403 = vpack.c.b16 %v10351, %v10349
        %v10404 = vpack.c.b16 %v10354, %v10352
        %v10405 = vpack.c.b16 %v10355, %v10353
        %v10406 = vpack.c.b16 %v10358, %v10356
        %v10407 = vpack.c.b16 %v10359, %v10357
        %v10408 = vpack.c.b16 %v10362, %v10360
        %v10409 = vpack.c.b16 %v10363, %v10361
        %v10410 = vpack.c.b16 %v10366, %v10364
        %v10411 = vpack.c.b16 %v10367, %v10365
        %v10412 = vpack.c.b16 %v10370, %v10368
        %v10413 = vpack.c.b16 %v10371, %v10369
        %v10414 = vpack.c.b16 %v10374, %v10372
        %v10415 = vpack.c.b16 %v10375, %v10373
        %v10416 = vpack.c.b16 %v10378, %v10376
        %v10417 = vpack.c.b16 %v10379, %v10377
        %v10418 = vpack.c.b16 %v10382, %v10380
        %v10419 = vpack.c.b16 %v10383, %v10381
        %v10420 = vpack.c.b16 %v10386, %v10384
        %v10421 = vpack.c.b16 %v10387, %v10385
        %v10422 = vpack.c.b16 %v10390, %v10388
        %v10423 = vpack.c.b16 %v10391, %v10389
        %10456 = vmatpush.bf16.msra.mxu0 %v10406
        %10457 = vmatpush.bf16.msra.mxu0 %v10404
        %10458 = vmatpush.bf16.msra.mxu0 %v10402
        %10459 = vmatpush.bf16.msra.mxu0 %v10400
        %10460 = vmatpush.bf16.msra.mxu0 %v10398
        %10461 = vmatpush.bf16.msra.mxu0 %v10396
        %10462 = vmatpush.bf16.msra.mxu0 %v10394
        %10463 = vmatpush.bf16.msra.mxu0 %v10392
        %10464 = vmatmul.bf16.gmra.mxu0 %v10196
        %v10465 = vpop.f32.mrf.mxu0
        %v10466 = vadd.f32 0.0, %v10465
        %v10467 = vpop.f32.mrf.mxu0
        %v10468 = vadd.f32 0.0, %v10467
        %10469 = vmatmul.bf16.gmra.mxu0 %v10222
        %v10470 = vpop.f32.mrf.mxu0
        %v10471 = vadd.f32 0.0, %v10470
        %v10472 = vpop.f32.mrf.mxu0
        %v10473 = vadd.f32 0.0, %v10472
        %10474 = vmatmul.bf16.gmra.mxu0 %v10240
        %v10475 = vpop.f32.mrf.mxu0
        %v10476 = vadd.f32 0.0, %v10475
        %v10477 = vpop.f32.mrf.mxu0
        %v10478 = vadd.f32 0.0, %v10477
        %10479 = vmatmul.bf16.gmra.mxu0 %v10258
        %v10480 = vpop.f32.mrf.mxu0
        %v10481 = vadd.f32 0.0, %v10480
        %v10482 = vpop.f32.mrf.mxu0
        %v10483 = vadd.f32 0.0, %v10482
        %10484 = vmatmul.bf16.gmra.mxu0 %v10276
        %v10485 = vpop.f32.mrf.mxu0
        %v10486 = vadd.f32 0.0, %v10485
        %v10487 = vpop.f32.mrf.mxu0
        %v10488 = vadd.f32 0.0, %v10487
        %10489 = vdwg.mxu0
        %10490 = vmatpush.bf16.msra.mxu0 %v10422
        %10491 = vmatpush.bf16.msra.mxu0 %v10420
        %10492 = vmatpush.bf16.msra.mxu0 %v10418
        %10493 = vmatpush.bf16.msra.mxu0 %v10416
        %10494 = vmatpush.bf16.msra.mxu0 %v10414
        %10495 = vmatpush.bf16.msra.mxu0 %v10412
        %10496 = vmatpush.bf16.msra.mxu0 %v10410
        %10497 = vmatpush.bf16.msra.mxu0 %v10408
        %10498 = vmatmul.bf16.gmra.mxu0 %v10213
        %v10499 = vpop.f32.mrf.mxu0
        %v10500 = vadd.f32 %v10466, %v10499
        %v10501 = vpop.f32.mrf.mxu0
        %v10502 = vadd.f32 %v10468, %v10501
        %10503 = vmatmul.bf16.gmra.mxu0 %v10231
        %v10504 = vpop.f32.mrf.mxu0
        %v10505 = vadd.f32 %v10471, %v10504
        %v10506 = vpop.f32.mrf.mxu0
        %v10507 = vadd.f32 %v10473, %v10506
        %10508 = vmatmul.bf16.gmra.mxu0 %v10249
        %v10509 = vpop.f32.mrf.mxu0
        %v10510 = vadd.f32 %v10476, %v10509
        %v10511 = vpop.f32.mrf.mxu0
        %v10512 = vadd.f32 %v10478, %v10511
        %10513 = vmatmul.bf16.gmra.mxu0 %v10267
        %v10514 = vpop.f32.mrf.mxu0
        %v10515 = vadd.f32 %v10481, %v10514
        %v10516 = vpop.f32.mrf.mxu0
        %v10517 = vadd.f32 %v10483, %v10516
        %10518 = vmatmul.bf16.gmra.mxu0 %v10285
        %v10519 = vpop.f32.mrf.mxu0
        %v10520 = vadd.f32 %v10486, %v10519
        %v10521 = vpop.f32.mrf.mxu0
        %v10522 = vadd.f32 %v10488, %v10521
        %10523 = vdwg.mxu0
        %10524 = vmatpush.bf16.msra.mxu0 %v10407
        %10525 = vmatpush.bf16.msra.mxu0 %v10405
        %10526 = vmatpush.bf16.msra.mxu0 %v10403
        %10527 = vmatpush.bf16.msra.mxu0 %v10401
        %10528 = vmatpush.bf16.msra.mxu0 %v10399
        %10529 = vmatpush.bf16.msra.mxu0 %v10397
        %10530 = vmatpush.bf16.msra.mxu0 %v10395
        %10531 = vmatpush.bf16.msra.mxu0 %v10393
        %10532 = vmatmul.bf16.gmra.mxu0 %v10196
        %v10533 = vpop.f32.mrf.mxu0
        %v10534 = vadd.f32 0.0, %v10533
        %v10535 = vpop.f32.mrf.mxu0
        %v10536 = vadd.f32 0.0, %v10535
        %10537 = vmatmul.bf16.gmra.mxu0 %v10222
        %v10538 = vpop.f32.mrf.mxu0
        %v10539 = vadd.f32 0.0, %v10538
        %v10540 = vpop.f32.mrf.mxu0
        %v10541 = vadd.f32 0.0, %v10540
        %10542 = vmatmul.bf16.gmra.mxu0 %v10240
        %v10543 = vpop.f32.mrf.mxu0
        %v10544 = vadd.f32 0.0, %v10543
        %v10545 = vpop.f32.mrf.mxu0
        %v10546 = vadd.f32 0.0, %v10545
        %10547 = vmatmul.bf16.gmra.mxu0 %v10258
        %v10548 = vpop.f32.mrf.mxu0
        %v10549 = vadd.f32 0.0, %v10548
        %v10550 = vpop.f32.mrf.mxu0
        %v10551 = vadd.f32 0.0, %v10550
        %10552 = vmatmul.bf16.gmra.mxu0 %v10276
        %v10553 = vpop.f32.mrf.mxu0
        %v10554 = vadd.f32 0.0, %v10553
        %v10555 = vpop.f32.mrf.mxu0
        %v10556 = vadd.f32 0.0, %v10555
        %10557 = vdwg.mxu0
        %10558 = vmatpush.bf16.msra.mxu0 %v10423
        %10559 = vmatpush.bf16.msra.mxu0 %v10421
        %10560 = vmatpush.bf16.msra.mxu0 %v10419
        %10561 = vmatpush.bf16.msra.mxu0 %v10417
        %10562 = vmatpush.bf16.msra.mxu0 %v10415
        %10563 = vmatpush.bf16.msra.mxu0 %v10413
        %10564 = vmatpush.bf16.msra.mxu0 %v10411
        %10565 = vmatpush.bf16.msra.mxu0 %v10409
        %10566 = vmatmul.bf16.gmra.mxu0 %v10213
        %v10567 = vpop.f32.mrf.mxu0
        %v10568 = vadd.f32 %v10534, %v10567
        %v10569 = vpop.f32.mrf.mxu0
        %v10570 = vadd.f32 %v10536, %v10569
        %10571 = vmatmul.bf16.gmra.mxu0 %v10231
        %v10572 = vpop.f32.mrf.mxu0
        %v10573 = vadd.f32 %v10539, %v10572
        %v10574 = vpop.f32.mrf.mxu0
        %v10575 = vadd.f32 %v10541, %v10574
        %10576 = vmatmul.bf16.gmra.mxu0 %v10249
        %v10577 = vpop.f32.mrf.mxu0
        %v10578 = vadd.f32 %v10544, %v10577
        %v10579 = vpop.f32.mrf.mxu0
        %v10580 = vadd.f32 %v10546, %v10579
        %10581 = vmatmul.bf16.gmra.mxu0 %v10267
        %v10582 = vpop.f32.mrf.mxu0
        %v10583 = vadd.f32 %v10549, %v10582
        %v10584 = vpop.f32.mrf.mxu0
        %v10585 = vadd.f32 %v10551, %v10584
        %10586 = vmatmul.bf16.gmra.mxu0 %v10285
        %v10587 = vpop.f32.mrf.mxu0
        %v10588 = vadd.f32 %v10554, %v10587
        %v10589 = vpop.f32.mrf.mxu0
        %v10590 = vadd.f32 %v10556, %v10589
        %10591 = vdwg.mxu0
        %v10592 = vadd.f32 %v10093, %v10500
        %v10593 = vadd.f32 %v10094, %v10568
        %v10594 = vadd.f32 %v10095, %v10502
        %v10595 = vadd.f32 %v10096, %v10570
        %v10596 = vadd.f32 %v10097, %v10505
        %v10597 = vadd.f32 %v10098, %v10573
        %v10598 = vadd.f32 %v10099, %v10507
        %v10599 = vadd.f32 %v10100, %v10575
        %v10600 = vadd.f32 %v10101, %v10510
        %v10601 = vadd.f32 %v10102, %v10578
        %v10602 = vadd.f32 %v10103, %v10512
        %v10603 = vadd.f32 %v10104, %v10580
        %v10604 = vadd.f32 %v10105, %v10515
        %v10605 = vadd.f32 %v10106, %v10583
        %v10606 = vadd.f32 %v10107, %v10517
        %v10607 = vadd.f32 %v10108, %v10585
        %v10608 = vadd.f32 %v10109, %v10520
        %v10609 = vadd.f32 %v10110, %v10588
        %v10610 = vadd.f32 %v10111, %v10522
        %v10611 = vadd.f32 %v10112, %v10590
        %10612 = vst [vmem:[#allocation3] sm:$0xff] %v10592
        %10613 = vst [vmem:[#allocation3 + $0x8] sm:$0xff] %v10593
        %10614 = vst [vmem:[#allocation3 + $0x10] sm:$0xff] %v10594
        %10615 = vst [vmem:[#allocation3 + $0x18] sm:$0xff] %v10595
        %10616 = vst [vmem:[#allocation3 + $0x20] sm:$0xff] %v10596
        %10617 = vst [vmem:[#allocation3 + $0x28] sm:$0xff] %v10597
        %10618 = vst [vmem:[#allocation3 + $0x30] sm:$0xff] %v10598
        %10619 = vst [vmem:[#allocation3 + $0x38] sm:$0xff] %v10599
        %10620 = vst [vmem:[#allocation3 + $0x40] sm:$0xff] %v10600
        %10621 = vst [vmem:[#allocation3 + $0x48] sm:$0xff] %v10601
        %10622 = vst [vmem:[#allocation3 + $0x50] sm:$0xff] %v10602
        %10623 = vst [vmem:[#allocation3 + $0x58] sm:$0xff] %v10603
        %10624 = vst [vmem:[#allocation3 + $0x60] sm:$0xff] %v10604
        %10625 = vst [vmem:[#allocation3 + $0x68] sm:$0xff] %v10605
        %10626 = vst [vmem:[#allocation3 + $0x70] sm:$0xff] %v10606
        %10627 = vst [vmem:[#allocation3 + $0x78] sm:$0xff] %v10607
        %10628 = vst [vmem:[#allocation3 + $0x80] sm:$0xff] %v10608
        %10629 = vst [vmem:[#allocation3 + $0x88] sm:$0xff] %v10609
        %10630 = vst [vmem:[#allocation3 + $0x90] sm:$0xff] %v10610
        %10631 = vst [vmem:[#allocation3 + $0x98] sm:$0xff] %v10611
        %v10632 = vld [vmem:[#allocation3] sm:$0xff]
        %v10633 = vld [vmem:[#allocation3 + $0x8] sm:$0xff]
        %v10634 = vld [vmem:[#allocation3 + $0x10] sm:$0xff]
        %v10635 = vld [vmem:[#allocation3 + $0x18] sm:$0xff]
        %v10636 = vld [vmem:[#allocation3 + $0x20] sm:$0xff]
        %v10637 = vld [vmem:[#allocation3 + $0x28] sm:$0xff]
        %v10638 = vld [vmem:[#allocation3 + $0x30] sm:$0xff]
        %v10639 = vld [vmem:[#allocation3 + $0x38] sm:$0xff]
        %v10640 = vld [vmem:[#allocation3 + $0x40] sm:$0xff]
        %v10641 = vld [vmem:[#allocation3 + $0x48] sm:$0xff]
        %v10642 = vld [vmem:[#allocation3 + $0x50] sm:$0xff]
        %v10643 = vld [vmem:[#allocation3 + $0x58] sm:$0xff]
        %v10644 = vld [vmem:[#allocation3 + $0x60] sm:$0xff]
        %v10645 = vld [vmem:[#allocation3 + $0x68] sm:$0xff]
        %v10646 = vld [vmem:[#allocation3 + $0x70] sm:$0xff]
        %v10647 = vld [vmem:[#allocation3 + $0x78] sm:$0xff]
        %v10648 = vld [vmem:[#allocation3 + $0x80] sm:$0xff]
        %v10649 = vld [vmem:[#allocation3 + $0x88] sm:$0xff]
        %v10650 = vld [vmem:[#allocation3 + $0x90] sm:$0xff]
        %v10651 = vld [vmem:[#allocation3 + $0x98] sm:$0xff]
        %v10652 = vld [vmem:[#allocation2] sm:$0xc0]
        %v10653 = vld [vmem:[#allocation2 + $0x8] sm:$0xc0]
        %v10654 = vld [vmem:[#allocation2 + $0x10] sm:$0xff]
        %v10655 = vld [vmem:[#allocation2 + $0x18] sm:$0xff]
        %v10656 = vld [vmem:[#allocation2 + $0x20] sm:$0xff]
        %v10657 = vld [vmem:[#allocation2 + $0x28] sm:$0xff]
        %v10658 = vld [vmem:[#allocation2 + $0x30] sm:$0xff]
        %v10659 = vld [vmem:[#allocation2 + $0x38] sm:$0xff]
        %v10660 = vld [vmem:[#allocation2 + $0x40] sm:$0xff]
        %v10661 = vld [vmem:[#allocation2 + $0x48] sm:$0xff]
        %v10662 = vld [vmem:[#allocation2 + $0x50] sm:$0xff]
        %v10663 = vld [vmem:[#allocation2 + $0x58] sm:$0xff]
        %v10664 = vld [vmem:[#allocation2 + $0x60] sm:$0xff]
        %v10665 = vld [vmem:[#allocation2 + $0x68] sm:$0xff]
        %v10666 = vld [vmem:[#allocation2 + $0x70] sm:$0xff]
        %v10667 = vld [vmem:[#allocation2 + $0x78] sm:$0xff]
        %v10668 = vld [vmem:[#allocation2 + $0x80] sm:$0xff]
        %v10669 = vld [vmem:[#allocation2 + $0x88] sm:$0xff]
        %v10670 = vld [vmem:[#allocation2 + $0x90] sm:$0xff]
        %v10671 = vld [vmem:[#allocation2 + $0x98] sm:$0xff]
        %v10672 = vld [vmem:[#allocation2 + $0xa0] sm:$0x3f]
        %v10673 = vld [vmem:[#allocation2 + $0xa8] sm:$0x3f]
        %v10674 = vpack.c.bf16 %v10654, %v10652
        %v10675 = vpack.c.bf16 %v10655, %v10653
        %v10676 = vpack.c.bf16 %v10658, %v10656
        %v10677 = vpack.c.bf16 %v10659, %v10657
        %v10678 = vpack.c.bf16 %v10662, %v10660
        %v10679 = vpack.c.bf16 %v10663, %v10661
        %v10680 = vpack.c.bf16 %v10666, %v10664
        %v10681 = vpack.c.bf16 %v10667, %v10665
        %v10682 = vpack.c.bf16 %v10670, %v10668
        %v10683 = vpack.c.bf16 %v10671, %v10669
        %v10684 = vpack.c.bf16 %v10672, %v10672
        %v10685 = vpack.c.bf16 %v10673, %v10673
        %s10686 = scalar_lea.vmem [#allocation7], 1536
        %v10687 = vld [vmem:[%s10686] sm:$0xff]
        %v10688 = vld [vmem:[%s10686 + $0x8] sm:$0xff]
        %v10689 = vld [vmem:[%s10686 + $0x10] sm:$0xff]
        %v10690 = vld [vmem:[%s10686 + $0x18] sm:$0xff]
        %v10691 = vld [vmem:[%s10686 + $0x20] sm:$0xff]
        %v10692 = vld [vmem:[%s10686 + $0x28] sm:$0xff]
        %v10693 = vld [vmem:[%s10686 + $0x30] sm:$0xff]
        %v10694 = vld [vmem:[%s10686 + $0x38] sm:$0xff]
        %v10695 = vld [vmem:[%s10686 + $0x40] sm:$0xff]
        %v10696 = vld [vmem:[%s10686 + $0x48] sm:$0xff]
        %v10697 = vld [vmem:[%s10686 + $0x50] sm:$0xff]
        %v10698 = vld [vmem:[%s10686 + $0x58] sm:$0xff]
        %v10699 = vld [vmem:[%s10686 + $0x60] sm:$0xff]
        %v10700 = vld [vmem:[%s10686 + $0x68] sm:$0xff]
        %v10701 = vld [vmem:[%s10686 + $0x70] sm:$0xff]
        %v10702 = vld [vmem:[%s10686 + $0x78] sm:$0xff]
        %v10703 = vld [vmem:[%s10686 + $0x80] sm:$0xff]
        %v10704 = vld [vmem:[%s10686 + $0x88] sm:$0xff]
        %v10705 = vld [vmem:[%s10686 + $0x90] sm:$0xff]
        %v10706 = vld [vmem:[%s10686 + $0x98] sm:$0xff]
        %v10707 = vld [vmem:[%s10686 + $0xa0] sm:$0xff]
        %v10708 = vld [vmem:[%s10686 + $0xa8] sm:$0xff]
        %v10709 = vld [vmem:[%s10686 + $0xb0] sm:$0xff]
        %v10710 = vld [vmem:[%s10686 + $0xb8] sm:$0xff]
        %v10711 = vld [vmem:[%s10686 + $0xc0] sm:$0xff]
        %v10712 = vld [vmem:[%s10686 + $0xc8] sm:$0xff]
        %v10713 = vld [vmem:[%s10686 + $0xd0] sm:$0xff]
        %v10714 = vld [vmem:[%s10686 + $0xd8] sm:$0xff]
        %v10715 = vld [vmem:[%s10686 + $0xe0] sm:$0xff]
        %v10716 = vld [vmem:[%s10686 + $0xe8] sm:$0xff]
        %v10717 = vld [vmem:[%s10686 + $0xf0] sm:$0xff]
        %v10718 = vld [vmem:[%s10686 + $0xf8] sm:$0xff]
        %v10731 = vrot.slane %v10674, 3
        %v10732 = vrot.slane %v10676, 3
        %v10733 = vsel %vm3599, %v10731, %v10732
        %v10734 = vrot.slane %v10675, 3
        %v10735 = vrot.slane %v10677, 3
        %v10736 = vsel %vm3599, %v10734, %v10735
        %v10737 = vrot.slane %v10678, 3
        %v10738 = vsel %vm3599, %v10732, %v10737
        %v10739 = vrot.slane %v10679, 3
        %v10740 = vsel %vm3599, %v10735, %v10739
        %v10741 = vrot.slane %v10680, 3
        %v10742 = vsel %vm3599, %v10737, %v10741
        %v10743 = vrot.slane %v10681, 3
        %v10744 = vsel %vm3599, %v10739, %v10743
        %v10745 = vrot.slane %v10682, 3
        %v10746 = vsel %vm3599, %v10741, %v10745
        %v10747 = vrot.slane %v10683, 3
        %v10748 = vsel %vm3599, %v10743, %v10747
        %v10749 = vrot.slane %v10684, 3
        %v10750 = vsel %vm3599, %v10745, %v10749
        %v10751 = vrot.slane %v10685, 3
        %v10752 = vsel %vm3599, %v10747, %v10751
        %v10795 = vunpack.c.l.b16 %v10687
        %v10796 = vunpack.c.h.b16 %v10687
        %v10797 = vunpack.c.l.b16 %v10688
        %v10798 = vunpack.c.h.b16 %v10688
        %v10799 = vunpack.c.l.b16 %v10689
        %v10800 = vunpack.c.h.b16 %v10689
        %v10801 = vunpack.c.l.b16 %v10690
        %v10802 = vunpack.c.h.b16 %v10690
        %v10803 = vunpack.c.l.b16 %v10691
        %v10804 = vunpack.c.h.b16 %v10691
        %v10805 = vunpack.c.l.b16 %v10692
        %v10806 = vunpack.c.h.b16 %v10692
        %v10807 = vunpack.c.l.b16 %v10693
        %v10808 = vunpack.c.h.b16 %v10693
        %v10809 = vunpack.c.l.b16 %v10694
        %v10810 = vunpack.c.h.b16 %v10694
        %v10811 = vunpack.c.l.b16 %v10695
        %v10812 = vunpack.c.h.b16 %v10695
        %v10813 = vunpack.c.l.b16 %v10696
        %v10814 = vunpack.c.h.b16 %v10696
        %v10815 = vunpack.c.l.b16 %v10697
        %v10816 = vunpack.c.h.b16 %v10697
        %v10817 = vunpack.c.l.b16 %v10698
        %v10818 = vunpack.c.h.b16 %v10698
        %v10819 = vunpack.c.l.b16 %v10699
        %v10820 = vunpack.c.h.b16 %v10699
        %v10821 = vunpack.c.l.b16 %v10700
        %v10822 = vunpack.c.h.b16 %v10700
        %v10823 = vunpack.c.l.b16 %v10701
        %v10824 = vunpack.c.h.b16 %v10701
        %v10825 = vunpack.c.l.b16 %v10702
        %v10826 = vunpack.c.h.b16 %v10702
        %v10827 = vunpack.c.l.b16 %v10703
        %v10828 = vunpack.c.h.b16 %v10703
        %v10829 = vunpack.c.l.b16 %v10704
        %v10830 = vunpack.c.h.b16 %v10704
        %v10831 = vunpack.c.l.b16 %v10705
        %v10832 = vunpack.c.h.b16 %v10705
        %v10833 = vunpack.c.l.b16 %v10706
        %v10834 = vunpack.c.h.b16 %v10706
        %v10835 = vunpack.c.l.b16 %v10707
        %v10836 = vunpack.c.h.b16 %v10707
        %v10837 = vunpack.c.l.b16 %v10708
        %v10838 = vunpack.c.h.b16 %v10708
        %v10839 = vunpack.c.l.b16 %v10709
        %v10840 = vunpack.c.h.b16 %v10709
        %v10841 = vunpack.c.l.b16 %v10710
        %v10842 = vunpack.c.h.b16 %v10710
        %v10843 = vunpack.c.l.b16 %v10711
        %v10844 = vunpack.c.h.b16 %v10711
        %v10845 = vunpack.c.l.b16 %v10712
        %v10846 = vunpack.c.h.b16 %v10712
        %v10847 = vunpack.c.l.b16 %v10713
        %v10848 = vunpack.c.h.b16 %v10713
        %v10849 = vunpack.c.l.b16 %v10714
        %v10850 = vunpack.c.h.b16 %v10714
        %v10851 = vunpack.c.l.b16 %v10715
        %v10852 = vunpack.c.h.b16 %v10715
        %v10853 = vunpack.c.l.b16 %v10716
        %v10854 = vunpack.c.h.b16 %v10716
        %v10855 = vunpack.c.l.b16 %v10717
        %v10856 = vunpack.c.h.b16 %v10717
        %v10857 = vunpack.c.l.b16 %v10718
        %v10858 = vunpack.c.h.b16 %v10718
        %v10859 = vpack.c.b16 %v10797, %v10795
        %v10860 = vpack.c.b16 %v10798, %v10796
        %v10861 = vpack.c.b16 %v10801, %v10799
        %v10862 = vpack.c.b16 %v10802, %v10800
        %v10863 = vpack.c.b16 %v10805, %v10803
        %v10864 = vpack.c.b16 %v10806, %v10804
        %v10865 = vpack.c.b16 %v10809, %v10807
        %v10866 = vpack.c.b16 %v10810, %v10808
        %v10867 = vpack.c.b16 %v10813, %v10811
        %v10868 = vpack.c.b16 %v10814, %v10812
        %v10869 = vpack.c.b16 %v10817, %v10815
        %v10870 = vpack.c.b16 %v10818, %v10816
        %v10871 = vpack.c.b16 %v10821, %v10819
        %v10872 = vpack.c.b16 %v10822, %v10820
        %v10873 = vpack.c.b16 %v10825, %v10823
        %v10874 = vpack.c.b16 %v10826, %v10824
        %v10875 = vpack.c.b16 %v10829, %v10827
        %v10876 = vpack.c.b16 %v10830, %v10828
        %v10877 = vpack.c.b16 %v10833, %v10831
        %v10878 = vpack.c.b16 %v10834, %v10832
        %v10879 = vpack.c.b16 %v10837, %v10835
        %v10880 = vpack.c.b16 %v10838, %v10836
        %v10881 = vpack.c.b16 %v10841, %v10839
        %v10882 = vpack.c.b16 %v10842, %v10840
        %v10883 = vpack.c.b16 %v10845, %v10843
        %v10884 = vpack.c.b16 %v10846, %v10844
        %v10885 = vpack.c.b16 %v10849, %v10847
        %v10886 = vpack.c.b16 %v10850, %v10848
        %v10887 = vpack.c.b16 %v10853, %v10851
        %v10888 = vpack.c.b16 %v10854, %v10852
        %v10889 = vpack.c.b16 %v10857, %v10855
        %v10890 = vpack.c.b16 %v10858, %v10856
        %10923 = vmatpush.bf16.msra.mxu0 %v10873
        %10924 = vmatpush.bf16.msra.mxu0 %v10871
        %10925 = vmatpush.bf16.msra.mxu0 %v10869
        %10926 = vmatpush.bf16.msra.mxu0 %v10867
        %10927 = vmatpush.bf16.msra.mxu0 %v10865
        %10928 = vmatpush.bf16.msra.mxu0 %v10863
        %10929 = vmatpush.bf16.msra.mxu0 %v10861
        %10930 = vmatpush.bf16.msra.mxu0 %v10859
        %10931 = vmatmul.bf16.gmra.mxu0 %v10733
        %v10932 = vpop.f32.mrf.mxu0
        %v10933 = vadd.f32 0.0, %v10932
        %v10934 = vpop.f32.mrf.mxu0
        %v10935 = vadd.f32 0.0, %v10934
        %10936 = vmatmul.bf16.gmra.mxu0 %v10738
        %v10937 = vpop.f32.mrf.mxu0
        %v10938 = vadd.f32 0.0, %v10937
        %v10939 = vpop.f32.mrf.mxu0
        %v10940 = vadd.f32 0.0, %v10939
        %10941 = vmatmul.bf16.gmra.mxu0 %v10742
        %v10942 = vpop.f32.mrf.mxu0
        %v10943 = vadd.f32 0.0, %v10942
        %v10944 = vpop.f32.mrf.mxu0
        %v10945 = vadd.f32 0.0, %v10944
        %10946 = vmatmul.bf16.gmra.mxu0 %v10746
        %v10947 = vpop.f32.mrf.mxu0
        %v10948 = vadd.f32 0.0, %v10947
        %v10949 = vpop.f32.mrf.mxu0
        %v10950 = vadd.f32 0.0, %v10949
        %10951 = vmatmul.bf16.gmra.mxu0 %v10750
        %v10952 = vpop.f32.mrf.mxu0
        %v10953 = vadd.f32 0.0, %v10952
        %v10954 = vpop.f32.mrf.mxu0
        %v10955 = vadd.f32 0.0, %v10954
        %10956 = vdwg.mxu0
        %10957 = vmatpush.bf16.msra.mxu0 %v10889
        %10958 = vmatpush.bf16.msra.mxu0 %v10887
        %10959 = vmatpush.bf16.msra.mxu0 %v10885
        %10960 = vmatpush.bf16.msra.mxu0 %v10883
        %10961 = vmatpush.bf16.msra.mxu0 %v10881
        %10962 = vmatpush.bf16.msra.mxu0 %v10879
        %10963 = vmatpush.bf16.msra.mxu0 %v10877
        %10964 = vmatpush.bf16.msra.mxu0 %v10875
        %10965 = vmatmul.bf16.gmra.mxu0 %v10736
        %v10966 = vpop.f32.mrf.mxu0
        %v10967 = vadd.f32 %v10933, %v10966
        %v10968 = vpop.f32.mrf.mxu0
        %v10969 = vadd.f32 %v10935, %v10968
        %10970 = vmatmul.bf16.gmra.mxu0 %v10740
        %v10971 = vpop.f32.mrf.mxu0
        %v10972 = vadd.f32 %v10938, %v10971
        %v10973 = vpop.f32.mrf.mxu0
        %v10974 = vadd.f32 %v10940, %v10973
        %10975 = vmatmul.bf16.gmra.mxu0 %v10744
        %v10976 = vpop.f32.mrf.mxu0
        %v10977 = vadd.f32 %v10943, %v10976
        %v10978 = vpop.f32.mrf.mxu0
        %v10979 = vadd.f32 %v10945, %v10978
        %10980 = vmatmul.bf16.gmra.mxu0 %v10748
        %v10981 = vpop.f32.mrf.mxu0
        %v10982 = vadd.f32 %v10948, %v10981
        %v10983 = vpop.f32.mrf.mxu0
        %v10984 = vadd.f32 %v10950, %v10983
        %10985 = vmatmul.bf16.gmra.mxu0 %v10752
        %v10986 = vpop.f32.mrf.mxu0
        %v10987 = vadd.f32 %v10953, %v10986
        %v10988 = vpop.f32.mrf.mxu0
        %v10989 = vadd.f32 %v10955, %v10988
        %10990 = vdwg.mxu0
        %10991 = vmatpush.bf16.msra.mxu0 %v10874
        %10992 = vmatpush.bf16.msra.mxu0 %v10872
        %10993 = vmatpush.bf16.msra.mxu0 %v10870
        %10994 = vmatpush.bf16.msra.mxu0 %v10868
        %10995 = vmatpush.bf16.msra.mxu0 %v10866
        %10996 = vmatpush.bf16.msra.mxu0 %v10864
        %10997 = vmatpush.bf16.msra.mxu0 %v10862
        %10998 = vmatpush.bf16.msra.mxu0 %v10860
        %10999 = vmatmul.bf16.gmra.mxu0 %v10733
        %v11000 = vpop.f32.mrf.mxu0
        %v11001 = vadd.f32 0.0, %v11000
        %v11002 = vpop.f32.mrf.mxu0
        %v11003 = vadd.f32 0.0, %v11002
        %11004 = vmatmul.bf16.gmra.mxu0 %v10738
        %v11005 = vpop.f32.mrf.mxu0
        %v11006 = vadd.f32 0.0, %v11005
        %v11007 = vpop.f32.mrf.mxu0
        %v11008 = vadd.f32 0.0, %v11007
        %11009 = vmatmul.bf16.gmra.mxu0 %v10742
        %v11010 = vpop.f32.mrf.mxu0
        %v11011 = vadd.f32 0.0, %v11010
        %v11012 = vpop.f32.mrf.mxu0
        %v11013 = vadd.f32 0.0, %v11012
        %11014 = vmatmul.bf16.gmra.mxu0 %v10746
        %v11015 = vpop.f32.mrf.mxu0
        %v11016 = vadd.f32 0.0, %v11015
        %v11017 = vpop.f32.mrf.mxu0
        %v11018 = vadd.f32 0.0, %v11017
        %11019 = vmatmul.bf16.gmra.mxu0 %v10750
        %v11020 = vpop.f32.mrf.mxu0
        %v11021 = vadd.f32 0.0, %v11020
        %v11022 = vpop.f32.mrf.mxu0
        %v11023 = vadd.f32 0.0, %v11022
        %11024 = vdwg.mxu0
        %11025 = vmatpush.bf16.msra.mxu0 %v10890
        %11026 = vmatpush.bf16.msra.mxu0 %v10888
        %11027 = vmatpush.bf16.msra.mxu0 %v10886
        %11028 = vmatpush.bf16.msra.mxu0 %v10884
        %11029 = vmatpush.bf16.msra.mxu0 %v10882
        %11030 = vmatpush.bf16.msra.mxu0 %v10880
        %11031 = vmatpush.bf16.msra.mxu0 %v10878
        %11032 = vmatpush.bf16.msra.mxu0 %v10876
        %11033 = vmatmul.bf16.gmra.mxu0 %v10736
        %v11034 = vpop.f32.mrf.mxu0
        %v11035 = vadd.f32 %v11001, %v11034
        %v11036 = vpop.f32.mrf.mxu0
        %v11037 = vadd.f32 %v11003, %v11036
        %11038 = vmatmul.bf16.gmra.mxu0 %v10740
        %v11039 = vpop.f32.mrf.mxu0
        %v11040 = vadd.f32 %v11006, %v11039
        %v11041 = vpop.f32.mrf.mxu0
        %v11042 = vadd.f32 %v11008, %v11041
        %11043 = vmatmul.bf16.gmra.mxu0 %v10744
        %v11044 = vpop.f32.mrf.mxu0
        %v11045 = vadd.f32 %v11011, %v11044
        %v11046 = vpop.f32.mrf.mxu0
        %v11047 = vadd.f32 %v11013, %v11046
        %11048 = vmatmul.bf16.gmra.mxu0 %v10748
        %v11049 = vpop.f32.mrf.mxu0
        %v11050 = vadd.f32 %v11016, %v11049
        %v11051 = vpop.f32.mrf.mxu0
        %v11052 = vadd.f32 %v11018, %v11051
        %11053 = vmatmul.bf16.gmra.mxu0 %v10752
        %v11054 = vpop.f32.mrf.mxu0
        %v11055 = vadd.f32 %v11021, %v11054
        %v11056 = vpop.f32.mrf.mxu0
        %v11057 = vadd.f32 %v11023, %v11056
        %11058 = vdwg.mxu0
        %v11059 = vadd.f32 %v10632, %v10967
        %v11060 = vadd.f32 %v10633, %v11035
        %v11061 = vadd.f32 %v10634, %v10969
        %v11062 = vadd.f32 %v10635, %v11037
        %v11063 = vadd.f32 %v10636, %v10972
        %v11064 = vadd.f32 %v10637, %v11040
        %v11065 = vadd.f32 %v10638, %v10974
        %v11066 = vadd.f32 %v10639, %v11042
        %v11067 = vadd.f32 %v10640, %v10977
        %v11068 = vadd.f32 %v10641, %v11045
        %v11069 = vadd.f32 %v10642, %v10979
        %v11070 = vadd.f32 %v10643, %v11047
        %v11071 = vadd.f32 %v10644, %v10982
        %v11072 = vadd.f32 %v10645, %v11050
        %v11073 = vadd.f32 %v10646, %v10984
        %v11074 = vadd.f32 %v10647, %v11052
        %v11075 = vadd.f32 %v10648, %v10987
        %v11076 = vadd.f32 %v10649, %v11055
        %v11077 = vadd.f32 %v10650, %v10989
        %v11078 = vadd.f32 %v10651, %v11057
        %11079 = vst [vmem:[#allocation3] sm:$0xff] %v11059
        %11080 = vst [vmem:[#allocation3 + $0x8] sm:$0xff] %v11060
        %11081 = vst [vmem:[#allocation3 + $0x10] sm:$0xff] %v11061
        %11082 = vst [vmem:[#allocation3 + $0x18] sm:$0xff] %v11062
        %11083 = vst [vmem:[#allocation3 + $0x20] sm:$0xff] %v11063
        %11084 = vst [vmem:[#allocation3 + $0x28] sm:$0xff] %v11064
        %11085 = vst [vmem:[#allocation3 + $0x30] sm:$0xff] %v11065
        %11086 = vst [vmem:[#allocation3 + $0x38] sm:$0xff] %v11066
        %11087 = vst [vmem:[#allocation3 + $0x40] sm:$0xff] %v11067
        %11088 = vst [vmem:[#allocation3 + $0x48] sm:$0xff] %v11068
        %11089 = vst [vmem:[#allocation3 + $0x50] sm:$0xff] %v11069
        %11090 = vst [vmem:[#allocation3 + $0x58] sm:$0xff] %v11070
        %11091 = vst [vmem:[#allocation3 + $0x60] sm:$0xff] %v11071
        %11092 = vst [vmem:[#allocation3 + $0x68] sm:$0xff] %v11072
        %11093 = vst [vmem:[#allocation3 + $0x70] sm:$0xff] %v11073
        %11094 = vst [vmem:[#allocation3 + $0x78] sm:$0xff] %v11074
        %11095 = vst [vmem:[#allocation3 + $0x80] sm:$0xff] %v11075
        %11096 = vst [vmem:[#allocation3 + $0x88] sm:$0xff] %v11076
        %11097 = vst [vmem:[#allocation3 + $0x90] sm:$0xff] %v11077
        %11098 = vst [vmem:[#allocation3 + $0x98] sm:$0xff] %v11078
        %v11099 = vld [vmem:[#allocation3] sm:$0xff]
        %v11100 = vld [vmem:[#allocation3 + $0x8] sm:$0xff]
        %v11101 = vld [vmem:[#allocation3 + $0x10] sm:$0xff]
        %v11102 = vld [vmem:[#allocation3 + $0x18] sm:$0xff]
        %v11103 = vld [vmem:[#allocation3 + $0x20] sm:$0xff]
        %v11104 = vld [vmem:[#allocation3 + $0x28] sm:$0xff]
        %v11105 = vld [vmem:[#allocation3 + $0x30] sm:$0xff]
        %v11106 = vld [vmem:[#allocation3 + $0x38] sm:$0xff]
        %v11107 = vadd.f32 %v11099, 1.0
        %v11108 = vadd.f32 %v11100, 1.0
        %v11109 = vadd.f32 %v11101, 1.0
        %v11110 = vadd.f32 %v11102, 1.0
        %v11111 = vadd.f32 %v11103, 1.0
        %v11112 = vadd.f32 %v11104, 1.0
        %v11113 = vadd.f32 %v11105, 1.0
        %v11114 = vadd.f32 %v11106, 1.0
        %v11115 = vmax.f32 %v11107, 0.0
        %v11116 = vmax.f32 %v11108, 0.0
        %v11117 = vmax.f32 %v11109, 0.0
        %v11118 = vmax.f32 %v11110, 0.0
        %v11119 = vmax.f32 %v11111, 0.0
        %v11120 = vmax.f32 %v11112, 0.0
        %v11121 = vmax.f32 %v11113, 0.0
        %v11122 = vmax.f32 %v11114, 0.0
        %11123 = vst [vmem:[%s452] sm:$0xff] %v11115
        %11124 = vst [vmem:[%s452 + $0x8] sm:$0xff] %v11116
        %11125 = vst [vmem:[%s452 + $0x10] sm:$0xff] %v11117
        %11126 = vst [vmem:[%s452 + $0x18] sm:$0xff] %v11118
        %11127 = vst [vmem:[%s452 + $0x20] sm:$0xff] %v11119
        %11128 = vst [vmem:[%s452 + $0x28] sm:$0xff] %v11120
        %11129 = vst [vmem:[%s452 + $0x30] sm:$0xff] %v11121
        %11130 = vst [vmem:[%s452 + $0x38] sm:$0xff] %v11122
        %v11131 = vld [vmem:[#allocation3 + $0x50] sm:$0xff]
        %v11132 = vld [vmem:[#allocation3 + $0x58] sm:$0xff]
        %v11133 = vld [vmem:[#allocation3 + $0x60] sm:$0xff]
        %v11134 = vld [vmem:[#allocation3 + $0x68] sm:$0xff]
        %v11135 = vld [vmem:[#allocation3 + $0x70] sm:$0xff]
        %v11136 = vld [vmem:[#allocation3 + $0x78] sm:$0xff]
        %v11137 = vld [vmem:[#allocation3 + $0x80] sm:$0xff]
        %v11138 = vld [vmem:[#allocation3 + $0x88] sm:$0xff]
        %v11139 = vadd.f32 %v11131, 1.0
        %v11140 = vadd.f32 %v11132, 1.0
        %v11141 = vadd.f32 %v11133, 1.0
        %v11142 = vadd.f32 %v11134, 1.0
        %v11143 = vadd.f32 %v11135, 1.0
        %v11144 = vadd.f32 %v11136, 1.0
        %v11145 = vadd.f32 %v11137, 1.0
        %v11146 = vadd.f32 %v11138, 1.0
        %v11147 = vmax.f32 %v11139, 0.0
        %v11148 = vmax.f32 %v11140, 0.0
        %v11149 = vmax.f32 %v11141, 0.0
        %v11150 = vmax.f32 %v11142, 0.0
        %v11151 = vmax.f32 %v11143, 0.0
        %v11152 = vmax.f32 %v11144, 0.0
        %v11153 = vmax.f32 %v11145, 0.0
        %v11154 = vmax.f32 %v11146, 0.0
        %s11155 = scalar_lea.vmem %s452, 64
        %11156 = vst [vmem:[%s11155] sm:$0xff] %v11147
        %11157 = vst [vmem:[%s11155 + $0x8] sm:$0xff] %v11148
        %11158 = vst [vmem:[%s11155 + $0x10] sm:$0xff] %v11149
        %11159 = vst [vmem:[%s11155 + $0x18] sm:$0xff] %v11150
        %11160 = vst [vmem:[%s11155 + $0x20] sm:$0xff] %v11151
        %11161 = vst [vmem:[%s11155 + $0x28] sm:$0xff] %v11152
        %11162 = vst [vmem:[%s11155 + $0x30] sm:$0xff] %v11153
        %11163 = vst [vmem:[%s11155 + $0x38] sm:$0xff] %v11154
        %s11164 = smul.u32 2, %s23
        %p11165 = scmp.lt.s32.totalorder %s11164, 3
        %s11166 = scalar_select %p11165, %s11164, 3
        %s11167 = smul.addr %s11166, 8
        %s11168 = smul.addr %s11167, 8
        %s11169 = scalar_lea.vmem %s9, %s11168
        // Predicated region
        $region73: #{model_forward.1} parent=55 // pred_check
          %p11170 = pneg %p245
        $region74: #{model_forward.1} parent=55 // pred_check_branch
          %11172 = sbr.rel (%p11170) target = $region76
        $region75: #{model_forward.1} parent=55 // pred_region
          %s11173 = smul.u32 2, %s23
        $region76: #{model_forward.1} parent=55 // pred_fallthru
          _
      $region56: #{model_forward.1} parent=5 // pred_fallthru
        _
      %p11174 = scmp.le.s32.totalorder 2, %s18
      // Predicated region
      $region77: #{model_forward.1} parent=5 // pred_check
        %p11175 = pneg %p11174
      $region78: #{model_forward.1} parent=5 // pred_check_branch
        %11177 = sbr.rel (%p11175) target = $region80
      $region79: #{model_forward.1} parent=5 // pred_region
        %s11178 = ssub.s32 %s18, 2
        // Predicated region
        $region81: #{model_forward.1} parent=79 // pred_check
          %p11179 = pneg %p251
        $region82: #{model_forward.1} parent=79 // pred_check_branch
          %11181 = sbr.rel (%p11179) target = $region84
        $region83: #{model_forward.1} parent=79 // pred_region
          %s11182 = smul.u32 2, %s24
          %p11183 = scmp.lt.s32.totalorder %s11182, 3
          %s11184 = scalar_select %p11183, %s11182, 3
          %s11185 = smul.addr %s11184, 8
          %s11186 = smul.addr %s11185, 8
          %s11187 = scalar_lea.vmem %s9, %s11186
        $region84: #{model_forward.1} parent=79 // pred_fallthru
          _
      $region80: #{model_forward.1} parent=5 // pred_fallthru
        _
    $region6: #{model_forward.1} parent=1 // loop_footer
      %s22 = sadd.s32 1, %s18
    $region7: #{model_forward.1} parent=1 // loop_footer_branch
      %17 = sbr.rel target = $region3
    $region8: #{model_forward.1} parent=1 // loop_exit
      _
    %11188 = vsyncpa [#allocation6], 1
    %s11189 = scalar_lea.sflag [#allocation6], 1
    %11190 = vsyncpa %s11189, 1
    %11191 = vsyncpa [#allocation8], 1
    %11192 = vsyncpa [#allocation11], 1

</llo_original>
